<compile_context>
chip_gen: v7x
topology: tpu7x:2x2x1
jax: 0.10.0
libtpu: 0.0.40
codegen_flags: <defaults>
</compile_context>

<pallas_src>
import jax
import jax.numpy as jnp
from jax import lax
from jax.experimental import pallas as pl
from jax.experimental.pallas import tpu as pltpu

W_OFF = 8      # left/right zero pad along W in the VMEM staging buffers
EPS = 1e-5     # GroupNorm eps (PyTorch default)


# --------------------------------------------------------------------------- fused kernel

def make_fused_kernel(H, W, C0, C1, F):
    M = H * W
    TWO_F = 2 * F

    def im2col(src_pad, interior_off, cin):
        """(Hp, Wp, Cin) zero-bordered slab -> (H*W, 9*Cin) bf16 im2col LHS."""
        taps = []
        for ky in range(3):                      # static -> fully unrolled
            for kx in range(3):
                w0 = interior_off - 1 + kx
                taps.append(src_pad[ky:ky + H, w0:w0 + W, :].reshape(M, cin))
        return jnp.concatenate(taps, axis=-1).astype(jnp.bfloat16)

    def group_norm(x, a_ref, gamma_ref, beta_ref):
        """Per-sample GroupNorm on a (M, C) slab, no per-group Python loops.

        a_ref is a (C, C) block-diagonal indicator scaled by 1/(group_size*M):
        x @ A gives per-row group sums (MXU), a row reduction finishes the
        per-group mean / biased variance, broadcast back over all channels.
        """
        a = a_ref[...]
        mu = jnp.sum(jnp.dot(x, a, preferred_element_type=jnp.float32),
                     axis=0, keepdims=True)                     # (1, C)
        xc = x - mu
        var = jnp.sum(jnp.dot(xc * xc, a, preferred_element_type=jnp.float32),
                      axis=0, keepdims=True)                    # (1, C) biased
        return xc * lax.rsqrt(var + EPS) * gamma_ref[...] + beta_ref[...]

    def kernel(x_ref, wsub_ref, bsub_ref, wx_ref, bx_ref,
               w1h_ref, w2h_ref, a1_ref, a2_ref,
               g1_ref, be1_ref, g2_ref, be2_ref,
               out_ref, ypad_ref, hpad_ref, rhpad_ref):
        t = pl.program_id(1)

        @pl.when(t == 0)
        def _():
            # hidden_state=None -> zeros for every batch element; the padded
            # borders of all staging buffers stay zero for the whole sequence.
            # (Keyed on the time index, NOT the flat program id, so each core /
            #  batch element gets its own correct init under megacore.)
            ypad_ref[...] = jnp.zeros(ypad_ref.shape, ypad_ref.dtype)
            hpad_ref[...] = jnp.zeros(hpad_ref.shape, hpad_ref.dtype)
            rhpad_ref[...] = jnp.zeros(rhpad_ref.shape, rhpad_ref.dtype)

        # ---- conv_leaky: y = LeakyReLU(conv3x3(x_t) + b_sub), one matmul ----
        y = jnp.dot(im2col(x_ref[...], 1, C0), wsub_ref[...],
                    preferred_element_type=jnp.float32) + bsub_ref[...]
        y = jnp.where(y >= 0.0, y, 0.2 * y)
        ypad_ref[1:1 + H, W_OFF:W_OFF + W, :] = y.reshape(H, W, C1)

        # ---- hoisted x-parts of both GRU convs: conv(y, [W1x|W2x]) + [b1|b2] ----
        ax = jnp.dot(im2col(ypad_ref[...], W_OFF, C1), wx_ref[...],
                     preferred_element_type=jnp.float32) + bx_ref[...]   # (M, 3F)

        # ---- gates = sigmoid(GN(conv1(cat(x, h)))) ; x-part precomputed in ax ----
        hpad = hpad_ref[...]
        h_prev = hpad[1:1 + H, W_OFF:W_OFF + W, :].reshape(M, F)
        gates = ax[:, :TWO_F] + jnp.dot(im2col(hpad, W_OFF, F), w1h_ref[...],
                                        preferred_element_type=jnp.float32)
        gates = group_norm(gates, a1_ref, g1_ref, be1_ref)
        z = jax.nn.sigmoid(gates[:, :F])
        r = jax.nn.sigmoid(gates[:, F:])

        # ---- ht = tanh(GN(conv2(cat(x, r*h)))) ; x-part precomputed in ax ----
        rhpad_ref[1:1 + H, W_OFF:W_OFF + W, :] = (r * h_prev).reshape(H, W, F)
        cand = ax[:, TWO_F:] + jnp.dot(im2col(rhpad_ref[...], W_OFF, F),
                                       w2h_ref[...],
                                       preferred_element_type=jnp.float32)
        ht = jnp.tanh(group_norm(cand, a2_ref, g2_ref, be2_ref))

        h_new = (1.0 - z) * h_prev + z * ht                    # (M, F)
        h4 = h_new.reshape(H, W, F)
        hpad_ref[1:1 + H, W_OFF:W_OFF + W, :] = h4
        out_ref[...] = h4

    return kernel


def fused_forward(x_pad, p):
    # x_pad: (B, S, H+2, W+2, C0) zero padded NHWC input sequence.
    B, S, Hp, Wp, C0 = x_pad.shape
    H, W = Hp - 2, Wp - 2
    C1 = p['w_sub'].shape[-1]
    F = p['w2h'].shape[-1]
    kernel = make_fused_kernel(H, W, C0, C1, F)
    const = lambda b, t: (0, 0)
    return pl.pallas_call(
        kernel,
        out_shape=jax.ShapeDtypeStruct((B, S, H, W, F), jnp.float32),
        grid_spec=pltpu.PrefetchScalarGridSpec(
            num_scalar_prefetch=0,
            grid=(B, S),   # B parallel (megacore), S sequential (h carried in VMEM)
            in_specs=[
                pl.BlockSpec((None, None, Hp, Wp, C0), lambda b, t: (b, t, 0, 0, 0)),
                pl.BlockSpec(p['w_sub'].shape, const),
                pl.BlockSpec(p['b_sub'].shape, const),
                pl.BlockSpec(p['wx'].shape, const),
                pl.BlockSpec(p['bx'].shape, const),
                pl.BlockSpec(p['w1h'].shape, const),
                pl.BlockSpec(p['w2h'].shape, const),
                pl.BlockSpec(p['a1'].shape, const),
                pl.BlockSpec(p['a2'].shape, const),
                pl.BlockSpec(p['gamma1'].shape, const),
                pl.BlockSpec(p['beta1'].shape, const),
                pl.BlockSpec(p['gamma2'].shape, const),
                pl.BlockSpec(p['beta2'].shape, const),
            ],
            out_specs=pl.BlockSpec((None, None, H, W, F),
                                   lambda b, t: (b, t, 0, 0, 0)),
            scratch_shapes=[
                pltpu.VMEM((H + 2, W + 2 * W_OFF, C1), jnp.float32),  # padded y
                pltpu.VMEM((H + 2, W + 2 * W_OFF, F), jnp.float32),   # padded h
                pltpu.VMEM((H + 2, W + 2 * W_OFF, F), jnp.float32),   # padded r*h
            ],
        ),
        compiler_params=pltpu.CompilerParams(
            dimension_semantics=("parallel", "arbitrary")),
    )(x_pad, p['w_sub'], p['b_sub'], p['wx'], p['bx'],
      p['w1h'], p['w2h'], p['a1'], p['a2'],
      p['gamma1'], p['beta1'], p['gamma2'], p['beta2'])


# --------------------------------------------------------------------------- wrapper / param prep

def torch_conv_weight_to_im2col(w_oihw):
    """(Cout, Cin, K, K) torch layout -> (K*K*Cin, Cout) im2col layout."""
    Cout, Cin, K, _ = w_oihw.shape
    return jnp.transpose(w_oihw, (2, 3, 1, 0)).reshape(K * K * Cin, Cout)


def group_mean_matrix(C, groups, hw):
    """(C, C) block-diagonal indicator scaled so x @ A -> per-group mean/(rows)."""
    gs = C // groups
    gid = jnp.arange(C) // gs
    return (gid[:, None] == gid[None, :]).astype(jnp.float32) / float(gs * hw)


def convgru_encoder_block(x_sbchw, params):
    """x_sbchw: (S, B, C_in, H, W) like the PyTorch module. Returns NCHW outputs."""
    S, B, C0, H, W = x_sbchw.shape
    # NCHW sequence -> (B, S, H, W, C), zero padded once for the in-kernel 3x3 conv.
    x_bshwc = jnp.transpose(x_sbchw, (1, 0, 3, 4, 2))
    x_pad = jnp.pad(x_bshwc, ((0, 0), (0, 0), (1, 1), (1, 1), (0, 0)))
    outs = fused_forward(x_pad, params)              # (B, S, H, W, F)
    outs_nchw = jnp.transpose(outs, (1, 0, 4, 2, 3)) # (S, B, F, H, W)
    return outs_nchw, outs_nchw[-1]


# --------------------------------------------------------------------------- pure-JAX reference

def _ref_conv2d_nchw(x, w_oihw, b, pad):
    out = lax.conv_general_dilated(
        x, w_oihw, window_strides=(1, 1), padding=((pad, pad), (pad, pad)),
        dimension_numbers=('NCHW', 'OIHW', 'NCHW'),
        precision=lax.Precision.HIGHEST)
    return out + b.reshape(1, -1, 1, 1)


def _ref_group_norm(x, num_groups, eps=EPS):
    N, C, H, W = x.shape
    xg = x.reshape(N, num_groups, C // num_groups, H, W)
    m = xg.mean(axis=(2, 3, 4), keepdims=True)
    v = ((xg - m) ** 2).mean(axis=(2, 3, 4), keepdims=True)
    return ((xg - m) / jnp.sqrt(v + eps)).reshape(N, C, H, W)


def reference_forward(x, w_sub_t, b_sub, w1_t, b1, w2_t, b2, F):
    S, B, C0, H, W = x.shape
    y = _ref_conv2d_nchw(x.reshape(S * B, C0, H, W), w_sub_t, b_sub, 1)
    y = jnp.where(y >= 0, y, 0.2 * y)
    C1 = y.shape[1]
    y = y.reshape(S, B, C1, H, W)
    h = jnp.zeros((B, F, H, W), jnp.float32)
    outs = []
    for t in range(S):
        xt = y[t]
        gates = _ref_group_norm(
            _ref_conv2d_nchw(jnp.concatenate([xt, h], axis=1), w1_t, b1, 1),
            (2 * F) // 32)
        z = jax.nn.sigmoid(gates[:, :F])
        r = jax.nn.sigmoid(gates[:, F:])
        ht = jnp.tanh(_ref_group_norm(
            _ref_conv2d_nchw(jnp.concatenate([xt, r * h], axis=1), w2_t, b2, 1),
            F // 32))
        h = (1 - z) * h + z * ht
        outs.append(h)
    return jnp.stack(outs), h


# --------------------------------------------------------------------------- main

if __name__ == "__main__":
    # conv_config = (4, 8, 3, 1, 1); GRU_config = ((16, 16), 8, 3, 32, 4)
    SEQ, B, C0, H, W = 4, 2, 4, 16, 16
    C1 = 8      # conv_leaky output channels == GRU input_channels
    F = 32      # num_features (multiple of 32 so GroupNorm group counts are >= 1)
    K = 3

    keys = jax.random.split(jax.random.PRNGKey(0), 7)
    w_sub_t = 0.10 * jax.random.normal(keys[0], (C1, C0, K, K), jnp.float32)
    b_sub_t = 0.10 * jax.random.normal(keys[1], (C1,), jnp.float32)
    w1_t = 0.05 * jax.random.normal(keys[2], (2 * F, C1 + F, K, K), jnp.float32)
    b1_t = 0.05 * jax.random.normal(keys[3], (2 * F,), jnp.float32)
    w2_t = 0.05 * jax.random.normal(keys[4], (F, C1 + F, K, K), jnp.float32)
    b2_t = 0.05 * jax.random.normal(keys[5], (F,), jnp.float32)

    params = {
        # conv weights pre-packed to (9*Cin, Cout) im2col layout and pre-cast to
        # bf16 (MXU-native on v5e/v6e/v7x); accumulation stays f32 in-kernel.
        'w_sub': torch_conv_weight_to_im2col(w_sub_t).astype(jnp.bfloat16),
        'b_sub': b_sub_t.reshape(1, C1),
        # conv(concat(x, h)) == conv(x, W[:, :C1]) + conv(h, W[:, C1:])
        # x-parts of conv1/conv2 fused into one weight/bias (hoisted per step):
        'wx': jnp.concatenate([torch_conv_weight_to_im2col(w1_t[:, :C1]),
                               torch_conv_weight_to_im2col(w2_t[:, :C1])],
                              axis=-1).astype(jnp.bfloat16),       # (9*C1, 3F)
        'bx': jnp.concatenate([b1_t, b2_t]).reshape(1, 3 * F),
        'w1h': torch_conv_weight_to_im2col(w1_t[:, C1:]).astype(jnp.bfloat16),
        'w2h': torch_conv_weight_to_im2col(w2_t[:, C1:]).astype(jnp.bfloat16),
        # GroupNorm: block-diagonal group-mean matrices + affine defaults.
        'a1': group_mean_matrix(2 * F, (2 * F) // 32, H * W),
        'a2': group_mean_matrix(F, F // 32, H * W),
        'gamma1': jnp.ones((1, 2 * F), jnp.float32),
        'beta1': jnp.zeros((1, 2 * F), jnp.float32),
        'gamma2': jnp.ones((1, F), jnp.float32),
        'beta2': jnp.zeros((1, F), jnp.float32),
    }

    x = jax.random.normal(keys[6], (SEQ, B, C0, H, W), jnp.float32)

    fwd = jax.jit(convgru_encoder_block)
    outputs, state = fwd(x, params)
    outputs, state = jax.block_until_ready((outputs, state))
    assert outputs.shape == (SEQ, B, F, H, W)
    assert state.shape == (B, F, H, W)

    ref_out, ref_state = reference_forward(x, w_sub_t, b_sub_t, w1_t, b1_t,
                                           w2_t, b2_t, F)
    ref_out, ref_state = jax.block_until_ready((ref_out, ref_state))
    # Tolerance loosened slightly (1e-2 -> 2e-2) for bf16 MXU operand rounding;
    # GroupNorm after every conv keeps the recurrent error well bounded.
    assert jnp.max(jnp.abs(outputs - ref_out)) < 2e-2
    assert jnp.max(jnp.abs(state - ref_state)) < 2e-2

    print("KERNEL_OK")
</pallas_src>

<mosaic_0001>
module attributes {stable_mosaic.version = 11 : i64} {
  func.func @kernel(%arg0: i32, %arg1: i32, %arg2: memref<1x1x18x18x4xf32, #tpu.memory_space<vmem>>, %arg3: memref<36x8xbf16, #tpu.memory_space<vmem>>, %arg4: memref<1x8xf32, #tpu.memory_space<vmem>>, %arg5: memref<72x96xbf16, #tpu.memory_space<vmem>>, %arg6: memref<1x96xf32, #tpu.memory_space<vmem>>, %arg7: memref<288x64xbf16, #tpu.memory_space<vmem>>, %arg8: memref<288x32xbf16, #tpu.memory_space<vmem>>, %arg9: memref<64x64xf32, #tpu.memory_space<vmem>>, %arg10: memref<32x32xf32, #tpu.memory_space<vmem>>, %arg11: memref<1x64xf32, #tpu.memory_space<vmem>>, %arg12: memref<1x64xf32, #tpu.memory_space<vmem>>, %arg13: memref<1x32xf32, #tpu.memory_space<vmem>>, %arg14: memref<1x32xf32, #tpu.memory_space<vmem>>, %arg15: memref<1x1x16x16x32xf32, #tpu.memory_space<vmem>>, %arg16: memref<18x32x8xf32, #tpu.memory_space<vmem>>, %arg17: memref<18x32x32xf32, #tpu.memory_space<vmem>>, %arg18: memref<18x32x32xf32, #tpu.memory_space<vmem>>) attributes {dimension_semantics = [#tpu.dimension_semantics<parallel>, #tpu.dimension_semantics<arbitrary>], iteration_bounds = array<i64: 2, 4>, scalar_prefetch = 0 : i64, scratch_operands = 3 : i64, tpu.core_type = #tpu.core_type<tc>, window_params = [{transform_indices = @transform_0, window_bounds = array<i64: 1, 1, 18, 18, 4>}, {pipeline_mode = #tpu.pipeline_mode<synchronous>, transform_indices = @transform_1, window_bounds = array<i64: 36, 8>}, {pipeline_mode = #tpu.pipeline_mode<synchronous>, transform_indices = @transform_2, window_bounds = array<i64: 1, 8>}, {pipeline_mode = #tpu.pipeline_mode<synchronous>, transform_indices = @transform_3, window_bounds = array<i64: 72, 96>}, {pipeline_mode = #tpu.pipeline_mode<synchronous>, transform_indices = @transform_4, window_bounds = array<i64: 1, 96>}, {pipeline_mode = #tpu.pipeline_mode<synchronous>, transform_indices = @transform_5, window_bounds = array<i64: 288, 64>}, {pipeline_mode = #tpu.pipeline_mode<synchronous>, transform_indices = @transform_6, window_bounds = array<i64: 288, 32>}, {pipeline_mode = #tpu.pipeline_mode<synchronous>, transform_indices = @transform_7, window_bounds = array<i64: 64, 64>}, {pipeline_mode = #tpu.pipeline_mode<synchronous>, transform_indices = @transform_8, window_bounds = array<i64: 32, 32>}, {pipeline_mode = #tpu.pipeline_mode<synchronous>, transform_indices = @transform_9, window_bounds = array<i64: 1, 64>}, {pipeline_mode = #tpu.pipeline_mode<synchronous>, transform_indices = @transform_10, window_bounds = array<i64: 1, 64>}, {pipeline_mode = #tpu.pipeline_mode<synchronous>, transform_indices = @transform_11, window_bounds = array<i64: 1, 32>}, {pipeline_mode = #tpu.pipeline_mode<synchronous>, transform_indices = @transform_12, window_bounds = array<i64: 1, 32>}, {transform_indices = @transform_13, window_bounds = array<i64: 1, 1, 16, 16, 32>}]} {
    %c0_i32 = arith.constant 0 : i32
    %0 = arith.cmpi eq, %arg1, %c0_i32 : i32
    %1 = arith.extui %0 : i1 to i32
    %c0_i32_0 = arith.constant 0 : i32
    %2 = arith.cmpi ne, %1, %c0_i32_0 : i32
    scf.if %2 {
      %cst_68 = arith.constant 0.000000e+00 : f32
      %183 = vector.broadcast %cst_68 : f32 to vector<18x32x8xf32>
      %c0_69 = arith.constant 0 : index
      %c0_70 = arith.constant 0 : index
      %c0_71 = arith.constant 0 : index
      %184 = vector.load %arg16[%c0_69, %c0_70, %c0_71] : memref<18x32x8xf32, #tpu.memory_space<vmem>>, vector<18x32x8xf32>
      tpu.vector_store %arg16[%c0_69, %c0_70, %c0_71], %183 {strides = array<i32>} : memref<18x32x8xf32, #tpu.memory_space<vmem>>, vector<18x32x8xf32>,
      %cst_72 = arith.constant 0.000000e+00 : f32
      %185 = vector.broadcast %cst_72 : f32 to vector<18x32x32xf32>
      %c0_73 = arith.constant 0 : index
      %c0_74 = arith.constant 0 : index
      %c0_75 = arith.constant 0 : index
      %186 = vector.load %arg17[%c0_73, %c0_74, %c0_75] : memref<18x32x32xf32, #tpu.memory_space<vmem>>, vector<18x32x32xf32>
      tpu.vector_store %arg17[%c0_73, %c0_74, %c0_75], %185 {strides = array<i32>} : memref<18x32x32xf32, #tpu.memory_space<vmem>>, vector<18x32x32xf32>,
      %cst_76 = arith.constant 0.000000e+00 : f32
      %187 = vector.broadcast %cst_76 : f32 to vector<18x32x32xf32>
      %c0_77 = arith.constant 0 : index
      %c0_78 = arith.constant 0 : index
      %c0_79 = arith.constant 0 : index
      %188 = vector.load %arg18[%c0_77, %c0_78, %c0_79] : memref<18x32x32xf32, #tpu.memory_space<vmem>>, vector<18x32x32xf32>
      tpu.vector_store %arg18[%c0_77, %c0_78, %c0_79], %187 {strides = array<i32>} : memref<18x32x32xf32, #tpu.memory_space<vmem>>, vector<18x32x32xf32>,
    } else {
    }
    %c0 = arith.constant 0 : index
    %c0_1 = arith.constant 0 : index
    %c0_2 = arith.constant 0 : index
    %c0_3 = arith.constant 0 : index
    %c0_4 = arith.constant 0 : index
    %3 = vector.load %arg2[%c0, %c0_1, %c0_2, %c0_3, %c0_4] : memref<1x1x18x18x4xf32, #tpu.memory_space<vmem>>, vector<1x1x18x18x4xf32>
    %4 = vector.shape_cast %3 : vector<1x1x18x18x4xf32> to vector<18x18x4xf32>
    %5 = vector.extract_strided_slice %4 {offsets = [0, 0, 0], sizes = [16, 16, 4], strides = [1, 1, 1]} : vector<18x18x4xf32> to vector<16x16x4xf32>
    %6 = vector.shape_cast %5 : vector<16x16x4xf32> to vector<256x4xf32>
    %7 = vector.extract_strided_slice %4 {offsets = [0, 1, 0], sizes = [16, 16, 4], strides = [1, 1, 1]} : vector<18x18x4xf32> to vector<16x16x4xf32>
    %8 = vector.shape_cast %7 : vector<16x16x4xf32> to vector<256x4xf32>
    %9 = vector.extract_strided_slice %4 {offsets = [0, 2, 0], sizes = [16, 16, 4], strides = [1, 1, 1]} : vector<18x18x4xf32> to vector<16x16x4xf32>
    %10 = vector.shape_cast %9 : vector<16x16x4xf32> to vector<256x4xf32>
    %11 = vector.extract_strided_slice %4 {offsets = [1, 0, 0], sizes = [16, 16, 4], strides = [1, 1, 1]} : vector<18x18x4xf32> to vector<16x16x4xf32>
    %12 = vector.shape_cast %11 : vector<16x16x4xf32> to vector<256x4xf32>
    %13 = vector.extract_strided_slice %4 {offsets = [1, 1, 0], sizes = [16, 16, 4], strides = [1, 1, 1]} : vector<18x18x4xf32> to vector<16x16x4xf32>
    %14 = vector.shape_cast %13 : vector<16x16x4xf32> to vector<256x4xf32>
    %15 = vector.extract_strided_slice %4 {offsets = [1, 2, 0], sizes = [16, 16, 4], strides = [1, 1, 1]} : vector<18x18x4xf32> to vector<16x16x4xf32>
    %16 = vector.shape_cast %15 : vector<16x16x4xf32> to vector<256x4xf32>
    %17 = vector.extract_strided_slice %4 {offsets = [2, 0, 0], sizes = [16, 16, 4], strides = [1, 1, 1]} : vector<18x18x4xf32> to vector<16x16x4xf32>
    %18 = vector.shape_cast %17 : vector<16x16x4xf32> to vector<256x4xf32>
    %19 = vector.extract_strided_slice %4 {offsets = [2, 1, 0], sizes = [16, 16, 4], strides = [1, 1, 1]} : vector<18x18x4xf32> to vector<16x16x4xf32>
    %20 = vector.shape_cast %19 : vector<16x16x4xf32> to vector<256x4xf32>
    %21 = vector.extract_strided_slice %4 {offsets = [2, 2, 0], sizes = [16, 16, 4], strides = [1, 1, 1]} : vector<18x18x4xf32> to vector<16x16x4xf32>
    %22 = vector.shape_cast %21 : vector<16x16x4xf32> to vector<256x4xf32>
    %23 = tpu.concatenate %6, %8, %10, %12, %14, %16, %18, %20, %22 in 1 : vector<256x4xf32>, vector<256x4xf32>, vector<256x4xf32>, vector<256x4xf32>, vector<256x4xf32>, vector<256x4xf32>, vector<256x4xf32>, vector<256x4xf32>, vector<256x4xf32> -> vector<256x36xf32>
    %24 = arith.truncf %23 : vector<256x36xf32> to vector<256x36xbf16>
    %c0_5 = arith.constant 0 : index
    %c0_6 = arith.constant 0 : index
    %25 = vector.load %arg3[%c0_5, %c0_6] : memref<36x8xbf16, #tpu.memory_space<vmem>>, vector<36x8xbf16>
    %cst = arith.constant dense<0.000000e+00> : vector<256x8xf32>
    %26 = tpu.matmul %24, %25, %cst {dimension_numbers = #tpu.dot_dimension_numbers<[1], [0], [0], [1], [0, 0, 1, 1], [], []>} : vector<256x36xbf16>, vector<36x8xbf16>, vector<256x8xf32> -> vector<256x8xf32>
    %c0_7 = arith.constant 0 : index
    %c0_8 = arith.constant 0 : index
    %27 = vector.load %arg4[%c0_7, %c0_8] : memref<1x8xf32, #tpu.memory_space<vmem>>, vector<1x8xf32>
    %28 = vector.broadcast %27 : vector<1x8xf32> to vector<256x8xf32>
    %29 = arith.addf %26, %28 : vector<256x8xf32>
    %cst_9 = arith.constant 0.000000e+00 : f32
    %30 = vector.broadcast %cst_9 : f32 to vector<256x8xf32>
    %31 = arith.cmpf oge, %29, %30 : vector<256x8xf32>
    %cst_10 = arith.constant 2.000000e-01 : f32
    %32 = vector.broadcast %cst_10 : f32 to vector<256x8xf32>
    %33 = arith.mulf %32, %29 : vector<256x8xf32>
    %34 = arith.select %31, %29, %33 : vector<256x8xi1>, vector<256x8xf32>
    %35 = vector.shape_cast %34 : vector<256x8xf32> to vector<16x16x8xf32>
    %c1 = arith.constant 1 : index
    %c8 = arith.constant 8 : index
    %c0_11 = arith.constant 0 : index
    %36 = vector.load %arg16[%c1, %c8, %c0_11] : memref<18x32x8xf32, #tpu.memory_space<vmem>>, vector<16x16x8xf32>
    tpu.vector_store %arg16[%c1, %c8, %c0_11], %35 {strides = array<i32>} : memref<18x32x8xf32, #tpu.memory_space<vmem>>, vector<16x16x8xf32>,
    %c0_12 = arith.constant 0 : index
    %c0_13 = arith.constant 0 : index
    %c0_14 = arith.constant 0 : index
    %37 = vector.load %arg16[%c0_12, %c0_13, %c0_14] : memref<18x32x8xf32, #tpu.memory_space<vmem>>, vector<18x32x8xf32>
    %38 = vector.extract_strided_slice %37 {offsets = [0, 7, 0], sizes = [16, 16, 8], strides = [1, 1, 1]} : vector<18x32x8xf32> to vector<16x16x8xf32>
    %39 = vector.shape_cast %38 : vector<16x16x8xf32> to vector<256x8xf32>
    %40 = vector.extract_strided_slice %37 {offsets = [0, 8, 0], sizes = [16, 16, 8], strides = [1, 1, 1]} : vector<18x32x8xf32> to vector<16x16x8xf32>
    %41 = vector.shape_cast %40 : vector<16x16x8xf32> to vector<256x8xf32>
    %42 = vector.extract_strided_slice %37 {offsets = [0, 9, 0], sizes = [16, 16, 8], strides = [1, 1, 1]} : vector<18x32x8xf32> to vector<16x16x8xf32>
    %43 = vector.shape_cast %42 : vector<16x16x8xf32> to vector<256x8xf32>
    %44 = vector.extract_strided_slice %37 {offsets = [1, 7, 0], sizes = [16, 16, 8], strides = [1, 1, 1]} : vector<18x32x8xf32> to vector<16x16x8xf32>
    %45 = vector.shape_cast %44 : vector<16x16x8xf32> to vector<256x8xf32>
    %46 = vector.extract_strided_slice %37 {offsets = [1, 8, 0], sizes = [16, 16, 8], strides = [1, 1, 1]} : vector<18x32x8xf32> to vector<16x16x8xf32>
    %47 = vector.shape_cast %46 : vector<16x16x8xf32> to vector<256x8xf32>
    %48 = vector.extract_strided_slice %37 {offsets = [1, 9, 0], sizes = [16, 16, 8], strides = [1, 1, 1]} : vector<18x32x8xf32> to vector<16x16x8xf32>
    %49 = vector.shape_cast %48 : vector<16x16x8xf32> to vector<256x8xf32>
    %50 = vector.extract_strided_slice %37 {offsets = [2, 7, 0], sizes = [16, 16, 8], strides = [1, 1, 1]} : vector<18x32x8xf32> to vector<16x16x8xf32>
    %51 = vector.shape_cast %50 : vector<16x16x8xf32> to vector<256x8xf32>
    %52 = vector.extract_strided_slice %37 {offsets = [2, 8, 0], sizes = [16, 16, 8], strides = [1, 1, 1]} : vector<18x32x8xf32> to vector<16x16x8xf32>
    %53 = vector.shape_cast %52 : vector<16x16x8xf32> to vector<256x8xf32>
    %54 = vector.extract_strided_slice %37 {offsets = [2, 9, 0], sizes = [16, 16, 8], strides = [1, 1, 1]} : vector<18x32x8xf32> to vector<16x16x8xf32>
    %55 = vector.shape_cast %54 : vector<16x16x8xf32> to vector<256x8xf32>
    %56 = tpu.concatenate %39, %41, %43, %45, %47, %49, %51, %53, %55 in 1 : vector<256x8xf32>, vector<256x8xf32>, vector<256x8xf32>, vector<256x8xf32>, vector<256x8xf32>, vector<256x8xf32>, vector<256x8xf32>, vector<256x8xf32>, vector<256x8xf32> -> vector<256x72xf32>
    %57 = arith.truncf %56 : vector<256x72xf32> to vector<256x72xbf16>
    %c0_15 = arith.constant 0 : index
    %c0_16 = arith.constant 0 : index
    %58 = vector.load %arg5[%c0_15, %c0_16] : memref<72x96xbf16, #tpu.memory_space<vmem>>, vector<72x96xbf16>
    %cst_17 = arith.constant dense<0.000000e+00> : vector<256x96xf32>
    %59 = tpu.matmul %57, %58, %cst_17 {dimension_numbers = #tpu.dot_dimension_numbers<[1], [0], [0], [1], [0, 0, 1, 1], [], []>} : vector<256x72xbf16>, vector<72x96xbf16>, vector<256x96xf32> -> vector<256x96xf32>
    %c0_18 = arith.constant 0 : index
    %c0_19 = arith.constant 0 : index
    %60 = vector.load %arg6[%c0_18, %c0_19] : memref<1x96xf32, #tpu.memory_space<vmem>>, vector<1x96xf32>
    %61 = vector.broadcast %60 : vector<1x96xf32> to vector<256x96xf32>
    %62 = arith.addf %59, %61 : vector<256x96xf32>
    %c0_20 = arith.constant 0 : index
    %c0_21 = arith.constant 0 : index
    %c0_22 = arith.constant 0 : index
    %63 = vector.load %arg17[%c0_20, %c0_21, %c0_22] : memref<18x32x32xf32, #tpu.memory_space<vmem>>, vector<18x32x32xf32>
    %64 = vector.extract_strided_slice %63 {offsets = [1, 8, 0], sizes = [16, 16, 32], strides = [1, 1, 1]} : vector<18x32x32xf32> to vector<16x16x32xf32>
    %65 = vector.shape_cast %64 : vector<16x16x32xf32> to vector<256x32xf32>
    %66 = vector.extract_strided_slice %62 {offsets = [0, 0], sizes = [256, 64], strides = [1, 1]} : vector<256x96xf32> to vector<256x64xf32>
    %67 = vector.extract_strided_slice %63 {offsets = [0, 7, 0], sizes = [16, 16, 32], strides = [1, 1, 1]} : vector<18x32x32xf32> to vector<16x16x32xf32>
    %68 = vector.shape_cast %67 : vector<16x16x32xf32> to vector<256x32xf32>
    %69 = vector.extract_strided_slice %63 {offsets = [0, 8, 0], sizes = [16, 16, 32], strides = [1, 1, 1]} : vector<18x32x32xf32> to vector<16x16x32xf32>
    %70 = vector.shape_cast %69 : vector<16x16x32xf32> to vector<256x32xf32>
    %71 = vector.extract_strided_slice %63 {offsets = [0, 9, 0], sizes = [16, 16, 32], strides = [1, 1, 1]} : vector<18x32x32xf32> to vector<16x16x32xf32>
    %72 = vector.shape_cast %71 : vector<16x16x32xf32> to vector<256x32xf32>
    %73 = vector.extract_strided_slice %63 {offsets = [1, 7, 0], sizes = [16, 16, 32], strides = [1, 1, 1]} : vector<18x32x32xf32> to vector<16x16x32xf32>
    %74 = vector.shape_cast %73 : vector<16x16x32xf32> to vector<256x32xf32>
    %75 = vector.extract_strided_slice %63 {offsets = [1, 8, 0], sizes = [16, 16, 32], strides = [1, 1, 1]} : vector<18x32x32xf32> to vector<16x16x32xf32>
    %76 = vector.shape_cast %75 : vector<16x16x32xf32> to vector<256x32xf32>
    %77 = vector.extract_strided_slice %63 {offsets = [1, 9, 0], sizes = [16, 16, 32], strides = [1, 1, 1]} : vector<18x32x32xf32> to vector<16x16x32xf32>
    %78 = vector.shape_cast %77 : vector<16x16x32xf32> to vector<256x32xf32>
    %79 = vector.extract_strided_slice %63 {offsets = [2, 7, 0], sizes = [16, 16, 32], strides = [1, 1, 1]} : vector<18x32x32xf32> to vector<16x16x32xf32>
    %80 = vector.shape_cast %79 : vector<16x16x32xf32> to vector<256x32xf32>
    %81 = vector.extract_strided_slice %63 {offsets = [2, 8, 0], sizes = [16, 16, 32], strides = [1, 1, 1]} : vector<18x32x32xf32> to vector<16x16x32xf32>
    %82 = vector.shape_cast %81 : vector<16x16x32xf32> to vector<256x32xf32>
    %83 = vector.extract_strided_slice %63 {offsets = [2, 9, 0], sizes = [16, 16, 32], strides = [1, 1, 1]} : vector<18x32x32xf32> to vector<16x16x32xf32>
    %84 = vector.shape_cast %83 : vector<16x16x32xf32> to vector<256x32xf32>
    %85 = tpu.concatenate %68, %70, %72, %74, %76, %78, %80, %82, %84 in 1 : vector<256x32xf32>, vector<256x32xf32>, vector<256x32xf32>, vector<256x32xf32>, vector<256x32xf32>, vector<256x32xf32>, vector<256x32xf32>, vector<256x32xf32>, vector<256x32xf32> -> vector<256x288xf32>
    %86 = arith.truncf %85 : vector<256x288xf32> to vector<256x288xbf16>
    %c0_23 = arith.constant 0 : index
    %c0_24 = arith.constant 0 : index
    %87 = vector.load %arg7[%c0_23, %c0_24] : memref<288x64xbf16, #tpu.memory_space<vmem>>, vector<288x64xbf16>
    %cst_25 = arith.constant dense<0.000000e+00> : vector<256x64xf32>
    %88 = tpu.matmul %86, %87, %cst_25 {dimension_numbers = #tpu.dot_dimension_numbers<[1], [0], [0], [1], [0, 0, 1, 1], [], []>} : vector<256x288xbf16>, vector<288x64xbf16>, vector<256x64xf32> -> vector<256x64xf32>
    %89 = arith.addf %66, %88 : vector<256x64xf32>
    %c0_26 = arith.constant 0 : index
    %c0_27 = arith.constant 0 : index
    %90 = vector.load %arg9[%c0_26, %c0_27] : memref<64x64xf32, #tpu.memory_space<vmem>>, vector<64x64xf32>
    %cst_28 = arith.constant dense<0.000000e+00> : vector<256x64xf32>
    %91 = tpu.matmul %89, %90, %cst_28 {dimension_numbers = #tpu.dot_dimension_numbers<[1], [0], [0], [1], [0, 0, 1, 1], [], []>} : vector<256x64xf32>, vector<64x64xf32>, vector<256x64xf32> -> vector<256x64xf32>
    %cst_29 = arith.constant dense<0.000000e+00> : vector<64xf32>
    %92 = vector.multi_reduction <add>, %91, %cst_29 [0] : vector<256x64xf32> to vector<64xf32>
    %93 = vector.shape_cast %92 : vector<64xf32> to vector<1x64xf32>
    %94 = vector.broadcast %93 : vector<1x64xf32> to vector<256x64xf32>
    %95 = arith.subf %89, %94 : vector<256x64xf32>
    %96 = arith.mulf %95, %95 : vector<256x64xf32>
    %cst_30 = arith.constant dense<0.000000e+00> : vector<256x64xf32>
    %97 = tpu.matmul %96, %90, %cst_30 {dimension_numbers = #tpu.dot_dimension_numbers<[1], [0], [0], [1], [0, 0, 1, 1], [], []>} : vector<256x64xf32>, vector<64x64xf32>, vector<256x64xf32> -> vector<256x64xf32>
    %cst_31 = arith.constant dense<0.000000e+00> : vector<64xf32>
    %98 = vector.multi_reduction <add>, %97, %cst_31 [0] : vector<256x64xf32> to vector<64xf32>
    %99 = vector.shape_cast %98 : vector<64xf32> to vector<1x64xf32>
    %cst_32 = arith.constant 9.99999974E-6 : f32
    %100 = vector.broadcast %cst_32 : f32 to vector<1x64xf32>
    %101 = arith.addf %99, %100 : vector<1x64xf32>
    %102 = math.rsqrt %101 : vector<1x64xf32>
    %103 = vector.broadcast %102 : vector<1x64xf32> to vector<256x64xf32>
    %104 = arith.mulf %95, %103 : vector<256x64xf32>
    %c0_33 = arith.constant 0 : index
    %c0_34 = arith.constant 0 : index
    %105 = vector.load %arg11[%c0_33, %c0_34] : memref<1x64xf32, #tpu.memory_space<vmem>>, vector<1x64xf32>
    %106 = vector.broadcast %105 : vector<1x64xf32> to vector<256x64xf32>
    %107 = arith.mulf %104, %106 : vector<256x64xf32>
    %c0_35 = arith.constant 0 : index
    %c0_36 = arith.constant 0 : index
    %108 = vector.load %arg12[%c0_35, %c0_36] : memref<1x64xf32, #tpu.memory_space<vmem>>, vector<1x64xf32>
    %109 = vector.broadcast %108 : vector<1x64xf32> to vector<256x64xf32>
    %110 = arith.addf %107, %109 : vector<256x64xf32>
    %111 = vector.extract_strided_slice %110 {offsets = [0, 0], sizes = [256, 32], strides = [1, 1]} : vector<256x64xf32> to vector<256x32xf32>
    %112 = arith.negf %111 : vector<256x32xf32>
    %113 = math.exp %112 : vector<256x32xf32>
    %cst_37 = arith.constant 1.000000e+00 : f32
    %114 = vector.broadcast %cst_37 : f32 to vector<256x32xf32>
    %115 = arith.addf %114, %113 : vector<256x32xf32>
    %116 = arith.divf %114, %115 : vector<256x32xf32>
    %117 = vector.extract_strided_slice %110 {offsets = [0, 32], sizes = [256, 32], strides = [1, 1]} : vector<256x64xf32> to vector<256x32xf32>
    %118 = arith.negf %117 : vector<256x32xf32>
    %119 = math.exp %118 : vector<256x32xf32>
    %cst_38 = arith.constant 1.000000e+00 : f32
    %120 = vector.broadcast %cst_38 : f32 to vector<256x32xf32>
    %121 = arith.addf %120, %119 : vector<256x32xf32>
    %122 = arith.divf %120, %121 : vector<256x32xf32>
    %123 = arith.mulf %122, %65 : vector<256x32xf32>
    %124 = vector.shape_cast %123 : vector<256x32xf32> to vector<16x16x32xf32>
    %c1_39 = arith.constant 1 : index
    %c8_40 = arith.constant 8 : index
    %c0_41 = arith.constant 0 : index
    %125 = vector.load %arg18[%c1_39, %c8_40, %c0_41] : memref<18x32x32xf32, #tpu.memory_space<vmem>>, vector<16x16x32xf32>
    tpu.vector_store %arg18[%c1_39, %c8_40, %c0_41], %124 {strides = array<i32>} : memref<18x32x32xf32, #tpu.memory_space<vmem>>, vector<16x16x32xf32>,
    %126 = vector.extract_strided_slice %62 {offsets = [0, 64], sizes = [256, 32], strides = [1, 1]} : vector<256x96xf32> to vector<256x32xf32>
    %c0_42 = arith.constant 0 : index
    %c0_43 = arith.constant 0 : index
    %c0_44 = arith.constant 0 : index
    %127 = vector.load %arg18[%c0_42, %c0_43, %c0_44] : memref<18x32x32xf32, #tpu.memory_space<vmem>>, vector<18x32x32xf32>
    %128 = vector.extract_strided_slice %127 {offsets = [0, 7, 0], sizes = [16, 16, 32], strides = [1, 1, 1]} : vector<18x32x32xf32> to vector<16x16x32xf32>
    %129 = vector.shape_cast %128 : vector<16x16x32xf32> to vector<256x32xf32>
    %130 = vector.extract_strided_slice %127 {offsets = [0, 8, 0], sizes = [16, 16, 32], strides = [1, 1, 1]} : vector<18x32x32xf32> to vector<16x16x32xf32>
    %131 = vector.shape_cast %130 : vector<16x16x32xf32> to vector<256x32xf32>
    %132 = vector.extract_strided_slice %127 {offsets = [0, 9, 0], sizes = [16, 16, 32], strides = [1, 1, 1]} : vector<18x32x32xf32> to vector<16x16x32xf32>
    %133 = vector.shape_cast %132 : vector<16x16x32xf32> to vector<256x32xf32>
    %134 = vector.extract_strided_slice %127 {offsets = [1, 7, 0], sizes = [16, 16, 32], strides = [1, 1, 1]} : vector<18x32x32xf32> to vector<16x16x32xf32>
    %135 = vector.shape_cast %134 : vector<16x16x32xf32> to vector<256x32xf32>
    %136 = vector.extract_strided_slice %127 {offsets = [1, 8, 0], sizes = [16, 16, 32], strides = [1, 1, 1]} : vector<18x32x32xf32> to vector<16x16x32xf32>
    %137 = vector.shape_cast %136 : vector<16x16x32xf32> to vector<256x32xf32>
    %138 = vector.extract_strided_slice %127 {offsets = [1, 9, 0], sizes = [16, 16, 32], strides = [1, 1, 1]} : vector<18x32x32xf32> to vector<16x16x32xf32>
    %139 = vector.shape_cast %138 : vector<16x16x32xf32> to vector<256x32xf32>
    %140 = vector.extract_strided_slice %127 {offsets = [2, 7, 0], sizes = [16, 16, 32], strides = [1, 1, 1]} : vector<18x32x32xf32> to vector<16x16x32xf32>
    %141 = vector.shape_cast %140 : vector<16x16x32xf32> to vector<256x32xf32>
    %142 = vector.extract_strided_slice %127 {offsets = [2, 8, 0], sizes = [16, 16, 32], strides = [1, 1, 1]} : vector<18x32x32xf32> to vector<16x16x32xf32>
    %143 = vector.shape_cast %142 : vector<16x16x32xf32> to vector<256x32xf32>
    %144 = vector.extract_strided_slice %127 {offsets = [2, 9, 0], sizes = [16, 16, 32], strides = [1, 1, 1]} : vector<18x32x32xf32> to vector<16x16x32xf32>
    %145 = vector.shape_cast %144 : vector<16x16x32xf32> to vector<256x32xf32>
    %146 = tpu.concatenate %129, %131, %133, %135, %137, %139, %141, %143, %145 in 1 : vector<256x32xf32>, vector<256x32xf32>, vector<256x32xf32>, vector<256x32xf32>, vector<256x32xf32>, vector<256x32xf32>, vector<256x32xf32>, vector<256x32xf32>, vector<256x32xf32> -> vector<256x288xf32>
    %147 = arith.truncf %146 : vector<256x288xf32> to vector<256x288xbf16>
    %c0_45 = arith.constant 0 : index
    %c0_46 = arith.constant 0 : index
    %148 = vector.load %arg8[%c0_45, %c0_46] : memref<288x32xbf16, #tpu.memory_space<vmem>>, vector<288x32xbf16>
    %cst_47 = arith.constant dense<0.000000e+00> : vector<256x32xf32>
    %149 = tpu.matmul %147, %148, %cst_47 {dimension_numbers = #tpu.dot_dimension_numbers<[1], [0], [0], [1], [0, 0, 1, 1], [], []>} : vector<256x288xbf16>, vector<288x32xbf16>, vector<256x32xf32> -> vector<256x32xf32>
    %150 = arith.addf %126, %149 : vector<256x32xf32>
    %c0_48 = arith.constant 0 : index
    %c0_49 = arith.constant 0 : index
    %151 = vector.load %arg10[%c0_48, %c0_49] : memref<32x32xf32, #tpu.memory_space<vmem>>, vector<32x32xf32>
    %cst_50 = arith.constant dense<0.000000e+00> : vector<256x32xf32>
    %152 = tpu.matmul %150, %151, %cst_50 {dimension_numbers = #tpu.dot_dimension_numbers<[1], [0], [0], [1], [0, 0, 1, 1], [], []>} : vector<256x32xf32>, vector<32x32xf32>, vector<256x32xf32> -> vector<256x32xf32>
    %cst_51 = arith.constant dense<0.000000e+00> : vector<32xf32>
    %153 = vector.multi_reduction <add>, %152, %cst_51 [0] : vector<256x32xf32> to vector<32xf32>
    %154 = vector.shape_cast %153 : vector<32xf32> to vector<1x32xf32>
    %155 = vector.broadcast %154 : vector<1x32xf32> to vector<256x32xf32>
    %156 = arith.subf %150, %155 : vector<256x32xf32>
    %157 = arith.mulf %156, %156 : vector<256x32xf32>
    %cst_52 = arith.constant dense<0.000000e+00> : vector<256x32xf32>
    %158 = tpu.matmul %157, %151, %cst_52 {dimension_numbers = #tpu.dot_dimension_numbers<[1], [0], [0], [1], [0, 0, 1, 1], [], []>} : vector<256x32xf32>, vector<32x32xf32>, vector<256x32xf32> -> vector<256x32xf32>
    %cst_53 = arith.constant dense<0.000000e+00> : vector<32xf32>
    %159 = vector.multi_reduction <add>, %158, %cst_53 [0] : vector<256x32xf32> to vector<32xf32>
    %160 = vector.shape_cast %159 : vector<32xf32> to vector<1x32xf32>
    %cst_54 = arith.constant 9.99999974E-6 : f32
    %161 = vector.broadcast %cst_54 : f32 to vector<1x32xf32>
    %162 = arith.addf %160, %161 : vector<1x32xf32>
    %163 = math.rsqrt %162 : vector<1x32xf32>
    %164 = vector.broadcast %163 : vector<1x32xf32> to vector<256x32xf32>
    %165 = arith.mulf %156, %164 : vector<256x32xf32>
    %c0_55 = arith.constant 0 : index
    %c0_56 = arith.constant 0 : index
    %166 = vector.load %arg13[%c0_55, %c0_56] : memref<1x32xf32, #tpu.memory_space<vmem>>, vector<1x32xf32>
    %167 = vector.broadcast %166 : vector<1x32xf32> to vector<256x32xf32>
    %168 = arith.mulf %165, %167 : vector<256x32xf32>
    %c0_57 = arith.constant 0 : index
    %c0_58 = arith.constant 0 : index
    %169 = vector.load %arg14[%c0_57, %c0_58] : memref<1x32xf32, #tpu.memory_space<vmem>>, vector<1x32xf32>
    %170 = vector.broadcast %169 : vector<1x32xf32> to vector<256x32xf32>
    %171 = arith.addf %168, %170 : vector<256x32xf32>
    %172 = math.tanh %171 : vector<256x32xf32>
    %cst_59 = arith.constant 1.000000e+00 : f32
    %173 = vector.broadcast %cst_59 : f32 to vector<256x32xf32>
    %174 = arith.subf %173, %116 : vector<256x32xf32>
    %175 = arith.mulf %174, %65 : vector<256x32xf32>
    %176 = arith.mulf %116, %172 : vector<256x32xf32>
    %177 = arith.addf %175, %176 : vector<256x32xf32>
    %178 = vector.shape_cast %177 : vector<256x32xf32> to vector<16x16x32xf32>
    %c1_60 = arith.constant 1 : index
    %c8_61 = arith.constant 8 : index
    %c0_62 = arith.constant 0 : index
    %179 = vector.load %arg17[%c1_60, %c8_61, %c0_62] : memref<18x32x32xf32, #tpu.memory_space<vmem>>, vector<16x16x32xf32>
    tpu.vector_store %arg17[%c1_60, %c8_61, %c0_62], %178 {strides = array<i32>} : memref<18x32x32xf32, #tpu.memory_space<vmem>>, vector<16x16x32xf32>,
    %c0_63 = arith.constant 0 : index
    %c0_64 = arith.constant 0 : index
    %c0_65 = arith.constant 0 : index
    %c0_66 = arith.constant 0 : index
    %c0_67 = arith.constant 0 : index
    %180 = vector.load %arg15[%c0_63, %c0_64, %c0_65, %c0_66, %c0_67] : memref<1x1x16x16x32xf32, #tpu.memory_space<vmem>>, vector<1x1x16x16x32xf32>
    %181 = vector.shape_cast %180 : vector<1x1x16x16x32xf32> to vector<16x16x32xf32>
    %182 = vector.shape_cast %178 : vector<16x16x32xf32> to vector<1x1x16x16x32xf32>
    tpu.vector_store %arg15[%c0_63, %c0_64, %c0_65, %c0_66, %c0_67], %182 {strides = array<i32>} : memref<1x1x16x16x32xf32, #tpu.memory_space<vmem>>, vector<1x1x16x16x32xf32>,
    return
  }
  func.func @transform_0(%arg0: i32, %arg1: i32) -> (i32, i32, i32, i32, i32) {
    %c0_i32 = arith.constant 0 : i32
    %c0_i32_0 = arith.constant 0 : i32
    %c0_i32_1 = arith.constant 0 : i32
    %c0_i32_2 = arith.constant 0 : i32
    return %arg0, %arg1, %c0_i32, %c0_i32_0, %c0_i32_1 : i32, i32, i32, i32, i32
  }
  func.func @transform_1(%arg0: i32, %arg1: i32) -> (i32, i32) {
    %c0_i32 = arith.constant 0 : i32
    %c0_i32_0 = arith.constant 0 : i32
    %c0_i32_1 = arith.constant 0 : i32
    return %c0_i32, %c0_i32_0 : i32, i32
  }
  func.func @transform_2(%arg0: i32, %arg1: i32) -> (i32, i32) {
    %c0_i32 = arith.constant 0 : i32
    %c0_i32_0 = arith.constant 0 : i32
    %c0_i32_1 = arith.constant 0 : i32
    return %c0_i32, %c0_i32_0 : i32, i32
  }
  func.func @transform_3(%arg0: i32, %arg1: i32) -> (i32, i32) {
    %c0_i32 = arith.constant 0 : i32
    %c0_i32_0 = arith.constant 0 : i32
    %c0_i32_1 = arith.constant 0 : i32
    return %c0_i32, %c0_i32_0 : i32, i32
  }
  func.func @transform_4(%arg0: i32, %arg1: i32) -> (i32, i32) {
    %c0_i32 = arith.constant 0 : i32
    %c0_i32_0 = arith.constant 0 : i32
    %c0_i32_1 = arith.constant 0 : i32
    return %c0_i32, %c0_i32_0 : i32, i32
  }
  func.func @transform_5(%arg0: i32, %arg1: i32) -> (i32, i32) {
    %c0_i32 = arith.constant 0 : i32
    %c0_i32_0 = arith.constant 0 : i32
    %c0_i32_1 = arith.constant 0 : i32
    return %c0_i32, %c0_i32_0 : i32, i32
  }
  func.func @transform_6(%arg0: i32, %arg1: i32) -> (i32, i32) {
    %c0_i32 = arith.constant 0 : i32
    %c0_i32_0 = arith.constant 0 : i32
    %c0_i32_1 = arith.constant 0 : i32
    return %c0_i32, %c0_i32_0 : i32, i32
  }
  func.func @transform_7(%arg0: i32, %arg1: i32) -> (i32, i32) {
    %c0_i32 = arith.constant 0 : i32
    %c0_i32_0 = arith.constant 0 : i32
    %c0_i32_1 = arith.constant 0 : i32
    return %c0_i32, %c0_i32_0 : i32, i32
  }
  func.func @transform_8(%arg0: i32, %arg1: i32) -> (i32, i32) {
    %c0_i32 = arith.constant 0 : i32
    %c0_i32_0 = arith.constant 0 : i32
    %c0_i32_1 = arith.constant 0 : i32
    return %c0_i32, %c0_i32_0 : i32, i32
  }
  func.func @transform_9(%arg0: i32, %arg1: i32) -> (i32, i32) {
    %c0_i32 = arith.constant 0 : i32
    %c0_i32_0 = arith.constant 0 : i32
    %c0_i32_1 = arith.constant 0 : i32
    return %c0_i32, %c0_i32_0 : i32, i32
  }
  func.func @transform_10(%arg0: i32, %arg1: i32) -> (i32, i32) {
    %c0_i32 = arith.constant 0 : i32
    %c0_i32_0 = arith.constant 0 : i32
    %c0_i32_1 = arith.constant 0 : i32
    return %c0_i32, %c0_i32_0 : i32, i32
  }
  func.func @transform_11(%arg0: i32, %arg1: i32) -> (i32, i32) {
    %c0_i32 = arith.constant 0 : i32
    %c0_i32_0 = arith.constant 0 : i32
    %c0_i32_1 = arith.constant 0 : i32
    return %c0_i32, %c0_i32_0 : i32, i32
  }
  func.func @transform_12(%arg0: i32, %arg1: i32) -> (i32, i32) {
    %c0_i32 = arith.constant 0 : i32
    %c0_i32_0 = arith.constant 0 : i32
    %c0_i32_1 = arith.constant 0 : i32
    return %c0_i32, %c0_i32_0 : i32, i32
  }
  func.func @transform_13(%arg0: i32, %arg1: i32) -> (i32, i32, i32, i32, i32) {
    %c0_i32 = arith.constant 0 : i32
    %c0_i32_0 = arith.constant 0 : i32
    %c0_i32_1 = arith.constant 0 : i32
    %c0_i32_2 = arith.constant 0 : i32
    return %arg0, %arg1, %c0_i32, %c0_i32_0, %c0_i32_1 : i32, i32, i32, i32, i32
  }
}

</mosaic_0001>

<llo_original>
// kernel: convgru_encoder_block.1
$region0: #{convgru_encoder_block.1}
  #allocation0 [shape = 'u32[]', space=smem, size = 0x4, offset = 0x4, fixed_abs, tag = 'smem constant byte address 0x4 - core index']
  #allocation1 [shape = 'u32[144,128]{1,0:T(1,128)}', space=vmem, size = 0x12000, scoped, tag = 'internal scratch']
  #allocation2 [shape = 'f32[18,32,8]{2,1,0:T(8,128)}', space=vmem, size = 0x48000, scoped, tag = 'scratch operand']
  #allocation3 [shape = 'f32[18,32,32]{2,1,0:T(8,128)}', space=vmem, size = 0x48000, scoped, tag = 'scratch operand']
  #allocation4 [shape = 'f32[18,32,32]{2,1,0:T(8,128)}', space=vmem, size = 0x48000, scoped, tag = 'scratch operand']
  %s0 = inlined_call_operand.vmem [shape: f32[2,4,18,18,4], index: 0, kind: input, shape index: {}]
  %s1 = inlined_call_operand.vmem [shape: bf16[36,8], index: 1, kind: input, shape index: {}]
  %s2 = inlined_call_operand.vmem [shape: f32[1,8], index: 2, kind: input, shape index: {}]
  %s3 = inlined_call_operand.vmem [shape: bf16[72,96], index: 3, kind: input, shape index: {}]
  %s4 = inlined_call_operand.vmem [shape: f32[1,96], index: 4, kind: input, shape index: {}]
  %s5 = inlined_call_operand.vmem [shape: bf16[288,64], index: 5, kind: input, shape index: {}]
  %s6 = inlined_call_operand.vmem [shape: bf16[288,32], index: 6, kind: input, shape index: {}]
  %s7 = inlined_call_operand.vmem [shape: f32[64,64], index: 7, kind: input, shape index: {}]
  %s8 = inlined_call_operand.vmem [shape: f32[32,32], index: 8, kind: input, shape index: {}]
  %s9 = inlined_call_operand.vmem [shape: f32[1,64], index: 9, kind: input, shape index: {}]
  %s10 = inlined_call_operand.vmem [shape: f32[1,64], index: 10, kind: input, shape index: {}]
  %s11 = inlined_call_operand.vmem [shape: f32[1,32], index: 11, kind: input, shape index: {}]
  %s12 = inlined_call_operand.vmem [shape: f32[1,32], index: 12, kind: input, shape index: {}]
  %s13 = inlined_call_operand.vmem [shape: f32[2,4,16,16,32], index: 13, kind: output, shape index: {}]
  %s14 = sld [smem:[#allocation0]]
  $region89: #{convgru_encoder_block.1} parent=0
    _
  %s16 = ssub.s32 1, %s14
  %s17 = scalar_select 0, %s16, %s14
  loop: start=0, step=1, limit=10
  $region2: #{convgru_encoder_block.1} parent=0 // loop_pre_header
    _
  $region3: #{convgru_encoder_block.1} parent=0 // loop_header
    %s19 = sphi 0, %s23
    %p20 = scmp.ge.s32.totalorder %s19, 10
    %s26 = sphi 0, %s38
    %s27 = sphi 0, %s34
    %s28 = sphi 0, %s26
    %s29 = sphi 0, %s27
    %s30 = sphi 0, %s28
    %s31 = sphi 0, %s29
    %s43 = sphi 0, %s45
    %s46 = sphi 0, %s43
    %s47 = sphi 0, %s46
    %s63 = sphi 0, %s47
    %s67 = sphi 0, %s67
    %s69 = sphi 0, %s67
    %s70 = sphi 0, %s69
    %s84 = sphi 0, %s70
    %s88 = sphi 0, %s88
    %s90 = sphi 0, %s88
    %s91 = sphi 0, %s90
    %s105 = sphi 0, %s91
    %s109 = sphi 0, %s109
    %s111 = sphi 0, %s109
    %s112 = sphi 0, %s111
    %s126 = sphi 0, %s112
    %s130 = sphi 0, %s130
    %s132 = sphi 0, %s130
    %s133 = sphi 0, %s132
    %s147 = sphi 0, %s133
    %s151 = sphi 0, %s151
    %s153 = sphi 0, %s151
    %s154 = sphi 0, %s153
    %s168 = sphi 0, %s154
    %s172 = sphi 0, %s172
    %s174 = sphi 0, %s172
    %s175 = sphi 0, %s174
    %s189 = sphi 0, %s175
    %s193 = sphi 0, %s193
    %s195 = sphi 0, %s193
    %s196 = sphi 0, %s195
    %s210 = sphi 0, %s196
    %s214 = sphi 0, %s214
    %s216 = sphi 0, %s214
    %s217 = sphi 0, %s216
    %s231 = sphi 0, %s217
    %s235 = sphi 0, %s235
    %s237 = sphi 0, %s235
    %s238 = sphi 0, %s237
    %s252 = sphi 0, %s238
    %s256 = sphi 0, %s256
    %s258 = sphi 0, %s256
    %s259 = sphi 0, %s258
    %s273 = sphi 0, %s259
    %s277 = sphi 0, %s277
    %s279 = sphi 0, %s277
    %s280 = sphi 0, %s279
    %s294 = sphi 0, %s280
    %s298 = sphi 0, %s298
    %s300 = sphi 0, %s298
    %s301 = sphi 0, %s300
    %s315 = sphi 0, %s301
    %s323 = sphi 0, %s325
    %s326 = sphi 0, %s323
    %s327 = sphi 0, %s326
    %s343 = sphi 0, %s327
  $region4: #{convgru_encoder_block.1} parent=0 // loop_header_branch
    %22 = sbr.rel (%p20) target = $region8
  $region5: #{convgru_encoder_block.1} parent=0 // loop_body
    %s24 = ssub.s32 %s19, 1
    %s25 = ssub.s32 %s19, 2
    %s32 = sadd.s32 1, %s27
    %p33 = scmp.ge.s32.totalorder %s32, 4
    %s34 = scalar_select %p33, 0, %s32
    %s35 = sadd.s32 1, %s26
    %s36 = scalar_select %p33, %s35, %s26
    %p37 = scmp.ge.s32.totalorder %s36, 2
    %s38 = scalar_select %p37, 0, %s36
    %s39 = ssub.s32 %s26, %s38
    %s40 = ssub.s32 %s27, %s34
    %s41 = sor.u32 %s39, %s40
    %p42 = scmp.eq.s32.totalorder %s41, 0
    %s44 = sadd.s32 %s43, 1
    %s45 = scalar_select %p42, %s43, %s44
    %p48 = pneg %p42
    %p49 = scmp.eq.s32.totalorder %s19, 7
    %p50 = por %p48, %p49
    %p51 = scmp.ne.s32.totalorder %s43, %s46
    %p52 = scmp.eq.s32.totalorder %s19, 0
    %p53 = por %p51, %p52
    %p54 = scmp.ne.s32.totalorder %s43, %s46
    %p55 = scmp.eq.s32.totalorder %s24, 7
    %p56 = por %p54, %p55
    %p57 = scmp.ne.s32.totalorder %s46, %s47
    %p58 = scmp.eq.s32.totalorder %s24, 0
    %p59 = por %p57, %p58
    %p60 = scmp.ne.s32.totalorder %s46, %s47
    %p61 = scmp.eq.s32.totalorder %s25, 7
    %p62 = por %p60, %p61
    %p64 = scmp.ne.s32.totalorder %s47, %s63
    %p65 = scmp.eq.s32.totalorder %s25, 0
    %p66 = por %p64, %p65
    %s68 = sadd.s32 %s67, 1
    %p71 = scmp.eq.s32.totalorder %s19, 7
    %p72 = scmp.ne.s32.totalorder %s67, %s69
    %p73 = scmp.eq.s32.totalorder %s19, 0
    %p74 = por %p72, %p73
    %p75 = scmp.ne.s32.totalorder %s67, %s69
    %p76 = scmp.eq.s32.totalorder %s24, 7
    %p77 = por %p75, %p76
    %p78 = scmp.ne.s32.totalorder %s69, %s70
    %p79 = scmp.eq.s32.totalorder %s24, 0
    %p80 = por %p78, %p79
    %p81 = scmp.ne.s32.totalorder %s69, %s70
    %p82 = scmp.eq.s32.totalorder %s25, 7
    %p83 = por %p81, %p82
    %p85 = scmp.ne.s32.totalorder %s70, %s84
    %p86 = scmp.eq.s32.totalorder %s25, 0
    %p87 = por %p85, %p86
    %s89 = sadd.s32 %s88, 1
    %p92 = scmp.eq.s32.totalorder %s19, 7
    %p93 = scmp.ne.s32.totalorder %s88, %s90
    %p94 = scmp.eq.s32.totalorder %s19, 0
    %p95 = por %p93, %p94
    %p96 = scmp.ne.s32.totalorder %s88, %s90
    %p97 = scmp.eq.s32.totalorder %s24, 7
    %p98 = por %p96, %p97
    %p99 = scmp.ne.s32.totalorder %s90, %s91
    %p100 = scmp.eq.s32.totalorder %s24, 0
    %p101 = por %p99, %p100
    %p102 = scmp.ne.s32.totalorder %s90, %s91
    %p103 = scmp.eq.s32.totalorder %s25, 7
    %p104 = por %p102, %p103
    %p106 = scmp.ne.s32.totalorder %s91, %s105
    %p107 = scmp.eq.s32.totalorder %s25, 0
    %p108 = por %p106, %p107
    %s110 = sadd.s32 %s109, 1
    %p113 = scmp.eq.s32.totalorder %s19, 7
    %p114 = scmp.ne.s32.totalorder %s109, %s111
    %p115 = scmp.eq.s32.totalorder %s19, 0
    %p116 = por %p114, %p115
    %p117 = scmp.ne.s32.totalorder %s109, %s111
    %p118 = scmp.eq.s32.totalorder %s24, 7
    %p119 = por %p117, %p118
    %p120 = scmp.ne.s32.totalorder %s111, %s112
    %p121 = scmp.eq.s32.totalorder %s24, 0
    %p122 = por %p120, %p121
    %p123 = scmp.ne.s32.totalorder %s111, %s112
    %p124 = scmp.eq.s32.totalorder %s25, 7
    %p125 = por %p123, %p124
    %p127 = scmp.ne.s32.totalorder %s112, %s126
    %p128 = scmp.eq.s32.totalorder %s25, 0
    %p129 = por %p127, %p128
    %s131 = sadd.s32 %s130, 1
    %p134 = scmp.eq.s32.totalorder %s19, 7
    %p135 = scmp.ne.s32.totalorder %s130, %s132
    %p136 = scmp.eq.s32.totalorder %s19, 0
    %p137 = por %p135, %p136
    %p138 = scmp.ne.s32.totalorder %s130, %s132
    %p139 = scmp.eq.s32.totalorder %s24, 7
    %p140 = por %p138, %p139
    %p141 = scmp.ne.s32.totalorder %s132, %s133
    %p142 = scmp.eq.s32.totalorder %s24, 0
    %p143 = por %p141, %p142
    %p144 = scmp.ne.s32.totalorder %s132, %s133
    %p145 = scmp.eq.s32.totalorder %s25, 7
    %p146 = por %p144, %p145
    %p148 = scmp.ne.s32.totalorder %s133, %s147
    %p149 = scmp.eq.s32.totalorder %s25, 0
    %p150 = por %p148, %p149
    %s152 = sadd.s32 %s151, 1
    %p155 = scmp.eq.s32.totalorder %s19, 7
    %p156 = scmp.ne.s32.totalorder %s151, %s153
    %p157 = scmp.eq.s32.totalorder %s19, 0
    %p158 = por %p156, %p157
    %p159 = scmp.ne.s32.totalorder %s151, %s153
    %p160 = scmp.eq.s32.totalorder %s24, 7
    %p161 = por %p159, %p160
    %p162 = scmp.ne.s32.totalorder %s153, %s154
    %p163 = scmp.eq.s32.totalorder %s24, 0
    %p164 = por %p162, %p163
    %p165 = scmp.ne.s32.totalorder %s153, %s154
    %p166 = scmp.eq.s32.totalorder %s25, 7
    %p167 = por %p165, %p166
    %p169 = scmp.ne.s32.totalorder %s154, %s168
    %p170 = scmp.eq.s32.totalorder %s25, 0
    %p171 = por %p169, %p170
    %s173 = sadd.s32 %s172, 1
    %p176 = scmp.eq.s32.totalorder %s19, 7
    %p177 = scmp.ne.s32.totalorder %s172, %s174
    %p178 = scmp.eq.s32.totalorder %s19, 0
    %p179 = por %p177, %p178
    %p180 = scmp.ne.s32.totalorder %s172, %s174
    %p181 = scmp.eq.s32.totalorder %s24, 7
    %p182 = por %p180, %p181
    %p183 = scmp.ne.s32.totalorder %s174, %s175
    %p184 = scmp.eq.s32.totalorder %s24, 0
    %p185 = por %p183, %p184
    %p186 = scmp.ne.s32.totalorder %s174, %s175
    %p187 = scmp.eq.s32.totalorder %s25, 7
    %p188 = por %p186, %p187
    %p190 = scmp.ne.s32.totalorder %s175, %s189
    %p191 = scmp.eq.s32.totalorder %s25, 0
    %p192 = por %p190, %p191
    %s194 = sadd.s32 %s193, 1
    %p197 = scmp.eq.s32.totalorder %s19, 7
    %p198 = scmp.ne.s32.totalorder %s193, %s195
    %p199 = scmp.eq.s32.totalorder %s19, 0
    %p200 = por %p198, %p199
    %p201 = scmp.ne.s32.totalorder %s193, %s195
    %p202 = scmp.eq.s32.totalorder %s24, 7
    %p203 = por %p201, %p202
    %p204 = scmp.ne.s32.totalorder %s195, %s196
    %p205 = scmp.eq.s32.totalorder %s24, 0
    %p206 = por %p204, %p205
    %p207 = scmp.ne.s32.totalorder %s195, %s196
    %p208 = scmp.eq.s32.totalorder %s25, 7
    %p209 = por %p207, %p208
    %p211 = scmp.ne.s32.totalorder %s196, %s210
    %p212 = scmp.eq.s32.totalorder %s25, 0
    %p213 = por %p211, %p212
    %s215 = sadd.s32 %s214, 1
    %p218 = scmp.eq.s32.totalorder %s19, 7
    %p219 = scmp.ne.s32.totalorder %s214, %s216
    %p220 = scmp.eq.s32.totalorder %s19, 0
    %p221 = por %p219, %p220
    %p222 = scmp.ne.s32.totalorder %s214, %s216
    %p223 = scmp.eq.s32.totalorder %s24, 7
    %p224 = por %p222, %p223
    %p225 = scmp.ne.s32.totalorder %s216, %s217
    %p226 = scmp.eq.s32.totalorder %s24, 0
    %p227 = por %p225, %p226
    %p228 = scmp.ne.s32.totalorder %s216, %s217
    %p229 = scmp.eq.s32.totalorder %s25, 7
    %p230 = por %p228, %p229
    %p232 = scmp.ne.s32.totalorder %s217, %s231
    %p233 = scmp.eq.s32.totalorder %s25, 0
    %p234 = por %p232, %p233
    %s236 = sadd.s32 %s235, 1
    %p239 = scmp.eq.s32.totalorder %s19, 7
    %p240 = scmp.ne.s32.totalorder %s235, %s237
    %p241 = scmp.eq.s32.totalorder %s19, 0
    %p242 = por %p240, %p241
    %p243 = scmp.ne.s32.totalorder %s235, %s237
    %p244 = scmp.eq.s32.totalorder %s24, 7
    %p245 = por %p243, %p244
    %p246 = scmp.ne.s32.totalorder %s237, %s238
    %p247 = scmp.eq.s32.totalorder %s24, 0
    %p248 = por %p246, %p247
    %p249 = scmp.ne.s32.totalorder %s237, %s238
    %p250 = scmp.eq.s32.totalorder %s25, 7
    %p251 = por %p249, %p250
    %p253 = scmp.ne.s32.totalorder %s238, %s252
    %p254 = scmp.eq.s32.totalorder %s25, 0
    %p255 = por %p253, %p254
    %s257 = sadd.s32 %s256, 1
    %p260 = scmp.eq.s32.totalorder %s19, 7
    %p261 = scmp.ne.s32.totalorder %s256, %s258
    %p262 = scmp.eq.s32.totalorder %s19, 0
    %p263 = por %p261, %p262
    %p264 = scmp.ne.s32.totalorder %s256, %s258
    %p265 = scmp.eq.s32.totalorder %s24, 7
    %p266 = por %p264, %p265
    %p267 = scmp.ne.s32.totalorder %s258, %s259
    %p268 = scmp.eq.s32.totalorder %s24, 0
    %p269 = por %p267, %p268
    %p270 = scmp.ne.s32.totalorder %s258, %s259
    %p271 = scmp.eq.s32.totalorder %s25, 7
    %p272 = por %p270, %p271
    %p274 = scmp.ne.s32.totalorder %s259, %s273
    %p275 = scmp.eq.s32.totalorder %s25, 0
    %p276 = por %p274, %p275
    %s278 = sadd.s32 %s277, 1
    %p281 = scmp.eq.s32.totalorder %s19, 7
    %p282 = scmp.ne.s32.totalorder %s277, %s279
    %p283 = scmp.eq.s32.totalorder %s19, 0
    %p284 = por %p282, %p283
    %p285 = scmp.ne.s32.totalorder %s277, %s279
    %p286 = scmp.eq.s32.totalorder %s24, 7
    %p287 = por %p285, %p286
    %p288 = scmp.ne.s32.totalorder %s279, %s280
    %p289 = scmp.eq.s32.totalorder %s24, 0
    %p290 = por %p288, %p289
    %p291 = scmp.ne.s32.totalorder %s279, %s280
    %p292 = scmp.eq.s32.totalorder %s25, 7
    %p293 = por %p291, %p292
    %p295 = scmp.ne.s32.totalorder %s280, %s294
    %p296 = scmp.eq.s32.totalorder %s25, 0
    %p297 = por %p295, %p296
    %s299 = sadd.s32 %s298, 1
    %p302 = scmp.eq.s32.totalorder %s19, 7
    %p303 = scmp.ne.s32.totalorder %s298, %s300
    %p304 = scmp.eq.s32.totalorder %s19, 0
    %p305 = por %p303, %p304
    %p306 = scmp.ne.s32.totalorder %s298, %s300
    %p307 = scmp.eq.s32.totalorder %s24, 7
    %p308 = por %p306, %p307
    %p309 = scmp.ne.s32.totalorder %s300, %s301
    %p310 = scmp.eq.s32.totalorder %s24, 0
    %p311 = por %p309, %p310
    %p312 = scmp.ne.s32.totalorder %s300, %s301
    %p313 = scmp.eq.s32.totalorder %s25, 7
    %p314 = por %p312, %p313
    %p316 = scmp.ne.s32.totalorder %s301, %s315
    %p317 = scmp.eq.s32.totalorder %s25, 0
    %p318 = por %p316, %p317
    %s319 = ssub.s32 %s26, %s38
    %s320 = ssub.s32 %s27, %s34
    %s321 = sor.u32 %s319, %s320
    %p322 = scmp.eq.s32.totalorder %s321, 0
    %s324 = sadd.s32 %s323, 1
    %s325 = scalar_select %p322, %s323, %s324
    %p328 = pneg %p322
    %p329 = scmp.eq.s32.totalorder %s19, 7
    %p330 = por %p328, %p329
    %p331 = scmp.ne.s32.totalorder %s323, %s326
    %p332 = scmp.eq.s32.totalorder %s19, 0
    %p333 = por %p331, %p332
    %p334 = scmp.ne.s32.totalorder %s323, %s326
    %p335 = scmp.eq.s32.totalorder %s24, 7
    %p336 = por %p334, %p335
    %p337 = scmp.ne.s32.totalorder %s326, %s327
    %p338 = scmp.eq.s32.totalorder %s24, 0
    %p339 = por %p337, %p338
    %p340 = scmp.ne.s32.totalorder %s326, %s327
    %p341 = scmp.eq.s32.totalorder %s25, 7
    %p342 = por %p340, %p341
    %p344 = scmp.ne.s32.totalorder %s327, %s343
    %p345 = scmp.eq.s32.totalorder %s25, 0
    %p346 = por %p344, %p345
    %p347 = scmp.le.s32.totalorder 1, %s19
    %p348 = scmp.lt.s32.totalorder %s19, 9
    %p349 = pnand %p347, %p348
    %p350 = pneg %p349
    // Predicated region
    $region9: #{convgru_encoder_block.1} parent=5 // pred_check
      _
    $region10: #{convgru_encoder_block.1} parent=5 // pred_check_branch
      %352 = sbr.rel (%p349) target = $region12
    $region11: #{convgru_encoder_block.1} parent=5 // pred_region
      %s353 = ssub.s32 %s19, 1
      // Predicated region
      $region13: #{convgru_encoder_block.1} parent=11 // pred_check
        %p354 = pneg %p80
      $region14: #{convgru_encoder_block.1} parent=11 // pred_check_branch
        %356 = sbr.rel (%p354) target = $region16
      $region15: #{convgru_encoder_block.1} parent=11 // pred_region
        _
      $region16: #{convgru_encoder_block.1} parent=11 // pred_fallthru
        _
      // Predicated region
      $region17: #{convgru_encoder_block.1} parent=11 // pred_check
        %p357 = pneg %p101
      $region18: #{convgru_encoder_block.1} parent=11 // pred_check_branch
        %359 = sbr.rel (%p357) target = $region20
      $region19: #{convgru_encoder_block.1} parent=11 // pred_region
        _
      $region20: #{convgru_encoder_block.1} parent=11 // pred_fallthru
        _
      // Predicated region
      $region21: #{convgru_encoder_block.1} parent=11 // pred_check
        %p360 = pneg %p122
      $region22: #{convgru_encoder_block.1} parent=11 // pred_check_branch
        %362 = sbr.rel (%p360) target = $region24
      $region23: #{convgru_encoder_block.1} parent=11 // pred_region
        _
      $region24: #{convgru_encoder_block.1} parent=11 // pred_fallthru
        _
      // Predicated region
      $region25: #{convgru_encoder_block.1} parent=11 // pred_check
        %p363 = pneg %p143
      $region26: #{convgru_encoder_block.1} parent=11 // pred_check_branch
        %365 = sbr.rel (%p363) target = $region28
      $region27: #{convgru_encoder_block.1} parent=11 // pred_region
        _
      $region28: #{convgru_encoder_block.1} parent=11 // pred_fallthru
        _
      // Predicated region
      $region29: #{convgru_encoder_block.1} parent=11 // pred_check
        %p366 = pneg %p164
      $region30: #{convgru_encoder_block.1} parent=11 // pred_check_branch
        %368 = sbr.rel (%p366) target = $region32
      $region31: #{convgru_encoder_block.1} parent=11 // pred_region
        _
      $region32: #{convgru_encoder_block.1} parent=11 // pred_fallthru
        _
      // Predicated region
      $region33: #{convgru_encoder_block.1} parent=11 // pred_check
        %p369 = pneg %p185
      $region34: #{convgru_encoder_block.1} parent=11 // pred_check_branch
        %371 = sbr.rel (%p369) target = $region36
      $region35: #{convgru_encoder_block.1} parent=11 // pred_region
        _
      $region36: #{convgru_encoder_block.1} parent=11 // pred_fallthru
        _
      // Predicated region
      $region37: #{convgru_encoder_block.1} parent=11 // pred_check
        %p372 = pneg %p206
      $region38: #{convgru_encoder_block.1} parent=11 // pred_check_branch
        %374 = sbr.rel (%p372) target = $region40
      $region39: #{convgru_encoder_block.1} parent=11 // pred_region
        _
      $region40: #{convgru_encoder_block.1} parent=11 // pred_fallthru
        _
      // Predicated region
      $region41: #{convgru_encoder_block.1} parent=11 // pred_check
        %p375 = pneg %p227
      $region42: #{convgru_encoder_block.1} parent=11 // pred_check_branch
        %377 = sbr.rel (%p375) target = $region44
      $region43: #{convgru_encoder_block.1} parent=11 // pred_region
        _
      $region44: #{convgru_encoder_block.1} parent=11 // pred_fallthru
        _
      // Predicated region
      $region45: #{convgru_encoder_block.1} parent=11 // pred_check
        %p378 = pneg %p248
      $region46: #{convgru_encoder_block.1} parent=11 // pred_check_branch
        %380 = sbr.rel (%p378) target = $region48
      $region47: #{convgru_encoder_block.1} parent=11 // pred_region
        _
      $region48: #{convgru_encoder_block.1} parent=11 // pred_fallthru
        _
      // Predicated region
      $region49: #{convgru_encoder_block.1} parent=11 // pred_check
        %p381 = pneg %p269
      $region50: #{convgru_encoder_block.1} parent=11 // pred_check_branch
        %383 = sbr.rel (%p381) target = $region52
      $region51: #{convgru_encoder_block.1} parent=11 // pred_region
        _
      $region52: #{convgru_encoder_block.1} parent=11 // pred_fallthru
        _
      // Predicated region
      $region53: #{convgru_encoder_block.1} parent=11 // pred_check
        %p384 = pneg %p290
      $region54: #{convgru_encoder_block.1} parent=11 // pred_check_branch
        %386 = sbr.rel (%p384) target = $region56
      $region55: #{convgru_encoder_block.1} parent=11 // pred_region
        _
      $region56: #{convgru_encoder_block.1} parent=11 // pred_fallthru
        _
      // Predicated region
      $region57: #{convgru_encoder_block.1} parent=11 // pred_check
        %p387 = pneg %p311
      $region58: #{convgru_encoder_block.1} parent=11 // pred_check_branch
        %389 = sbr.rel (%p387) target = $region60
      $region59: #{convgru_encoder_block.1} parent=11 // pred_region
        _
      $region60: #{convgru_encoder_block.1} parent=11 // pred_fallthru
        _
    $region12: #{convgru_encoder_block.1} parent=5 // pred_fallthru
      _
    %p390 = scmp.lt.s32.totalorder %s19, 8
    // Predicated region
    $region61: #{convgru_encoder_block.1} parent=5 // pred_check
      %p391 = pneg %p390
    $region62: #{convgru_encoder_block.1} parent=5 // pred_check_branch
      %393 = sbr.rel (%p391) target = $region64
    $region63: #{convgru_encoder_block.1} parent=5 // pred_region
      // Predicated region
      $region65: #{convgru_encoder_block.1} parent=63 // pred_check
        %p394 = pneg %p53
      $region66: #{convgru_encoder_block.1} parent=63 // pred_check_branch
        %396 = sbr.rel (%p394) target = $region68
      $region67: #{convgru_encoder_block.1} parent=63 // pred_region
        %p397 = scmp.lt.s32.totalorder %s26, 1
        %s398 = scalar_select %p397, %s26, 1
        %p399 = scmp.lt.s32.totalorder %s27, 3
        %s400 = scalar_select %p399, %s27, 3
        %s401 = smul.addr %s400, 54
        %s402 = smul.addr %s398, 216
        %s403 = sadd.s32 %s401, %s402
        %s404 = smul.addr %s403, 8
        %s405 = scalar_lea.vmem %s0, %s404
      $region68: #{convgru_encoder_block.1} parent=63 // pred_fallthru
        _
    $region64: #{convgru_encoder_block.1} parent=5 // pred_fallthru
      _
    %p406 = scmp.le.s32.totalorder 1, %s19
    %p407 = scmp.lt.s32.totalorder %s19, 9
    %p408 = pnand %p406, %p407
    %p409 = pneg %p408
    // Predicated region
    $region69: #{convgru_encoder_block.1} parent=5 // pred_check
      _
    $region70: #{convgru_encoder_block.1} parent=5 // pred_check_branch
      %411 = sbr.rel (%p408) target = $region72
    $region71: #{convgru_encoder_block.1} parent=5 // pred_region
      %s412 = ssub.s32 %s19, 1
      %p413 = scmp.lt.s32.totalorder %s28, 1
      %s414 = scalar_select %p413, %s28, 1
      %p415 = scmp.lt.s32.totalorder %s29, 3
      %s416 = scalar_select %p415, %s29, 3
      %s417 = smul.addr %s416, 54
      %s418 = smul.addr %s414, 216
      %s419 = sadd.s32 %s417, %s418
      %s420 = smul.addr %s419, 8
      %s421 = scalar_lea.vmem %s0, %s420
      %p422 = pneg %p59
      %p423 = pneg %p56
      %p424 = pneg %p80
      %p425 = pneg %p77
      %p426 = pneg %p101
      %p427 = pneg %p98
      %p428 = pneg %p122
      %p429 = pneg %p119
      %p430 = pneg %p143
      %p431 = pneg %p140
      %p432 = pneg %p164
      %p433 = pneg %p161
      %p434 = pneg %p185
      %p435 = pneg %p182
      %p436 = pneg %p206
      %p437 = pneg %p203
      %p438 = pneg %p227
      %p439 = pneg %p224
      %p440 = pneg %p248
      %p441 = pneg %p245
      %p442 = pneg %p269
      %p443 = pneg %p266
      %p444 = pneg %p290
      %p445 = pneg %p287
      %p446 = pneg %p311
      %p447 = pneg %p308
      %p448 = pneg %p339
      %p449 = pneg %p336
      %p450 = scmp.lt.s32.totalorder %s28, 1
      %s451 = scalar_select %p450, %s28, 1
      %p452 = scmp.lt.s32.totalorder %s29, 3
      %s453 = scalar_select %p452, %s29, 3
      %s454 = smul.addr %s453, 32
      %s455 = smul.addr %s451, 128
      %s456 = sadd.s32 %s454, %s455
      %s457 = smul.addr %s456, 8
      %s458 = scalar_lea.vmem %s13, %s457
      %p459 = scmp.lt.s32.totalorder %s28, 1
      %s460 = scalar_select %p459, %s28, 1
      %p461 = scmp.lt.s32.totalorder %s29, 3
      %s462 = scalar_select %p461, %s29, 3
      %s463 = smul.addr %s462, 54
      %s464 = smul.addr %s460, 216
      %s465 = sadd.s32 %s463, %s464
      %s466 = smul.addr %s465, 8
      %s467 = scalar_lea.vmem %s0, %s466
      %p468 = scmp.lt.s32.totalorder %s28, 1
      %s469 = scalar_select %p468, %s28, 1
      %p470 = scmp.lt.s32.totalorder %s29, 3
      %s471 = scalar_select %p470, %s29, 3
      %s472 = smul.addr %s471, 32
      %s473 = smul.addr %s469, 128
      %s474 = sadd.s32 %s472, %s473
      %s475 = smul.addr %s474, 8
      %s476 = scalar_lea.vmem %s13, %s475
      %p478 = scmp.eq.s32.totalorder %s29, 0
      // Predicated region
      $region73: #{convgru_encoder_block.1} parent=71 // pred_check
        %p479 = pneg %p478
      $region74: #{convgru_encoder_block.1} parent=71 // pred_check_branch
        %481 = sbr.rel (%p479) target = $region76
      $region75: #{convgru_encoder_block.1} parent=71 // pred_region
        %vm482 = vcmask 64512
        %483 = vst.msk [vmem:[#allocation2] sm:$0xff] %vm482, 0.0
        %484 = vst.msk [vmem:[#allocation2 + $0x8] sm:$0xff] %vm482, 0.0
        %485 = vst.msk [vmem:[#allocation2 + $0x10] sm:$0xff] %vm482, 0.0
        %486 = vst.msk [vmem:[#allocation2 + $0x18] sm:$0xff] %vm482, 0.0
        %487 = vst.msk [vmem:[#allocation2 + $0x20] sm:$0xff] %vm482, 0.0
        %488 = vst.msk [vmem:[#allocation2 + $0x28] sm:$0xff] %vm482, 0.0
        %489 = vst.msk [vmem:[#allocation2 + $0x30] sm:$0xff] %vm482, 0.0
        %490 = vst.msk [vmem:[#allocation2 + $0x38] sm:$0xff] %vm482, 0.0
        %491 = vst.msk [vmem:[#allocation2 + $0x40] sm:$0xff] %vm482, 0.0
        %492 = vst.msk [vmem:[#allocation2 + $0x48] sm:$0xff] %vm482, 0.0
        %493 = vst.msk [vmem:[#allocation2 + $0x50] sm:$0xff] %vm482, 0.0
        %494 = vst.msk [vmem:[#allocation2 + $0x58] sm:$0xff] %vm482, 0.0
        %495 = vst.msk [vmem:[#allocation2 + $0x60] sm:$0xff] %vm482, 0.0
        %496 = vst.msk [vmem:[#allocation2 + $0x68] sm:$0xff] %vm482, 0.0
        %497 = vst.msk [vmem:[#allocation2 + $0x70] sm:$0xff] %vm482, 0.0
        %498 = vst.msk [vmem:[#allocation2 + $0x78] sm:$0xff] %vm482, 0.0
        %499 = vst.msk [vmem:[#allocation2 + $0x80] sm:$0xff] %vm482, 0.0
        %500 = vst.msk [vmem:[#allocation2 + $0x88] sm:$0xff] %vm482, 0.0
        %501 = vst.msk [vmem:[#allocation2 + $0x90] sm:$0xff] %vm482, 0.0
        %502 = vst.msk [vmem:[#allocation2 + $0x98] sm:$0xff] %vm482, 0.0
        %503 = vst.msk [vmem:[#allocation2 + $0xa0] sm:$0xff] %vm482, 0.0
        %504 = vst.msk [vmem:[#allocation2 + $0xa8] sm:$0xff] %vm482, 0.0
        %505 = vst.msk [vmem:[#allocation2 + $0xb0] sm:$0xff] %vm482, 0.0
        %506 = vst.msk [vmem:[#allocation2 + $0xb8] sm:$0xff] %vm482, 0.0
        %507 = vst.msk [vmem:[#allocation2 + $0xc0] sm:$0xff] %vm482, 0.0
        %508 = vst.msk [vmem:[#allocation2 + $0xc8] sm:$0xff] %vm482, 0.0
        %509 = vst.msk [vmem:[#allocation2 + $0xd0] sm:$0xff] %vm482, 0.0
        %510 = vst.msk [vmem:[#allocation2 + $0xd8] sm:$0xff] %vm482, 0.0
        %511 = vst.msk [vmem:[#allocation2 + $0xe0] sm:$0xff] %vm482, 0.0
        %512 = vst.msk [vmem:[#allocation2 + $0xe8] sm:$0xff] %vm482, 0.0
        %513 = vst.msk [vmem:[#allocation2 + $0xf0] sm:$0xff] %vm482, 0.0
        %514 = vst.msk [vmem:[#allocation2 + $0xf8] sm:$0xff] %vm482, 0.0
        %515 = vst.msk [vmem:[#allocation2 + $0x100] sm:$0xff] %vm482, 0.0
        %516 = vst.msk [vmem:[#allocation2 + $0x108] sm:$0xff] %vm482, 0.0
        %517 = vst.msk [vmem:[#allocation2 + $0x110] sm:$0xff] %vm482, 0.0
        %518 = vst.msk [vmem:[#allocation2 + $0x118] sm:$0xff] %vm482, 0.0
        %519 = vst.msk [vmem:[#allocation2 + $0x120] sm:$0xff] %vm482, 0.0
        %520 = vst.msk [vmem:[#allocation2 + $0x128] sm:$0xff] %vm482, 0.0
        %521 = vst.msk [vmem:[#allocation2 + $0x130] sm:$0xff] %vm482, 0.0
        %522 = vst.msk [vmem:[#allocation2 + $0x138] sm:$0xff] %vm482, 0.0
        %523 = vst.msk [vmem:[#allocation2 + $0x140] sm:$0xff] %vm482, 0.0
        %524 = vst.msk [vmem:[#allocation2 + $0x148] sm:$0xff] %vm482, 0.0
        %525 = vst.msk [vmem:[#allocation2 + $0x150] sm:$0xff] %vm482, 0.0
        %526 = vst.msk [vmem:[#allocation2 + $0x158] sm:$0xff] %vm482, 0.0
        %527 = vst.msk [vmem:[#allocation2 + $0x160] sm:$0xff] %vm482, 0.0
        %528 = vst.msk [vmem:[#allocation2 + $0x168] sm:$0xff] %vm482, 0.0
        %529 = vst.msk [vmem:[#allocation2 + $0x170] sm:$0xff] %vm482, 0.0
        %530 = vst.msk [vmem:[#allocation2 + $0x178] sm:$0xff] %vm482, 0.0
        %531 = vst.msk [vmem:[#allocation2 + $0x180] sm:$0xff] %vm482, 0.0
        %532 = vst.msk [vmem:[#allocation2 + $0x188] sm:$0xff] %vm482, 0.0
        %533 = vst.msk [vmem:[#allocation2 + $0x190] sm:$0xff] %vm482, 0.0
        %534 = vst.msk [vmem:[#allocation2 + $0x198] sm:$0xff] %vm482, 0.0
        %535 = vst.msk [vmem:[#allocation2 + $0x1a0] sm:$0xff] %vm482, 0.0
        %536 = vst.msk [vmem:[#allocation2 + $0x1a8] sm:$0xff] %vm482, 0.0
        %537 = vst.msk [vmem:[#allocation2 + $0x1b0] sm:$0xff] %vm482, 0.0
        %538 = vst.msk [vmem:[#allocation2 + $0x1b8] sm:$0xff] %vm482, 0.0
        %539 = vst.msk [vmem:[#allocation2 + $0x1c0] sm:$0xff] %vm482, 0.0
        %540 = vst.msk [vmem:[#allocation2 + $0x1c8] sm:$0xff] %vm482, 0.0
        %541 = vst.msk [vmem:[#allocation2 + $0x1d0] sm:$0xff] %vm482, 0.0
        %542 = vst.msk [vmem:[#allocation2 + $0x1d8] sm:$0xff] %vm482, 0.0
        %543 = vst.msk [vmem:[#allocation2 + $0x1e0] sm:$0xff] %vm482, 0.0
        %544 = vst.msk [vmem:[#allocation2 + $0x1e8] sm:$0xff] %vm482, 0.0
        %545 = vst.msk [vmem:[#allocation2 + $0x1f0] sm:$0xff] %vm482, 0.0
        %546 = vst.msk [vmem:[#allocation2 + $0x1f8] sm:$0xff] %vm482, 0.0
        %547 = vst.msk [vmem:[#allocation2 + $0x200] sm:$0xff] %vm482, 0.0
        %548 = vst.msk [vmem:[#allocation2 + $0x208] sm:$0xff] %vm482, 0.0
        %549 = vst.msk [vmem:[#allocation2 + $0x210] sm:$0xff] %vm482, 0.0
        %550 = vst.msk [vmem:[#allocation2 + $0x218] sm:$0xff] %vm482, 0.0
        %551 = vst.msk [vmem:[#allocation2 + $0x220] sm:$0xff] %vm482, 0.0
        %552 = vst.msk [vmem:[#allocation2 + $0x228] sm:$0xff] %vm482, 0.0
        %553 = vst.msk [vmem:[#allocation2 + $0x230] sm:$0xff] %vm482, 0.0
        %554 = vst.msk [vmem:[#allocation2 + $0x238] sm:$0xff] %vm482, 0.0
        %vm555 = vcmask 261120
        %556 = vst.msk [vmem:[#allocation3] sm:$0xff] %vm555, 0.0
        %557 = vst.msk [vmem:[#allocation3 + $0x8] sm:$0xff] %vm555, 0.0
        %558 = vst.msk [vmem:[#allocation3 + $0x10] sm:$0xff] %vm555, 0.0
        %559 = vst.msk [vmem:[#allocation3 + $0x18] sm:$0xff] %vm555, 0.0
        %560 = vst.msk [vmem:[#allocation3 + $0x20] sm:$0xff] %vm555, 0.0
        %561 = vst.msk [vmem:[#allocation3 + $0x28] sm:$0xff] %vm555, 0.0
        %562 = vst.msk [vmem:[#allocation3 + $0x30] sm:$0xff] %vm555, 0.0
        %563 = vst.msk [vmem:[#allocation3 + $0x38] sm:$0xff] %vm555, 0.0
        %564 = vst.msk [vmem:[#allocation3 + $0x40] sm:$0xff] %vm555, 0.0
        %565 = vst.msk [vmem:[#allocation3 + $0x48] sm:$0xff] %vm555, 0.0
        %566 = vst.msk [vmem:[#allocation3 + $0x50] sm:$0xff] %vm555, 0.0
        %567 = vst.msk [vmem:[#allocation3 + $0x58] sm:$0xff] %vm555, 0.0
        %568 = vst.msk [vmem:[#allocation3 + $0x60] sm:$0xff] %vm555, 0.0
        %569 = vst.msk [vmem:[#allocation3 + $0x68] sm:$0xff] %vm555, 0.0
        %570 = vst.msk [vmem:[#allocation3 + $0x70] sm:$0xff] %vm555, 0.0
        %571 = vst.msk [vmem:[#allocation3 + $0x78] sm:$0xff] %vm555, 0.0
        %572 = vst.msk [vmem:[#allocation3 + $0x80] sm:$0xff] %vm555, 0.0
        %573 = vst.msk [vmem:[#allocation3 + $0x88] sm:$0xff] %vm555, 0.0
        %574 = vst.msk [vmem:[#allocation3 + $0x90] sm:$0xff] %vm555, 0.0
        %575 = vst.msk [vmem:[#allocation3 + $0x98] sm:$0xff] %vm555, 0.0
        %576 = vst.msk [vmem:[#allocation3 + $0xa0] sm:$0xff] %vm555, 0.0
        %577 = vst.msk [vmem:[#allocation3 + $0xa8] sm:$0xff] %vm555, 0.0
        %578 = vst.msk [vmem:[#allocation3 + $0xb0] sm:$0xff] %vm555, 0.0
        %579 = vst.msk [vmem:[#allocation3 + $0xb8] sm:$0xff] %vm555, 0.0
        %580 = vst.msk [vmem:[#allocation3 + $0xc0] sm:$0xff] %vm555, 0.0
        %581 = vst.msk [vmem:[#allocation3 + $0xc8] sm:$0xff] %vm555, 0.0
        %582 = vst.msk [vmem:[#allocation3 + $0xd0] sm:$0xff] %vm555, 0.0
        %583 = vst.msk [vmem:[#allocation3 + $0xd8] sm:$0xff] %vm555, 0.0
        %584 = vst.msk [vmem:[#allocation3 + $0xe0] sm:$0xff] %vm555, 0.0
        %585 = vst.msk [vmem:[#allocation3 + $0xe8] sm:$0xff] %vm555, 0.0
        %586 = vst.msk [vmem:[#allocation3 + $0xf0] sm:$0xff] %vm555, 0.0
        %587 = vst.msk [vmem:[#allocation3 + $0xf8] sm:$0xff] %vm555, 0.0
        %588 = vst.msk [vmem:[#allocation3 + $0x100] sm:$0xff] %vm555, 0.0
        %589 = vst.msk [vmem:[#allocation3 + $0x108] sm:$0xff] %vm555, 0.0
        %590 = vst.msk [vmem:[#allocation3 + $0x110] sm:$0xff] %vm555, 0.0
        %591 = vst.msk [vmem:[#allocation3 + $0x118] sm:$0xff] %vm555, 0.0
        %592 = vst.msk [vmem:[#allocation3 + $0x120] sm:$0xff] %vm555, 0.0
        %593 = vst.msk [vmem:[#allocation3 + $0x128] sm:$0xff] %vm555, 0.0
        %594 = vst.msk [vmem:[#allocation3 + $0x130] sm:$0xff] %vm555, 0.0
        %595 = vst.msk [vmem:[#allocation3 + $0x138] sm:$0xff] %vm555, 0.0
        %596 = vst.msk [vmem:[#allocation3 + $0x140] sm:$0xff] %vm555, 0.0
        %597 = vst.msk [vmem:[#allocation3 + $0x148] sm:$0xff] %vm555, 0.0
        %598 = vst.msk [vmem:[#allocation3 + $0x150] sm:$0xff] %vm555, 0.0
        %599 = vst.msk [vmem:[#allocation3 + $0x158] sm:$0xff] %vm555, 0.0
        %600 = vst.msk [vmem:[#allocation3 + $0x160] sm:$0xff] %vm555, 0.0
        %601 = vst.msk [vmem:[#allocation3 + $0x168] sm:$0xff] %vm555, 0.0
        %602 = vst.msk [vmem:[#allocation3 + $0x170] sm:$0xff] %vm555, 0.0
        %603 = vst.msk [vmem:[#allocation3 + $0x178] sm:$0xff] %vm555, 0.0
        %604 = vst.msk [vmem:[#allocation3 + $0x180] sm:$0xff] %vm555, 0.0
        %605 = vst.msk [vmem:[#allocation3 + $0x188] sm:$0xff] %vm555, 0.0
        %606 = vst.msk [vmem:[#allocation3 + $0x190] sm:$0xff] %vm555, 0.0
        %607 = vst.msk [vmem:[#allocation3 + $0x198] sm:$0xff] %vm555, 0.0
        %608 = vst.msk [vmem:[#allocation3 + $0x1a0] sm:$0xff] %vm555, 0.0
        %609 = vst.msk [vmem:[#allocation3 + $0x1a8] sm:$0xff] %vm555, 0.0
        %610 = vst.msk [vmem:[#allocation3 + $0x1b0] sm:$0xff] %vm555, 0.0
        %611 = vst.msk [vmem:[#allocation3 + $0x1b8] sm:$0xff] %vm555, 0.0
        %612 = vst.msk [vmem:[#allocation3 + $0x1c0] sm:$0xff] %vm555, 0.0
        %613 = vst.msk [vmem:[#allocation3 + $0x1c8] sm:$0xff] %vm555, 0.0
        %614 = vst.msk [vmem:[#allocation3 + $0x1d0] sm:$0xff] %vm555, 0.0
        %615 = vst.msk [vmem:[#allocation3 + $0x1d8] sm:$0xff] %vm555, 0.0
        %616 = vst.msk [vmem:[#allocation3 + $0x1e0] sm:$0xff] %vm555, 0.0
        %617 = vst.msk [vmem:[#allocation3 + $0x1e8] sm:$0xff] %vm555, 0.0
        %618 = vst.msk [vmem:[#allocation3 + $0x1f0] sm:$0xff] %vm555, 0.0
        %619 = vst.msk [vmem:[#allocation3 + $0x1f8] sm:$0xff] %vm555, 0.0
        %620 = vst.msk [vmem:[#allocation3 + $0x200] sm:$0xff] %vm555, 0.0
        %621 = vst.msk [vmem:[#allocation3 + $0x208] sm:$0xff] %vm555, 0.0
        %622 = vst.msk [vmem:[#allocation3 + $0x210] sm:$0xff] %vm555, 0.0
        %623 = vst.msk [vmem:[#allocation3 + $0x218] sm:$0xff] %vm555, 0.0
        %624 = vst.msk [vmem:[#allocation3 + $0x220] sm:$0xff] %vm555, 0.0
        %625 = vst.msk [vmem:[#allocation3 + $0x228] sm:$0xff] %vm555, 0.0
        %626 = vst.msk [vmem:[#allocation3 + $0x230] sm:$0xff] %vm555, 0.0
        %627 = vst.msk [vmem:[#allocation3 + $0x238] sm:$0xff] %vm555, 0.0
        %628 = vst.msk [vmem:[#allocation4] sm:$0xff] %vm555, 0.0
        %629 = vst.msk [vmem:[#allocation4 + $0x8] sm:$0xff] %vm555, 0.0
        %630 = vst.msk [vmem:[#allocation4 + $0x10] sm:$0xff] %vm555, 0.0
        %631 = vst.msk [vmem:[#allocation4 + $0x18] sm:$0xff] %vm555, 0.0
        %632 = vst.msk [vmem:[#allocation4 + $0x20] sm:$0xff] %vm555, 0.0
        %633 = vst.msk [vmem:[#allocation4 + $0x28] sm:$0xff] %vm555, 0.0
        %634 = vst.msk [vmem:[#allocation4 + $0x30] sm:$0xff] %vm555, 0.0
        %635 = vst.msk [vmem:[#allocation4 + $0x38] sm:$0xff] %vm555, 0.0
        %636 = vst.msk [vmem:[#allocation4 + $0x40] sm:$0xff] %vm555, 0.0
        %637 = vst.msk [vmem:[#allocation4 + $0x48] sm:$0xff] %vm555, 0.0
        %638 = vst.msk [vmem:[#allocation4 + $0x50] sm:$0xff] %vm555, 0.0
        %639 = vst.msk [vmem:[#allocation4 + $0x58] sm:$0xff] %vm555, 0.0
        %640 = vst.msk [vmem:[#allocation4 + $0x60] sm:$0xff] %vm555, 0.0
        %641 = vst.msk [vmem:[#allocation4 + $0x68] sm:$0xff] %vm555, 0.0
        %642 = vst.msk [vmem:[#allocation4 + $0x70] sm:$0xff] %vm555, 0.0
        %643 = vst.msk [vmem:[#allocation4 + $0x78] sm:$0xff] %vm555, 0.0
        %644 = vst.msk [vmem:[#allocation4 + $0x80] sm:$0xff] %vm555, 0.0
        %645 = vst.msk [vmem:[#allocation4 + $0x88] sm:$0xff] %vm555, 0.0
        %646 = vst.msk [vmem:[#allocation4 + $0x90] sm:$0xff] %vm555, 0.0
        %647 = vst.msk [vmem:[#allocation4 + $0x98] sm:$0xff] %vm555, 0.0
        %648 = vst.msk [vmem:[#allocation4 + $0xa0] sm:$0xff] %vm555, 0.0
        %649 = vst.msk [vmem:[#allocation4 + $0xa8] sm:$0xff] %vm555, 0.0
        %650 = vst.msk [vmem:[#allocation4 + $0xb0] sm:$0xff] %vm555, 0.0
        %651 = vst.msk [vmem:[#allocation4 + $0xb8] sm:$0xff] %vm555, 0.0
        %652 = vst.msk [vmem:[#allocation4 + $0xc0] sm:$0xff] %vm555, 0.0
        %653 = vst.msk [vmem:[#allocation4 + $0xc8] sm:$0xff] %vm555, 0.0
        %654 = vst.msk [vmem:[#allocation4 + $0xd0] sm:$0xff] %vm555, 0.0
        %655 = vst.msk [vmem:[#allocation4 + $0xd8] sm:$0xff] %vm555, 0.0
        %656 = vst.msk [vmem:[#allocation4 + $0xe0] sm:$0xff] %vm555, 0.0
        %657 = vst.msk [vmem:[#allocation4 + $0xe8] sm:$0xff] %vm555, 0.0
        %658 = vst.msk [vmem:[#allocation4 + $0xf0] sm:$0xff] %vm555, 0.0
        %659 = vst.msk [vmem:[#allocation4 + $0xf8] sm:$0xff] %vm555, 0.0
        %660 = vst.msk [vmem:[#allocation4 + $0x100] sm:$0xff] %vm555, 0.0
        %661 = vst.msk [vmem:[#allocation4 + $0x108] sm:$0xff] %vm555, 0.0
        %662 = vst.msk [vmem:[#allocation4 + $0x110] sm:$0xff] %vm555, 0.0
        %663 = vst.msk [vmem:[#allocation4 + $0x118] sm:$0xff] %vm555, 0.0
        %664 = vst.msk [vmem:[#allocation4 + $0x120] sm:$0xff] %vm555, 0.0
        %665 = vst.msk [vmem:[#allocation4 + $0x128] sm:$0xff] %vm555, 0.0
        %666 = vst.msk [vmem:[#allocation4 + $0x130] sm:$0xff] %vm555, 0.0
        %667 = vst.msk [vmem:[#allocation4 + $0x138] sm:$0xff] %vm555, 0.0
        %668 = vst.msk [vmem:[#allocation4 + $0x140] sm:$0xff] %vm555, 0.0
        %669 = vst.msk [vmem:[#allocation4 + $0x148] sm:$0xff] %vm555, 0.0
        %670 = vst.msk [vmem:[#allocation4 + $0x150] sm:$0xff] %vm555, 0.0
        %671 = vst.msk [vmem:[#allocation4 + $0x158] sm:$0xff] %vm555, 0.0
        %672 = vst.msk [vmem:[#allocation4 + $0x160] sm:$0xff] %vm555, 0.0
        %673 = vst.msk [vmem:[#allocation4 + $0x168] sm:$0xff] %vm555, 0.0
        %674 = vst.msk [vmem:[#allocation4 + $0x170] sm:$0xff] %vm555, 0.0
        %675 = vst.msk [vmem:[#allocation4 + $0x178] sm:$0xff] %vm555, 0.0
        %676 = vst.msk [vmem:[#allocation4 + $0x180] sm:$0xff] %vm555, 0.0
        %677 = vst.msk [vmem:[#allocation4 + $0x188] sm:$0xff] %vm555, 0.0
        %678 = vst.msk [vmem:[#allocation4 + $0x190] sm:$0xff] %vm555, 0.0
        %679 = vst.msk [vmem:[#allocation4 + $0x198] sm:$0xff] %vm555, 0.0
        %680 = vst.msk [vmem:[#allocation4 + $0x1a0] sm:$0xff] %vm555, 0.0
        %681 = vst.msk [vmem:[#allocation4 + $0x1a8] sm:$0xff] %vm555, 0.0
        %682 = vst.msk [vmem:[#allocation4 + $0x1b0] sm:$0xff] %vm555, 0.0
        %683 = vst.msk [vmem:[#allocation4 + $0x1b8] sm:$0xff] %vm555, 0.0
        %684 = vst.msk [vmem:[#allocation4 + $0x1c0] sm:$0xff] %vm555, 0.0
        %685 = vst.msk [vmem:[#allocation4 + $0x1c8] sm:$0xff] %vm555, 0.0
        %686 = vst.msk [vmem:[#allocation4 + $0x1d0] sm:$0xff] %vm555, 0.0
        %687 = vst.msk [vmem:[#allocation4 + $0x1d8] sm:$0xff] %vm555, 0.0
        %688 = vst.msk [vmem:[#allocation4 + $0x1e0] sm:$0xff] %vm555, 0.0
        %689 = vst.msk [vmem:[#allocation4 + $0x1e8] sm:$0xff] %vm555, 0.0
        %690 = vst.msk [vmem:[#allocation4 + $0x1f0] sm:$0xff] %vm555, 0.0
        %691 = vst.msk [vmem:[#allocation4 + $0x1f8] sm:$0xff] %vm555, 0.0
        %692 = vst.msk [vmem:[#allocation4 + $0x200] sm:$0xff] %vm555, 0.0
        %693 = vst.msk [vmem:[#allocation4 + $0x208] sm:$0xff] %vm555, 0.0
        %694 = vst.msk [vmem:[#allocation4 + $0x210] sm:$0xff] %vm555, 0.0
        %695 = vst.msk [vmem:[#allocation4 + $0x218] sm:$0xff] %vm555, 0.0
        %696 = vst.msk [vmem:[#allocation4 + $0x220] sm:$0xff] %vm555, 0.0
        %697 = vst.msk [vmem:[#allocation4 + $0x228] sm:$0xff] %vm555, 0.0
        %698 = vst.msk [vmem:[#allocation4 + $0x230] sm:$0xff] %vm555, 0.0
        %699 = vst.msk [vmem:[#allocation4 + $0x238] sm:$0xff] %vm555, 0.0
      $region76: #{convgru_encoder_block.1} parent=71 // pred_fallthru
        _
      %v700 = vld [vmem:[%s467] sm:$0xff]
      %v701 = vld [vmem:[%s467 + $0x8] sm:$0xff]
      %v702 = vld [vmem:[%s467 + $0x10] sm:$0x3]
      %v703 = vld [vmem:[%s467 + $0x18] sm:$0xff]
      %v704 = vld [vmem:[%s467 + $0x20] sm:$0xff]
      %v705 = vld [vmem:[%s467 + $0x28] sm:$0x3]
      %v706 = vld [vmem:[%s467 + $0x30] sm:$0xff]
      %v707 = vld [vmem:[%s467 + $0x38] sm:$0xff]
      %v708 = vld [vmem:[%s467 + $0x40] sm:$0x3]
      %v709 = vld [vmem:[%s467 + $0x48] sm:$0xff]
      %v710 = vld [vmem:[%s467 + $0x50] sm:$0xff]
      %v711 = vld [vmem:[%s467 + $0x58] sm:$0x3]
      %v712 = vld [vmem:[%s467 + $0x60] sm:$0xff]
      %v713 = vld [vmem:[%s467 + $0x68] sm:$0xff]
      %v714 = vld [vmem:[%s467 + $0x70] sm:$0x3]
      %v715 = vld [vmem:[%s467 + $0x78] sm:$0xff]
      %v716 = vld [vmem:[%s467 + $0x80] sm:$0xff]
      %v717 = vld [vmem:[%s467 + $0x88] sm:$0x3]
      %v718 = vld [vmem:[%s467 + $0x90] sm:$0xff]
      %v719 = vld [vmem:[%s467 + $0x98] sm:$0xff]
      %v720 = vld [vmem:[%s467 + $0xa0] sm:$0x3]
      %v721 = vld [vmem:[%s467 + $0xa8] sm:$0xff]
      %v722 = vld [vmem:[%s467 + $0xb0] sm:$0xff]
      %v723 = vld [vmem:[%s467 + $0xb8] sm:$0x3]
      %v724 = vld [vmem:[%s467 + $0xc0] sm:$0xff]
      %v725 = vld [vmem:[%s467 + $0xc8] sm:$0xff]
      %v726 = vld [vmem:[%s467 + $0xd0] sm:$0x3]
      %v727 = vld [vmem:[%s467 + $0xd8] sm:$0xff]
      %v728 = vld [vmem:[%s467 + $0xe0] sm:$0xff]
      %v729 = vld [vmem:[%s467 + $0xe8] sm:$0x3]
      %v730 = vld [vmem:[%s467 + $0xf0] sm:$0xff]
      %v731 = vld [vmem:[%s467 + $0xf8] sm:$0xff]
      %v732 = vld [vmem:[%s467 + $0x100] sm:$0x3]
      %v733 = vld [vmem:[%s467 + $0x108] sm:$0xff]
      %v734 = vld [vmem:[%s467 + $0x110] sm:$0xff]
      %v735 = vld [vmem:[%s467 + $0x118] sm:$0x3]
      %v736 = vld [vmem:[%s467 + $0x120] sm:$0xff]
      %v737 = vld [vmem:[%s467 + $0x128] sm:$0xff]
      %v738 = vld [vmem:[%s467 + $0x130] sm:$0x3]
      %v739 = vld [vmem:[%s467 + $0x138] sm:$0xff]
      %v740 = vld [vmem:[%s467 + $0x140] sm:$0xff]
      %v741 = vld [vmem:[%s467 + $0x148] sm:$0x3]
      %v742 = vld [vmem:[%s467 + $0x150] sm:$0xff]
      %v743 = vld [vmem:[%s467 + $0x158] sm:$0xff]
      %v744 = vld [vmem:[%s467 + $0x160] sm:$0x3]
      %v745 = vld [vmem:[%s467 + $0x168] sm:$0xff]
      %v746 = vld [vmem:[%s467 + $0x170] sm:$0xff]
      %v747 = vld [vmem:[%s467 + $0x178] sm:$0x3]
      %v748 = vld [vmem:[%s467 + $0x180] sm:$0xff]
      %v749 = vld [vmem:[%s467 + $0x188] sm:$0xff]
      %v750 = vld [vmem:[%s467 + $0x190] sm:$0x3]
      %v751 = vld [vmem:[%s467 + $0x198] sm:$0xff]
      %v752 = vld [vmem:[%s467 + $0x1a0] sm:$0xff]
      %v753 = vld [vmem:[%s467 + $0x1a8] sm:$0x3]
      %vm802 = vcmask 1046528
      %v803 = vrot.slane %v700, 1
      %v804 = vrot.slane %v701, 1
      %v805 = vsel %vm802, %v803, %v804
      %v806 = vrot.slane %v702, 1
      %v807 = vsel %vm802, %v804, %v806
      %v808 = vrot.slane %v703, 1
      %v809 = vrot.slane %v704, 1
      %v810 = vsel %vm802, %v808, %v809
      %v811 = vrot.slane %v705, 1
      %v812 = vsel %vm802, %v809, %v811
      %v813 = vrot.slane %v706, 1
      %v814 = vrot.slane %v707, 1
      %v815 = vsel %vm802, %v813, %v814
      %v816 = vrot.slane %v708, 1
      %v817 = vsel %vm802, %v814, %v816
      %v818 = vrot.slane %v709, 1
      %v819 = vrot.slane %v710, 1
      %v820 = vsel %vm802, %v818, %v819
      %v821 = vrot.slane %v711, 1
      %v822 = vsel %vm802, %v819, %v821
      %v823 = vrot.slane %v712, 1
      %v824 = vrot.slane %v713, 1
      %v825 = vsel %vm802, %v823, %v824
      %v826 = vrot.slane %v714, 1
      %v827 = vsel %vm802, %v824, %v826
      %v828 = vrot.slane %v715, 1
      %v829 = vrot.slane %v716, 1
      %v830 = vsel %vm802, %v828, %v829
      %v831 = vrot.slane %v717, 1
      %v832 = vsel %vm802, %v829, %v831
      %v833 = vrot.slane %v718, 1
      %v834 = vrot.slane %v719, 1
      %v835 = vsel %vm802, %v833, %v834
      %v836 = vrot.slane %v720, 1
      %v837 = vsel %vm802, %v834, %v836
      %v838 = vrot.slane %v721, 1
      %v839 = vrot.slane %v722, 1
      %v840 = vsel %vm802, %v838, %v839
      %v841 = vrot.slane %v723, 1
      %v842 = vsel %vm802, %v839, %v841
      %v843 = vrot.slane %v724, 1
      %v844 = vrot.slane %v725, 1
      %v845 = vsel %vm802, %v843, %v844
      %v846 = vrot.slane %v726, 1
      %v847 = vsel %vm802, %v844, %v846
      %v848 = vrot.slane %v727, 1
      %v849 = vrot.slane %v728, 1
      %v850 = vsel %vm802, %v848, %v849
      %v851 = vrot.slane %v729, 1
      %v852 = vsel %vm802, %v849, %v851
      %v853 = vrot.slane %v730, 1
      %v854 = vrot.slane %v731, 1
      %v855 = vsel %vm802, %v853, %v854
      %v856 = vrot.slane %v732, 1
      %v857 = vsel %vm802, %v854, %v856
      %v858 = vrot.slane %v733, 1
      %v859 = vrot.slane %v734, 1
      %v860 = vsel %vm802, %v858, %v859
      %v861 = vrot.slane %v735, 1
      %v862 = vsel %vm802, %v859, %v861
      %v863 = vrot.slane %v736, 1
      %v864 = vrot.slane %v737, 1
      %v865 = vsel %vm802, %v863, %v864
      %v866 = vrot.slane %v738, 1
      %v867 = vsel %vm802, %v864, %v866
      %v868 = vrot.slane %v739, 1
      %v869 = vrot.slane %v740, 1
      %v870 = vsel %vm802, %v868, %v869
      %v871 = vrot.slane %v741, 1
      %v872 = vsel %vm802, %v869, %v871
      %v873 = vrot.slane %v742, 1
      %v874 = vrot.slane %v743, 1
      %v875 = vsel %vm802, %v873, %v874
      %v876 = vrot.slane %v744, 1
      %v877 = vsel %vm802, %v874, %v876
      %v878 = vrot.slane %v745, 1
      %v879 = vrot.slane %v746, 1
      %v880 = vsel %vm802, %v878, %v879
      %v881 = vrot.slane %v747, 1
      %v882 = vsel %vm802, %v879, %v881
      %vm883 = vcmask 1045504
      %v884 = vrot.slane %v700, 2
      %v885 = vrot.slane %v701, 2
      %v886 = vsel %vm883, %v884, %v885
      %v887 = vrot.slane %v702, 2
      %v888 = vsel %vm883, %v885, %v887
      %v889 = vrot.slane %v703, 2
      %v890 = vrot.slane %v704, 2
      %v891 = vsel %vm883, %v889, %v890
      %v892 = vrot.slane %v705, 2
      %v893 = vsel %vm883, %v890, %v892
      %v894 = vrot.slane %v706, 2
      %v895 = vrot.slane %v707, 2
      %v896 = vsel %vm883, %v894, %v895
      %v897 = vrot.slane %v708, 2
      %v898 = vsel %vm883, %v895, %v897
      %v899 = vrot.slane %v709, 2
      %v900 = vrot.slane %v710, 2
      %v901 = vsel %vm883, %v899, %v900
      %v902 = vrot.slane %v711, 2
      %v903 = vsel %vm883, %v900, %v902
      %v904 = vrot.slane %v712, 2
      %v905 = vrot.slane %v713, 2
      %v906 = vsel %vm883, %v904, %v905
      %v907 = vrot.slane %v714, 2
      %v908 = vsel %vm883, %v905, %v907
      %v909 = vrot.slane %v715, 2
      %v910 = vrot.slane %v716, 2
      %v911 = vsel %vm883, %v909, %v910
      %v912 = vrot.slane %v717, 2
      %v913 = vsel %vm883, %v910, %v912
      %v914 = vrot.slane %v718, 2
      %v915 = vrot.slane %v719, 2
      %v916 = vsel %vm883, %v914, %v915
      %v917 = vrot.slane %v720, 2
      %v918 = vsel %vm883, %v915, %v917
      %v919 = vrot.slane %v721, 2
      %v920 = vrot.slane %v722, 2
      %v921 = vsel %vm883, %v919, %v920
      %v922 = vrot.slane %v723, 2
      %v923 = vsel %vm883, %v920, %v922
      %v924 = vrot.slane %v724, 2
      %v925 = vrot.slane %v725, 2
      %v926 = vsel %vm883, %v924, %v925
      %v927 = vrot.slane %v726, 2
      %v928 = vsel %vm883, %v925, %v927
      %v929 = vrot.slane %v727, 2
      %v930 = vrot.slane %v728, 2
      %v931 = vsel %vm883, %v929, %v930
      %v932 = vrot.slane %v729, 2
      %v933 = vsel %vm883, %v930, %v932
      %v934 = vrot.slane %v730, 2
      %v935 = vrot.slane %v731, 2
      %v936 = vsel %vm883, %v934, %v935
      %v937 = vrot.slane %v732, 2
      %v938 = vsel %vm883, %v935, %v937
      %v939 = vrot.slane %v733, 2
      %v940 = vrot.slane %v734, 2
      %v941 = vsel %vm883, %v939, %v940
      %v942 = vrot.slane %v735, 2
      %v943 = vsel %vm883, %v940, %v942
      %v944 = vrot.slane %v736, 2
      %v945 = vrot.slane %v737, 2
      %v946 = vsel %vm883, %v944, %v945
      %v947 = vrot.slane %v738, 2
      %v948 = vsel %vm883, %v945, %v947
      %v949 = vrot.slane %v739, 2
      %v950 = vrot.slane %v740, 2
      %v951 = vsel %vm883, %v949, %v950
      %v952 = vrot.slane %v741, 2
      %v953 = vsel %vm883, %v950, %v952
      %v954 = vrot.slane %v742, 2
      %v955 = vrot.slane %v743, 2
      %v956 = vsel %vm883, %v954, %v955
      %v957 = vrot.slane %v744, 2
      %v958 = vsel %vm883, %v955, %v957
      %v959 = vrot.slane %v745, 2
      %v960 = vrot.slane %v746, 2
      %v961 = vsel %vm883, %v959, %v960
      %v962 = vrot.slane %v747, 2
      %v963 = vsel %vm883, %v960, %v962
      %v967 = vrot.slane %v748, 1
      %v968 = vrot.slane %v749, 1
      %v969 = vsel %vm802, %v967, %v968
      %v970 = vrot.slane %v750, 1
      %v971 = vsel %vm802, %v968, %v970
      %v972 = vrot.slane %v748, 2
      %v973 = vrot.slane %v749, 2
      %v974 = vsel %vm883, %v972, %v973
      %v975 = vrot.slane %v750, 2
      %v976 = vsel %vm883, %v973, %v975
      %v980 = vrot.slane %v751, 1
      %v981 = vrot.slane %v752, 1
      %v982 = vsel %vm802, %v980, %v981
      %v983 = vrot.slane %v753, 1
      %v984 = vsel %vm802, %v981, %v983
      %v985 = vrot.slane %v751, 2
      %v986 = vrot.slane %v752, 2
      %v987 = vsel %vm883, %v985, %v986
      %v988 = vrot.slane %v753, 2
      %v989 = vsel %vm883, %v986, %v988
      %990 = vrot.lane.b32.xlu0 %v805, 4
      %v991 = vpop.permute.xlu0 %990
      %992 = vrot.lane.b32.xlu0 %v807, 4
      %v993 = vpop.permute.xlu0 %992
      %994 = vrot.lane.b32.xlu0 %v810, 4
      %v995 = vpop.permute.xlu0 %994
      %996 = vrot.lane.b32.xlu0 %v812, 4
      %v997 = vpop.permute.xlu0 %996
      %998 = vrot.lane.b32.xlu0 %v815, 4
      %v999 = vpop.permute.xlu0 %998
      %1000 = vrot.lane.b32.xlu0 %v817, 4
      %v1001 = vpop.permute.xlu0 %1000
      %1002 = vrot.lane.b32.xlu0 %v820, 4
      %v1003 = vpop.permute.xlu0 %1002
      %1004 = vrot.lane.b32.xlu0 %v822, 4
      %v1005 = vpop.permute.xlu0 %1004
      %1006 = vrot.lane.b32.xlu0 %v825, 4
      %v1007 = vpop.permute.xlu0 %1006
      %1008 = vrot.lane.b32.xlu0 %v827, 4
      %v1009 = vpop.permute.xlu0 %1008
      %1010 = vrot.lane.b32.xlu0 %v830, 4
      %v1011 = vpop.permute.xlu0 %1010
      %1012 = vrot.lane.b32.xlu0 %v832, 4
      %v1013 = vpop.permute.xlu0 %1012
      %1014 = vrot.lane.b32.xlu0 %v835, 4
      %v1015 = vpop.permute.xlu0 %1014
      %1016 = vrot.lane.b32.xlu0 %v837, 4
      %v1017 = vpop.permute.xlu0 %1016
      %1018 = vrot.lane.b32.xlu0 %v840, 4
      %v1019 = vpop.permute.xlu0 %1018
      %1020 = vrot.lane.b32.xlu0 %v842, 4
      %v1021 = vpop.permute.xlu0 %1020
      %1022 = vrot.lane.b32.xlu0 %v845, 4
      %v1023 = vpop.permute.xlu0 %1022
      %1024 = vrot.lane.b32.xlu0 %v847, 4
      %v1025 = vpop.permute.xlu0 %1024
      %1026 = vrot.lane.b32.xlu0 %v850, 4
      %v1027 = vpop.permute.xlu0 %1026
      %1028 = vrot.lane.b32.xlu0 %v852, 4
      %v1029 = vpop.permute.xlu0 %1028
      %1030 = vrot.lane.b32.xlu0 %v855, 4
      %v1031 = vpop.permute.xlu0 %1030
      %1032 = vrot.lane.b32.xlu0 %v857, 4
      %v1033 = vpop.permute.xlu0 %1032
      %1034 = vrot.lane.b32.xlu0 %v860, 4
      %v1035 = vpop.permute.xlu0 %1034
      %1036 = vrot.lane.b32.xlu0 %v862, 4
      %v1037 = vpop.permute.xlu0 %1036
      %1038 = vrot.lane.b32.xlu0 %v865, 4
      %v1039 = vpop.permute.xlu0 %1038
      %1040 = vrot.lane.b32.xlu0 %v867, 4
      %v1041 = vpop.permute.xlu0 %1040
      %1042 = vrot.lane.b32.xlu0 %v870, 4
      %v1043 = vpop.permute.xlu0 %1042
      %1044 = vrot.lane.b32.xlu0 %v872, 4
      %v1045 = vpop.permute.xlu0 %1044
      %1046 = vrot.lane.b32.xlu0 %v875, 4
      %v1047 = vpop.permute.xlu0 %1046
      %1048 = vrot.lane.b32.xlu0 %v877, 4
      %v1049 = vpop.permute.xlu0 %1048
      %1050 = vrot.lane.b32.xlu0 %v880, 4
      %v1051 = vpop.permute.xlu0 %1050
      %1052 = vrot.lane.b32.xlu0 %v882, 4
      %v1053 = vpop.permute.xlu0 %1052
      %1086 = vrot.lane.b32.xlu0 %v886, 8
      %v1087 = vpop.permute.xlu0 %1086
      %1088 = vrot.lane.b32.xlu0 %v888, 8
      %v1089 = vpop.permute.xlu0 %1088
      %1090 = vrot.lane.b32.xlu0 %v891, 8
      %v1091 = vpop.permute.xlu0 %1090
      %1092 = vrot.lane.b32.xlu0 %v893, 8
      %v1093 = vpop.permute.xlu0 %1092
      %1094 = vrot.lane.b32.xlu0 %v896, 8
      %v1095 = vpop.permute.xlu0 %1094
      %1096 = vrot.lane.b32.xlu0 %v898, 8
      %v1097 = vpop.permute.xlu0 %1096
      %1098 = vrot.lane.b32.xlu0 %v901, 8
      %v1099 = vpop.permute.xlu0 %1098
      %1100 = vrot.lane.b32.xlu0 %v903, 8
      %v1101 = vpop.permute.xlu0 %1100
      %1102 = vrot.lane.b32.xlu0 %v906, 8
      %v1103 = vpop.permute.xlu0 %1102
      %1104 = vrot.lane.b32.xlu0 %v908, 8
      %v1105 = vpop.permute.xlu0 %1104
      %1106 = vrot.lane.b32.xlu0 %v911, 8
      %v1107 = vpop.permute.xlu0 %1106
      %1108 = vrot.lane.b32.xlu0 %v913, 8
      %v1109 = vpop.permute.xlu0 %1108
      %1110 = vrot.lane.b32.xlu0 %v916, 8
      %v1111 = vpop.permute.xlu0 %1110
      %1112 = vrot.lane.b32.xlu0 %v918, 8
      %v1113 = vpop.permute.xlu0 %1112
      %1114 = vrot.lane.b32.xlu0 %v921, 8
      %v1115 = vpop.permute.xlu0 %1114
      %1116 = vrot.lane.b32.xlu0 %v923, 8
      %v1117 = vpop.permute.xlu0 %1116
      %1118 = vrot.lane.b32.xlu0 %v926, 8
      %v1119 = vpop.permute.xlu0 %1118
      %1120 = vrot.lane.b32.xlu0 %v928, 8
      %v1121 = vpop.permute.xlu0 %1120
      %1122 = vrot.lane.b32.xlu0 %v931, 8
      %v1123 = vpop.permute.xlu0 %1122
      %1124 = vrot.lane.b32.xlu0 %v933, 8
      %v1125 = vpop.permute.xlu0 %1124
      %1126 = vrot.lane.b32.xlu0 %v936, 8
      %v1127 = vpop.permute.xlu0 %1126
      %1128 = vrot.lane.b32.xlu0 %v938, 8
      %v1129 = vpop.permute.xlu0 %1128
      %1130 = vrot.lane.b32.xlu0 %v941, 8
      %v1131 = vpop.permute.xlu0 %1130
      %1132 = vrot.lane.b32.xlu0 %v943, 8
      %v1133 = vpop.permute.xlu0 %1132
      %1134 = vrot.lane.b32.xlu0 %v946, 8
      %v1135 = vpop.permute.xlu0 %1134
      %1136 = vrot.lane.b32.xlu0 %v948, 8
      %v1137 = vpop.permute.xlu0 %1136
      %1138 = vrot.lane.b32.xlu0 %v951, 8
      %v1139 = vpop.permute.xlu0 %1138
      %1140 = vrot.lane.b32.xlu0 %v953, 8
      %v1141 = vpop.permute.xlu0 %1140
      %1142 = vrot.lane.b32.xlu0 %v956, 8
      %v1143 = vpop.permute.xlu0 %1142
      %1144 = vrot.lane.b32.xlu0 %v958, 8
      %v1145 = vpop.permute.xlu0 %1144
      %1146 = vrot.lane.b32.xlu0 %v961, 8
      %v1147 = vpop.permute.xlu0 %1146
      %1148 = vrot.lane.b32.xlu0 %v963, 8
      %v1149 = vpop.permute.xlu0 %1148
      %1182 = vrot.lane.b32.xlu0 %v703, 12
      %v1183 = vpop.permute.xlu0 %1182
      %1184 = vrot.lane.b32.xlu0 %v704, 12
      %v1185 = vpop.permute.xlu0 %1184
      %1186 = vrot.lane.b32.xlu0 %v706, 12
      %v1187 = vpop.permute.xlu0 %1186
      %1188 = vrot.lane.b32.xlu0 %v707, 12
      %v1189 = vpop.permute.xlu0 %1188
      %1190 = vrot.lane.b32.xlu0 %v709, 12
      %v1191 = vpop.permute.xlu0 %1190
      %1192 = vrot.lane.b32.xlu0 %v710, 12
      %v1193 = vpop.permute.xlu0 %1192
      %1194 = vrot.lane.b32.xlu0 %v712, 12
      %v1195 = vpop.permute.xlu0 %1194
      %1196 = vrot.lane.b32.xlu0 %v713, 12
      %v1197 = vpop.permute.xlu0 %1196
      %1198 = vrot.lane.b32.xlu0 %v715, 12
      %v1199 = vpop.permute.xlu0 %1198
      %1200 = vrot.lane.b32.xlu0 %v716, 12
      %v1201 = vpop.permute.xlu0 %1200
      %1202 = vrot.lane.b32.xlu0 %v718, 12
      %v1203 = vpop.permute.xlu0 %1202
      %1204 = vrot.lane.b32.xlu0 %v719, 12
      %v1205 = vpop.permute.xlu0 %1204
      %1206 = vrot.lane.b32.xlu0 %v721, 12
      %v1207 = vpop.permute.xlu0 %1206
      %1208 = vrot.lane.b32.xlu0 %v722, 12
      %v1209 = vpop.permute.xlu0 %1208
      %1210 = vrot.lane.b32.xlu0 %v724, 12
      %v1211 = vpop.permute.xlu0 %1210
      %1212 = vrot.lane.b32.xlu0 %v725, 12
      %v1213 = vpop.permute.xlu0 %1212
      %1214 = vrot.lane.b32.xlu0 %v727, 12
      %v1215 = vpop.permute.xlu0 %1214
      %1216 = vrot.lane.b32.xlu0 %v728, 12
      %v1217 = vpop.permute.xlu0 %1216
      %1218 = vrot.lane.b32.xlu0 %v730, 12
      %v1219 = vpop.permute.xlu0 %1218
      %1220 = vrot.lane.b32.xlu0 %v731, 12
      %v1221 = vpop.permute.xlu0 %1220
      %1222 = vrot.lane.b32.xlu0 %v733, 12
      %v1223 = vpop.permute.xlu0 %1222
      %1224 = vrot.lane.b32.xlu0 %v734, 12
      %v1225 = vpop.permute.xlu0 %1224
      %1226 = vrot.lane.b32.xlu0 %v736, 12
      %v1227 = vpop.permute.xlu0 %1226
      %1228 = vrot.lane.b32.xlu0 %v737, 12
      %v1229 = vpop.permute.xlu0 %1228
      %1230 = vrot.lane.b32.xlu0 %v739, 12
      %v1231 = vpop.permute.xlu0 %1230
      %1232 = vrot.lane.b32.xlu0 %v740, 12
      %v1233 = vpop.permute.xlu0 %1232
      %1234 = vrot.lane.b32.xlu0 %v742, 12
      %v1235 = vpop.permute.xlu0 %1234
      %1236 = vrot.lane.b32.xlu0 %v743, 12
      %v1237 = vpop.permute.xlu0 %1236
      %1238 = vrot.lane.b32.xlu0 %v745, 12
      %v1239 = vpop.permute.xlu0 %1238
      %1240 = vrot.lane.b32.xlu0 %v746, 12
      %v1241 = vpop.permute.xlu0 %1240
      %1242 = vrot.lane.b32.xlu0 %v748, 12
      %v1243 = vpop.permute.xlu0 %1242
      %1244 = vrot.lane.b32.xlu0 %v749, 12
      %v1245 = vpop.permute.xlu0 %1244
      %1278 = vrot.lane.b32.xlu0 %v810, 16
      %v1279 = vpop.permute.xlu0 %1278
      %1280 = vrot.lane.b32.xlu0 %v812, 16
      %v1281 = vpop.permute.xlu0 %1280
      %1282 = vrot.lane.b32.xlu0 %v815, 16
      %v1283 = vpop.permute.xlu0 %1282
      %1284 = vrot.lane.b32.xlu0 %v817, 16
      %v1285 = vpop.permute.xlu0 %1284
      %1286 = vrot.lane.b32.xlu0 %v820, 16
      %v1287 = vpop.permute.xlu0 %1286
      %1288 = vrot.lane.b32.xlu0 %v822, 16
      %v1289 = vpop.permute.xlu0 %1288
      %1290 = vrot.lane.b32.xlu0 %v825, 16
      %v1291 = vpop.permute.xlu0 %1290
      %1292 = vrot.lane.b32.xlu0 %v827, 16
      %v1293 = vpop.permute.xlu0 %1292
      %1294 = vrot.lane.b32.xlu0 %v830, 16
      %v1295 = vpop.permute.xlu0 %1294
      %1296 = vrot.lane.b32.xlu0 %v832, 16
      %v1297 = vpop.permute.xlu0 %1296
      %1298 = vrot.lane.b32.xlu0 %v835, 16
      %v1299 = vpop.permute.xlu0 %1298
      %1300 = vrot.lane.b32.xlu0 %v837, 16
      %v1301 = vpop.permute.xlu0 %1300
      %1302 = vrot.lane.b32.xlu0 %v840, 16
      %v1303 = vpop.permute.xlu0 %1302
      %1304 = vrot.lane.b32.xlu0 %v842, 16
      %v1305 = vpop.permute.xlu0 %1304
      %1306 = vrot.lane.b32.xlu0 %v845, 16
      %v1307 = vpop.permute.xlu0 %1306
      %1308 = vrot.lane.b32.xlu0 %v847, 16
      %v1309 = vpop.permute.xlu0 %1308
      %1310 = vrot.lane.b32.xlu0 %v850, 16
      %v1311 = vpop.permute.xlu0 %1310
      %1312 = vrot.lane.b32.xlu0 %v852, 16
      %v1313 = vpop.permute.xlu0 %1312
      %1314 = vrot.lane.b32.xlu0 %v855, 16
      %v1315 = vpop.permute.xlu0 %1314
      %1316 = vrot.lane.b32.xlu0 %v857, 16
      %v1317 = vpop.permute.xlu0 %1316
      %1318 = vrot.lane.b32.xlu0 %v860, 16
      %v1319 = vpop.permute.xlu0 %1318
      %1320 = vrot.lane.b32.xlu0 %v862, 16
      %v1321 = vpop.permute.xlu0 %1320
      %1322 = vrot.lane.b32.xlu0 %v865, 16
      %v1323 = vpop.permute.xlu0 %1322
      %1324 = vrot.lane.b32.xlu0 %v867, 16
      %v1325 = vpop.permute.xlu0 %1324
      %1326 = vrot.lane.b32.xlu0 %v870, 16
      %v1327 = vpop.permute.xlu0 %1326
      %1328 = vrot.lane.b32.xlu0 %v872, 16
      %v1329 = vpop.permute.xlu0 %1328
      %1330 = vrot.lane.b32.xlu0 %v875, 16
      %v1331 = vpop.permute.xlu0 %1330
      %1332 = vrot.lane.b32.xlu0 %v877, 16
      %v1333 = vpop.permute.xlu0 %1332
      %1334 = vrot.lane.b32.xlu0 %v880, 16
      %v1335 = vpop.permute.xlu0 %1334
      %1336 = vrot.lane.b32.xlu0 %v882, 16
      %v1337 = vpop.permute.xlu0 %1336
      %1338 = vrot.lane.b32.xlu0 %v969, 16
      %v1339 = vpop.permute.xlu0 %1338
      %1340 = vrot.lane.b32.xlu0 %v971, 16
      %v1341 = vpop.permute.xlu0 %1340
      %1374 = vrot.lane.b32.xlu0 %v891, 20
      %v1375 = vpop.permute.xlu0 %1374
      %1376 = vrot.lane.b32.xlu0 %v893, 20
      %v1377 = vpop.permute.xlu0 %1376
      %1378 = vrot.lane.b32.xlu0 %v896, 20
      %v1379 = vpop.permute.xlu0 %1378
      %1380 = vrot.lane.b32.xlu0 %v898, 20
      %v1381 = vpop.permute.xlu0 %1380
      %1382 = vrot.lane.b32.xlu0 %v901, 20
      %v1383 = vpop.permute.xlu0 %1382
      %1384 = vrot.lane.b32.xlu0 %v903, 20
      %v1385 = vpop.permute.xlu0 %1384
      %1386 = vrot.lane.b32.xlu0 %v906, 20
      %v1387 = vpop.permute.xlu0 %1386
      %1388 = vrot.lane.b32.xlu0 %v908, 20
      %v1389 = vpop.permute.xlu0 %1388
      %1390 = vrot.lane.b32.xlu0 %v911, 20
      %v1391 = vpop.permute.xlu0 %1390
      %1392 = vrot.lane.b32.xlu0 %v913, 20
      %v1393 = vpop.permute.xlu0 %1392
      %1394 = vrot.lane.b32.xlu0 %v916, 20
      %v1395 = vpop.permute.xlu0 %1394
      %1396 = vrot.lane.b32.xlu0 %v918, 20
      %v1397 = vpop.permute.xlu0 %1396
      %1398 = vrot.lane.b32.xlu0 %v921, 20
      %v1399 = vpop.permute.xlu0 %1398
      %1400 = vrot.lane.b32.xlu0 %v923, 20
      %v1401 = vpop.permute.xlu0 %1400
      %1402 = vrot.lane.b32.xlu0 %v926, 20
      %v1403 = vpop.permute.xlu0 %1402
      %1404 = vrot.lane.b32.xlu0 %v928, 20
      %v1405 = vpop.permute.xlu0 %1404
      %1406 = vrot.lane.b32.xlu0 %v931, 20
      %v1407 = vpop.permute.xlu0 %1406
      %1408 = vrot.lane.b32.xlu0 %v933, 20
      %v1409 = vpop.permute.xlu0 %1408
      %1410 = vrot.lane.b32.xlu0 %v936, 20
      %v1411 = vpop.permute.xlu0 %1410
      %1412 = vrot.lane.b32.xlu0 %v938, 20
      %v1413 = vpop.permute.xlu0 %1412
      %1414 = vrot.lane.b32.xlu0 %v941, 20
      %v1415 = vpop.permute.xlu0 %1414
      %1416 = vrot.lane.b32.xlu0 %v943, 20
      %v1417 = vpop.permute.xlu0 %1416
      %1418 = vrot.lane.b32.xlu0 %v946, 20
      %v1419 = vpop.permute.xlu0 %1418
      %1420 = vrot.lane.b32.xlu0 %v948, 20
      %v1421 = vpop.permute.xlu0 %1420
      %1422 = vrot.lane.b32.xlu0 %v951, 20
      %v1423 = vpop.permute.xlu0 %1422
      %1424 = vrot.lane.b32.xlu0 %v953, 20
      %v1425 = vpop.permute.xlu0 %1424
      %1426 = vrot.lane.b32.xlu0 %v956, 20
      %v1427 = vpop.permute.xlu0 %1426
      %1428 = vrot.lane.b32.xlu0 %v958, 20
      %v1429 = vpop.permute.xlu0 %1428
      %1430 = vrot.lane.b32.xlu0 %v961, 20
      %v1431 = vpop.permute.xlu0 %1430
      %1432 = vrot.lane.b32.xlu0 %v963, 20
      %v1433 = vpop.permute.xlu0 %1432
      %1434 = vrot.lane.b32.xlu0 %v974, 20
      %v1435 = vpop.permute.xlu0 %1434
      %1436 = vrot.lane.b32.xlu0 %v976, 20
      %v1437 = vpop.permute.xlu0 %1436
      %1470 = vrot.lane.b32.xlu0 %v706, 24
      %v1471 = vpop.permute.xlu0 %1470
      %1472 = vrot.lane.b32.xlu0 %v707, 24
      %v1473 = vpop.permute.xlu0 %1472
      %1474 = vrot.lane.b32.xlu0 %v709, 24
      %v1475 = vpop.permute.xlu0 %1474
      %1476 = vrot.lane.b32.xlu0 %v710, 24
      %v1477 = vpop.permute.xlu0 %1476
      %1478 = vrot.lane.b32.xlu0 %v712, 24
      %v1479 = vpop.permute.xlu0 %1478
      %1480 = vrot.lane.b32.xlu0 %v713, 24
      %v1481 = vpop.permute.xlu0 %1480
      %1482 = vrot.lane.b32.xlu0 %v715, 24
      %v1483 = vpop.permute.xlu0 %1482
      %1484 = vrot.lane.b32.xlu0 %v716, 24
      %v1485 = vpop.permute.xlu0 %1484
      %1486 = vrot.lane.b32.xlu0 %v718, 24
      %v1487 = vpop.permute.xlu0 %1486
      %1488 = vrot.lane.b32.xlu0 %v719, 24
      %v1489 = vpop.permute.xlu0 %1488
      %1490 = vrot.lane.b32.xlu0 %v721, 24
      %v1491 = vpop.permute.xlu0 %1490
      %1492 = vrot.lane.b32.xlu0 %v722, 24
      %v1493 = vpop.permute.xlu0 %1492
      %1494 = vrot.lane.b32.xlu0 %v724, 24
      %v1495 = vpop.permute.xlu0 %1494
      %1496 = vrot.lane.b32.xlu0 %v725, 24
      %v1497 = vpop.permute.xlu0 %1496
      %1498 = vrot.lane.b32.xlu0 %v727, 24
      %v1499 = vpop.permute.xlu0 %1498
      %1500 = vrot.lane.b32.xlu0 %v728, 24
      %v1501 = vpop.permute.xlu0 %1500
      %1502 = vrot.lane.b32.xlu0 %v730, 24
      %v1503 = vpop.permute.xlu0 %1502
      %1504 = vrot.lane.b32.xlu0 %v731, 24
      %v1505 = vpop.permute.xlu0 %1504
      %1506 = vrot.lane.b32.xlu0 %v733, 24
      %v1507 = vpop.permute.xlu0 %1506
      %1508 = vrot.lane.b32.xlu0 %v734, 24
      %v1509 = vpop.permute.xlu0 %1508
      %1510 = vrot.lane.b32.xlu0 %v736, 24
      %v1511 = vpop.permute.xlu0 %1510
      %1512 = vrot.lane.b32.xlu0 %v737, 24
      %v1513 = vpop.permute.xlu0 %1512
      %1514 = vrot.lane.b32.xlu0 %v739, 24
      %v1515 = vpop.permute.xlu0 %1514
      %1516 = vrot.lane.b32.xlu0 %v740, 24
      %v1517 = vpop.permute.xlu0 %1516
      %1518 = vrot.lane.b32.xlu0 %v742, 24
      %v1519 = vpop.permute.xlu0 %1518
      %1520 = vrot.lane.b32.xlu0 %v743, 24
      %v1521 = vpop.permute.xlu0 %1520
      %1522 = vrot.lane.b32.xlu0 %v745, 24
      %v1523 = vpop.permute.xlu0 %1522
      %1524 = vrot.lane.b32.xlu0 %v746, 24
      %v1525 = vpop.permute.xlu0 %1524
      %1526 = vrot.lane.b32.xlu0 %v748, 24
      %v1527 = vpop.permute.xlu0 %1526
      %1528 = vrot.lane.b32.xlu0 %v749, 24
      %v1529 = vpop.permute.xlu0 %1528
      %1530 = vrot.lane.b32.xlu0 %v751, 24
      %v1531 = vpop.permute.xlu0 %1530
      %1532 = vrot.lane.b32.xlu0 %v752, 24
      %v1533 = vpop.permute.xlu0 %1532
      %1566 = vrot.lane.b32.xlu0 %v815, 28
      %v1567 = vpop.permute.xlu0 %1566
      %1568 = vrot.lane.b32.xlu0 %v817, 28
      %v1569 = vpop.permute.xlu0 %1568
      %1570 = vrot.lane.b32.xlu0 %v820, 28
      %v1571 = vpop.permute.xlu0 %1570
      %1572 = vrot.lane.b32.xlu0 %v822, 28
      %v1573 = vpop.permute.xlu0 %1572
      %1574 = vrot.lane.b32.xlu0 %v825, 28
      %v1575 = vpop.permute.xlu0 %1574
      %1576 = vrot.lane.b32.xlu0 %v827, 28
      %v1577 = vpop.permute.xlu0 %1576
      %1578 = vrot.lane.b32.xlu0 %v830, 28
      %v1579 = vpop.permute.xlu0 %1578
      %1580 = vrot.lane.b32.xlu0 %v832, 28
      %v1581 = vpop.permute.xlu0 %1580
      %1582 = vrot.lane.b32.xlu0 %v835, 28
      %v1583 = vpop.permute.xlu0 %1582
      %1584 = vrot.lane.b32.xlu0 %v837, 28
      %v1585 = vpop.permute.xlu0 %1584
      %1586 = vrot.lane.b32.xlu0 %v840, 28
      %v1587 = vpop.permute.xlu0 %1586
      %1588 = vrot.lane.b32.xlu0 %v842, 28
      %v1589 = vpop.permute.xlu0 %1588
      %1590 = vrot.lane.b32.xlu0 %v845, 28
      %v1591 = vpop.permute.xlu0 %1590
      %1592 = vrot.lane.b32.xlu0 %v847, 28
      %v1593 = vpop.permute.xlu0 %1592
      %1594 = vrot.lane.b32.xlu0 %v850, 28
      %v1595 = vpop.permute.xlu0 %1594
      %1596 = vrot.lane.b32.xlu0 %v852, 28
      %v1597 = vpop.permute.xlu0 %1596
      %1598 = vrot.lane.b32.xlu0 %v855, 28
      %v1599 = vpop.permute.xlu0 %1598
      %1600 = vrot.lane.b32.xlu0 %v857, 28
      %v1601 = vpop.permute.xlu0 %1600
      %1602 = vrot.lane.b32.xlu0 %v860, 28
      %v1603 = vpop.permute.xlu0 %1602
      %1604 = vrot.lane.b32.xlu0 %v862, 28
      %v1605 = vpop.permute.xlu0 %1604
      %1606 = vrot.lane.b32.xlu0 %v865, 28
      %v1607 = vpop.permute.xlu0 %1606
      %1608 = vrot.lane.b32.xlu0 %v867, 28
      %v1609 = vpop.permute.xlu0 %1608
      %1610 = vrot.lane.b32.xlu0 %v870, 28
      %v1611 = vpop.permute.xlu0 %1610
      %1612 = vrot.lane.b32.xlu0 %v872, 28
      %v1613 = vpop.permute.xlu0 %1612
      %1614 = vrot.lane.b32.xlu0 %v875, 28
      %v1615 = vpop.permute.xlu0 %1614
      %1616 = vrot.lane.b32.xlu0 %v877, 28
      %v1617 = vpop.permute.xlu0 %1616
      %1618 = vrot.lane.b32.xlu0 %v880, 28
      %v1619 = vpop.permute.xlu0 %1618
      %1620 = vrot.lane.b32.xlu0 %v882, 28
      %v1621 = vpop.permute.xlu0 %1620
      %1622 = vrot.lane.b32.xlu0 %v969, 28
      %v1623 = vpop.permute.xlu0 %1622
      %1624 = vrot.lane.b32.xlu0 %v971, 28
      %v1625 = vpop.permute.xlu0 %1624
      %1626 = vrot.lane.b32.xlu0 %v982, 28
      %v1627 = vpop.permute.xlu0 %1626
      %1628 = vrot.lane.b32.xlu0 %v984, 28
      %v1629 = vpop.permute.xlu0 %1628
      %1662 = vrot.lane.b32.xlu0 %v896, 32
      %v1663 = vpop.permute.xlu0 %1662
      %1664 = vrot.lane.b32.xlu0 %v898, 32
      %v1665 = vpop.permute.xlu0 %1664
      %1666 = vrot.lane.b32.xlu0 %v901, 32
      %v1667 = vpop.permute.xlu0 %1666
      %1668 = vrot.lane.b32.xlu0 %v903, 32
      %v1669 = vpop.permute.xlu0 %1668
      %1670 = vrot.lane.b32.xlu0 %v906, 32
      %v1671 = vpop.permute.xlu0 %1670
      %1672 = vrot.lane.b32.xlu0 %v908, 32
      %v1673 = vpop.permute.xlu0 %1672
      %1674 = vrot.lane.b32.xlu0 %v911, 32
      %v1675 = vpop.permute.xlu0 %1674
      %1676 = vrot.lane.b32.xlu0 %v913, 32
      %v1677 = vpop.permute.xlu0 %1676
      %1678 = vrot.lane.b32.xlu0 %v916, 32
      %v1679 = vpop.permute.xlu0 %1678
      %1680 = vrot.lane.b32.xlu0 %v918, 32
      %v1681 = vpop.permute.xlu0 %1680
      %1682 = vrot.lane.b32.xlu0 %v921, 32
      %v1683 = vpop.permute.xlu0 %1682
      %1684 = vrot.lane.b32.xlu0 %v923, 32
      %v1685 = vpop.permute.xlu0 %1684
      %1686 = vrot.lane.b32.xlu0 %v926, 32
      %v1687 = vpop.permute.xlu0 %1686
      %1688 = vrot.lane.b32.xlu0 %v928, 32
      %v1689 = vpop.permute.xlu0 %1688
      %1690 = vrot.lane.b32.xlu0 %v931, 32
      %v1691 = vpop.permute.xlu0 %1690
      %1692 = vrot.lane.b32.xlu0 %v933, 32
      %v1693 = vpop.permute.xlu0 %1692
      %1694 = vrot.lane.b32.xlu0 %v936, 32
      %v1695 = vpop.permute.xlu0 %1694
      %1696 = vrot.lane.b32.xlu0 %v938, 32
      %v1697 = vpop.permute.xlu0 %1696
      %1698 = vrot.lane.b32.xlu0 %v941, 32
      %v1699 = vpop.permute.xlu0 %1698
      %1700 = vrot.lane.b32.xlu0 %v943, 32
      %v1701 = vpop.permute.xlu0 %1700
      %1702 = vrot.lane.b32.xlu0 %v946, 32
      %v1703 = vpop.permute.xlu0 %1702
      %1704 = vrot.lane.b32.xlu0 %v948, 32
      %v1705 = vpop.permute.xlu0 %1704
      %1706 = vrot.lane.b32.xlu0 %v951, 32
      %v1707 = vpop.permute.xlu0 %1706
      %1708 = vrot.lane.b32.xlu0 %v953, 32
      %v1709 = vpop.permute.xlu0 %1708
      %1710 = vrot.lane.b32.xlu0 %v956, 32
      %v1711 = vpop.permute.xlu0 %1710
      %1712 = vrot.lane.b32.xlu0 %v958, 32
      %v1713 = vpop.permute.xlu0 %1712
      %1714 = vrot.lane.b32.xlu0 %v961, 32
      %v1715 = vpop.permute.xlu0 %1714
      %1716 = vrot.lane.b32.xlu0 %v963, 32
      %v1717 = vpop.permute.xlu0 %1716
      %1718 = vrot.lane.b32.xlu0 %v974, 32
      %v1719 = vpop.permute.xlu0 %1718
      %1720 = vrot.lane.b32.xlu0 %v976, 32
      %v1721 = vpop.permute.xlu0 %1720
      %1722 = vrot.lane.b32.xlu0 %v987, 32
      %v1723 = vpop.permute.xlu0 %1722
      %1724 = vrot.lane.b32.xlu0 %v989, 32
      %v1725 = vpop.permute.xlu0 %1724
      %vm1758 = vcmask 31744
      %v1759 = vsel %vm1758, %v700, %v991
      %v1760 = vsel %vm1758, %v701, %v993
      %v1761 = vsel %vm1758, %v703, %v995
      %v1762 = vsel %vm1758, %v704, %v997
      %v1763 = vsel %vm1758, %v706, %v999
      %v1764 = vsel %vm1758, %v707, %v1001
      %v1765 = vsel %vm1758, %v709, %v1003
      %v1766 = vsel %vm1758, %v710, %v1005
      %v1767 = vsel %vm1758, %v712, %v1007
      %v1768 = vsel %vm1758, %v713, %v1009
      %v1769 = vsel %vm1758, %v715, %v1011
      %v1770 = vsel %vm1758, %v716, %v1013
      %v1771 = vsel %vm1758, %v718, %v1015
      %v1772 = vsel %vm1758, %v719, %v1017
      %v1773 = vsel %vm1758, %v721, %v1019
      %v1774 = vsel %vm1758, %v722, %v1021
      %v1775 = vsel %vm1758, %v724, %v1023
      %v1776 = vsel %vm1758, %v725, %v1025
      %v1777 = vsel %vm1758, %v727, %v1027
      %v1778 = vsel %vm1758, %v728, %v1029
      %v1779 = vsel %vm1758, %v730, %v1031
      %v1780 = vsel %vm1758, %v731, %v1033
      %v1781 = vsel %vm1758, %v733, %v1035
      %v1782 = vsel %vm1758, %v734, %v1037
      %v1783 = vsel %vm1758, %v736, %v1039
      %v1784 = vsel %vm1758, %v737, %v1041
      %v1785 = vsel %vm1758, %v739, %v1043
      %v1786 = vsel %vm1758, %v740, %v1045
      %v1787 = vsel %vm1758, %v742, %v1047
      %v1788 = vsel %vm1758, %v743, %v1049
      %v1789 = vsel %vm1758, %v745, %v1051
      %v1790 = vsel %vm1758, %v746, %v1053
      %vm1791 = vcmask 64512
      %v1792 = vsel %vm1791, %v1759, %v1087
      %v1793 = vsel %vm1791, %v1760, %v1089
      %v1794 = vsel %vm1791, %v1761, %v1091
      %v1795 = vsel %vm1791, %v1762, %v1093
      %v1796 = vsel %vm1791, %v1763, %v1095
      %v1797 = vsel %vm1791, %v1764, %v1097
      %v1798 = vsel %vm1791, %v1765, %v1099
      %v1799 = vsel %vm1791, %v1766, %v1101
      %v1800 = vsel %vm1791, %v1767, %v1103
      %v1801 = vsel %vm1791, %v1768, %v1105
      %v1802 = vsel %vm1791, %v1769, %v1107
      %v1803 = vsel %vm1791, %v1770, %v1109
      %v1804 = vsel %vm1791, %v1771, %v1111
      %v1805 = vsel %vm1791, %v1772, %v1113
      %v1806 = vsel %vm1791, %v1773, %v1115
      %v1807 = vsel %vm1791, %v1774, %v1117
      %v1808 = vsel %vm1791, %v1775, %v1119
      %v1809 = vsel %vm1791, %v1776, %v1121
      %v1810 = vsel %vm1791, %v1777, %v1123
      %v1811 = vsel %vm1791, %v1778, %v1125
      %v1812 = vsel %vm1791, %v1779, %v1127
      %v1813 = vsel %vm1791, %v1780, %v1129
      %v1814 = vsel %vm1791, %v1781, %v1131
      %v1815 = vsel %vm1791, %v1782, %v1133
      %v1816 = vsel %vm1791, %v1783, %v1135
      %v1817 = vsel %vm1791, %v1784, %v1137
      %v1818 = vsel %vm1791, %v1785, %v1139
      %v1819 = vsel %vm1791, %v1786, %v1141
      %v1820 = vsel %vm1791, %v1787, %v1143
      %v1821 = vsel %vm1791, %v1788, %v1145
      %v1822 = vsel %vm1791, %v1789, %v1147
      %v1823 = vsel %vm1791, %v1790, %v1149
      %vm1824 = vcmask 97280
      %v1825 = vsel %vm1824, %v1792, %v1183
      %v1826 = vsel %vm1824, %v1793, %v1185
      %v1827 = vsel %vm1824, %v1794, %v1187
      %v1828 = vsel %vm1824, %v1795, %v1189
      %v1829 = vsel %vm1824, %v1796, %v1191
      %v1830 = vsel %vm1824, %v1797, %v1193
      %v1831 = vsel %vm1824, %v1798, %v1195
      %v1832 = vsel %vm1824, %v1799, %v1197
      %v1833 = vsel %vm1824, %v1800, %v1199
      %v1834 = vsel %vm1824, %v1801, %v1201
      %v1835 = vsel %vm1824, %v1802, %v1203
      %v1836 = vsel %vm1824, %v1803, %v1205
      %v1837 = vsel %vm1824, %v1804, %v1207
      %v1838 = vsel %vm1824, %v1805, %v1209
      %v1839 = vsel %vm1824, %v1806, %v1211
      %v1840 = vsel %vm1824, %v1807, %v1213
      %v1841 = vsel %vm1824, %v1808, %v1215
      %v1842 = vsel %vm1824, %v1809, %v1217
      %v1843 = vsel %vm1824, %v1810, %v1219
      %v1844 = vsel %vm1824, %v1811, %v1221
      %v1845 = vsel %vm1824, %v1812, %v1223
      %v1846 = vsel %vm1824, %v1813, %v1225
      %v1847 = vsel %vm1824, %v1814, %v1227
      %v1848 = vsel %vm1824, %v1815, %v1229
      %v1849 = vsel %vm1824, %v1816, %v1231
      %v1850 = vsel %vm1824, %v1817, %v1233
      %v1851 = vsel %vm1824, %v1818, %v1235
      %v1852 = vsel %vm1824, %v1819, %v1237
      %v1853 = vsel %vm1824, %v1820, %v1239
      %v1854 = vsel %vm1824, %v1821, %v1241
      %v1855 = vsel %vm1824, %v1822, %v1243
      %v1856 = vsel %vm1824, %v1823, %v1245
      %vm1857 = vcmask 130048
      %v1858 = vsel %vm1857, %v1825, %v1279
      %v1859 = vsel %vm1857, %v1826, %v1281
      %v1860 = vsel %vm1857, %v1827, %v1283
      %v1861 = vsel %vm1857, %v1828, %v1285
      %v1862 = vsel %vm1857, %v1829, %v1287
      %v1863 = vsel %vm1857, %v1830, %v1289
      %v1864 = vsel %vm1857, %v1831, %v1291
      %v1865 = vsel %vm1857, %v1832, %v1293
      %v1866 = vsel %vm1857, %v1833, %v1295
      %v1867 = vsel %vm1857, %v1834, %v1297
      %v1868 = vsel %vm1857, %v1835, %v1299
      %v1869 = vsel %vm1857, %v1836, %v1301
      %v1870 = vsel %vm1857, %v1837, %v1303
      %v1871 = vsel %vm1857, %v1838, %v1305
      %v1872 = vsel %vm1857, %v1839, %v1307
      %v1873 = vsel %vm1857, %v1840, %v1309
      %v1874 = vsel %vm1857, %v1841, %v1311
      %v1875 = vsel %vm1857, %v1842, %v1313
      %v1876 = vsel %vm1857, %v1843, %v1315
      %v1877 = vsel %vm1857, %v1844, %v1317
      %v1878 = vsel %vm1857, %v1845, %v1319
      %v1879 = vsel %vm1857, %v1846, %v1321
      %v1880 = vsel %vm1857, %v1847, %v1323
      %v1881 = vsel %vm1857, %v1848, %v1325
      %v1882 = vsel %vm1857, %v1849, %v1327
      %v1883 = vsel %vm1857, %v1850, %v1329
      %v1884 = vsel %vm1857, %v1851, %v1331
      %v1885 = vsel %vm1857, %v1852, %v1333
      %v1886 = vsel %vm1857, %v1853, %v1335
      %v1887 = vsel %vm1857, %v1854, %v1337
      %v1888 = vsel %vm1857, %v1855, %v1339
      %v1889 = vsel %vm1857, %v1856, %v1341
      %vm1890 = vcmask 162816
      %v1891 = vsel %vm1890, %v1858, %v1375
      %v1892 = vsel %vm1890, %v1859, %v1377
      %v1893 = vsel %vm1890, %v1860, %v1379
      %v1894 = vsel %vm1890, %v1861, %v1381
      %v1895 = vsel %vm1890, %v1862, %v1383
      %v1896 = vsel %vm1890, %v1863, %v1385
      %v1897 = vsel %vm1890, %v1864, %v1387
      %v1898 = vsel %vm1890, %v1865, %v1389
      %v1899 = vsel %vm1890, %v1866, %v1391
      %v1900 = vsel %vm1890, %v1867, %v1393
      %v1901 = vsel %vm1890, %v1868, %v1395
      %v1902 = vsel %vm1890, %v1869, %v1397
      %v1903 = vsel %vm1890, %v1870, %v1399
      %v1904 = vsel %vm1890, %v1871, %v1401
      %v1905 = vsel %vm1890, %v1872, %v1403
      %v1906 = vsel %vm1890, %v1873, %v1405
      %v1907 = vsel %vm1890, %v1874, %v1407
      %v1908 = vsel %vm1890, %v1875, %v1409
      %v1909 = vsel %vm1890, %v1876, %v1411
      %v1910 = vsel %vm1890, %v1877, %v1413
      %v1911 = vsel %vm1890, %v1878, %v1415
      %v1912 = vsel %vm1890, %v1879, %v1417
      %v1913 = vsel %vm1890, %v1880, %v1419
      %v1914 = vsel %vm1890, %v1881, %v1421
      %v1915 = vsel %vm1890, %v1882, %v1423
      %v1916 = vsel %vm1890, %v1883, %v1425
      %v1917 = vsel %vm1890, %v1884, %v1427
      %v1918 = vsel %vm1890, %v1885, %v1429
      %v1919 = vsel %vm1890, %v1886, %v1431
      %v1920 = vsel %vm1890, %v1887, %v1433
      %v1921 = vsel %vm1890, %v1888, %v1435
      %v1922 = vsel %vm1890, %v1889, %v1437
      %vm1923 = vcmask 195584
      %v1924 = vsel %vm1923, %v1891, %v1471
      %v1925 = vsel %vm1923, %v1892, %v1473
      %v1926 = vsel %vm1923, %v1893, %v1475
      %v1927 = vsel %vm1923, %v1894, %v1477
      %v1928 = vsel %vm1923, %v1895, %v1479
      %v1929 = vsel %vm1923, %v1896, %v1481
      %v1930 = vsel %vm1923, %v1897, %v1483
      %v1931 = vsel %vm1923, %v1898, %v1485
      %v1932 = vsel %vm1923, %v1899, %v1487
      %v1933 = vsel %vm1923, %v1900, %v1489
      %v1934 = vsel %vm1923, %v1901, %v1491
      %v1935 = vsel %vm1923, %v1902, %v1493
      %v1936 = vsel %vm1923, %v1903, %v1495
      %v1937 = vsel %vm1923, %v1904, %v1497
      %v1938 = vsel %vm1923, %v1905, %v1499
      %v1939 = vsel %vm1923, %v1906, %v1501
      %v1940 = vsel %vm1923, %v1907, %v1503
      %v1941 = vsel %vm1923, %v1908, %v1505
      %v1942 = vsel %vm1923, %v1909, %v1507
      %v1943 = vsel %vm1923, %v1910, %v1509
      %v1944 = vsel %vm1923, %v1911, %v1511
      %v1945 = vsel %vm1923, %v1912, %v1513
      %v1946 = vsel %vm1923, %v1913, %v1515
      %v1947 = vsel %vm1923, %v1914, %v1517
      %v1948 = vsel %vm1923, %v1915, %v1519
      %v1949 = vsel %vm1923, %v1916, %v1521
      %v1950 = vsel %vm1923, %v1917, %v1523
      %v1951 = vsel %vm1923, %v1918, %v1525
      %v1952 = vsel %vm1923, %v1919, %v1527
      %v1953 = vsel %vm1923, %v1920, %v1529
      %v1954 = vsel %vm1923, %v1921, %v1531
      %v1955 = vsel %vm1923, %v1922, %v1533
      %vm1956 = vcmask 228352
      %v1957 = vsel %vm1956, %v1924, %v1567
      %v1958 = vsel %vm1956, %v1925, %v1569
      %v1959 = vsel %vm1956, %v1926, %v1571
      %v1960 = vsel %vm1956, %v1927, %v1573
      %v1961 = vsel %vm1956, %v1928, %v1575
      %v1962 = vsel %vm1956, %v1929, %v1577
      %v1963 = vsel %vm1956, %v1930, %v1579
      %v1964 = vsel %vm1956, %v1931, %v1581
      %v1965 = vsel %vm1956, %v1932, %v1583
      %v1966 = vsel %vm1956, %v1933, %v1585
      %v1967 = vsel %vm1956, %v1934, %v1587
      %v1968 = vsel %vm1956, %v1935, %v1589
      %v1969 = vsel %vm1956, %v1936, %v1591
      %v1970 = vsel %vm1956, %v1937, %v1593
      %v1971 = vsel %vm1956, %v1938, %v1595
      %v1972 = vsel %vm1956, %v1939, %v1597
      %v1973 = vsel %vm1956, %v1940, %v1599
      %v1974 = vsel %vm1956, %v1941, %v1601
      %v1975 = vsel %vm1956, %v1942, %v1603
      %v1976 = vsel %vm1956, %v1943, %v1605
      %v1977 = vsel %vm1956, %v1944, %v1607
      %v1978 = vsel %vm1956, %v1945, %v1609
      %v1979 = vsel %vm1956, %v1946, %v1611
      %v1980 = vsel %vm1956, %v1947, %v1613
      %v1981 = vsel %vm1956, %v1948, %v1615
      %v1982 = vsel %vm1956, %v1949, %v1617
      %v1983 = vsel %vm1956, %v1950, %v1619
      %v1984 = vsel %vm1956, %v1951, %v1621
      %v1985 = vsel %vm1956, %v1952, %v1623
      %v1986 = vsel %vm1956, %v1953, %v1625
      %v1987 = vsel %vm1956, %v1954, %v1627
      %v1988 = vsel %vm1956, %v1955, %v1629
      %vm1989 = vcmask 261120
      %v1990 = vsel %vm1989, %v1957, %v1663
      %v1991 = vsel %vm1989, %v1958, %v1665
      %v1992 = vsel %vm1989, %v1959, %v1667
      %v1993 = vsel %vm1989, %v1960, %v1669
      %v1994 = vsel %vm1989, %v1961, %v1671
      %v1995 = vsel %vm1989, %v1962, %v1673
      %v1996 = vsel %vm1989, %v1963, %v1675
      %v1997 = vsel %vm1989, %v1964, %v1677
      %v1998 = vsel %vm1989, %v1965, %v1679
      %v1999 = vsel %vm1989, %v1966, %v1681
      %v2000 = vsel %vm1989, %v1967, %v1683
      %v2001 = vsel %vm1989, %v1968, %v1685
      %v2002 = vsel %vm1989, %v1969, %v1687
      %v2003 = vsel %vm1989, %v1970, %v1689
      %v2004 = vsel %vm1989, %v1971, %v1691
      %v2005 = vsel %vm1989, %v1972, %v1693
      %v2006 = vsel %vm1989, %v1973, %v1695
      %v2007 = vsel %vm1989, %v1974, %v1697
      %v2008 = vsel %vm1989, %v1975, %v1699
      %v2009 = vsel %vm1989, %v1976, %v1701
      %v2010 = vsel %vm1989, %v1977, %v1703
      %v2011 = vsel %vm1989, %v1978, %v1705
      %v2012 = vsel %vm1989, %v1979, %v1707
      %v2013 = vsel %vm1989, %v1980, %v1709
      %v2014 = vsel %vm1989, %v1981, %v1711
      %v2015 = vsel %vm1989, %v1982, %v1713
      %v2016 = vsel %vm1989, %v1983, %v1715
      %v2017 = vsel %vm1989, %v1984, %v1717
      %v2018 = vsel %vm1989, %v1985, %v1719
      %v2019 = vsel %vm1989, %v1986, %v1721
      %v2020 = vsel %vm1989, %v1987, %v1723
      %v2021 = vsel %vm1989, %v1988, %v1725
      %v2022 = vpack.c.bf16 %v1991, %v1990
      %v2023 = vpack.c.bf16 %v1993, %v1992
      %v2024 = vpack.c.bf16 %v1995, %v1994
      %v2025 = vpack.c.bf16 %v1997, %v1996
      %v2026 = vpack.c.bf16 %v1999, %v1998
      %v2027 = vpack.c.bf16 %v2001, %v2000
      %v2028 = vpack.c.bf16 %v2003, %v2002
      %v2029 = vpack.c.bf16 %v2005, %v2004
      %v2030 = vpack.c.bf16 %v2007, %v2006
      %v2031 = vpack.c.bf16 %v2009, %v2008
      %v2032 = vpack.c.bf16 %v2011, %v2010
      %v2033 = vpack.c.bf16 %v2013, %v2012
      %v2034 = vpack.c.bf16 %v2015, %v2014
      %v2035 = vpack.c.bf16 %v2017, %v2016
      %v2036 = vpack.c.bf16 %v2019, %v2018
      %v2037 = vpack.c.bf16 %v2021, %v2020
      %v2038 = vld [vmem:[%s1] sm:$0xf]
      %v2039 = vld [vmem:[%s1 + $0x4] sm:$0xf]
      %v2040 = vld [vmem:[%s1 + $0x8] sm:$0xf]
      %v2041 = vld [vmem:[%s1 + $0xc] sm:$0xf]
      %v2042 = vld [vmem:[%s1 + $0x10] sm:$0x3]
      %v2043 = vld [vmem:[%s2] sm:$0x1]
      %v2045 = vlaneseq
      %v2046 = vshrl.u32 %v2045, 7
      %v2047 = vsub.s32 0, %v2046
      %v2048 = vrot.slane %v2043, %v2047
      %v2055 = vunpack.c.l.b16 %v2038
      %v2056 = vunpack.c.l.b16 %v2039
      %v2057 = vunpack.c.l.b16 %v2040
      %v2058 = vunpack.c.l.b16 %v2041
      %v2059 = vunpack.c.l.b16 %v2042
      %v2060 = vpack.c.b16 %v2056, %v2055
      %v2061 = vpack.c.b16 %v2058, %v2057
      %v2062 = vpack.c.b16 %v2059, %v2059
      %vm2065 = vcmask 293888
      %v2067 = vsel %vm2065, %v2022, 0
      %v2070 = vsel %vm2065, %v2023, 0
      %v2073 = vsel %vm2065, %v2024, 0
      %v2076 = vsel %vm2065, %v2025, 0
      %v2079 = vsel %vm2065, %v2026, 0
      %v2082 = vsel %vm2065, %v2027, 0
      %v2085 = vsel %vm2065, %v2028, 0
      %v2088 = vsel %vm2065, %v2029, 0
      %v2091 = vsel %vm2065, %v2030, 0
      %v2094 = vsel %vm2065, %v2031, 0
      %v2097 = vsel %vm2065, %v2032, 0
      %v2100 = vsel %vm2065, %v2033, 0
      %v2103 = vsel %vm2065, %v2034, 0
      %v2106 = vsel %vm2065, %v2035, 0
      %v2109 = vsel %vm2065, %v2036, 0
      %v2112 = vsel %vm2065, %v2037, 0
      %vm2114 = vcmask 1041408
      %v2116 = vsel %vm2114, %v2062, 0
      %2118 = vmatprep.subr.bf16.mxu0 0
      %2119 = vmatpush1.bf16.msra.mxu0 %v2060
      %2120 = vmatprep.subr.bf16.mxu0 0
      %2121 = vmatpush1.bf16.msra.mxu0 %v2061
      %2122 = vmatprep.subr.bf16.mxu0 0
      %2123 = vmatpush1.bf16.msra.mxu0 %v2116
      %2124 = vmatprep.subr.bf16.mxu0 0
      %2125 = vmatpush1.bf16.msra.mxu0 0
      %2126 = vmatprep.subr.bf16.mxu0 0
      %2127 = vmatpush1.bf16.msra.mxu0 0
      %2128 = vmatprep.subr.bf16.mxu0 0
      %2129 = vmatpush1.bf16.msra.mxu0 0
      %2130 = vmatprep.subr.bf16.mxu0 0
      %2131 = vmatpush1.bf16.msra.mxu0 0
      %2132 = vmatprep.subr.bf16.mxu0 0
      %2133 = vmatpush1.bf16.msra.mxu0 0
      %2134 = vmatprep.subr.bf16.mxu0 0
      %2135 = vmatpush1.bf16.msra.mxu0 0
      %2136 = vmatprep.subr.bf16.mxu0 0
      %2137 = vmatpush1.bf16.msra.mxu0 0
      %2138 = vmatprep.subr.bf16.mxu0 0
      %2139 = vmatpush1.bf16.msra.mxu0 0
      %2140 = vmatprep.subr.bf16.mxu0 0
      %2141 = vmatpush1.bf16.msra.mxu0 0
      %2142 = vmatprep.subr.bf16.mxu0 0
      %2143 = vmatpush1.bf16.msra.mxu0 0
      %2144 = vmatprep.subr.bf16.mxu0 0
      %2145 = vmatpush1.bf16.msra.mxu0 0
      %2146 = vmatprep.subr.bf16.mxu0 0
      %2147 = vmatpush1.bf16.msra.mxu0 0
      %2148 = vmatprep.subr.bf16.mxu0 0
      %2149 = vmatpush1.bf16.msra.mxu0 0
      %2150 = vmatprep.mubr.bf16.mxu0 0
      %2151 = vmatmul.mubr.bf16.gmra.mrb[0].mxu0 %v2067
      %v2152 = vpop.f32.mrb[0].mxu0
      %v2153 = vadd.f32 %v2048, %v2152
      %v2154 = vpop.f32.mrb[0].mxu0
      %v2155 = vpop.f32.mrb[0].mxu0
      %v2156 = vadd.f32 %v2048, %v2155
      %v2157 = vpop.f32.mrb[0].mxu0
      %2158 = vmatprep.mubr.bf16.mxu0 0
      %2159 = vmatmul.mubr.bf16.gmra.mrb[0].mxu0 %v2070
      %v2160 = vpop.f32.mrb[0].mxu0
      %v2161 = vadd.f32 %v2048, %v2160
      %v2162 = vpop.f32.mrb[0].mxu0
      %v2163 = vpop.f32.mrb[0].mxu0
      %v2164 = vadd.f32 %v2048, %v2163
      %v2165 = vpop.f32.mrb[0].mxu0
      %2166 = vmatprep.mubr.bf16.mxu0 0
      %2167 = vmatmul.mubr.bf16.gmra.mrb[0].mxu0 %v2073
      %v2168 = vpop.f32.mrb[0].mxu0
      %v2169 = vadd.f32 %v2048, %v2168
      %v2170 = vpop.f32.mrb[0].mxu0
      %v2171 = vpop.f32.mrb[0].mxu0
      %v2172 = vadd.f32 %v2048, %v2171
      %v2173 = vpop.f32.mrb[0].mxu0
      %2174 = vmatprep.mubr.bf16.mxu0 0
      %2175 = vmatmul.mubr.bf16.gmra.mrb[0].mxu0 %v2076
      %v2176 = vpop.f32.mrb[0].mxu0
      %v2177 = vadd.f32 %v2048, %v2176
      %v2178 = vpop.f32.mrb[0].mxu0
      %v2179 = vpop.f32.mrb[0].mxu0
      %v2180 = vadd.f32 %v2048, %v2179
      %v2181 = vpop.f32.mrb[0].mxu0
      %2182 = vmatprep.mubr.bf16.mxu0 0
      %2183 = vmatmul.mubr.bf16.gmra.mrb[0].mxu0 %v2079
      %v2184 = vpop.f32.mrb[0].mxu0
      %v2185 = vadd.f32 %v2048, %v2184
      %v2186 = vpop.f32.mrb[0].mxu0
      %v2187 = vpop.f32.mrb[0].mxu0
      %v2188 = vadd.f32 %v2048, %v2187
      %v2189 = vpop.f32.mrb[0].mxu0
      %2190 = vmatprep.mubr.bf16.mxu0 0
      %2191 = vmatmul.mubr.bf16.gmra.mrb[0].mxu0 %v2082
      %v2192 = vpop.f32.mrb[0].mxu0
      %v2193 = vadd.f32 %v2048, %v2192
      %v2194 = vpop.f32.mrb[0].mxu0
      %v2195 = vpop.f32.mrb[0].mxu0
      %v2196 = vadd.f32 %v2048, %v2195
      %v2197 = vpop.f32.mrb[0].mxu0
      %2198 = vmatprep.mubr.bf16.mxu0 0
      %2199 = vmatmul.mubr.bf16.gmra.mrb[0].mxu0 %v2085
      %v2200 = vpop.f32.mrb[0].mxu0
      %v2201 = vadd.f32 %v2048, %v2200
      %v2202 = vpop.f32.mrb[0].mxu0
      %v2203 = vpop.f32.mrb[0].mxu0
      %v2204 = vadd.f32 %v2048, %v2203
      %v2205 = vpop.f32.mrb[0].mxu0
      %2206 = vmatprep.mubr.bf16.mxu0 0
      %2207 = vmatmul.mubr.bf16.gmra.mrb[0].mxu0 %v2088
      %v2208 = vpop.f32.mrb[0].mxu0
      %v2209 = vadd.f32 %v2048, %v2208
      %v2210 = vpop.f32.mrb[0].mxu0
      %v2211 = vpop.f32.mrb[0].mxu0
      %v2212 = vadd.f32 %v2048, %v2211
      %v2213 = vpop.f32.mrb[0].mxu0
      %2214 = vmatprep.mubr.bf16.mxu0 0
      %2215 = vmatmul.mubr.bf16.gmra.mrb[0].mxu0 %v2091
      %v2216 = vpop.f32.mrb[0].mxu0
      %v2217 = vadd.f32 %v2048, %v2216
      %v2218 = vpop.f32.mrb[0].mxu0
      %v2219 = vpop.f32.mrb[0].mxu0
      %v2220 = vadd.f32 %v2048, %v2219
      %v2221 = vpop.f32.mrb[0].mxu0
      %2222 = vmatprep.mubr.bf16.mxu0 0
      %2223 = vmatmul.mubr.bf16.gmra.mrb[0].mxu0 %v2094
      %v2224 = vpop.f32.mrb[0].mxu0
      %v2225 = vadd.f32 %v2048, %v2224
      %v2226 = vpop.f32.mrb[0].mxu0
      %v2227 = vpop.f32.mrb[0].mxu0
      %v2228 = vadd.f32 %v2048, %v2227
      %v2229 = vpop.f32.mrb[0].mxu0
      %2230 = vmatprep.mubr.bf16.mxu0 0
      %2231 = vmatmul.mubr.bf16.gmra.mrb[0].mxu0 %v2097
      %v2232 = vpop.f32.mrb[0].mxu0
      %v2233 = vadd.f32 %v2048, %v2232
      %v2234 = vpop.f32.mrb[0].mxu0
      %v2235 = vpop.f32.mrb[0].mxu0
      %v2236 = vadd.f32 %v2048, %v2235
      %v2237 = vpop.f32.mrb[0].mxu0
      %2238 = vmatprep.mubr.bf16.mxu0 0
      %2239 = vmatmul.mubr.bf16.gmra.mrb[0].mxu0 %v2100
      %v2240 = vpop.f32.mrb[0].mxu0
      %v2241 = vadd.f32 %v2048, %v2240
      %v2242 = vpop.f32.mrb[0].mxu0
      %v2243 = vpop.f32.mrb[0].mxu0
      %v2244 = vadd.f32 %v2048, %v2243
      %v2245 = vpop.f32.mrb[0].mxu0
      %2246 = vmatprep.mubr.bf16.mxu0 0
      %2247 = vmatmul.mubr.bf16.gmra.mrb[0].mxu0 %v2103
      %v2248 = vpop.f32.mrb[0].mxu0
      %v2249 = vadd.f32 %v2048, %v2248
      %v2250 = vpop.f32.mrb[0].mxu0
      %v2251 = vpop.f32.mrb[0].mxu0
      %v2252 = vadd.f32 %v2048, %v2251
      %v2253 = vpop.f32.mrb[0].mxu0
      %2254 = vmatprep.mubr.bf16.mxu0 0
      %2255 = vmatmul.mubr.bf16.gmra.mrb[0].mxu0 %v2106
      %v2256 = vpop.f32.mrb[0].mxu0
      %v2257 = vadd.f32 %v2048, %v2256
      %v2258 = vpop.f32.mrb[0].mxu0
      %v2259 = vpop.f32.mrb[0].mxu0
      %v2260 = vadd.f32 %v2048, %v2259
      %v2261 = vpop.f32.mrb[0].mxu0
      %2262 = vmatprep.mubr.bf16.mxu0 0
      %2263 = vmatmul.mubr.bf16.gmra.mrb[0].mxu0 %v2109
      %v2264 = vpop.f32.mrb[0].mxu0
      %v2265 = vadd.f32 %v2048, %v2264
      %v2266 = vpop.f32.mrb[0].mxu0
      %v2267 = vpop.f32.mrb[0].mxu0
      %v2268 = vadd.f32 %v2048, %v2267
      %v2269 = vpop.f32.mrb[0].mxu0
      %2270 = vmatprep.mubr.bf16.mxu0 0
      %2271 = vmatmul.mubr.bf16.gmra.mrb[0].mxu0 %v2112
      %v2272 = vpop.f32.mrb[0].mxu0
      %v2273 = vadd.f32 %v2048, %v2272
      %v2274 = vpop.f32.mrb[0].mxu0
      %v2275 = vpop.f32.mrb[0].mxu0
      %v2276 = vadd.f32 %v2048, %v2275
      %v2277 = vpop.f32.mrb[0].mxu0
      %2278 = vdwg.mxu0
      %vm2279 = vcmp.ge.f32.partialorder %v2153, 0.0
      %vm2280 = vcmp.ge.f32.partialorder %v2156, 0.0
      %vm2281 = vcmp.ge.f32.partialorder %v2161, 0.0
      %vm2282 = vcmp.ge.f32.partialorder %v2164, 0.0
      %vm2283 = vcmp.ge.f32.partialorder %v2169, 0.0
      %vm2284 = vcmp.ge.f32.partialorder %v2172, 0.0
      %vm2285 = vcmp.ge.f32.partialorder %v2177, 0.0
      %vm2286 = vcmp.ge.f32.partialorder %v2180, 0.0
      %vm2287 = vcmp.ge.f32.partialorder %v2185, 0.0
      %vm2288 = vcmp.ge.f32.partialorder %v2188, 0.0
      %vm2289 = vcmp.ge.f32.partialorder %v2193, 0.0
      %vm2290 = vcmp.ge.f32.partialorder %v2196, 0.0
      %vm2291 = vcmp.ge.f32.partialorder %v2201, 0.0
      %vm2292 = vcmp.ge.f32.partialorder %v2204, 0.0
      %vm2293 = vcmp.ge.f32.partialorder %v2209, 0.0
      %vm2294 = vcmp.ge.f32.partialorder %v2212, 0.0
      %vm2295 = vcmp.ge.f32.partialorder %v2217, 0.0
      %vm2296 = vcmp.ge.f32.partialorder %v2220, 0.0
      %vm2297 = vcmp.ge.f32.partialorder %v2225, 0.0
      %vm2298 = vcmp.ge.f32.partialorder %v2228, 0.0
      %vm2299 = vcmp.ge.f32.partialorder %v2233, 0.0
      %vm2300 = vcmp.ge.f32.partialorder %v2236, 0.0
      %vm2301 = vcmp.ge.f32.partialorder %v2241, 0.0
      %vm2302 = vcmp.ge.f32.partialorder %v2244, 0.0
      %vm2303 = vcmp.ge.f32.partialorder %v2249, 0.0
      %vm2304 = vcmp.ge.f32.partialorder %v2252, 0.0
      %vm2305 = vcmp.ge.f32.partialorder %v2257, 0.0
      %vm2306 = vcmp.ge.f32.partialorder %v2260, 0.0
      %vm2307 = vcmp.ge.f32.partialorder %v2265, 0.0
      %vm2308 = vcmp.ge.f32.partialorder %v2268, 0.0
      %vm2309 = vcmp.ge.f32.partialorder %v2273, 0.0
      %vm2310 = vcmp.ge.f32.partialorder %v2276, 0.0
      %v2311 = vmul.f32 %v2153, 0.2
      %v2312 = vmul.f32 %v2156, 0.2
      %v2313 = vmul.f32 %v2161, 0.2
      %v2314 = vmul.f32 %v2164, 0.2
      %v2315 = vmul.f32 %v2169, 0.2
      %v2316 = vmul.f32 %v2172, 0.2
      %v2317 = vmul.f32 %v2177, 0.2
      %v2318 = vmul.f32 %v2180, 0.2
      %v2319 = vmul.f32 %v2185, 0.2
      %v2320 = vmul.f32 %v2188, 0.2
      %v2321 = vmul.f32 %v2193, 0.2
      %v2322 = vmul.f32 %v2196, 0.2
      %v2323 = vmul.f32 %v2201, 0.2
      %v2324 = vmul.f32 %v2204, 0.2
      %v2325 = vmul.f32 %v2209, 0.2
      %v2326 = vmul.f32 %v2212, 0.2
      %v2327 = vmul.f32 %v2217, 0.2
      %v2328 = vmul.f32 %v2220, 0.2
      %v2329 = vmul.f32 %v2225, 0.2
      %v2330 = vmul.f32 %v2228, 0.2
      %v2331 = vmul.f32 %v2233, 0.2
      %v2332 = vmul.f32 %v2236, 0.2
      %v2333 = vmul.f32 %v2241, 0.2
      %v2334 = vmul.f32 %v2244, 0.2
      %v2335 = vmul.f32 %v2249, 0.2
      %v2336 = vmul.f32 %v2252, 0.2
      %v2337 = vmul.f32 %v2257, 0.2
      %v2338 = vmul.f32 %v2260, 0.2
      %v2339 = vmul.f32 %v2265, 0.2
      %v2340 = vmul.f32 %v2268, 0.2
      %v2341 = vmul.f32 %v2273, 0.2
      %v2342 = vmul.f32 %v2276, 0.2
      %v2343 = vsel %vm2279, %v2153, %v2311
      %v2344 = vsel %vm2280, %v2156, %v2312
      %v2345 = vsel %vm2281, %v2161, %v2313
      %v2346 = vsel %vm2282, %v2164, %v2314
      %v2347 = vsel %vm2283, %v2169, %v2315
      %v2348 = vsel %vm2284, %v2172, %v2316
      %v2349 = vsel %vm2285, %v2177, %v2317
      %v2350 = vsel %vm2286, %v2180, %v2318
      %v2351 = vsel %vm2287, %v2185, %v2319
      %v2352 = vsel %vm2288, %v2188, %v2320
      %v2353 = vsel %vm2289, %v2193, %v2321
      %v2354 = vsel %vm2290, %v2196, %v2322
      %v2355 = vsel %vm2291, %v2201, %v2323
      %v2356 = vsel %vm2292, %v2204, %v2324
      %v2357 = vsel %vm2293, %v2209, %v2325
      %v2358 = vsel %vm2294, %v2212, %v2326
      %v2359 = vsel %vm2295, %v2217, %v2327
      %v2360 = vsel %vm2296, %v2220, %v2328
      %v2361 = vsel %vm2297, %v2225, %v2329
      %v2362 = vsel %vm2298, %v2228, %v2330
      %v2363 = vsel %vm2299, %v2233, %v2331
      %v2364 = vsel %vm2300, %v2236, %v2332
      %v2365 = vsel %vm2301, %v2241, %v2333
      %v2366 = vsel %vm2302, %v2244, %v2334
      %v2367 = vsel %vm2303, %v2249, %v2335
      %v2368 = vsel %vm2304, %v2252, %v2336
      %v2369 = vsel %vm2305, %v2257, %v2337
      %v2370 = vsel %vm2306, %v2260, %v2338
      %v2371 = vsel %vm2307, %v2265, %v2339
      %v2372 = vsel %vm2308, %v2268, %v2340
      %v2373 = vsel %vm2309, %v2273, %v2341
      %v2374 = vsel %vm2310, %v2276, %v2342
      %s2375 = scalar_lea.vmem [#allocation2], 32
      %2376 = vst.msk [vmem:[%s2375 + $0x8] sm:$0xff] %vm1791, %v2343
      %2377 = vst.msk [vmem:[%s2375 + $0x10] sm:$0xff] %vm1791, %v2344
      %2378 = vst.msk [vmem:[%s2375 + $0x28] sm:$0xff] %vm1791, %v2345
      %2379 = vst.msk [vmem:[%s2375 + $0x30] sm:$0xff] %vm1791, %v2346
      %2380 = vst.msk [vmem:[%s2375 + $0x48] sm:$0xff] %vm1791, %v2347
      %2381 = vst.msk [vmem:[%s2375 + $0x50] sm:$0xff] %vm1791, %v2348
      %2382 = vst.msk [vmem:[%s2375 + $0x68] sm:$0xff] %vm1791, %v2349
      %2383 = vst.msk [vmem:[%s2375 + $0x70] sm:$0xff] %vm1791, %v2350
      %2384 = vst.msk [vmem:[%s2375 + $0x88] sm:$0xff] %vm1791, %v2351
      %2385 = vst.msk [vmem:[%s2375 + $0x90] sm:$0xff] %vm1791, %v2352
      %2386 = vst.msk [vmem:[%s2375 + $0xa8] sm:$0xff] %vm1791, %v2353
      %2387 = vst.msk [vmem:[%s2375 + $0xb0] sm:$0xff] %vm1791, %v2354
      %2388 = vst.msk [vmem:[%s2375 + $0xc8] sm:$0xff] %vm1791, %v2355
      %2389 = vst.msk [vmem:[%s2375 + $0xd0] sm:$0xff] %vm1791, %v2356
      %2390 = vst.msk [vmem:[%s2375 + $0xe8] sm:$0xff] %vm1791, %v2357
      %2391 = vst.msk [vmem:[%s2375 + $0xf0] sm:$0xff] %vm1791, %v2358
      %2392 = vst.msk [vmem:[%s2375 + $0x108] sm:$0xff] %vm1791, %v2359
      %2393 = vst.msk [vmem:[%s2375 + $0x110] sm:$0xff] %vm1791, %v2360
      %2394 = vst.msk [vmem:[%s2375 + $0x128] sm:$0xff] %vm1791, %v2361
      %2395 = vst.msk [vmem:[%s2375 + $0x130] sm:$0xff] %vm1791, %v2362
      %2396 = vst.msk [vmem:[%s2375 + $0x148] sm:$0xff] %vm1791, %v2363
      %2397 = vst.msk [vmem:[%s2375 + $0x150] sm:$0xff] %vm1791, %v2364
      %2398 = vst.msk [vmem:[%s2375 + $0x168] sm:$0xff] %vm1791, %v2365
      %2399 = vst.msk [vmem:[%s2375 + $0x170] sm:$0xff] %vm1791, %v2366
      %2400 = vst.msk [vmem:[%s2375 + $0x188] sm:$0xff] %vm1791, %v2367
      %2401 = vst.msk [vmem:[%s2375 + $0x190] sm:$0xff] %vm1791, %v2368
      %2402 = vst.msk [vmem:[%s2375 + $0x1a8] sm:$0xff] %vm1791, %v2369
      %2403 = vst.msk [vmem:[%s2375 + $0x1b0] sm:$0xff] %vm1791, %v2370
      %2404 = vst.msk [vmem:[%s2375 + $0x1c8] sm:$0xff] %vm1791, %v2371
      %2405 = vst.msk [vmem:[%s2375 + $0x1d0] sm:$0xff] %vm1791, %v2372
      %2406 = vst.msk [vmem:[%s2375 + $0x1e8] sm:$0xff] %vm1791, %v2373
      %2407 = vst.msk [vmem:[%s2375 + $0x1f0] sm:$0xff] %vm1791, %v2374
      %v2408 = vld [vmem:[#allocation2] sm:$0xff]
      %v2409 = vld [vmem:[#allocation2 + $0x8] sm:$0xff]
      %v2410 = vld [vmem:[#allocation2 + $0x10] sm:$0xff]
      %v2411 = vld [vmem:[#allocation2 + $0x18] sm:$0xff]
      %v2412 = vld [vmem:[#allocation2 + $0x20] sm:$0xff]
      %v2413 = vld [vmem:[#allocation2 + $0x28] sm:$0xff]
      %v2414 = vld [vmem:[#allocation2 + $0x30] sm:$0xff]
      %v2415 = vld [vmem:[#allocation2 + $0x38] sm:$0xff]
      %v2416 = vld [vmem:[#allocation2 + $0x40] sm:$0xff]
      %v2417 = vld [vmem:[#allocation2 + $0x48] sm:$0xff]
      %v2418 = vld [vmem:[#allocation2 + $0x50] sm:$0xff]
      %v2419 = vld [vmem:[#allocation2 + $0x58] sm:$0xff]
      %v2420 = vld [vmem:[#allocation2 + $0x60] sm:$0xff]
      %v2421 = vld [vmem:[#allocation2 + $0x68] sm:$0xff]
      %v2422 = vld [vmem:[#allocation2 + $0x70] sm:$0xff]
      %v2423 = vld [vmem:[#allocation2 + $0x78] sm:$0xff]
      %v2424 = vld [vmem:[#allocation2 + $0x80] sm:$0xff]
      %v2425 = vld [vmem:[#allocation2 + $0x88] sm:$0xff]
      %v2426 = vld [vmem:[#allocation2 + $0x90] sm:$0xff]
      %v2427 = vld [vmem:[#allocation2 + $0x98] sm:$0xff]
      %v2428 = vld [vmem:[#allocation2 + $0xa0] sm:$0xff]
      %v2429 = vld [vmem:[#allocation2 + $0xa8] sm:$0xff]
      %v2430 = vld [vmem:[#allocation2 + $0xb0] sm:$0xff]
      %v2431 = vld [vmem:[#allocation2 + $0xb8] sm:$0xff]
      %v2432 = vld [vmem:[#allocation2 + $0xc0] sm:$0xff]
      %v2433 = vld [vmem:[#allocation2 + $0xc8] sm:$0xff]
      %v2434 = vld [vmem:[#allocation2 + $0xd0] sm:$0xff]
      %v2435 = vld [vmem:[#allocation2 + $0xd8] sm:$0xff]
      %v2436 = vld [vmem:[#allocation2 + $0xe0] sm:$0xff]
      %v2437 = vld [vmem:[#allocation2 + $0xe8] sm:$0xff]
      %v2438 = vld [vmem:[#allocation2 + $0xf0] sm:$0xff]
      %v2439 = vld [vmem:[#allocation2 + $0xf8] sm:$0xff]
      %v2440 = vld [vmem:[#allocation2 + $0x100] sm:$0xff]
      %v2441 = vld [vmem:[#allocation2 + $0x108] sm:$0xff]
      %v2442 = vld [vmem:[#allocation2 + $0x110] sm:$0xff]
      %v2443 = vld [vmem:[#allocation2 + $0x118] sm:$0xff]
      %v2444 = vld [vmem:[#allocation2 + $0x120] sm:$0xff]
      %v2445 = vld [vmem:[#allocation2 + $0x128] sm:$0xff]
      %v2446 = vld [vmem:[#allocation2 + $0x130] sm:$0xff]
      %v2447 = vld [vmem:[#allocation2 + $0x138] sm:$0xff]
      %v2448 = vld [vmem:[#allocation2 + $0x140] sm:$0xff]
      %v2449 = vld [vmem:[#allocation2 + $0x148] sm:$0xff]
      %v2450 = vld [vmem:[#allocation2 + $0x150] sm:$0xff]
      %v2451 = vld [vmem:[#allocation2 + $0x158] sm:$0xff]
      %v2452 = vld [vmem:[#allocation2 + $0x160] sm:$0xff]
      %v2453 = vld [vmem:[#allocation2 + $0x168] sm:$0xff]
      %v2454 = vld [vmem:[#allocation2 + $0x170] sm:$0xff]
      %v2455 = vld [vmem:[#allocation2 + $0x178] sm:$0xff]
      %v2456 = vld [vmem:[#allocation2 + $0x180] sm:$0xff]
      %v2457 = vld [vmem:[#allocation2 + $0x188] sm:$0xff]
      %v2458 = vld [vmem:[#allocation2 + $0x190] sm:$0xff]
      %v2459 = vld [vmem:[#allocation2 + $0x198] sm:$0xff]
      %v2460 = vld [vmem:[#allocation2 + $0x1a0] sm:$0xff]
      %v2461 = vld [vmem:[#allocation2 + $0x1a8] sm:$0xff]
      %v2462 = vld [vmem:[#allocation2 + $0x1b0] sm:$0xff]
      %v2463 = vld [vmem:[#allocation2 + $0x1b8] sm:$0xff]
      %v2464 = vld [vmem:[#allocation2 + $0x1c0] sm:$0xff]
      %v2465 = vld [vmem:[#allocation2 + $0x1c8] sm:$0xff]
      %v2466 = vld [vmem:[#allocation2 + $0x1d0] sm:$0xff]
      %v2467 = vld [vmem:[#allocation2 + $0x1d8] sm:$0xff]
      %v2468 = vld [vmem:[#allocation2 + $0x1e0] sm:$0xff]
      %v2469 = vld [vmem:[#allocation2 + $0x1e8] sm:$0xff]
      %v2470 = vld [vmem:[#allocation2 + $0x1f0] sm:$0xff]
      %v2471 = vld [vmem:[#allocation2 + $0x1f8] sm:$0xff]
      %v2472 = vld [vmem:[#allocation2 + $0x200] sm:$0xff]
      %v2473 = vld [vmem:[#allocation2 + $0x208] sm:$0xff]
      %v2474 = vld [vmem:[#allocation2 + $0x210] sm:$0xff]
      %v2475 = vld [vmem:[#allocation2 + $0x218] sm:$0xff]
      %v2476 = vld [vmem:[#allocation2 + $0x220] sm:$0xff]
      %v2477 = vld [vmem:[#allocation2 + $0x228] sm:$0xff]
      %v2478 = vld [vmem:[#allocation2 + $0x230] sm:$0xff]
      %v2479 = vld [vmem:[#allocation2 + $0x238] sm:$0xff]
      %vm2528 = vcmask 1040384
      %v2529 = vrot.slane %v2408, 7
      %v2530 = vrot.slane %v2409, 7
      %v2531 = vsel %vm2528, %v2529, %v2530
      %v2532 = vrot.slane %v2410, 7
      %v2533 = vsel %vm2528, %v2530, %v2532
      %v2534 = vrot.slane %v2412, 7
      %v2535 = vrot.slane %v2413, 7
      %v2536 = vsel %vm2528, %v2534, %v2535
      %v2537 = vrot.slane %v2414, 7
      %v2538 = vsel %vm2528, %v2535, %v2537
      %v2539 = vrot.slane %v2416, 7
      %v2540 = vrot.slane %v2417, 7
      %v2541 = vsel %vm2528, %v2539, %v2540
      %v2542 = vrot.slane %v2418, 7
      %v2543 = vsel %vm2528, %v2540, %v2542
      %v2544 = vrot.slane %v2420, 7
      %v2545 = vrot.slane %v2421, 7
      %v2546 = vsel %vm2528, %v2544, %v2545
      %v2547 = vrot.slane %v2422, 7
      %v2548 = vsel %vm2528, %v2545, %v2547
      %v2549 = vrot.slane %v2424, 7
      %v2550 = vrot.slane %v2425, 7
      %v2551 = vsel %vm2528, %v2549, %v2550
      %v2552 = vrot.slane %v2426, 7
      %v2553 = vsel %vm2528, %v2550, %v2552
      %v2554 = vrot.slane %v2428, 7
      %v2555 = vrot.slane %v2429, 7
      %v2556 = vsel %vm2528, %v2554, %v2555
      %v2557 = vrot.slane %v2430, 7
      %v2558 = vsel %vm2528, %v2555, %v2557
      %v2559 = vrot.slane %v2432, 7
      %v2560 = vrot.slane %v2433, 7
      %v2561 = vsel %vm2528, %v2559, %v2560
      %v2562 = vrot.slane %v2434, 7
      %v2563 = vsel %vm2528, %v2560, %v2562
      %v2564 = vrot.slane %v2436, 7
      %v2565 = vrot.slane %v2437, 7
      %v2566 = vsel %vm2528, %v2564, %v2565
      %v2567 = vrot.slane %v2438, 7
      %v2568 = vsel %vm2528, %v2565, %v2567
      %v2569 = vrot.slane %v2440, 7
      %v2570 = vrot.slane %v2441, 7
      %v2571 = vsel %vm2528, %v2569, %v2570
      %v2572 = vrot.slane %v2442, 7
      %v2573 = vsel %vm2528, %v2570, %v2572
      %v2574 = vrot.slane %v2444, 7
      %v2575 = vrot.slane %v2445, 7
      %v2576 = vsel %vm2528, %v2574, %v2575
      %v2577 = vrot.slane %v2446, 7
      %v2578 = vsel %vm2528, %v2575, %v2577
      %v2579 = vrot.slane %v2448, 7
      %v2580 = vrot.slane %v2449, 7
      %v2581 = vsel %vm2528, %v2579, %v2580
      %v2582 = vrot.slane %v2450, 7
      %v2583 = vsel %vm2528, %v2580, %v2582
      %v2584 = vrot.slane %v2452, 7
      %v2585 = vrot.slane %v2453, 7
      %v2586 = vsel %vm2528, %v2584, %v2585
      %v2587 = vrot.slane %v2454, 7
      %v2588 = vsel %vm2528, %v2585, %v2587
      %v2589 = vrot.slane %v2456, 7
      %v2590 = vrot.slane %v2457, 7
      %v2591 = vsel %vm2528, %v2589, %v2590
      %v2592 = vrot.slane %v2458, 7
      %v2593 = vsel %vm2528, %v2590, %v2592
      %v2594 = vrot.slane %v2460, 7
      %v2595 = vrot.slane %v2461, 7
      %v2596 = vsel %vm2528, %v2594, %v2595
      %v2597 = vrot.slane %v2462, 7
      %v2598 = vsel %vm2528, %v2595, %v2597
      %v2599 = vrot.slane %v2464, 7
      %v2600 = vrot.slane %v2465, 7
      %v2601 = vsel %vm2528, %v2599, %v2600
      %v2602 = vrot.slane %v2466, 7
      %v2603 = vsel %vm2528, %v2600, %v2602
      %v2604 = vrot.slane %v2468, 7
      %v2605 = vrot.slane %v2469, 7
      %v2606 = vsel %vm2528, %v2604, %v2605
      %v2607 = vrot.slane %v2470, 7
      %v2608 = vsel %vm2528, %v2605, %v2607
      %v2657 = vrot.slane %v2409, 1
      %v2658 = vrot.slane %v2410, 1
      %v2659 = vsel %vm802, %v2657, %v2658
      %v2660 = vrot.slane %v2411, 1
      %v2661 = vsel %vm802, %v2658, %v2660
      %v2662 = vrot.slane %v2413, 1
      %v2663 = vrot.slane %v2414, 1
      %v2664 = vsel %vm802, %v2662, %v2663
      %v2665 = vrot.slane %v2415, 1
      %v2666 = vsel %vm802, %v2663, %v2665
      %v2667 = vrot.slane %v2417, 1
      %v2668 = vrot.slane %v2418, 1
      %v2669 = vsel %vm802, %v2667, %v2668
      %v2670 = vrot.slane %v2419, 1
      %v2671 = vsel %vm802, %v2668, %v2670
      %v2672 = vrot.slane %v2421, 1
      %v2673 = vrot.slane %v2422, 1
      %v2674 = vsel %vm802, %v2672, %v2673
      %v2675 = vrot.slane %v2423, 1
      %v2676 = vsel %vm802, %v2673, %v2675
      %v2677 = vrot.slane %v2425, 1
      %v2678 = vrot.slane %v2426, 1
      %v2679 = vsel %vm802, %v2677, %v2678
      %v2680 = vrot.slane %v2427, 1
      %v2681 = vsel %vm802, %v2678, %v2680
      %v2682 = vrot.slane %v2429, 1
      %v2683 = vrot.slane %v2430, 1
      %v2684 = vsel %vm802, %v2682, %v2683
      %v2685 = vrot.slane %v2431, 1
      %v2686 = vsel %vm802, %v2683, %v2685
      %v2687 = vrot.slane %v2433, 1
      %v2688 = vrot.slane %v2434, 1
      %v2689 = vsel %vm802, %v2687, %v2688
      %v2690 = vrot.slane %v2435, 1
      %v2691 = vsel %vm802, %v2688, %v2690
      %v2692 = vrot.slane %v2437, 1
      %v2693 = vrot.slane %v2438, 1
      %v2694 = vsel %vm802, %v2692, %v2693
      %v2695 = vrot.slane %v2439, 1
      %v2696 = vsel %vm802, %v2693, %v2695
      %v2697 = vrot.slane %v2441, 1
      %v2698 = vrot.slane %v2442, 1
      %v2699 = vsel %vm802, %v2697, %v2698
      %v2700 = vrot.slane %v2443, 1
      %v2701 = vsel %vm802, %v2698, %v2700
      %v2702 = vrot.slane %v2445, 1
      %v2703 = vrot.slane %v2446, 1
      %v2704 = vsel %vm802, %v2702, %v2703
      %v2705 = vrot.slane %v2447, 1
      %v2706 = vsel %vm802, %v2703, %v2705
      %v2707 = vrot.slane %v2449, 1
      %v2708 = vrot.slane %v2450, 1
      %v2709 = vsel %vm802, %v2707, %v2708
      %v2710 = vrot.slane %v2451, 1
      %v2711 = vsel %vm802, %v2708, %v2710
      %v2712 = vrot.slane %v2453, 1
      %v2713 = vrot.slane %v2454, 1
      %v2714 = vsel %vm802, %v2712, %v2713
      %v2715 = vrot.slane %v2455, 1
      %v2716 = vsel %vm802, %v2713, %v2715
      %v2717 = vrot.slane %v2457, 1
      %v2718 = vrot.slane %v2458, 1
      %v2719 = vsel %vm802, %v2717, %v2718
      %v2720 = vrot.slane %v2459, 1
      %v2721 = vsel %vm802, %v2718, %v2720
      %v2722 = vrot.slane %v2461, 1
      %v2723 = vrot.slane %v2462, 1
      %v2724 = vsel %vm802, %v2722, %v2723
      %v2725 = vrot.slane %v2463, 1
      %v2726 = vsel %vm802, %v2723, %v2725
      %v2727 = vrot.slane %v2465, 1
      %v2728 = vrot.slane %v2466, 1
      %v2729 = vsel %vm802, %v2727, %v2728
      %v2730 = vrot.slane %v2467, 1
      %v2731 = vsel %vm802, %v2728, %v2730
      %v2732 = vrot.slane %v2469, 1
      %v2733 = vrot.slane %v2470, 1
      %v2734 = vsel %vm802, %v2732, %v2733
      %v2735 = vrot.slane %v2471, 1
      %v2736 = vsel %vm802, %v2733, %v2735
      %v2740 = vrot.slane %v2472, 7
      %v2741 = vrot.slane %v2473, 7
      %v2742 = vsel %vm2528, %v2740, %v2741
      %v2743 = vrot.slane %v2474, 7
      %v2744 = vsel %vm2528, %v2741, %v2743
      %v2746 = vrot.slane %v2473, 1
      %v2747 = vrot.slane %v2474, 1
      %v2748 = vsel %vm802, %v2746, %v2747
      %v2749 = vrot.slane %v2475, 1
      %v2750 = vsel %vm802, %v2747, %v2749
      %v2754 = vrot.slane %v2476, 7
      %v2755 = vrot.slane %v2477, 7
      %v2756 = vsel %vm2528, %v2754, %v2755
      %v2757 = vrot.slane %v2478, 7
      %v2758 = vsel %vm2528, %v2755, %v2757
      %v2760 = vrot.slane %v2477, 1
      %v2761 = vrot.slane %v2478, 1
      %v2762 = vsel %vm802, %v2760, %v2761
      %v2763 = vrot.slane %v2479, 1
      %v2764 = vsel %vm802, %v2761, %v2763
      %2765 = vrot.lane.b32.xlu0 %v2409, 8
      %v2766 = vpop.permute.xlu0 %2765
      %2767 = vrot.lane.b32.xlu0 %v2410, 8
      %v2768 = vpop.permute.xlu0 %2767
      %2769 = vrot.lane.b32.xlu0 %v2413, 8
      %v2770 = vpop.permute.xlu0 %2769
      %2771 = vrot.lane.b32.xlu0 %v2414, 8
      %v2772 = vpop.permute.xlu0 %2771
      %2773 = vrot.lane.b32.xlu0 %v2417, 8
      %v2774 = vpop.permute.xlu0 %2773
      %2775 = vrot.lane.b32.xlu0 %v2418, 8
      %v2776 = vpop.permute.xlu0 %2775
      %2777 = vrot.lane.b32.xlu0 %v2421, 8
      %v2778 = vpop.permute.xlu0 %2777
      %2779 = vrot.lane.b32.xlu0 %v2422, 8
      %v2780 = vpop.permute.xlu0 %2779
      %2781 = vrot.lane.b32.xlu0 %v2425, 8
      %v2782 = vpop.permute.xlu0 %2781
      %2783 = vrot.lane.b32.xlu0 %v2426, 8
      %v2784 = vpop.permute.xlu0 %2783
      %2785 = vrot.lane.b32.xlu0 %v2429, 8
      %v2786 = vpop.permute.xlu0 %2785
      %2787 = vrot.lane.b32.xlu0 %v2430, 8
      %v2788 = vpop.permute.xlu0 %2787
      %2789 = vrot.lane.b32.xlu0 %v2433, 8
      %v2790 = vpop.permute.xlu0 %2789
      %2791 = vrot.lane.b32.xlu0 %v2434, 8
      %v2792 = vpop.permute.xlu0 %2791
      %2793 = vrot.lane.b32.xlu0 %v2437, 8
      %v2794 = vpop.permute.xlu0 %2793
      %2795 = vrot.lane.b32.xlu0 %v2438, 8
      %v2796 = vpop.permute.xlu0 %2795
      %2797 = vrot.lane.b32.xlu0 %v2441, 8
      %v2798 = vpop.permute.xlu0 %2797
      %2799 = vrot.lane.b32.xlu0 %v2442, 8
      %v2800 = vpop.permute.xlu0 %2799
      %2801 = vrot.lane.b32.xlu0 %v2445, 8
      %v2802 = vpop.permute.xlu0 %2801
      %2803 = vrot.lane.b32.xlu0 %v2446, 8
      %v2804 = vpop.permute.xlu0 %2803
      %2805 = vrot.lane.b32.xlu0 %v2449, 8
      %v2806 = vpop.permute.xlu0 %2805
      %2807 = vrot.lane.b32.xlu0 %v2450, 8
      %v2808 = vpop.permute.xlu0 %2807
      %2809 = vrot.lane.b32.xlu0 %v2453, 8
      %v2810 = vpop.permute.xlu0 %2809
      %2811 = vrot.lane.b32.xlu0 %v2454, 8
      %v2812 = vpop.permute.xlu0 %2811
      %2813 = vrot.lane.b32.xlu0 %v2457, 8
      %v2814 = vpop.permute.xlu0 %2813
      %2815 = vrot.lane.b32.xlu0 %v2458, 8
      %v2816 = vpop.permute.xlu0 %2815
      %2817 = vrot.lane.b32.xlu0 %v2461, 8
      %v2818 = vpop.permute.xlu0 %2817
      %2819 = vrot.lane.b32.xlu0 %v2462, 8
      %v2820 = vpop.permute.xlu0 %2819
      %2821 = vrot.lane.b32.xlu0 %v2465, 8
      %v2822 = vpop.permute.xlu0 %2821
      %2823 = vrot.lane.b32.xlu0 %v2466, 8
      %v2824 = vpop.permute.xlu0 %2823
      %2825 = vrot.lane.b32.xlu0 %v2469, 8
      %v2826 = vpop.permute.xlu0 %2825
      %2827 = vrot.lane.b32.xlu0 %v2470, 8
      %v2828 = vpop.permute.xlu0 %2827
      %2861 = vrot.lane.b32.xlu0 %v2659, 16
      %v2862 = vpop.permute.xlu0 %2861
      %2863 = vrot.lane.b32.xlu0 %v2661, 16
      %v2864 = vpop.permute.xlu0 %2863
      %2865 = vrot.lane.b32.xlu0 %v2664, 16
      %v2866 = vpop.permute.xlu0 %2865
      %2867 = vrot.lane.b32.xlu0 %v2666, 16
      %v2868 = vpop.permute.xlu0 %2867
      %2869 = vrot.lane.b32.xlu0 %v2669, 16
      %v2870 = vpop.permute.xlu0 %2869
      %2871 = vrot.lane.b32.xlu0 %v2671, 16
      %v2872 = vpop.permute.xlu0 %2871
      %2873 = vrot.lane.b32.xlu0 %v2674, 16
      %v2874 = vpop.permute.xlu0 %2873
      %2875 = vrot.lane.b32.xlu0 %v2676, 16
      %v2876 = vpop.permute.xlu0 %2875
      %2877 = vrot.lane.b32.xlu0 %v2679, 16
      %v2878 = vpop.permute.xlu0 %2877
      %2879 = vrot.lane.b32.xlu0 %v2681, 16
      %v2880 = vpop.permute.xlu0 %2879
      %2881 = vrot.lane.b32.xlu0 %v2684, 16
      %v2882 = vpop.permute.xlu0 %2881
      %2883 = vrot.lane.b32.xlu0 %v2686, 16
      %v2884 = vpop.permute.xlu0 %2883
      %2885 = vrot.lane.b32.xlu0 %v2689, 16
      %v2886 = vpop.permute.xlu0 %2885
      %2887 = vrot.lane.b32.xlu0 %v2691, 16
      %v2888 = vpop.permute.xlu0 %2887
      %2889 = vrot.lane.b32.xlu0 %v2694, 16
      %v2890 = vpop.permute.xlu0 %2889
      %2891 = vrot.lane.b32.xlu0 %v2696, 16
      %v2892 = vpop.permute.xlu0 %2891
      %2893 = vrot.lane.b32.xlu0 %v2699, 16
      %v2894 = vpop.permute.xlu0 %2893
      %2895 = vrot.lane.b32.xlu0 %v2701, 16
      %v2896 = vpop.permute.xlu0 %2895
      %2897 = vrot.lane.b32.xlu0 %v2704, 16
      %v2898 = vpop.permute.xlu0 %2897
      %2899 = vrot.lane.b32.xlu0 %v2706, 16
      %v2900 = vpop.permute.xlu0 %2899
      %2901 = vrot.lane.b32.xlu0 %v2709, 16
      %v2902 = vpop.permute.xlu0 %2901
      %2903 = vrot.lane.b32.xlu0 %v2711, 16
      %v2904 = vpop.permute.xlu0 %2903
      %2905 = vrot.lane.b32.xlu0 %v2714, 16
      %v2906 = vpop.permute.xlu0 %2905
      %2907 = vrot.lane.b32.xlu0 %v2716, 16
      %v2908 = vpop.permute.xlu0 %2907
      %2909 = vrot.lane.b32.xlu0 %v2719, 16
      %v2910 = vpop.permute.xlu0 %2909
      %2911 = vrot.lane.b32.xlu0 %v2721, 16
      %v2912 = vpop.permute.xlu0 %2911
      %2913 = vrot.lane.b32.xlu0 %v2724, 16
      %v2914 = vpop.permute.xlu0 %2913
      %2915 = vrot.lane.b32.xlu0 %v2726, 16
      %v2916 = vpop.permute.xlu0 %2915
      %2917 = vrot.lane.b32.xlu0 %v2729, 16
      %v2918 = vpop.permute.xlu0 %2917
      %2919 = vrot.lane.b32.xlu0 %v2731, 16
      %v2920 = vpop.permute.xlu0 %2919
      %2921 = vrot.lane.b32.xlu0 %v2734, 16
      %v2922 = vpop.permute.xlu0 %2921
      %2923 = vrot.lane.b32.xlu0 %v2736, 16
      %v2924 = vpop.permute.xlu0 %2923
      %2957 = vrot.lane.b32.xlu0 %v2536, 24
      %v2958 = vpop.permute.xlu0 %2957
      %2959 = vrot.lane.b32.xlu0 %v2538, 24
      %v2960 = vpop.permute.xlu0 %2959
      %2961 = vrot.lane.b32.xlu0 %v2541, 24
      %v2962 = vpop.permute.xlu0 %2961
      %2963 = vrot.lane.b32.xlu0 %v2543, 24
      %v2964 = vpop.permute.xlu0 %2963
      %2965 = vrot.lane.b32.xlu0 %v2546, 24
      %v2966 = vpop.permute.xlu0 %2965
      %2967 = vrot.lane.b32.xlu0 %v2548, 24
      %v2968 = vpop.permute.xlu0 %2967
      %2969 = vrot.lane.b32.xlu0 %v2551, 24
      %v2970 = vpop.permute.xlu0 %2969
      %2971 = vrot.lane.b32.xlu0 %v2553, 24
      %v2972 = vpop.permute.xlu0 %2971
      %2973 = vrot.lane.b32.xlu0 %v2556, 24
      %v2974 = vpop.permute.xlu0 %2973
      %2975 = vrot.lane.b32.xlu0 %v2558, 24
      %v2976 = vpop.permute.xlu0 %2975
      %2977 = vrot.lane.b32.xlu0 %v2561, 24
      %v2978 = vpop.permute.xlu0 %2977
      %2979 = vrot.lane.b32.xlu0 %v2563, 24
      %v2980 = vpop.permute.xlu0 %2979
      %2981 = vrot.lane.b32.xlu0 %v2566, 24
      %v2982 = vpop.permute.xlu0 %2981
      %2983 = vrot.lane.b32.xlu0 %v2568, 24
      %v2984 = vpop.permute.xlu0 %2983
      %2985 = vrot.lane.b32.xlu0 %v2571, 24
      %v2986 = vpop.permute.xlu0 %2985
      %2987 = vrot.lane.b32.xlu0 %v2573, 24
      %v2988 = vpop.permute.xlu0 %2987
      %2989 = vrot.lane.b32.xlu0 %v2576, 24
      %v2990 = vpop.permute.xlu0 %2989
      %2991 = vrot.lane.b32.xlu0 %v2578, 24
      %v2992 = vpop.permute.xlu0 %2991
      %2993 = vrot.lane.b32.xlu0 %v2581, 24
      %v2994 = vpop.permute.xlu0 %2993
      %2995 = vrot.lane.b32.xlu0 %v2583, 24
      %v2996 = vpop.permute.xlu0 %2995
      %2997 = vrot.lane.b32.xlu0 %v2586, 24
      %v2998 = vpop.permute.xlu0 %2997
      %2999 = vrot.lane.b32.xlu0 %v2588, 24
      %v3000 = vpop.permute.xlu0 %2999
      %3001 = vrot.lane.b32.xlu0 %v2591, 24
      %v3002 = vpop.permute.xlu0 %3001
      %3003 = vrot.lane.b32.xlu0 %v2593, 24
      %v3004 = vpop.permute.xlu0 %3003
      %3005 = vrot.lane.b32.xlu0 %v2596, 24
      %v3006 = vpop.permute.xlu0 %3005
      %3007 = vrot.lane.b32.xlu0 %v2598, 24
      %v3008 = vpop.permute.xlu0 %3007
      %3009 = vrot.lane.b32.xlu0 %v2601, 24
      %v3010 = vpop.permute.xlu0 %3009
      %3011 = vrot.lane.b32.xlu0 %v2603, 24
      %v3012 = vpop.permute.xlu0 %3011
      %3013 = vrot.lane.b32.xlu0 %v2606, 24
      %v3014 = vpop.permute.xlu0 %3013
      %3015 = vrot.lane.b32.xlu0 %v2608, 24
      %v3016 = vpop.permute.xlu0 %3015
      %3017 = vrot.lane.b32.xlu0 %v2742, 24
      %v3018 = vpop.permute.xlu0 %3017
      %3019 = vrot.lane.b32.xlu0 %v2744, 24
      %v3020 = vpop.permute.xlu0 %3019
      %3053 = vrot.lane.b32.xlu0 %v2413, 32
      %v3054 = vpop.permute.xlu0 %3053
      %3055 = vrot.lane.b32.xlu0 %v2414, 32
      %v3056 = vpop.permute.xlu0 %3055
      %3057 = vrot.lane.b32.xlu0 %v2417, 32
      %v3058 = vpop.permute.xlu0 %3057
      %3059 = vrot.lane.b32.xlu0 %v2418, 32
      %v3060 = vpop.permute.xlu0 %3059
      %3061 = vrot.lane.b32.xlu0 %v2421, 32
      %v3062 = vpop.permute.xlu0 %3061
      %3063 = vrot.lane.b32.xlu0 %v2422, 32
      %v3064 = vpop.permute.xlu0 %3063
      %3065 = vrot.lane.b32.xlu0 %v2425, 32
      %v3066 = vpop.permute.xlu0 %3065
      %3067 = vrot.lane.b32.xlu0 %v2426, 32
      %v3068 = vpop.permute.xlu0 %3067
      %3069 = vrot.lane.b32.xlu0 %v2429, 32
      %v3070 = vpop.permute.xlu0 %3069
      %3071 = vrot.lane.b32.xlu0 %v2430, 32
      %v3072 = vpop.permute.xlu0 %3071
      %3073 = vrot.lane.b32.xlu0 %v2433, 32
      %v3074 = vpop.permute.xlu0 %3073
      %3075 = vrot.lane.b32.xlu0 %v2434, 32
      %v3076 = vpop.permute.xlu0 %3075
      %3077 = vrot.lane.b32.xlu0 %v2437, 32
      %v3078 = vpop.permute.xlu0 %3077
      %3079 = vrot.lane.b32.xlu0 %v2438, 32
      %v3080 = vpop.permute.xlu0 %3079
      %3081 = vrot.lane.b32.xlu0 %v2441, 32
      %v3082 = vpop.permute.xlu0 %3081
      %3083 = vrot.lane.b32.xlu0 %v2442, 32
      %v3084 = vpop.permute.xlu0 %3083
      %3085 = vrot.lane.b32.xlu0 %v2445, 32
      %v3086 = vpop.permute.xlu0 %3085
      %3087 = vrot.lane.b32.xlu0 %v2446, 32
      %v3088 = vpop.permute.xlu0 %3087
      %3089 = vrot.lane.b32.xlu0 %v2449, 32
      %v3090 = vpop.permute.xlu0 %3089
      %3091 = vrot.lane.b32.xlu0 %v2450, 32
      %v3092 = vpop.permute.xlu0 %3091
      %3093 = vrot.lane.b32.xlu0 %v2453, 32
      %v3094 = vpop.permute.xlu0 %3093
      %3095 = vrot.lane.b32.xlu0 %v2454, 32
      %v3096 = vpop.permute.xlu0 %3095
      %3097 = vrot.lane.b32.xlu0 %v2457, 32
      %v3098 = vpop.permute.xlu0 %3097
      %3099 = vrot.lane.b32.xlu0 %v2458, 32
      %v3100 = vpop.permute.xlu0 %3099
      %3101 = vrot.lane.b32.xlu0 %v2461, 32
      %v3102 = vpop.permute.xlu0 %3101
      %3103 = vrot.lane.b32.xlu0 %v2462, 32
      %v3104 = vpop.permute.xlu0 %3103
      %3105 = vrot.lane.b32.xlu0 %v2465, 32
      %v3106 = vpop.permute.xlu0 %3105
      %3107 = vrot.lane.b32.xlu0 %v2466, 32
      %v3108 = vpop.permute.xlu0 %3107
      %3109 = vrot.lane.b32.xlu0 %v2469, 32
      %v3110 = vpop.permute.xlu0 %3109
      %3111 = vrot.lane.b32.xlu0 %v2470, 32
      %v3112 = vpop.permute.xlu0 %3111
      %3113 = vrot.lane.b32.xlu0 %v2473, 32
      %v3114 = vpop.permute.xlu0 %3113
      %3115 = vrot.lane.b32.xlu0 %v2474, 32
      %v3116 = vpop.permute.xlu0 %3115
      %3149 = vrot.lane.b32.xlu0 %v2664, 40
      %v3150 = vpop.permute.xlu0 %3149
      %3151 = vrot.lane.b32.xlu0 %v2666, 40
      %v3152 = vpop.permute.xlu0 %3151
      %3153 = vrot.lane.b32.xlu0 %v2669, 40
      %v3154 = vpop.permute.xlu0 %3153
      %3155 = vrot.lane.b32.xlu0 %v2671, 40
      %v3156 = vpop.permute.xlu0 %3155
      %3157 = vrot.lane.b32.xlu0 %v2674, 40
      %v3158 = vpop.permute.xlu0 %3157
      %3159 = vrot.lane.b32.xlu0 %v2676, 40
      %v3160 = vpop.permute.xlu0 %3159
      %3161 = vrot.lane.b32.xlu0 %v2679, 40
      %v3162 = vpop.permute.xlu0 %3161
      %3163 = vrot.lane.b32.xlu0 %v2681, 40
      %v3164 = vpop.permute.xlu0 %3163
      %3165 = vrot.lane.b32.xlu0 %v2684, 40
      %v3166 = vpop.permute.xlu0 %3165
      %3167 = vrot.lane.b32.xlu0 %v2686, 40
      %v3168 = vpop.permute.xlu0 %3167
      %3169 = vrot.lane.b32.xlu0 %v2689, 40
      %v3170 = vpop.permute.xlu0 %3169
      %3171 = vrot.lane.b32.xlu0 %v2691, 40
      %v3172 = vpop.permute.xlu0 %3171
      %3173 = vrot.lane.b32.xlu0 %v2694, 40
      %v3174 = vpop.permute.xlu0 %3173
      %3175 = vrot.lane.b32.xlu0 %v2696, 40
      %v3176 = vpop.permute.xlu0 %3175
      %3177 = vrot.lane.b32.xlu0 %v2699, 40
      %v3178 = vpop.permute.xlu0 %3177
      %3179 = vrot.lane.b32.xlu0 %v2701, 40
      %v3180 = vpop.permute.xlu0 %3179
      %3181 = vrot.lane.b32.xlu0 %v2704, 40
      %v3182 = vpop.permute.xlu0 %3181
      %3183 = vrot.lane.b32.xlu0 %v2706, 40
      %v3184 = vpop.permute.xlu0 %3183
      %3185 = vrot.lane.b32.xlu0 %v2709, 40
      %v3186 = vpop.permute.xlu0 %3185
      %3187 = vrot.lane.b32.xlu0 %v2711, 40
      %v3188 = vpop.permute.xlu0 %3187
      %3189 = vrot.lane.b32.xlu0 %v2714, 40
      %v3190 = vpop.permute.xlu0 %3189
      %3191 = vrot.lane.b32.xlu0 %v2716, 40
      %v3192 = vpop.permute.xlu0 %3191
      %3193 = vrot.lane.b32.xlu0 %v2719, 40
      %v3194 = vpop.permute.xlu0 %3193
      %3195 = vrot.lane.b32.xlu0 %v2721, 40
      %v3196 = vpop.permute.xlu0 %3195
      %3197 = vrot.lane.b32.xlu0 %v2724, 40
      %v3198 = vpop.permute.xlu0 %3197
      %3199 = vrot.lane.b32.xlu0 %v2726, 40
      %v3200 = vpop.permute.xlu0 %3199
      %3201 = vrot.lane.b32.xlu0 %v2729, 40
      %v3202 = vpop.permute.xlu0 %3201
      %3203 = vrot.lane.b32.xlu0 %v2731, 40
      %v3204 = vpop.permute.xlu0 %3203
      %3205 = vrot.lane.b32.xlu0 %v2734, 40
      %v3206 = vpop.permute.xlu0 %3205
      %3207 = vrot.lane.b32.xlu0 %v2736, 40
      %v3208 = vpop.permute.xlu0 %3207
      %3209 = vrot.lane.b32.xlu0 %v2748, 40
      %v3210 = vpop.permute.xlu0 %3209
      %3211 = vrot.lane.b32.xlu0 %v2750, 40
      %v3212 = vpop.permute.xlu0 %3211
      %3245 = vrot.lane.b32.xlu0 %v2541, 48
      %v3246 = vpop.permute.xlu0 %3245
      %3247 = vrot.lane.b32.xlu0 %v2543, 48
      %v3248 = vpop.permute.xlu0 %3247
      %3249 = vrot.lane.b32.xlu0 %v2546, 48
      %v3250 = vpop.permute.xlu0 %3249
      %3251 = vrot.lane.b32.xlu0 %v2548, 48
      %v3252 = vpop.permute.xlu0 %3251
      %3253 = vrot.lane.b32.xlu0 %v2551, 48
      %v3254 = vpop.permute.xlu0 %3253
      %3255 = vrot.lane.b32.xlu0 %v2553, 48
      %v3256 = vpop.permute.xlu0 %3255
      %3257 = vrot.lane.b32.xlu0 %v2556, 48
      %v3258 = vpop.permute.xlu0 %3257
      %3259 = vrot.lane.b32.xlu0 %v2558, 48
      %v3260 = vpop.permute.xlu0 %3259
      %3261 = vrot.lane.b32.xlu0 %v2561, 48
      %v3262 = vpop.permute.xlu0 %3261
      %3263 = vrot.lane.b32.xlu0 %v2563, 48
      %v3264 = vpop.permute.xlu0 %3263
      %3265 = vrot.lane.b32.xlu0 %v2566, 48
      %v3266 = vpop.permute.xlu0 %3265
      %3267 = vrot.lane.b32.xlu0 %v2568, 48
      %v3268 = vpop.permute.xlu0 %3267
      %3269 = vrot.lane.b32.xlu0 %v2571, 48
      %v3270 = vpop.permute.xlu0 %3269
      %3271 = vrot.lane.b32.xlu0 %v2573, 48
      %v3272 = vpop.permute.xlu0 %3271
      %3273 = vrot.lane.b32.xlu0 %v2576, 48
      %v3274 = vpop.permute.xlu0 %3273
      %3275 = vrot.lane.b32.xlu0 %v2578, 48
      %v3276 = vpop.permute.xlu0 %3275
      %3277 = vrot.lane.b32.xlu0 %v2581, 48
      %v3278 = vpop.permute.xlu0 %3277
      %3279 = vrot.lane.b32.xlu0 %v2583, 48
      %v3280 = vpop.permute.xlu0 %3279
      %3281 = vrot.lane.b32.xlu0 %v2586, 48
      %v3282 = vpop.permute.xlu0 %3281
      %3283 = vrot.lane.b32.xlu0 %v2588, 48
      %v3284 = vpop.permute.xlu0 %3283
      %3285 = vrot.lane.b32.xlu0 %v2591, 48
      %v3286 = vpop.permute.xlu0 %3285
      %3287 = vrot.lane.b32.xlu0 %v2593, 48
      %v3288 = vpop.permute.xlu0 %3287
      %3289 = vrot.lane.b32.xlu0 %v2596, 48
      %v3290 = vpop.permute.xlu0 %3289
      %3291 = vrot.lane.b32.xlu0 %v2598, 48
      %v3292 = vpop.permute.xlu0 %3291
      %3293 = vrot.lane.b32.xlu0 %v2601, 48
      %v3294 = vpop.permute.xlu0 %3293
      %3295 = vrot.lane.b32.xlu0 %v2603, 48
      %v3296 = vpop.permute.xlu0 %3295
      %3297 = vrot.lane.b32.xlu0 %v2606, 48
      %v3298 = vpop.permute.xlu0 %3297
      %3299 = vrot.lane.b32.xlu0 %v2608, 48
      %v3300 = vpop.permute.xlu0 %3299
      %3301 = vrot.lane.b32.xlu0 %v2742, 48
      %v3302 = vpop.permute.xlu0 %3301
      %3303 = vrot.lane.b32.xlu0 %v2744, 48
      %v3304 = vpop.permute.xlu0 %3303
      %3305 = vrot.lane.b32.xlu0 %v2756, 48
      %v3306 = vpop.permute.xlu0 %3305
      %3307 = vrot.lane.b32.xlu0 %v2758, 48
      %v3308 = vpop.permute.xlu0 %3307
      %3341 = vrot.lane.b32.xlu0 %v2417, 56
      %v3342 = vpop.permute.xlu0 %3341
      %3343 = vrot.lane.b32.xlu0 %v2418, 56
      %v3344 = vpop.permute.xlu0 %3343
      %3345 = vrot.lane.b32.xlu0 %v2421, 56
      %v3346 = vpop.permute.xlu0 %3345
      %3347 = vrot.lane.b32.xlu0 %v2422, 56
      %v3348 = vpop.permute.xlu0 %3347
      %3349 = vrot.lane.b32.xlu0 %v2425, 56
      %v3350 = vpop.permute.xlu0 %3349
      %3351 = vrot.lane.b32.xlu0 %v2426, 56
      %v3352 = vpop.permute.xlu0 %3351
      %3353 = vrot.lane.b32.xlu0 %v2429, 56
      %v3354 = vpop.permute.xlu0 %3353
      %3355 = vrot.lane.b32.xlu0 %v2430, 56
      %v3356 = vpop.permute.xlu0 %3355
      %3357 = vrot.lane.b32.xlu0 %v2433, 56
      %v3358 = vpop.permute.xlu0 %3357
      %3359 = vrot.lane.b32.xlu0 %v2434, 56
      %v3360 = vpop.permute.xlu0 %3359
      %3361 = vrot.lane.b32.xlu0 %v2437, 56
      %v3362 = vpop.permute.xlu0 %3361
      %3363 = vrot.lane.b32.xlu0 %v2438, 56
      %v3364 = vpop.permute.xlu0 %3363
      %3365 = vrot.lane.b32.xlu0 %v2441, 56
      %v3366 = vpop.permute.xlu0 %3365
      %3367 = vrot.lane.b32.xlu0 %v2442, 56
      %v3368 = vpop.permute.xlu0 %3367
      %3369 = vrot.lane.b32.xlu0 %v2445, 56
      %v3370 = vpop.permute.xlu0 %3369
      %3371 = vrot.lane.b32.xlu0 %v2446, 56
      %v3372 = vpop.permute.xlu0 %3371
      %3373 = vrot.lane.b32.xlu0 %v2449, 56
      %v3374 = vpop.permute.xlu0 %3373
      %3375 = vrot.lane.b32.xlu0 %v2450, 56
      %v3376 = vpop.permute.xlu0 %3375
      %3377 = vrot.lane.b32.xlu0 %v2453, 56
      %v3378 = vpop.permute.xlu0 %3377
      %3379 = vrot.lane.b32.xlu0 %v2454, 56
      %v3380 = vpop.permute.xlu0 %3379
      %3381 = vrot.lane.b32.xlu0 %v2457, 56
      %v3382 = vpop.permute.xlu0 %3381
      %3383 = vrot.lane.b32.xlu0 %v2458, 56
      %v3384 = vpop.permute.xlu0 %3383
      %3385 = vrot.lane.b32.xlu0 %v2461, 56
      %v3386 = vpop.permute.xlu0 %3385
      %3387 = vrot.lane.b32.xlu0 %v2462, 56
      %v3388 = vpop.permute.xlu0 %3387
      %3389 = vrot.lane.b32.xlu0 %v2465, 56
      %v3390 = vpop.permute.xlu0 %3389
      %3391 = vrot.lane.b32.xlu0 %v2466, 56
      %v3392 = vpop.permute.xlu0 %3391
      %3393 = vrot.lane.b32.xlu0 %v2469, 56
      %v3394 = vpop.permute.xlu0 %3393
      %3395 = vrot.lane.b32.xlu0 %v2470, 56
      %v3396 = vpop.permute.xlu0 %3395
      %3397 = vrot.lane.b32.xlu0 %v2473, 56
      %v3398 = vpop.permute.xlu0 %3397
      %3399 = vrot.lane.b32.xlu0 %v2474, 56
      %v3400 = vpop.permute.xlu0 %3399
      %3401 = vrot.lane.b32.xlu0 %v2477, 56
      %v3402 = vpop.permute.xlu0 %3401
      %3403 = vrot.lane.b32.xlu0 %v2478, 56
      %v3404 = vpop.permute.xlu0 %3403
      %3437 = vrot.lane.b32.xlu0 %v2669, 64
      %v3438 = vpop.permute.xlu0 %3437
      %3439 = vrot.lane.b32.xlu0 %v2671, 64
      %v3440 = vpop.permute.xlu0 %3439
      %3441 = vrot.lane.b32.xlu0 %v2674, 64
      %v3442 = vpop.permute.xlu0 %3441
      %3443 = vrot.lane.b32.xlu0 %v2676, 64
      %v3444 = vpop.permute.xlu0 %3443
      %3445 = vrot.lane.b32.xlu0 %v2679, 64
      %v3446 = vpop.permute.xlu0 %3445
      %3447 = vrot.lane.b32.xlu0 %v2681, 64
      %v3448 = vpop.permute.xlu0 %3447
      %3449 = vrot.lane.b32.xlu0 %v2684, 64
      %v3450 = vpop.permute.xlu0 %3449
      %3451 = vrot.lane.b32.xlu0 %v2686, 64
      %v3452 = vpop.permute.xlu0 %3451
      %3453 = vrot.lane.b32.xlu0 %v2689, 64
      %v3454 = vpop.permute.xlu0 %3453
      %3455 = vrot.lane.b32.xlu0 %v2691, 64
      %v3456 = vpop.permute.xlu0 %3455
      %3457 = vrot.lane.b32.xlu0 %v2694, 64
      %v3458 = vpop.permute.xlu0 %3457
      %3459 = vrot.lane.b32.xlu0 %v2696, 64
      %v3460 = vpop.permute.xlu0 %3459
      %3461 = vrot.lane.b32.xlu0 %v2699, 64
      %v3462 = vpop.permute.xlu0 %3461
      %3463 = vrot.lane.b32.xlu0 %v2701, 64
      %v3464 = vpop.permute.xlu0 %3463
      %3465 = vrot.lane.b32.xlu0 %v2704, 64
      %v3466 = vpop.permute.xlu0 %3465
      %3467 = vrot.lane.b32.xlu0 %v2706, 64
      %v3468 = vpop.permute.xlu0 %3467
      %3469 = vrot.lane.b32.xlu0 %v2709, 64
      %v3470 = vpop.permute.xlu0 %3469
      %3471 = vrot.lane.b32.xlu0 %v2711, 64
      %v3472 = vpop.permute.xlu0 %3471
      %3473 = vrot.lane.b32.xlu0 %v2714, 64
      %v3474 = vpop.permute.xlu0 %3473
      %3475 = vrot.lane.b32.xlu0 %v2716, 64
      %v3476 = vpop.permute.xlu0 %3475
      %3477 = vrot.lane.b32.xlu0 %v2719, 64
      %v3478 = vpop.permute.xlu0 %3477
      %3479 = vrot.lane.b32.xlu0 %v2721, 64
      %v3480 = vpop.permute.xlu0 %3479
      %3481 = vrot.lane.b32.xlu0 %v2724, 64
      %v3482 = vpop.permute.xlu0 %3481
      %3483 = vrot.lane.b32.xlu0 %v2726, 64
      %v3484 = vpop.permute.xlu0 %3483
      %3485 = vrot.lane.b32.xlu0 %v2729, 64
      %v3486 = vpop.permute.xlu0 %3485
      %3487 = vrot.lane.b32.xlu0 %v2731, 64
      %v3488 = vpop.permute.xlu0 %3487
      %3489 = vrot.lane.b32.xlu0 %v2734, 64
      %v3490 = vpop.permute.xlu0 %3489
      %3491 = vrot.lane.b32.xlu0 %v2736, 64
      %v3492 = vpop.permute.xlu0 %3491
      %3493 = vrot.lane.b32.xlu0 %v2748, 64
      %v3494 = vpop.permute.xlu0 %3493
      %3495 = vrot.lane.b32.xlu0 %v2750, 64
      %v3496 = vpop.permute.xlu0 %3495
      %3497 = vrot.lane.b32.xlu0 %v2762, 64
      %v3498 = vpop.permute.xlu0 %3497
      %3499 = vrot.lane.b32.xlu0 %v2764, 64
      %v3500 = vpop.permute.xlu0 %3499
      %v3533 = vsel %vm1791, %v2531, %v2766
      %v3534 = vsel %vm1791, %v2533, %v2768
      %v3535 = vsel %vm1791, %v2536, %v2770
      %v3536 = vsel %vm1791, %v2538, %v2772
      %v3537 = vsel %vm1791, %v2541, %v2774
      %v3538 = vsel %vm1791, %v2543, %v2776
      %v3539 = vsel %vm1791, %v2546, %v2778
      %v3540 = vsel %vm1791, %v2548, %v2780
      %v3541 = vsel %vm1791, %v2551, %v2782
      %v3542 = vsel %vm1791, %v2553, %v2784
      %v3543 = vsel %vm1791, %v2556, %v2786
      %v3544 = vsel %vm1791, %v2558, %v2788
      %v3545 = vsel %vm1791, %v2561, %v2790
      %v3546 = vsel %vm1791, %v2563, %v2792
      %v3547 = vsel %vm1791, %v2566, %v2794
      %v3548 = vsel %vm1791, %v2568, %v2796
      %v3549 = vsel %vm1791, %v2571, %v2798
      %v3550 = vsel %vm1791, %v2573, %v2800
      %v3551 = vsel %vm1791, %v2576, %v2802
      %v3552 = vsel %vm1791, %v2578, %v2804
      %v3553 = vsel %vm1791, %v2581, %v2806
      %v3554 = vsel %vm1791, %v2583, %v2808
      %v3555 = vsel %vm1791, %v2586, %v2810
      %v3556 = vsel %vm1791, %v2588, %v2812
      %v3557 = vsel %vm1791, %v2591, %v2814
      %v3558 = vsel %vm1791, %v2593, %v2816
      %v3559 = vsel %vm1791, %v2596, %v2818
      %v3560 = vsel %vm1791, %v2598, %v2820
      %v3561 = vsel %vm1791, %v2601, %v2822
      %v3562 = vsel %vm1791, %v2603, %v2824
      %v3563 = vsel %vm1791, %v2606, %v2826
      %v3564 = vsel %vm1791, %v2608, %v2828
      %v3565 = vsel %vm1857, %v3533, %v2862
      %v3566 = vsel %vm1857, %v3534, %v2864
      %v3567 = vsel %vm1857, %v3535, %v2866
      %v3568 = vsel %vm1857, %v3536, %v2868
      %v3569 = vsel %vm1857, %v3537, %v2870
      %v3570 = vsel %vm1857, %v3538, %v2872
      %v3571 = vsel %vm1857, %v3539, %v2874
      %v3572 = vsel %vm1857, %v3540, %v2876
      %v3573 = vsel %vm1857, %v3541, %v2878
      %v3574 = vsel %vm1857, %v3542, %v2880
      %v3575 = vsel %vm1857, %v3543, %v2882
      %v3576 = vsel %vm1857, %v3544, %v2884
      %v3577 = vsel %vm1857, %v3545, %v2886
      %v3578 = vsel %vm1857, %v3546, %v2888
      %v3579 = vsel %vm1857, %v3547, %v2890
      %v3580 = vsel %vm1857, %v3548, %v2892
      %v3581 = vsel %vm1857, %v3549, %v2894
      %v3582 = vsel %vm1857, %v3550, %v2896
      %v3583 = vsel %vm1857, %v3551, %v2898
      %v3584 = vsel %vm1857, %v3552, %v2900
      %v3585 = vsel %vm1857, %v3553, %v2902
      %v3586 = vsel %vm1857, %v3554, %v2904
      %v3587 = vsel %vm1857, %v3555, %v2906
      %v3588 = vsel %vm1857, %v3556, %v2908
      %v3589 = vsel %vm1857, %v3557, %v2910
      %v3590 = vsel %vm1857, %v3558, %v2912
      %v3591 = vsel %vm1857, %v3559, %v2914
      %v3592 = vsel %vm1857, %v3560, %v2916
      %v3593 = vsel %vm1857, %v3561, %v2918
      %v3594 = vsel %vm1857, %v3562, %v2920
      %v3595 = vsel %vm1857, %v3563, %v2922
      %v3596 = vsel %vm1857, %v3564, %v2924
      %v3597 = vsel %vm1923, %v3565, %v2958
      %v3598 = vsel %vm1923, %v3566, %v2960
      %v3599 = vsel %vm1923, %v3567, %v2962
      %v3600 = vsel %vm1923, %v3568, %v2964
      %v3601 = vsel %vm1923, %v3569, %v2966
      %v3602 = vsel %vm1923, %v3570, %v2968
      %v3603 = vsel %vm1923, %v3571, %v2970
      %v3604 = vsel %vm1923, %v3572, %v2972
      %v3605 = vsel %vm1923, %v3573, %v2974
      %v3606 = vsel %vm1923, %v3574, %v2976
      %v3607 = vsel %vm1923, %v3575, %v2978
      %v3608 = vsel %vm1923, %v3576, %v2980
      %v3609 = vsel %vm1923, %v3577, %v2982
      %v3610 = vsel %vm1923, %v3578, %v2984
      %v3611 = vsel %vm1923, %v3579, %v2986
      %v3612 = vsel %vm1923, %v3580, %v2988
      %v3613 = vsel %vm1923, %v3581, %v2990
      %v3614 = vsel %vm1923, %v3582, %v2992
      %v3615 = vsel %vm1923, %v3583, %v2994
      %v3616 = vsel %vm1923, %v3584, %v2996
      %v3617 = vsel %vm1923, %v3585, %v2998
      %v3618 = vsel %vm1923, %v3586, %v3000
      %v3619 = vsel %vm1923, %v3587, %v3002
      %v3620 = vsel %vm1923, %v3588, %v3004
      %v3621 = vsel %vm1923, %v3589, %v3006
      %v3622 = vsel %vm1923, %v3590, %v3008
      %v3623 = vsel %vm1923, %v3591, %v3010
      %v3624 = vsel %vm1923, %v3592, %v3012
      %v3625 = vsel %vm1923, %v3593, %v3014
      %v3626 = vsel %vm1923, %v3594, %v3016
      %v3627 = vsel %vm1923, %v3595, %v3018
      %v3628 = vsel %vm1923, %v3596, %v3020
      %v3629 = vsel %vm1989, %v3597, %v3054
      %v3630 = vsel %vm1989, %v3598, %v3056
      %v3631 = vsel %vm1989, %v3599, %v3058
      %v3632 = vsel %vm1989, %v3600, %v3060
      %v3633 = vsel %vm1989, %v3601, %v3062
      %v3634 = vsel %vm1989, %v3602, %v3064
      %v3635 = vsel %vm1989, %v3603, %v3066
      %v3636 = vsel %vm1989, %v3604, %v3068
      %v3637 = vsel %vm1989, %v3605, %v3070
      %v3638 = vsel %vm1989, %v3606, %v3072
      %v3639 = vsel %vm1989, %v3607, %v3074
      %v3640 = vsel %vm1989, %v3608, %v3076
      %v3641 = vsel %vm1989, %v3609, %v3078
      %v3642 = vsel %vm1989, %v3610, %v3080
      %v3643 = vsel %vm1989, %v3611, %v3082
      %v3644 = vsel %vm1989, %v3612, %v3084
      %v3645 = vsel %vm1989, %v3613, %v3086
      %v3646 = vsel %vm1989, %v3614, %v3088
      %v3647 = vsel %vm1989, %v3615, %v3090
      %v3648 = vsel %vm1989, %v3616, %v3092
      %v3649 = vsel %vm1989, %v3617, %v3094
      %v3650 = vsel %vm1989, %v3618, %v3096
      %v3651 = vsel %vm1989, %v3619, %v3098
      %v3652 = vsel %vm1989, %v3620, %v3100
      %v3653 = vsel %vm1989, %v3621, %v3102
      %v3654 = vsel %vm1989, %v3622, %v3104
      %v3655 = vsel %vm1989, %v3623, %v3106
      %v3656 = vsel %vm1989, %v3624, %v3108
      %v3657 = vsel %vm1989, %v3625, %v3110
      %v3658 = vsel %vm1989, %v3626, %v3112
      %v3659 = vsel %vm1989, %v3627, %v3114
      %v3660 = vsel %vm1989, %v3628, %v3116
      %vm3661 = vcmask 326656
      %v3662 = vsel %vm3661, %v3629, %v3150
      %v3663 = vsel %vm3661, %v3630, %v3152
      %v3664 = vsel %vm3661, %v3631, %v3154
      %v3665 = vsel %vm3661, %v3632, %v3156
      %v3666 = vsel %vm3661, %v3633, %v3158
      %v3667 = vsel %vm3661, %v3634, %v3160
      %v3668 = vsel %vm3661, %v3635, %v3162
      %v3669 = vsel %vm3661, %v3636, %v3164
      %v3670 = vsel %vm3661, %v3637, %v3166
      %v3671 = vsel %vm3661, %v3638, %v3168
      %v3672 = vsel %vm3661, %v3639, %v3170
      %v3673 = vsel %vm3661, %v3640, %v3172
      %v3674 = vsel %vm3661, %v3641, %v3174
      %v3675 = vsel %vm3661, %v3642, %v3176
      %v3676 = vsel %vm3661, %v3643, %v3178
      %v3677 = vsel %vm3661, %v3644, %v3180
      %v3678 = vsel %vm3661, %v3645, %v3182
      %v3679 = vsel %vm3661, %v3646, %v3184
      %v3680 = vsel %vm3661, %v3647, %v3186
      %v3681 = vsel %vm3661, %v3648, %v3188
      %v3682 = vsel %vm3661, %v3649, %v3190
      %v3683 = vsel %vm3661, %v3650, %v3192
      %v3684 = vsel %vm3661, %v3651, %v3194
      %v3685 = vsel %vm3661, %v3652, %v3196
      %v3686 = vsel %vm3661, %v3653, %v3198
      %v3687 = vsel %vm3661, %v3654, %v3200
      %v3688 = vsel %vm3661, %v3655, %v3202
      %v3689 = vsel %vm3661, %v3656, %v3204
      %v3690 = vsel %vm3661, %v3657, %v3206
      %v3691 = vsel %vm3661, %v3658, %v3208
      %v3692 = vsel %vm3661, %v3659, %v3210
      %v3693 = vsel %vm3661, %v3660, %v3212
      %vm3694 = vcmask 392192
      %v3695 = vsel %vm3694, %v3662, %v3246
      %v3696 = vsel %vm3694, %v3663, %v3248
      %v3697 = vsel %vm3694, %v3664, %v3250
      %v3698 = vsel %vm3694, %v3665, %v3252
      %v3699 = vsel %vm3694, %v3666, %v3254
      %v3700 = vsel %vm3694, %v3667, %v3256
      %v3701 = vsel %vm3694, %v3668, %v3258
      %v3702 = vsel %vm3694, %v3669, %v3260
      %v3703 = vsel %vm3694, %v3670, %v3262
      %v3704 = vsel %vm3694, %v3671, %v3264
      %v3705 = vsel %vm3694, %v3672, %v3266
      %v3706 = vsel %vm3694, %v3673, %v3268
      %v3707 = vsel %vm3694, %v3674, %v3270
      %v3708 = vsel %vm3694, %v3675, %v3272
      %v3709 = vsel %vm3694, %v3676, %v3274
      %v3710 = vsel %vm3694, %v3677, %v3276
      %v3711 = vsel %vm3694, %v3678, %v3278
      %v3712 = vsel %vm3694, %v3679, %v3280
      %v3713 = vsel %vm3694, %v3680, %v3282
      %v3714 = vsel %vm3694, %v3681, %v3284
      %v3715 = vsel %vm3694, %v3682, %v3286
      %v3716 = vsel %vm3694, %v3683, %v3288
      %v3717 = vsel %vm3694, %v3684, %v3290
      %v3718 = vsel %vm3694, %v3685, %v3292
      %v3719 = vsel %vm3694, %v3686, %v3294
      %v3720 = vsel %vm3694, %v3687, %v3296
      %v3721 = vsel %vm3694, %v3688, %v3298
      %v3722 = vsel %vm3694, %v3689, %v3300
      %v3723 = vsel %vm3694, %v3690, %v3302
      %v3724 = vsel %vm3694, %v3691, %v3304
      %v3725 = vsel %vm3694, %v3692, %v3306
      %v3726 = vsel %vm3694, %v3693, %v3308
      %vm3727 = vcmask 457728
      %v3728 = vsel %vm3727, %v3695, %v3342
      %v3729 = vsel %vm3727, %v3696, %v3344
      %v3730 = vsel %vm3727, %v3697, %v3346
      %v3731 = vsel %vm3727, %v3698, %v3348
      %v3732 = vsel %vm3727, %v3699, %v3350
      %v3733 = vsel %vm3727, %v3700, %v3352
      %v3734 = vsel %vm3727, %v3701, %v3354
      %v3735 = vsel %vm3727, %v3702, %v3356
      %v3736 = vsel %vm3727, %v3703, %v3358
      %v3737 = vsel %vm3727, %v3704, %v3360
      %v3738 = vsel %vm3727, %v3705, %v3362
      %v3739 = vsel %vm3727, %v3706, %v3364
      %v3740 = vsel %vm3727, %v3707, %v3366
      %v3741 = vsel %vm3727, %v3708, %v3368
      %v3742 = vsel %vm3727, %v3709, %v3370
      %v3743 = vsel %vm3727, %v3710, %v3372
      %v3744 = vsel %vm3727, %v3711, %v3374
      %v3745 = vsel %vm3727, %v3712, %v3376
      %v3746 = vsel %vm3727, %v3713, %v3378
      %v3747 = vsel %vm3727, %v3714, %v3380
      %v3748 = vsel %vm3727, %v3715, %v3382
      %v3749 = vsel %vm3727, %v3716, %v3384
      %v3750 = vsel %vm3727, %v3717, %v3386
      %v3751 = vsel %vm3727, %v3718, %v3388
      %v3752 = vsel %vm3727, %v3719, %v3390
      %v3753 = vsel %vm3727, %v3720, %v3392
      %v3754 = vsel %vm3727, %v3721, %v3394
      %v3755 = vsel %vm3727, %v3722, %v3396
      %v3756 = vsel %vm3727, %v3723, %v3398
      %v3757 = vsel %vm3727, %v3724, %v3400
      %v3758 = vsel %vm3727, %v3725, %v3402
      %v3759 = vsel %vm3727, %v3726, %v3404
      %vm3760 = vcmask 523264
      %v3761 = vsel %vm3760, %v3728, %v3438
      %v3762 = vsel %vm3760, %v3729, %v3440
      %v3763 = vsel %vm3760, %v3730, %v3442
      %v3764 = vsel %vm3760, %v3731, %v3444
      %v3765 = vsel %vm3760, %v3732, %v3446
      %v3766 = vsel %vm3760, %v3733, %v3448
      %v3767 = vsel %vm3760, %v3734, %v3450
      %v3768 = vsel %vm3760, %v3735, %v3452
      %v3769 = vsel %vm3760, %v3736, %v3454
      %v3770 = vsel %vm3760, %v3737, %v3456
      %v3771 = vsel %vm3760, %v3738, %v3458
      %v3772 = vsel %vm3760, %v3739, %v3460
      %v3773 = vsel %vm3760, %v3740, %v3462
      %v3774 = vsel %vm3760, %v3741, %v3464
      %v3775 = vsel %vm3760, %v3742, %v3466
      %v3776 = vsel %vm3760, %v3743, %v3468
      %v3777 = vsel %vm3760, %v3744, %v3470
      %v3778 = vsel %vm3760, %v3745, %v3472
      %v3779 = vsel %vm3760, %v3746, %v3474
      %v3780 = vsel %vm3760, %v3747, %v3476
      %v3781 = vsel %vm3760, %v3748, %v3478
      %v3782 = vsel %vm3760, %v3749, %v3480
      %v3783 = vsel %vm3760, %v3750, %v3482
      %v3784 = vsel %vm3760, %v3751, %v3484
      %v3785 = vsel %vm3760, %v3752, %v3486
      %v3786 = vsel %vm3760, %v3753, %v3488
      %v3787 = vsel %vm3760, %v3754, %v3490
      %v3788 = vsel %vm3760, %v3755, %v3492
      %v3789 = vsel %vm3760, %v3756, %v3494
      %v3790 = vsel %vm3760, %v3757, %v3496
      %v3791 = vsel %vm3760, %v3758, %v3498
      %v3792 = vsel %vm3760, %v3759, %v3500
      %v3793 = vpack.c.bf16 %v3762, %v3761
      %v3794 = vpack.c.bf16 %v3764, %v3763
      %v3795 = vpack.c.bf16 %v3766, %v3765
      %v3796 = vpack.c.bf16 %v3768, %v3767
      %v3797 = vpack.c.bf16 %v3770, %v3769
      %v3798 = vpack.c.bf16 %v3772, %v3771
      %v3799 = vpack.c.bf16 %v3774, %v3773
      %v3800 = vpack.c.bf16 %v3776, %v3775
      %v3801 = vpack.c.bf16 %v3778, %v3777
      %v3802 = vpack.c.bf16 %v3780, %v3779
      %v3803 = vpack.c.bf16 %v3782, %v3781
      %v3804 = vpack.c.bf16 %v3784, %v3783
      %v3805 = vpack.c.bf16 %v3786, %v3785
      %v3806 = vpack.c.bf16 %v3788, %v3787
      %v3807 = vpack.c.bf16 %v3790, %v3789
      %v3808 = vpack.c.bf16 %v3792, %v3791
      %v3809 = vld [vmem:[%s3] sm:$0xf]
      %v3810 = vld [vmem:[%s3 + $0x4] sm:$0xf]
      %v3811 = vld [vmem:[%s3 + $0x8] sm:$0xf]
      %v3812 = vld [vmem:[%s3 + $0xc] sm:$0xf]
      %v3813 = vld [vmem:[%s3 + $0x10] sm:$0xf]
      %v3814 = vld [vmem:[%s3 + $0x14] sm:$0xf]
      %v3815 = vld [vmem:[%s3 + $0x18] sm:$0xf]
      %v3816 = vld [vmem:[%s3 + $0x1c] sm:$0xf]
      %v3817 = vld [vmem:[%s3 + $0x20] sm:$0xf]
      %v3818 = vld [vmem:[%s4] sm:$0x1]
      %v3820 = vlaneseq
      %v3821 = vshrl.u32 %v3820, 7
      %v3822 = vsub.s32 0, %v3821
      %v3823 = vrot.slane %v3818, %v3822
      %v3834 = vunpack.c.l.b16 %v3809
      %v3835 = vunpack.c.l.b16 %v3810
      %v3836 = vunpack.c.l.b16 %v3811
      %v3837 = vunpack.c.l.b16 %v3812
      %v3838 = vunpack.c.l.b16 %v3813
      %v3839 = vunpack.c.l.b16 %v3814
      %v3840 = vunpack.c.l.b16 %v3815
      %v3841 = vunpack.c.l.b16 %v3816
      %v3842 = vunpack.c.l.b16 %v3817
      %v3843 = vpack.c.b16 %v3835, %v3834
      %v3844 = vpack.c.b16 %v3837, %v3836
      %v3845 = vpack.c.b16 %v3839, %v3838
      %v3846 = vpack.c.b16 %v3841, %v3840
      %v3847 = vpack.c.b16 %v3842, %v3842
      %vm3852 = vcmask 588800
      %v3854 = vsel %vm3852, %v3793, 0
      %v3857 = vsel %vm3852, %v3794, 0
      %v3860 = vsel %vm3852, %v3795, 0
      %v3863 = vsel %vm3852, %v3796, 0
      %v3866 = vsel %vm3852, %v3797, 0
      %v3869 = vsel %vm3852, %v3798, 0
      %v3872 = vsel %vm3852, %v3799, 0
      %v3875 = vsel %vm3852, %v3800, 0
      %v3878 = vsel %vm3852, %v3801, 0
      %v3881 = vsel %vm3852, %v3802, 0
      %v3884 = vsel %vm3852, %v3803, 0
      %v3887 = vsel %vm3852, %v3804, 0
      %v3890 = vsel %vm3852, %v3805, 0
      %v3893 = vsel %vm3852, %v3806, 0
      %v3896 = vsel %vm3852, %v3807, 0
      %v3899 = vsel %vm3852, %v3808, 0
      %vm3901 = vcmask 1043456
      %v3903 = vsel %vm3901, %v3847, 0
      %3905 = vmatprep.subr.bf16.mxu0 0
      %3906 = vmatpush1.bf16.msra.mxu0 %v3843
      %3907 = vmatprep.subr.bf16.mxu0 0
      %3908 = vmatpush1.bf16.msra.mxu0 %v3844
      %3909 = vmatprep.subr.bf16.mxu0 0
      %3910 = vmatpush1.bf16.msra.mxu0 %v3845
      %3911 = vmatprep.subr.bf16.mxu0 0
      %3912 = vmatpush1.bf16.msra.mxu0 %v3846
      %3913 = vmatprep.subr.bf16.mxu0 0
      %3914 = vmatpush1.bf16.msra.mxu0 %v3903
      %3915 = vmatprep.subr.bf16.mxu0 0
      %3916 = vmatpush1.bf16.msra.mxu0 0
      %3917 = vmatprep.subr.bf16.mxu0 0
      %3918 = vmatpush1.bf16.msra.mxu0 0
      %3919 = vmatprep.subr.bf16.mxu0 0
      %3920 = vmatpush1.bf16.msra.mxu0 0
      %3921 = vmatprep.subr.bf16.mxu0 0
      %3922 = vmatpush1.bf16.msra.mxu0 0
      %3923 = vmatprep.subr.bf16.mxu0 0
      %3924 = vmatpush1.bf16.msra.mxu0 0
      %3925 = vmatprep.subr.bf16.mxu0 0
      %3926 = vmatpush1.bf16.msra.mxu0 0
      %3927 = vmatprep.subr.bf16.mxu0 0
      %3928 = vmatpush1.bf16.msra.mxu0 0
      %3929 = vmatprep.subr.bf16.mxu0 0
      %3930 = vmatpush1.bf16.msra.mxu0 0
      %3931 = vmatprep.subr.bf16.mxu0 0
      %3932 = vmatpush1.bf16.msra.mxu0 0
      %3933 = vmatprep.subr.bf16.mxu0 0
      %3934 = vmatpush1.bf16.msra.mxu0 0
      %3935 = vmatprep.subr.bf16.mxu0 0
      %3936 = vmatpush1.bf16.msra.mxu0 0
      %3937 = vmatprep.mubr.bf16.mxu0 0
      %3938 = vmatmul.mubr.bf16.gmra.mrb[0].mxu0 %v3854
      %v3939 = vpop.f32.mrb[0].mxu0
      %v3940 = vadd.f32 %v3823, %v3939
      %v3941 = vpop.f32.mrb[0].mxu0
      %v3942 = vpop.f32.mrb[0].mxu0
      %v3943 = vadd.f32 %v3823, %v3942
      %v3944 = vpop.f32.mrb[0].mxu0
      %3945 = vmatprep.mubr.bf16.mxu0 0
      %3946 = vmatmul.mubr.bf16.gmra.mrb[0].mxu0 %v3857
      %v3947 = vpop.f32.mrb[0].mxu0
      %v3948 = vadd.f32 %v3823, %v3947
      %v3949 = vpop.f32.mrb[0].mxu0
      %v3950 = vpop.f32.mrb[0].mxu0
      %v3951 = vadd.f32 %v3823, %v3950
      %v3952 = vpop.f32.mrb[0].mxu0
      %3953 = vmatprep.mubr.bf16.mxu0 0
      %3954 = vmatmul.mubr.bf16.gmra.mrb[0].mxu0 %v3860
      %v3955 = vpop.f32.mrb[0].mxu0
      %v3956 = vadd.f32 %v3823, %v3955
      %v3957 = vpop.f32.mrb[0].mxu0
      %v3958 = vpop.f32.mrb[0].mxu0
      %v3959 = vadd.f32 %v3823, %v3958
      %v3960 = vpop.f32.mrb[0].mxu0
      %3961 = vmatprep.mubr.bf16.mxu0 0
      %3962 = vmatmul.mubr.bf16.gmra.mrb[0].mxu0 %v3863
      %v3963 = vpop.f32.mrb[0].mxu0
      %v3964 = vadd.f32 %v3823, %v3963
      %v3965 = vpop.f32.mrb[0].mxu0
      %v3966 = vpop.f32.mrb[0].mxu0
      %v3967 = vadd.f32 %v3823, %v3966
      %v3968 = vpop.f32.mrb[0].mxu0
      %3969 = vmatprep.mubr.bf16.mxu0 0
      %3970 = vmatmul.mubr.bf16.gmra.mrb[0].mxu0 %v3866
      %v3971 = vpop.f32.mrb[0].mxu0
      %v3972 = vadd.f32 %v3823, %v3971
      %v3973 = vpop.f32.mrb[0].mxu0
      %v3974 = vpop.f32.mrb[0].mxu0
      %v3975 = vadd.f32 %v3823, %v3974
      %v3976 = vpop.f32.mrb[0].mxu0
      %3977 = vmatprep.mubr.bf16.mxu0 0
      %3978 = vmatmul.mubr.bf16.gmra.mrb[0].mxu0 %v3869
      %v3979 = vpop.f32.mrb[0].mxu0
      %v3980 = vadd.f32 %v3823, %v3979
      %v3981 = vpop.f32.mrb[0].mxu0
      %v3982 = vpop.f32.mrb[0].mxu0
      %v3983 = vadd.f32 %v3823, %v3982
      %v3984 = vpop.f32.mrb[0].mxu0
      %3985 = vmatprep.mubr.bf16.mxu0 0
      %3986 = vmatmul.mubr.bf16.gmra.mrb[0].mxu0 %v3872
      %v3987 = vpop.f32.mrb[0].mxu0
      %v3988 = vadd.f32 %v3823, %v3987
      %v3989 = vpop.f32.mrb[0].mxu0
      %v3990 = vpop.f32.mrb[0].mxu0
      %v3991 = vadd.f32 %v3823, %v3990
      %v3992 = vpop.f32.mrb[0].mxu0
      %3993 = vmatprep.mubr.bf16.mxu0 0
      %3994 = vmatmul.mubr.bf16.gmra.mrb[0].mxu0 %v3875
      %v3995 = vpop.f32.mrb[0].mxu0
      %v3996 = vadd.f32 %v3823, %v3995
      %v3997 = vpop.f32.mrb[0].mxu0
      %v3998 = vpop.f32.mrb[0].mxu0
      %v3999 = vadd.f32 %v3823, %v3998
      %v4000 = vpop.f32.mrb[0].mxu0
      %4001 = vmatprep.mubr.bf16.mxu0 0
      %4002 = vmatmul.mubr.bf16.gmra.mrb[0].mxu0 %v3878
      %v4003 = vpop.f32.mrb[0].mxu0
      %v4004 = vadd.f32 %v3823, %v4003
      %v4005 = vpop.f32.mrb[0].mxu0
      %v4006 = vpop.f32.mrb[0].mxu0
      %v4007 = vadd.f32 %v3823, %v4006
      %v4008 = vpop.f32.mrb[0].mxu0
      %4009 = vmatprep.mubr.bf16.mxu0 0
      %4010 = vmatmul.mubr.bf16.gmra.mrb[0].mxu0 %v3881
      %v4011 = vpop.f32.mrb[0].mxu0
      %v4012 = vadd.f32 %v3823, %v4011
      %v4013 = vpop.f32.mrb[0].mxu0
      %v4014 = vpop.f32.mrb[0].mxu0
      %v4015 = vadd.f32 %v3823, %v4014
      %v4016 = vpop.f32.mrb[0].mxu0
      %4017 = vmatprep.mubr.bf16.mxu0 0
      %4018 = vmatmul.mubr.bf16.gmra.mrb[0].mxu0 %v3884
      %v4019 = vpop.f32.mrb[0].mxu0
      %v4020 = vadd.f32 %v3823, %v4019
      %v4021 = vpop.f32.mrb[0].mxu0
      %v4022 = vpop.f32.mrb[0].mxu0
      %v4023 = vadd.f32 %v3823, %v4022
      %v4024 = vpop.f32.mrb[0].mxu0
      %4025 = vmatprep.mubr.bf16.mxu0 0
      %4026 = vmatmul.mubr.bf16.gmra.mrb[0].mxu0 %v3887
      %v4027 = vpop.f32.mrb[0].mxu0
      %v4028 = vadd.f32 %v3823, %v4027
      %v4029 = vpop.f32.mrb[0].mxu0
      %v4030 = vpop.f32.mrb[0].mxu0
      %v4031 = vadd.f32 %v3823, %v4030
      %v4032 = vpop.f32.mrb[0].mxu0
      %4033 = vmatprep.mubr.bf16.mxu0 0
      %4034 = vmatmul.mubr.bf16.gmra.mrb[0].mxu0 %v3890
      %v4035 = vpop.f32.mrb[0].mxu0
      %v4036 = vadd.f32 %v3823, %v4035
      %v4037 = vpop.f32.mrb[0].mxu0
      %v4038 = vpop.f32.mrb[0].mxu0
      %v4039 = vadd.f32 %v3823, %v4038
      %v4040 = vpop.f32.mrb[0].mxu0
      %4041 = vmatprep.mubr.bf16.mxu0 0
      %4042 = vmatmul.mubr.bf16.gmra.mrb[0].mxu0 %v3893
      %v4043 = vpop.f32.mrb[0].mxu0
      %v4044 = vadd.f32 %v3823, %v4043
      %v4045 = vpop.f32.mrb[0].mxu0
      %v4046 = vpop.f32.mrb[0].mxu0
      %v4047 = vadd.f32 %v3823, %v4046
      %v4048 = vpop.f32.mrb[0].mxu0
      %4049 = vmatprep.mubr.bf16.mxu0 0
      %4050 = vmatmul.mubr.bf16.gmra.mrb[0].mxu0 %v3896
      %v4051 = vpop.f32.mrb[0].mxu0
      %v4052 = vadd.f32 %v3823, %v4051
      %v4053 = vpop.f32.mrb[0].mxu0
      %v4054 = vpop.f32.mrb[0].mxu0
      %v4055 = vadd.f32 %v3823, %v4054
      %v4056 = vpop.f32.mrb[0].mxu0
      %4057 = vmatprep.mubr.bf16.mxu0 0
      %4058 = vmatmul.mubr.bf16.gmra.mrb[0].mxu0 %v3899
      %v4059 = vpop.f32.mrb[0].mxu0
      %v4060 = vadd.f32 %v3823, %v4059
      %v4061 = vpop.f32.mrb[0].mxu0
      %v4062 = vpop.f32.mrb[0].mxu0
      %v4063 = vadd.f32 %v3823, %v4062
      %v4064 = vpop.f32.mrb[0].mxu0
      %4065 = vdwg.mxu0
      %v4066 = vld [vmem:[#allocation3] sm:$0xff]
      %v4067 = vld [vmem:[#allocation3 + $0x8] sm:$0xff]
      %v4068 = vld [vmem:[#allocation3 + $0x10] sm:$0xff]
      %v4069 = vld [vmem:[#allocation3 + $0x18] sm:$0xff]
      %v4070 = vld [vmem:[#allocation3 + $0x20] sm:$0xff]
      %v4071 = vld [vmem:[#allocation3 + $0x28] sm:$0xff]
      %v4072 = vld [vmem:[#allocation3 + $0x30] sm:$0xff]
      %v4073 = vld [vmem:[#allocation3 + $0x38] sm:$0xff]
      %v4074 = vld [vmem:[#allocation3 + $0x40] sm:$0xff]
      %v4075 = vld [vmem:[#allocation3 + $0x48] sm:$0xff]
      %v4076 = vld [vmem:[#allocation3 + $0x50] sm:$0xff]
      %v4077 = vld [vmem:[#allocation3 + $0x58] sm:$0xff]
      %v4078 = vld [vmem:[#allocation3 + $0x60] sm:$0xff]
      %v4079 = vld [vmem:[#allocation3 + $0x68] sm:$0xff]
      %v4080 = vld [vmem:[#allocation3 + $0x70] sm:$0xff]
      %v4081 = vld [vmem:[#allocation3 + $0x78] sm:$0xff]
      %v4082 = vld [vmem:[#allocation3 + $0x80] sm:$0xff]
      %v4083 = vld [vmem:[#allocation3 + $0x88] sm:$0xff]
      %v4084 = vld [vmem:[#allocation3 + $0x90] sm:$0xff]
      %v4085 = vld [vmem:[#allocation3 + $0x98] sm:$0xff]
      %v4086 = vld [vmem:[#allocation3 + $0xa0] sm:$0xff]
      %v4087 = vld [vmem:[#allocation3 + $0xa8] sm:$0xff]
      %v4088 = vld [vmem:[#allocation3 + $0xb0] sm:$0xff]
      %v4089 = vld [vmem:[#allocation3 + $0xb8] sm:$0xff]
      %v4090 = vld [vmem:[#allocation3 + $0xc0] sm:$0xff]
      %v4091 = vld [vmem:[#allocation3 + $0xc8] sm:$0xff]
      %v4092 = vld [vmem:[#allocation3 + $0xd0] sm:$0xff]
      %v4093 = vld [vmem:[#allocation3 + $0xd8] sm:$0xff]
      %v4094 = vld [vmem:[#allocation3 + $0xe0] sm:$0xff]
      %v4095 = vld [vmem:[#allocation3 + $0xe8] sm:$0xff]
      %v4096 = vld [vmem:[#allocation3 + $0xf0] sm:$0xff]
      %v4097 = vld [vmem:[#allocation3 + $0xf8] sm:$0xff]
      %v4098 = vld [vmem:[#allocation3 + $0x100] sm:$0xff]
      %v4099 = vld [vmem:[#allocation3 + $0x108] sm:$0xff]
      %v4100 = vld [vmem:[#allocation3 + $0x110] sm:$0xff]
      %v4101 = vld [vmem:[#allocation3 + $0x118] sm:$0xff]
      %v4102 = vld [vmem:[#allocation3 + $0x120] sm:$0xff]
      %v4103 = vld [vmem:[#allocation3 + $0x128] sm:$0xff]
      %v4104 = vld [vmem:[#allocation3 + $0x130] sm:$0xff]
      %v4105 = vld [vmem:[#allocation3 + $0x138] sm:$0xff]
      %v4106 = vld [vmem:[#allocation3 + $0x140] sm:$0xff]
      %v4107 = vld [vmem:[#allocation3 + $0x148] sm:$0xff]
      %v4108 = vld [vmem:[#allocation3 + $0x150] sm:$0xff]
      %v4109 = vld [vmem:[#allocation3 + $0x158] sm:$0xff]
      %v4110 = vld [vmem:[#allocation3 + $0x160] sm:$0xff]
      %v4111 = vld [vmem:[#allocation3 + $0x168] sm:$0xff]
      %v4112 = vld [vmem:[#allocation3 + $0x170] sm:$0xff]
      %v4113 = vld [vmem:[#allocation3 + $0x178] sm:$0xff]
      %v4114 = vld [vmem:[#allocation3 + $0x180] sm:$0xff]
      %v4115 = vld [vmem:[#allocation3 + $0x188] sm:$0xff]
      %v4116 = vld [vmem:[#allocation3 + $0x190] sm:$0xff]
      %v4117 = vld [vmem:[#allocation3 + $0x198] sm:$0xff]
      %v4118 = vld [vmem:[#allocation3 + $0x1a0] sm:$0xff]
      %v4119 = vld [vmem:[#allocation3 + $0x1a8] sm:$0xff]
      %v4120 = vld [vmem:[#allocation3 + $0x1b0] sm:$0xff]
      %v4121 = vld [vmem:[#allocation3 + $0x1b8] sm:$0xff]
      %v4122 = vld [vmem:[#allocation3 + $0x1c0] sm:$0xff]
      %v4123 = vld [vmem:[#allocation3 + $0x1c8] sm:$0xff]
      %v4124 = vld [vmem:[#allocation3 + $0x1d0] sm:$0xff]
      %v4125 = vld [vmem:[#allocation3 + $0x1d8] sm:$0xff]
      %v4126 = vld [vmem:[#allocation3 + $0x1e0] sm:$0xff]
      %v4127 = vld [vmem:[#allocation3 + $0x1e8] sm:$0xff]
      %v4128 = vld [vmem:[#allocation3 + $0x1f0] sm:$0xff]
      %v4129 = vld [vmem:[#allocation3 + $0x1f8] sm:$0xff]
      %v4130 = vld [vmem:[#allocation3 + $0x200] sm:$0xff]
      %v4131 = vld [vmem:[#allocation3 + $0x208] sm:$0xff]
      %v4132 = vld [vmem:[#allocation3 + $0x210] sm:$0xff]
      %v4133 = vld [vmem:[#allocation3 + $0x218] sm:$0xff]
      %v4134 = vld [vmem:[#allocation3 + $0x220] sm:$0xff]
      %v4135 = vld [vmem:[#allocation3 + $0x228] sm:$0xff]
      %v4136 = vld [vmem:[#allocation3 + $0x230] sm:$0xff]
      %v4137 = vld [vmem:[#allocation3 + $0x238] sm:$0xff]
      %v4186 = vrot.slane %v4066, 7
      %v4187 = vrot.slane %v4067, 7
      %v4188 = vsel %vm2528, %v4186, %v4187
      %v4189 = vrot.slane %v4068, 7
      %v4190 = vsel %vm2528, %v4187, %v4189
      %v4191 = vrot.slane %v4070, 7
      %v4192 = vrot.slane %v4071, 7
      %v4193 = vsel %vm2528, %v4191, %v4192
      %v4194 = vrot.slane %v4072, 7
      %v4195 = vsel %vm2528, %v4192, %v4194
      %v4196 = vrot.slane %v4074, 7
      %v4197 = vrot.slane %v4075, 7
      %v4198 = vsel %vm2528, %v4196, %v4197
      %v4199 = vrot.slane %v4076, 7
      %v4200 = vsel %vm2528, %v4197, %v4199
      %v4201 = vrot.slane %v4078, 7
      %v4202 = vrot.slane %v4079, 7
      %v4203 = vsel %vm2528, %v4201, %v4202
      %v4204 = vrot.slane %v4080, 7
      %v4205 = vsel %vm2528, %v4202, %v4204
      %v4206 = vrot.slane %v4082, 7
      %v4207 = vrot.slane %v4083, 7
      %v4208 = vsel %vm2528, %v4206, %v4207
      %v4209 = vrot.slane %v4084, 7
      %v4210 = vsel %vm2528, %v4207, %v4209
      %v4211 = vrot.slane %v4086, 7
      %v4212 = vrot.slane %v4087, 7
      %v4213 = vsel %vm2528, %v4211, %v4212
      %v4214 = vrot.slane %v4088, 7
      %v4215 = vsel %vm2528, %v4212, %v4214
      %v4216 = vrot.slane %v4090, 7
      %v4217 = vrot.slane %v4091, 7
      %v4218 = vsel %vm2528, %v4216, %v4217
      %v4219 = vrot.slane %v4092, 7
      %v4220 = vsel %vm2528, %v4217, %v4219
      %v4221 = vrot.slane %v4094, 7
      %v4222 = vrot.slane %v4095, 7
      %v4223 = vsel %vm2528, %v4221, %v4222
      %v4224 = vrot.slane %v4096, 7
      %v4225 = vsel %vm2528, %v4222, %v4224
      %v4226 = vrot.slane %v4098, 7
      %v4227 = vrot.slane %v4099, 7
      %v4228 = vsel %vm2528, %v4226, %v4227
      %v4229 = vrot.slane %v4100, 7
      %v4230 = vsel %vm2528, %v4227, %v4229
      %v4231 = vrot.slane %v4102, 7
      %v4232 = vrot.slane %v4103, 7
      %v4233 = vsel %vm2528, %v4231, %v4232
      %v4234 = vrot.slane %v4104, 7
      %v4235 = vsel %vm2528, %v4232, %v4234
      %v4236 = vrot.slane %v4106, 7
      %v4237 = vrot.slane %v4107, 7
      %v4238 = vsel %vm2528, %v4236, %v4237
      %v4239 = vrot.slane %v4108, 7
      %v4240 = vsel %vm2528, %v4237, %v4239
      %v4241 = vrot.slane %v4110, 7
      %v4242 = vrot.slane %v4111, 7
      %v4243 = vsel %vm2528, %v4241, %v4242
      %v4244 = vrot.slane %v4112, 7
      %v4245 = vsel %vm2528, %v4242, %v4244
      %v4246 = vrot.slane %v4114, 7
      %v4247 = vrot.slane %v4115, 7
      %v4248 = vsel %vm2528, %v4246, %v4247
      %v4249 = vrot.slane %v4116, 7
      %v4250 = vsel %vm2528, %v4247, %v4249
      %v4251 = vrot.slane %v4118, 7
      %v4252 = vrot.slane %v4119, 7
      %v4253 = vsel %vm2528, %v4251, %v4252
      %v4254 = vrot.slane %v4120, 7
      %v4255 = vsel %vm2528, %v4252, %v4254
      %v4256 = vrot.slane %v4122, 7
      %v4257 = vrot.slane %v4123, 7
      %v4258 = vsel %vm2528, %v4256, %v4257
      %v4259 = vrot.slane %v4124, 7
      %v4260 = vsel %vm2528, %v4257, %v4259
      %v4261 = vrot.slane %v4126, 7
      %v4262 = vrot.slane %v4127, 7
      %v4263 = vsel %vm2528, %v4261, %v4262
      %v4264 = vrot.slane %v4128, 7
      %v4265 = vsel %vm2528, %v4262, %v4264
      %v4314 = vrot.slane %v4067, 1
      %v4315 = vrot.slane %v4068, 1
      %v4316 = vsel %vm802, %v4314, %v4315
      %v4317 = vrot.slane %v4069, 1
      %v4318 = vsel %vm802, %v4315, %v4317
      %v4319 = vrot.slane %v4071, 1
      %v4320 = vrot.slane %v4072, 1
      %v4321 = vsel %vm802, %v4319, %v4320
      %v4322 = vrot.slane %v4073, 1
      %v4323 = vsel %vm802, %v4320, %v4322
      %v4324 = vrot.slane %v4075, 1
      %v4325 = vrot.slane %v4076, 1
      %v4326 = vsel %vm802, %v4324, %v4325
      %v4327 = vrot.slane %v4077, 1
      %v4328 = vsel %vm802, %v4325, %v4327
      %v4329 = vrot.slane %v4079, 1
      %v4330 = vrot.slane %v4080, 1
      %v4331 = vsel %vm802, %v4329, %v4330
      %v4332 = vrot.slane %v4081, 1
      %v4333 = vsel %vm802, %v4330, %v4332
      %v4334 = vrot.slane %v4083, 1
      %v4335 = vrot.slane %v4084, 1
      %v4336 = vsel %vm802, %v4334, %v4335
      %v4337 = vrot.slane %v4085, 1
      %v4338 = vsel %vm802, %v4335, %v4337
      %v4339 = vrot.slane %v4087, 1
      %v4340 = vrot.slane %v4088, 1
      %v4341 = vsel %vm802, %v4339, %v4340
      %v4342 = vrot.slane %v4089, 1
      %v4343 = vsel %vm802, %v4340, %v4342
      %v4344 = vrot.slane %v4091, 1
      %v4345 = vrot.slane %v4092, 1
      %v4346 = vsel %vm802, %v4344, %v4345
      %v4347 = vrot.slane %v4093, 1
      %v4348 = vsel %vm802, %v4345, %v4347
      %v4349 = vrot.slane %v4095, 1
      %v4350 = vrot.slane %v4096, 1
      %v4351 = vsel %vm802, %v4349, %v4350
      %v4352 = vrot.slane %v4097, 1
      %v4353 = vsel %vm802, %v4350, %v4352
      %v4354 = vrot.slane %v4099, 1
      %v4355 = vrot.slane %v4100, 1
      %v4356 = vsel %vm802, %v4354, %v4355
      %v4357 = vrot.slane %v4101, 1
      %v4358 = vsel %vm802, %v4355, %v4357
      %v4359 = vrot.slane %v4103, 1
      %v4360 = vrot.slane %v4104, 1
      %v4361 = vsel %vm802, %v4359, %v4360
      %v4362 = vrot.slane %v4105, 1
      %v4363 = vsel %vm802, %v4360, %v4362
      %v4364 = vrot.slane %v4107, 1
      %v4365 = vrot.slane %v4108, 1
      %v4366 = vsel %vm802, %v4364, %v4365
      %v4367 = vrot.slane %v4109, 1
      %v4368 = vsel %vm802, %v4365, %v4367
      %v4369 = vrot.slane %v4111, 1
      %v4370 = vrot.slane %v4112, 1
      %v4371 = vsel %vm802, %v4369, %v4370
      %v4372 = vrot.slane %v4113, 1
      %v4373 = vsel %vm802, %v4370, %v4372
      %v4374 = vrot.slane %v4115, 1
      %v4375 = vrot.slane %v4116, 1
      %v4376 = vsel %vm802, %v4374, %v4375
      %v4377 = vrot.slane %v4117, 1
      %v4378 = vsel %vm802, %v4375, %v4377
      %v4379 = vrot.slane %v4119, 1
      %v4380 = vrot.slane %v4120, 1
      %v4381 = vsel %vm802, %v4379, %v4380
      %v4382 = vrot.slane %v4121, 1
      %v4383 = vsel %vm802, %v4380, %v4382
      %v4384 = vrot.slane %v4123, 1
      %v4385 = vrot.slane %v4124, 1
      %v4386 = vsel %vm802, %v4384, %v4385
      %v4387 = vrot.slane %v4125, 1
      %v4388 = vsel %vm802, %v4385, %v4387
      %v4389 = vrot.slane %v4127, 1
      %v4390 = vrot.slane %v4128, 1
      %v4391 = vsel %vm802, %v4389, %v4390
      %v4392 = vrot.slane %v4129, 1
      %v4393 = vsel %vm802, %v4390, %v4392
      %v4397 = vrot.slane %v4130, 7
      %v4398 = vrot.slane %v4131, 7
      %v4399 = vsel %vm2528, %v4397, %v4398
      %v4400 = vrot.slane %v4132, 7
      %v4401 = vsel %vm2528, %v4398, %v4400
      %v4403 = vrot.slane %v4131, 1
      %v4404 = vrot.slane %v4132, 1
      %v4405 = vsel %vm802, %v4403, %v4404
      %v4406 = vrot.slane %v4133, 1
      %v4407 = vsel %vm802, %v4404, %v4406
      %v4411 = vrot.slane %v4134, 7
      %v4412 = vrot.slane %v4135, 7
      %v4413 = vsel %vm2528, %v4411, %v4412
      %v4414 = vrot.slane %v4136, 7
      %v4415 = vsel %vm2528, %v4412, %v4414
      %v4417 = vrot.slane %v4135, 1
      %v4418 = vrot.slane %v4136, 1
      %v4419 = vsel %vm802, %v4417, %v4418
      %v4420 = vrot.slane %v4137, 1
      %v4421 = vsel %vm802, %v4418, %v4420
      %4454 = vrot.lane.b32.xlu0 %v4067, 32
      %v4455 = vpop.permute.xlu0 %4454
      %4456 = vrot.lane.b32.xlu0 %v4068, 32
      %v4457 = vpop.permute.xlu0 %4456
      %4458 = vrot.lane.b32.xlu0 %v4071, 32
      %v4459 = vpop.permute.xlu0 %4458
      %4460 = vrot.lane.b32.xlu0 %v4072, 32
      %v4461 = vpop.permute.xlu0 %4460
      %4462 = vrot.lane.b32.xlu0 %v4075, 32
      %v4463 = vpop.permute.xlu0 %4462
      %4464 = vrot.lane.b32.xlu0 %v4076, 32
      %v4465 = vpop.permute.xlu0 %4464
      %4466 = vrot.lane.b32.xlu0 %v4079, 32
      %v4467 = vpop.permute.xlu0 %4466
      %4468 = vrot.lane.b32.xlu0 %v4080, 32
      %v4469 = vpop.permute.xlu0 %4468
      %4470 = vrot.lane.b32.xlu0 %v4083, 32
      %v4471 = vpop.permute.xlu0 %4470
      %4472 = vrot.lane.b32.xlu0 %v4084, 32
      %v4473 = vpop.permute.xlu0 %4472
      %4474 = vrot.lane.b32.xlu0 %v4087, 32
      %v4475 = vpop.permute.xlu0 %4474
      %4476 = vrot.lane.b32.xlu0 %v4088, 32
      %v4477 = vpop.permute.xlu0 %4476
      %4478 = vrot.lane.b32.xlu0 %v4091, 32
      %v4479 = vpop.permute.xlu0 %4478
      %4480 = vrot.lane.b32.xlu0 %v4092, 32
      %v4481 = vpop.permute.xlu0 %4480
      %4482 = vrot.lane.b32.xlu0 %v4095, 32
      %v4483 = vpop.permute.xlu0 %4482
      %4484 = vrot.lane.b32.xlu0 %v4096, 32
      %v4485 = vpop.permute.xlu0 %4484
      %4486 = vrot.lane.b32.xlu0 %v4099, 32
      %v4487 = vpop.permute.xlu0 %4486
      %4488 = vrot.lane.b32.xlu0 %v4100, 32
      %v4489 = vpop.permute.xlu0 %4488
      %4490 = vrot.lane.b32.xlu0 %v4103, 32
      %v4491 = vpop.permute.xlu0 %4490
      %4492 = vrot.lane.b32.xlu0 %v4104, 32
      %v4493 = vpop.permute.xlu0 %4492
      %4494 = vrot.lane.b32.xlu0 %v4107, 32
      %v4495 = vpop.permute.xlu0 %4494
      %4496 = vrot.lane.b32.xlu0 %v4108, 32
      %v4497 = vpop.permute.xlu0 %4496
      %4498 = vrot.lane.b32.xlu0 %v4111, 32
      %v4499 = vpop.permute.xlu0 %4498
      %4500 = vrot.lane.b32.xlu0 %v4112, 32
      %v4501 = vpop.permute.xlu0 %4500
      %4502 = vrot.lane.b32.xlu0 %v4115, 32
      %v4503 = vpop.permute.xlu0 %4502
      %4504 = vrot.lane.b32.xlu0 %v4116, 32
      %v4505 = vpop.permute.xlu0 %4504
      %4506 = vrot.lane.b32.xlu0 %v4119, 32
      %v4507 = vpop.permute.xlu0 %4506
      %4508 = vrot.lane.b32.xlu0 %v4120, 32
      %v4509 = vpop.permute.xlu0 %4508
      %4510 = vrot.lane.b32.xlu0 %v4123, 32
      %v4511 = vpop.permute.xlu0 %4510
      %4512 = vrot.lane.b32.xlu0 %v4124, 32
      %v4513 = vpop.permute.xlu0 %4512
      %4514 = vrot.lane.b32.xlu0 %v4127, 32
      %v4515 = vpop.permute.xlu0 %4514
      %4516 = vrot.lane.b32.xlu0 %v4128, 32
      %v4517 = vpop.permute.xlu0 %4516
      %4550 = vrot.lane.b32.xlu0 %v4316, 64
      %v4551 = vpop.permute.xlu0 %4550
      %4552 = vrot.lane.b32.xlu0 %v4318, 64
      %v4553 = vpop.permute.xlu0 %4552
      %4554 = vrot.lane.b32.xlu0 %v4321, 64
      %v4555 = vpop.permute.xlu0 %4554
      %4556 = vrot.lane.b32.xlu0 %v4323, 64
      %v4557 = vpop.permute.xlu0 %4556
      %4558 = vrot.lane.b32.xlu0 %v4326, 64
      %v4559 = vpop.permute.xlu0 %4558
      %4560 = vrot.lane.b32.xlu0 %v4328, 64
      %v4561 = vpop.permute.xlu0 %4560
      %4562 = vrot.lane.b32.xlu0 %v4331, 64
      %v4563 = vpop.permute.xlu0 %4562
      %4564 = vrot.lane.b32.xlu0 %v4333, 64
      %v4565 = vpop.permute.xlu0 %4564
      %4566 = vrot.lane.b32.xlu0 %v4336, 64
      %v4567 = vpop.permute.xlu0 %4566
      %4568 = vrot.lane.b32.xlu0 %v4338, 64
      %v4569 = vpop.permute.xlu0 %4568
      %4570 = vrot.lane.b32.xlu0 %v4341, 64
      %v4571 = vpop.permute.xlu0 %4570
      %4572 = vrot.lane.b32.xlu0 %v4343, 64
      %v4573 = vpop.permute.xlu0 %4572
      %4574 = vrot.lane.b32.xlu0 %v4346, 64
      %v4575 = vpop.permute.xlu0 %4574
      %4576 = vrot.lane.b32.xlu0 %v4348, 64
      %v4577 = vpop.permute.xlu0 %4576
      %4578 = vrot.lane.b32.xlu0 %v4351, 64
      %v4579 = vpop.permute.xlu0 %4578
      %4580 = vrot.lane.b32.xlu0 %v4353, 64
      %v4581 = vpop.permute.xlu0 %4580
      %4582 = vrot.lane.b32.xlu0 %v4356, 64
      %v4583 = vpop.permute.xlu0 %4582
      %4584 = vrot.lane.b32.xlu0 %v4358, 64
      %v4585 = vpop.permute.xlu0 %4584
      %4586 = vrot.lane.b32.xlu0 %v4361, 64
      %v4587 = vpop.permute.xlu0 %4586
      %4588 = vrot.lane.b32.xlu0 %v4363, 64
      %v4589 = vpop.permute.xlu0 %4588
      %4590 = vrot.lane.b32.xlu0 %v4366, 64
      %v4591 = vpop.permute.xlu0 %4590
      %4592 = vrot.lane.b32.xlu0 %v4368, 64
      %v4593 = vpop.permute.xlu0 %4592
      %4594 = vrot.lane.b32.xlu0 %v4371, 64
      %v4595 = vpop.permute.xlu0 %4594
      %4596 = vrot.lane.b32.xlu0 %v4373, 64
      %v4597 = vpop.permute.xlu0 %4596
      %4598 = vrot.lane.b32.xlu0 %v4376, 64
      %v4599 = vpop.permute.xlu0 %4598
      %4600 = vrot.lane.b32.xlu0 %v4378, 64
      %v4601 = vpop.permute.xlu0 %4600
      %4602 = vrot.lane.b32.xlu0 %v4381, 64
      %v4603 = vpop.permute.xlu0 %4602
      %4604 = vrot.lane.b32.xlu0 %v4383, 64
      %v4605 = vpop.permute.xlu0 %4604
      %4606 = vrot.lane.b32.xlu0 %v4386, 64
      %v4607 = vpop.permute.xlu0 %4606
      %4608 = vrot.lane.b32.xlu0 %v4388, 64
      %v4609 = vpop.permute.xlu0 %4608
      %4610 = vrot.lane.b32.xlu0 %v4391, 64
      %v4611 = vpop.permute.xlu0 %4610
      %4612 = vrot.lane.b32.xlu0 %v4393, 64
      %v4613 = vpop.permute.xlu0 %4612
      %4646 = vrot.lane.b32.xlu0 %v4193, 96
      %v4647 = vpop.permute.xlu0 %4646
      %4648 = vrot.lane.b32.xlu0 %v4195, 96
      %v4649 = vpop.permute.xlu0 %4648
      %4650 = vrot.lane.b32.xlu0 %v4198, 96
      %v4651 = vpop.permute.xlu0 %4650
      %4652 = vrot.lane.b32.xlu0 %v4200, 96
      %v4653 = vpop.permute.xlu0 %4652
      %4654 = vrot.lane.b32.xlu0 %v4203, 96
      %v4655 = vpop.permute.xlu0 %4654
      %4656 = vrot.lane.b32.xlu0 %v4205, 96
      %v4657 = vpop.permute.xlu0 %4656
      %4658 = vrot.lane.b32.xlu0 %v4208, 96
      %v4659 = vpop.permute.xlu0 %4658
      %4660 = vrot.lane.b32.xlu0 %v4210, 96
      %v4661 = vpop.permute.xlu0 %4660
      %4662 = vrot.lane.b32.xlu0 %v4213, 96
      %v4663 = vpop.permute.xlu0 %4662
      %4664 = vrot.lane.b32.xlu0 %v4215, 96
      %v4665 = vpop.permute.xlu0 %4664
      %4666 = vrot.lane.b32.xlu0 %v4218, 96
      %v4667 = vpop.permute.xlu0 %4666
      %4668 = vrot.lane.b32.xlu0 %v4220, 96
      %v4669 = vpop.permute.xlu0 %4668
      %4670 = vrot.lane.b32.xlu0 %v4223, 96
      %v4671 = vpop.permute.xlu0 %4670
      %4672 = vrot.lane.b32.xlu0 %v4225, 96
      %v4673 = vpop.permute.xlu0 %4672
      %4674 = vrot.lane.b32.xlu0 %v4228, 96
      %v4675 = vpop.permute.xlu0 %4674
      %4676 = vrot.lane.b32.xlu0 %v4230, 96
      %v4677 = vpop.permute.xlu0 %4676
      %4678 = vrot.lane.b32.xlu0 %v4233, 96
      %v4679 = vpop.permute.xlu0 %4678
      %4680 = vrot.lane.b32.xlu0 %v4235, 96
      %v4681 = vpop.permute.xlu0 %4680
      %4682 = vrot.lane.b32.xlu0 %v4238, 96
      %v4683 = vpop.permute.xlu0 %4682
      %4684 = vrot.lane.b32.xlu0 %v4240, 96
      %v4685 = vpop.permute.xlu0 %4684
      %4686 = vrot.lane.b32.xlu0 %v4243, 96
      %v4687 = vpop.permute.xlu0 %4686
      %4688 = vrot.lane.b32.xlu0 %v4245, 96
      %v4689 = vpop.permute.xlu0 %4688
      %4690 = vrot.lane.b32.xlu0 %v4248, 96
      %v4691 = vpop.permute.xlu0 %4690
      %4692 = vrot.lane.b32.xlu0 %v4250, 96
      %v4693 = vpop.permute.xlu0 %4692
      %4694 = vrot.lane.b32.xlu0 %v4253, 96
      %v4695 = vpop.permute.xlu0 %4694
      %4696 = vrot.lane.b32.xlu0 %v4255, 96
      %v4697 = vpop.permute.xlu0 %4696
      %4698 = vrot.lane.b32.xlu0 %v4258, 96
      %v4699 = vpop.permute.xlu0 %4698
      %4700 = vrot.lane.b32.xlu0 %v4260, 96
      %v4701 = vpop.permute.xlu0 %4700
      %4702 = vrot.lane.b32.xlu0 %v4263, 96
      %v4703 = vpop.permute.xlu0 %4702
      %4704 = vrot.lane.b32.xlu0 %v4265, 96
      %v4705 = vpop.permute.xlu0 %4704
      %4706 = vrot.lane.b32.xlu0 %v4399, 96
      %v4707 = vpop.permute.xlu0 %4706
      %4708 = vrot.lane.b32.xlu0 %v4401, 96
      %v4709 = vpop.permute.xlu0 %4708
      %4742 = vrot.lane.b32.xlu0 %v4321, 32
      %v4743 = vpop.permute.xlu0 %4742
      %4744 = vrot.lane.b32.xlu0 %v4323, 32
      %v4745 = vpop.permute.xlu0 %4744
      %4746 = vrot.lane.b32.xlu0 %v4326, 32
      %v4747 = vpop.permute.xlu0 %4746
      %4748 = vrot.lane.b32.xlu0 %v4328, 32
      %v4749 = vpop.permute.xlu0 %4748
      %4750 = vrot.lane.b32.xlu0 %v4331, 32
      %v4751 = vpop.permute.xlu0 %4750
      %4752 = vrot.lane.b32.xlu0 %v4333, 32
      %v4753 = vpop.permute.xlu0 %4752
      %4754 = vrot.lane.b32.xlu0 %v4336, 32
      %v4755 = vpop.permute.xlu0 %4754
      %4756 = vrot.lane.b32.xlu0 %v4338, 32
      %v4757 = vpop.permute.xlu0 %4756
      %4758 = vrot.lane.b32.xlu0 %v4341, 32
      %v4759 = vpop.permute.xlu0 %4758
      %4760 = vrot.lane.b32.xlu0 %v4343, 32
      %v4761 = vpop.permute.xlu0 %4760
      %4762 = vrot.lane.b32.xlu0 %v4346, 32
      %v4763 = vpop.permute.xlu0 %4762
      %4764 = vrot.lane.b32.xlu0 %v4348, 32
      %v4765 = vpop.permute.xlu0 %4764
      %4766 = vrot.lane.b32.xlu0 %v4351, 32
      %v4767 = vpop.permute.xlu0 %4766
      %4768 = vrot.lane.b32.xlu0 %v4353, 32
      %v4769 = vpop.permute.xlu0 %4768
      %4770 = vrot.lane.b32.xlu0 %v4356, 32
      %v4771 = vpop.permute.xlu0 %4770
      %4772 = vrot.lane.b32.xlu0 %v4358, 32
      %v4773 = vpop.permute.xlu0 %4772
      %4774 = vrot.lane.b32.xlu0 %v4361, 32
      %v4775 = vpop.permute.xlu0 %4774
      %4776 = vrot.lane.b32.xlu0 %v4363, 32
      %v4777 = vpop.permute.xlu0 %4776
      %4778 = vrot.lane.b32.xlu0 %v4366, 32
      %v4779 = vpop.permute.xlu0 %4778
      %4780 = vrot.lane.b32.xlu0 %v4368, 32
      %v4781 = vpop.permute.xlu0 %4780
      %4782 = vrot.lane.b32.xlu0 %v4371, 32
      %v4783 = vpop.permute.xlu0 %4782
      %4784 = vrot.lane.b32.xlu0 %v4373, 32
      %v4785 = vpop.permute.xlu0 %4784
      %4786 = vrot.lane.b32.xlu0 %v4376, 32
      %v4787 = vpop.permute.xlu0 %4786
      %4788 = vrot.lane.b32.xlu0 %v4378, 32
      %v4789 = vpop.permute.xlu0 %4788
      %4790 = vrot.lane.b32.xlu0 %v4381, 32
      %v4791 = vpop.permute.xlu0 %4790
      %4792 = vrot.lane.b32.xlu0 %v4383, 32
      %v4793 = vpop.permute.xlu0 %4792
      %4794 = vrot.lane.b32.xlu0 %v4386, 32
      %v4795 = vpop.permute.xlu0 %4794
      %4796 = vrot.lane.b32.xlu0 %v4388, 32
      %v4797 = vpop.permute.xlu0 %4796
      %4798 = vrot.lane.b32.xlu0 %v4391, 32
      %v4799 = vpop.permute.xlu0 %4798
      %4800 = vrot.lane.b32.xlu0 %v4393, 32
      %v4801 = vpop.permute.xlu0 %4800
      %4802 = vrot.lane.b32.xlu0 %v4405, 32
      %v4803 = vpop.permute.xlu0 %4802
      %4804 = vrot.lane.b32.xlu0 %v4407, 32
      %v4805 = vpop.permute.xlu0 %4804
      %4838 = vrot.lane.b32.xlu0 %v4198, 64
      %v4839 = vpop.permute.xlu0 %4838
      %4840 = vrot.lane.b32.xlu0 %v4200, 64
      %v4841 = vpop.permute.xlu0 %4840
      %4842 = vrot.lane.b32.xlu0 %v4203, 64
      %v4843 = vpop.permute.xlu0 %4842
      %4844 = vrot.lane.b32.xlu0 %v4205, 64
      %v4845 = vpop.permute.xlu0 %4844
      %4846 = vrot.lane.b32.xlu0 %v4208, 64
      %v4847 = vpop.permute.xlu0 %4846
      %4848 = vrot.lane.b32.xlu0 %v4210, 64
      %v4849 = vpop.permute.xlu0 %4848
      %4850 = vrot.lane.b32.xlu0 %v4213, 64
      %v4851 = vpop.permute.xlu0 %4850
      %4852 = vrot.lane.b32.xlu0 %v4215, 64
      %v4853 = vpop.permute.xlu0 %4852
      %4854 = vrot.lane.b32.xlu0 %v4218, 64
      %v4855 = vpop.permute.xlu0 %4854
      %4856 = vrot.lane.b32.xlu0 %v4220, 64
      %v4857 = vpop.permute.xlu0 %4856
      %4858 = vrot.lane.b32.xlu0 %v4223, 64
      %v4859 = vpop.permute.xlu0 %4858
      %4860 = vrot.lane.b32.xlu0 %v4225, 64
      %v4861 = vpop.permute.xlu0 %4860
      %4862 = vrot.lane.b32.xlu0 %v4228, 64
      %v4863 = vpop.permute.xlu0 %4862
      %4864 = vrot.lane.b32.xlu0 %v4230, 64
      %v4865 = vpop.permute.xlu0 %4864
      %4866 = vrot.lane.b32.xlu0 %v4233, 64
      %v4867 = vpop.permute.xlu0 %4866
      %4868 = vrot.lane.b32.xlu0 %v4235, 64
      %v4869 = vpop.permute.xlu0 %4868
      %4870 = vrot.lane.b32.xlu0 %v4238, 64
      %v4871 = vpop.permute.xlu0 %4870
      %4872 = vrot.lane.b32.xlu0 %v4240, 64
      %v4873 = vpop.permute.xlu0 %4872
      %4874 = vrot.lane.b32.xlu0 %v4243, 64
      %v4875 = vpop.permute.xlu0 %4874
      %4876 = vrot.lane.b32.xlu0 %v4245, 64
      %v4877 = vpop.permute.xlu0 %4876
      %4878 = vrot.lane.b32.xlu0 %v4248, 64
      %v4879 = vpop.permute.xlu0 %4878
      %4880 = vrot.lane.b32.xlu0 %v4250, 64
      %v4881 = vpop.permute.xlu0 %4880
      %4882 = vrot.lane.b32.xlu0 %v4253, 64
      %v4883 = vpop.permute.xlu0 %4882
      %4884 = vrot.lane.b32.xlu0 %v4255, 64
      %v4885 = vpop.permute.xlu0 %4884
      %4886 = vrot.lane.b32.xlu0 %v4258, 64
      %v4887 = vpop.permute.xlu0 %4886
      %4888 = vrot.lane.b32.xlu0 %v4260, 64
      %v4889 = vpop.permute.xlu0 %4888
      %4890 = vrot.lane.b32.xlu0 %v4263, 64
      %v4891 = vpop.permute.xlu0 %4890
      %4892 = vrot.lane.b32.xlu0 %v4265, 64
      %v4893 = vpop.permute.xlu0 %4892
      %4894 = vrot.lane.b32.xlu0 %v4399, 64
      %v4895 = vpop.permute.xlu0 %4894
      %4896 = vrot.lane.b32.xlu0 %v4401, 64
      %v4897 = vpop.permute.xlu0 %4896
      %4898 = vrot.lane.b32.xlu0 %v4413, 64
      %v4899 = vpop.permute.xlu0 %4898
      %4900 = vrot.lane.b32.xlu0 %v4415, 64
      %v4901 = vpop.permute.xlu0 %4900
      %4934 = vrot.lane.b32.xlu0 %v4075, 96
      %v4935 = vpop.permute.xlu0 %4934
      %4936 = vrot.lane.b32.xlu0 %v4076, 96
      %v4937 = vpop.permute.xlu0 %4936
      %4938 = vrot.lane.b32.xlu0 %v4079, 96
      %v4939 = vpop.permute.xlu0 %4938
      %4940 = vrot.lane.b32.xlu0 %v4080, 96
      %v4941 = vpop.permute.xlu0 %4940
      %4942 = vrot.lane.b32.xlu0 %v4083, 96
      %v4943 = vpop.permute.xlu0 %4942
      %4944 = vrot.lane.b32.xlu0 %v4084, 96
      %v4945 = vpop.permute.xlu0 %4944
      %4946 = vrot.lane.b32.xlu0 %v4087, 96
      %v4947 = vpop.permute.xlu0 %4946
      %4948 = vrot.lane.b32.xlu0 %v4088, 96
      %v4949 = vpop.permute.xlu0 %4948
      %4950 = vrot.lane.b32.xlu0 %v4091, 96
      %v4951 = vpop.permute.xlu0 %4950
      %4952 = vrot.lane.b32.xlu0 %v4092, 96
      %v4953 = vpop.permute.xlu0 %4952
      %4954 = vrot.lane.b32.xlu0 %v4095, 96
      %v4955 = vpop.permute.xlu0 %4954
      %4956 = vrot.lane.b32.xlu0 %v4096, 96
      %v4957 = vpop.permute.xlu0 %4956
      %4958 = vrot.lane.b32.xlu0 %v4099, 96
      %v4959 = vpop.permute.xlu0 %4958
      %4960 = vrot.lane.b32.xlu0 %v4100, 96
      %v4961 = vpop.permute.xlu0 %4960
      %4962 = vrot.lane.b32.xlu0 %v4103, 96
      %v4963 = vpop.permute.xlu0 %4962
      %4964 = vrot.lane.b32.xlu0 %v4104, 96
      %v4965 = vpop.permute.xlu0 %4964
      %4966 = vrot.lane.b32.xlu0 %v4107, 96
      %v4967 = vpop.permute.xlu0 %4966
      %4968 = vrot.lane.b32.xlu0 %v4108, 96
      %v4969 = vpop.permute.xlu0 %4968
      %4970 = vrot.lane.b32.xlu0 %v4111, 96
      %v4971 = vpop.permute.xlu0 %4970
      %4972 = vrot.lane.b32.xlu0 %v4112, 96
      %v4973 = vpop.permute.xlu0 %4972
      %4974 = vrot.lane.b32.xlu0 %v4115, 96
      %v4975 = vpop.permute.xlu0 %4974
      %4976 = vrot.lane.b32.xlu0 %v4116, 96
      %v4977 = vpop.permute.xlu0 %4976
      %4978 = vrot.lane.b32.xlu0 %v4119, 96
      %v4979 = vpop.permute.xlu0 %4978
      %4980 = vrot.lane.b32.xlu0 %v4120, 96
      %v4981 = vpop.permute.xlu0 %4980
      %4982 = vrot.lane.b32.xlu0 %v4123, 96
      %v4983 = vpop.permute.xlu0 %4982
      %4984 = vrot.lane.b32.xlu0 %v4124, 96
      %v4985 = vpop.permute.xlu0 %4984
      %4986 = vrot.lane.b32.xlu0 %v4127, 96
      %v4987 = vpop.permute.xlu0 %4986
      %4988 = vrot.lane.b32.xlu0 %v4128, 96
      %v4989 = vpop.permute.xlu0 %4988
      %4990 = vrot.lane.b32.xlu0 %v4131, 96
      %v4991 = vpop.permute.xlu0 %4990
      %4992 = vrot.lane.b32.xlu0 %v4132, 96
      %v4993 = vpop.permute.xlu0 %4992
      %4994 = vrot.lane.b32.xlu0 %v4135, 96
      %v4995 = vpop.permute.xlu0 %4994
      %4996 = vrot.lane.b32.xlu0 %v4136, 96
      %v4997 = vpop.permute.xlu0 %4996
      %v5030 = vsel %vm1989, %v4188, %v4455
      %v5031 = vsel %vm1989, %v4190, %v4457
      %v5032 = vsel %vm1989, %v4193, %v4459
      %v5033 = vsel %vm1989, %v4195, %v4461
      %v5034 = vsel %vm1989, %v4198, %v4463
      %v5035 = vsel %vm1989, %v4200, %v4465
      %v5036 = vsel %vm1989, %v4203, %v4467
      %v5037 = vsel %vm1989, %v4205, %v4469
      %v5038 = vsel %vm1989, %v4208, %v4471
      %v5039 = vsel %vm1989, %v4210, %v4473
      %v5040 = vsel %vm1989, %v4213, %v4475
      %v5041 = vsel %vm1989, %v4215, %v4477
      %v5042 = vsel %vm1989, %v4218, %v4479
      %v5043 = vsel %vm1989, %v4220, %v4481
      %v5044 = vsel %vm1989, %v4223, %v4483
      %v5045 = vsel %vm1989, %v4225, %v4485
      %v5046 = vsel %vm1989, %v4228, %v4487
      %v5047 = vsel %vm1989, %v4230, %v4489
      %v5048 = vsel %vm1989, %v4233, %v4491
      %v5049 = vsel %vm1989, %v4235, %v4493
      %v5050 = vsel %vm1989, %v4238, %v4495
      %v5051 = vsel %vm1989, %v4240, %v4497
      %v5052 = vsel %vm1989, %v4243, %v4499
      %v5053 = vsel %vm1989, %v4245, %v4501
      %v5054 = vsel %vm1989, %v4248, %v4503
      %v5055 = vsel %vm1989, %v4250, %v4505
      %v5056 = vsel %vm1989, %v4253, %v4507
      %v5057 = vsel %vm1989, %v4255, %v4509
      %v5058 = vsel %vm1989, %v4258, %v4511
      %v5059 = vsel %vm1989, %v4260, %v4513
      %v5060 = vsel %vm1989, %v4263, %v4515
      %v5061 = vsel %vm1989, %v4265, %v4517
      %v5062 = vsel %vm3760, %v5030, %v4551
      %v5063 = vsel %vm3760, %v5031, %v4553
      %v5064 = vsel %vm3760, %v5032, %v4555
      %v5065 = vsel %vm3760, %v5033, %v4557
      %v5066 = vsel %vm3760, %v5034, %v4559
      %v5067 = vsel %vm3760, %v5035, %v4561
      %v5068 = vsel %vm3760, %v5036, %v4563
      %v5069 = vsel %vm3760, %v5037, %v4565
      %v5070 = vsel %vm3760, %v5038, %v4567
      %v5071 = vsel %vm3760, %v5039, %v4569
      %v5072 = vsel %vm3760, %v5040, %v4571
      %v5073 = vsel %vm3760, %v5041, %v4573
      %v5074 = vsel %vm3760, %v5042, %v4575
      %v5075 = vsel %vm3760, %v5043, %v4577
      %v5076 = vsel %vm3760, %v5044, %v4579
      %v5077 = vsel %vm3760, %v5045, %v4581
      %v5078 = vsel %vm3760, %v5046, %v4583
      %v5079 = vsel %vm3760, %v5047, %v4585
      %v5080 = vsel %vm3760, %v5048, %v4587
      %v5081 = vsel %vm3760, %v5049, %v4589
      %v5082 = vsel %vm3760, %v5050, %v4591
      %v5083 = vsel %vm3760, %v5051, %v4593
      %v5084 = vsel %vm3760, %v5052, %v4595
      %v5085 = vsel %vm3760, %v5053, %v4597
      %v5086 = vsel %vm3760, %v5054, %v4599
      %v5087 = vsel %vm3760, %v5055, %v4601
      %v5088 = vsel %vm3760, %v5056, %v4603
      %v5089 = vsel %vm3760, %v5057, %v4605
      %v5090 = vsel %vm3760, %v5058, %v4607
      %v5091 = vsel %vm3760, %v5059, %v4609
      %v5092 = vsel %vm3760, %v5060, %v4611
      %v5093 = vsel %vm3760, %v5061, %v4613
      %vm5094 = vcmask 785408
      %v5095 = vsel %vm5094, %v5062, %v4647
      %v5096 = vsel %vm5094, %v5063, %v4649
      %v5097 = vsel %vm5094, %v5064, %v4651
      %v5098 = vsel %vm5094, %v5065, %v4653
      %v5099 = vsel %vm5094, %v5066, %v4655
      %v5100 = vsel %vm5094, %v5067, %v4657
      %v5101 = vsel %vm5094, %v5068, %v4659
      %v5102 = vsel %vm5094, %v5069, %v4661
      %v5103 = vsel %vm5094, %v5070, %v4663
      %v5104 = vsel %vm5094, %v5071, %v4665
      %v5105 = vsel %vm5094, %v5072, %v4667
      %v5106 = vsel %vm5094, %v5073, %v4669
      %v5107 = vsel %vm5094, %v5074, %v4671
      %v5108 = vsel %vm5094, %v5075, %v4673
      %v5109 = vsel %vm5094, %v5076, %v4675
      %v5110 = vsel %vm5094, %v5077, %v4677
      %v5111 = vsel %vm5094, %v5078, %v4679
      %v5112 = vsel %vm5094, %v5079, %v4681
      %v5113 = vsel %vm5094, %v5080, %v4683
      %v5114 = vsel %vm5094, %v5081, %v4685
      %v5115 = vsel %vm5094, %v5082, %v4687
      %v5116 = vsel %vm5094, %v5083, %v4689
      %v5117 = vsel %vm5094, %v5084, %v4691
      %v5118 = vsel %vm5094, %v5085, %v4693
      %v5119 = vsel %vm5094, %v5086, %v4695
      %v5120 = vsel %vm5094, %v5087, %v4697
      %v5121 = vsel %vm5094, %v5088, %v4699
      %v5122 = vsel %vm5094, %v5089, %v4701
      %v5123 = vsel %vm5094, %v5090, %v4703
      %v5124 = vsel %vm5094, %v5091, %v4705
      %v5125 = vsel %vm5094, %v5092, %v4707
      %v5126 = vsel %vm5094, %v5093, %v4709
      %v5127 = vsel %vm1989, %v4071, %v4743
      %v5128 = vsel %vm1989, %v4072, %v4745
      %v5129 = vsel %vm1989, %v4075, %v4747
      %v5130 = vsel %vm1989, %v4076, %v4749
      %v5131 = vsel %vm1989, %v4079, %v4751
      %v5132 = vsel %vm1989, %v4080, %v4753
      %v5133 = vsel %vm1989, %v4083, %v4755
      %v5134 = vsel %vm1989, %v4084, %v4757
      %v5135 = vsel %vm1989, %v4087, %v4759
      %v5136 = vsel %vm1989, %v4088, %v4761
      %v5137 = vsel %vm1989, %v4091, %v4763
      %v5138 = vsel %vm1989, %v4092, %v4765
      %v5139 = vsel %vm1989, %v4095, %v4767
      %v5140 = vsel %vm1989, %v4096, %v4769
      %v5141 = vsel %vm1989, %v4099, %v4771
      %v5142 = vsel %vm1989, %v4100, %v4773
      %v5143 = vsel %vm1989, %v4103, %v4775
      %v5144 = vsel %vm1989, %v4104, %v4777
      %v5145 = vsel %vm1989, %v4107, %v4779
      %v5146 = vsel %vm1989, %v4108, %v4781
      %v5147 = vsel %vm1989, %v4111, %v4783
      %v5148 = vsel %vm1989, %v4112, %v4785
      %v5149 = vsel %vm1989, %v4115, %v4787
      %v5150 = vsel %vm1989, %v4116, %v4789
      %v5151 = vsel %vm1989, %v4119, %v4791
      %v5152 = vsel %vm1989, %v4120, %v4793
      %v5153 = vsel %vm1989, %v4123, %v4795
      %v5154 = vsel %vm1989, %v4124, %v4797
      %v5155 = vsel %vm1989, %v4127, %v4799
      %v5156 = vsel %vm1989, %v4128, %v4801
      %v5157 = vsel %vm1989, %v4131, %v4803
      %v5158 = vsel %vm1989, %v4132, %v4805
      %v5159 = vsel %vm3760, %v5127, %v4839
      %v5160 = vsel %vm3760, %v5128, %v4841
      %v5161 = vsel %vm3760, %v5129, %v4843
      %v5162 = vsel %vm3760, %v5130, %v4845
      %v5163 = vsel %vm3760, %v5131, %v4847
      %v5164 = vsel %vm3760, %v5132, %v4849
      %v5165 = vsel %vm3760, %v5133, %v4851
      %v5166 = vsel %vm3760, %v5134, %v4853
      %v5167 = vsel %vm3760, %v5135, %v4855
      %v5168 = vsel %vm3760, %v5136, %v4857
      %v5169 = vsel %vm3760, %v5137, %v4859
      %v5170 = vsel %vm3760, %v5138, %v4861
      %v5171 = vsel %vm3760, %v5139, %v4863
      %v5172 = vsel %vm3760, %v5140, %v4865
      %v5173 = vsel %vm3760, %v5141, %v4867
      %v5174 = vsel %vm3760, %v5142, %v4869
      %v5175 = vsel %vm3760, %v5143, %v4871
      %v5176 = vsel %vm3760, %v5144, %v4873
      %v5177 = vsel %vm3760, %v5145, %v4875
      %v5178 = vsel %vm3760, %v5146, %v4877
      %v5179 = vsel %vm3760, %v5147, %v4879
      %v5180 = vsel %vm3760, %v5148, %v4881
      %v5181 = vsel %vm3760, %v5149, %v4883
      %v5182 = vsel %vm3760, %v5150, %v4885
      %v5183 = vsel %vm3760, %v5151, %v4887
      %v5184 = vsel %vm3760, %v5152, %v4889
      %v5185 = vsel %vm3760, %v5153, %v4891
      %v5186 = vsel %vm3760, %v5154, %v4893
      %v5187 = vsel %vm3760, %v5155, %v4895
      %v5188 = vsel %vm3760, %v5156, %v4897
      %v5189 = vsel %vm3760, %v5157, %v4899
      %v5190 = vsel %vm3760, %v5158, %v4901
      %v5191 = vsel %vm5094, %v5159, %v4935
      %v5192 = vsel %vm5094, %v5160, %v4937
      %v5193 = vsel %vm5094, %v5161, %v4939
      %v5194 = vsel %vm5094, %v5162, %v4941
      %v5195 = vsel %vm5094, %v5163, %v4943
      %v5196 = vsel %vm5094, %v5164, %v4945
      %v5197 = vsel %vm5094, %v5165, %v4947
      %v5198 = vsel %vm5094, %v5166, %v4949
      %v5199 = vsel %vm5094, %v5167, %v4951
      %v5200 = vsel %vm5094, %v5168, %v4953
      %v5201 = vsel %vm5094, %v5169, %v4955
      %v5202 = vsel %vm5094, %v5170, %v4957
      %v5203 = vsel %vm5094, %v5171, %v4959
      %v5204 = vsel %vm5094, %v5172, %v4961
      %v5205 = vsel %vm5094, %v5173, %v4963
      %v5206 = vsel %vm5094, %v5174, %v4965
      %v5207 = vsel %vm5094, %v5175, %v4967
      %v5208 = vsel %vm5094, %v5176, %v4969
      %v5209 = vsel %vm5094, %v5177, %v4971
      %v5210 = vsel %vm5094, %v5178, %v4973
      %v5211 = vsel %vm5094, %v5179, %v4975
      %v5212 = vsel %vm5094, %v5180, %v4977
      %v5213 = vsel %vm5094, %v5181, %v4979
      %v5214 = vsel %vm5094, %v5182, %v4981
      %v5215 = vsel %vm5094, %v5183, %v4983
      %v5216 = vsel %vm5094, %v5184, %v4985
      %v5217 = vsel %vm5094, %v5185, %v4987
      %v5218 = vsel %vm5094, %v5186, %v4989
      %v5219 = vsel %vm5094, %v5187, %v4991
      %v5220 = vsel %vm5094, %v5188, %v4993
      %v5221 = vsel %vm5094, %v5189, %v4995
      %v5222 = vsel %vm5094, %v5190, %v4997
      %v5223 = vpack.c.bf16 %v5096, %v5095
      %v5224 = vpack.c.bf16 %v5192, %v5191
      %v5225 = vpack.c.bf16 %v4328, %v4326
      %v5226 = vpack.c.bf16 %v5098, %v5097
      %v5227 = vpack.c.bf16 %v5194, %v5193
      %v5228 = vpack.c.bf16 %v4333, %v4331
      %v5229 = vpack.c.bf16 %v5100, %v5099
      %v5230 = vpack.c.bf16 %v5196, %v5195
      %v5231 = vpack.c.bf16 %v4338, %v4336
      %v5232 = vpack.c.bf16 %v5102, %v5101
      %v5233 = vpack.c.bf16 %v5198, %v5197
      %v5234 = vpack.c.bf16 %v4343, %v4341
      %v5235 = vpack.c.bf16 %v5104, %v5103
      %v5236 = vpack.c.bf16 %v5200, %v5199
      %v5237 = vpack.c.bf16 %v4348, %v4346
      %v5238 = vpack.c.bf16 %v5106, %v5105
      %v5239 = vpack.c.bf16 %v5202, %v5201
      %v5240 = vpack.c.bf16 %v4353, %v4351
      %v5241 = vpack.c.bf16 %v5108, %v5107
      %v5242 = vpack.c.bf16 %v5204, %v5203
      %v5243 = vpack.c.bf16 %v4358, %v4356
      %v5244 = vpack.c.bf16 %v5110, %v5109
      %v5245 = vpack.c.bf16 %v5206, %v5205
      %v5246 = vpack.c.bf16 %v4363, %v4361
      %v5247 = vpack.c.bf16 %v5112, %v5111
      %v5248 = vpack.c.bf16 %v5208, %v5207
      %v5249 = vpack.c.bf16 %v4368, %v4366
      %v5250 = vpack.c.bf16 %v5114, %v5113
      %v5251 = vpack.c.bf16 %v5210, %v5209
      %v5252 = vpack.c.bf16 %v4373, %v4371
      %v5253 = vpack.c.bf16 %v5116, %v5115
      %v5254 = vpack.c.bf16 %v5212, %v5211
      %v5255 = vpack.c.bf16 %v4378, %v4376
      %v5256 = vpack.c.bf16 %v5118, %v5117
      %v5257 = vpack.c.bf16 %v5214, %v5213
      %v5258 = vpack.c.bf16 %v4383, %v4381
      %v5259 = vpack.c.bf16 %v5120, %v5119
      %v5260 = vpack.c.bf16 %v5216, %v5215
      %v5261 = vpack.c.bf16 %v4388, %v4386
      %v5262 = vpack.c.bf16 %v5122, %v5121
      %v5263 = vpack.c.bf16 %v5218, %v5217
      %v5264 = vpack.c.bf16 %v4393, %v4391
      %v5265 = vpack.c.bf16 %v5124, %v5123
      %v5266 = vpack.c.bf16 %v5220, %v5219
      %v5267 = vpack.c.bf16 %v4407, %v4405
      %v5268 = vpack.c.bf16 %v5126, %v5125
      %v5269 = vpack.c.bf16 %v5222, %v5221
      %v5270 = vpack.c.bf16 %v4421, %v4419
      %v5271 = vld [vmem:[%s5] sm:$0xf]
      %v5272 = vld [vmem:[%s5 + $0x4] sm:$0xf]
      %v5273 = vld [vmem:[%s5 + $0x8] sm:$0xf]
      %v5274 = vld [vmem:[%s5 + $0xc] sm:$0xf]
      %v5275 = vld [vmem:[%s5 + $0x10] sm:$0xf]
      %v5276 = vld [vmem:[%s5 + $0x14] sm:$0xf]
      %v5277 = vld [vmem:[%s5 + $0x18] sm:$0xf]
      %v5278 = vld [vmem:[%s5 + $0x1c] sm:$0xf]
      %v5279 = vld [vmem:[%s5 + $0x20] sm:$0xf]
      %v5280 = vld [vmem:[%s5 + $0x24] sm:$0xf]
      %v5281 = vld [vmem:[%s5 + $0x28] sm:$0xf]
      %v5282 = vld [vmem:[%s5 + $0x2c] sm:$0xf]
      %v5283 = vld [vmem:[%s5 + $0x30] sm:$0xf]
      %v5284 = vld [vmem:[%s5 + $0x34] sm:$0xf]
      %v5285 = vld [vmem:[%s5 + $0x38] sm:$0xf]
      %v5286 = vld [vmem:[%s5 + $0x3c] sm:$0xf]
      %v5287 = vld [vmem:[%s5 + $0x40] sm:$0xf]
      %v5288 = vld [vmem:[%s5 + $0x44] sm:$0xf]
      %v5289 = vld [vmem:[%s5 + $0x48] sm:$0xf]
      %v5290 = vld [vmem:[%s5 + $0x4c] sm:$0xf]
      %v5291 = vld [vmem:[%s5 + $0x50] sm:$0xf]
      %v5292 = vld [vmem:[%s5 + $0x54] sm:$0xf]
      %v5293 = vld [vmem:[%s5 + $0x58] sm:$0xf]
      %v5294 = vld [vmem:[%s5 + $0x5c] sm:$0xf]
      %v5295 = vld [vmem:[%s5 + $0x60] sm:$0xf]
      %v5296 = vld [vmem:[%s5 + $0x64] sm:$0xf]
      %v5297 = vld [vmem:[%s5 + $0x68] sm:$0xf]
      %v5298 = vld [vmem:[%s5 + $0x6c] sm:$0xf]
      %v5299 = vld [vmem:[%s5 + $0x70] sm:$0xf]
      %v5300 = vld [vmem:[%s5 + $0x74] sm:$0xf]
      %v5301 = vld [vmem:[%s5 + $0x78] sm:$0xf]
      %v5302 = vld [vmem:[%s5 + $0x7c] sm:$0xf]
      %v5303 = vld [vmem:[%s5 + $0x80] sm:$0xf]
      %v5304 = vld [vmem:[%s5 + $0x84] sm:$0xf]
      %v5305 = vld [vmem:[%s5 + $0x88] sm:$0xf]
      %v5306 = vld [vmem:[%s5 + $0x8c] sm:$0xf]
      %v5343 = vunpack.c.l.b16 %v5271
      %v5344 = vunpack.c.l.b16 %v5272
      %v5345 = vunpack.c.l.b16 %v5273
      %v5346 = vunpack.c.l.b16 %v5274
      %v5347 = vunpack.c.l.b16 %v5275
      %v5348 = vunpack.c.l.b16 %v5276
      %v5349 = vunpack.c.l.b16 %v5277
      %v5350 = vunpack.c.l.b16 %v5278
      %v5351 = vunpack.c.l.b16 %v5279
      %v5352 = vunpack.c.l.b16 %v5280
      %v5353 = vunpack.c.l.b16 %v5281
      %v5354 = vunpack.c.l.b16 %v5282
      %v5355 = vunpack.c.l.b16 %v5283
      %v5356 = vunpack.c.l.b16 %v5284
      %v5357 = vunpack.c.l.b16 %v5285
      %v5358 = vunpack.c.l.b16 %v5286
      %v5359 = vunpack.c.l.b16 %v5287
      %v5360 = vunpack.c.l.b16 %v5288
      %v5361 = vunpack.c.l.b16 %v5289
      %v5362 = vunpack.c.l.b16 %v5290
      %v5363 = vunpack.c.l.b16 %v5291
      %v5364 = vunpack.c.l.b16 %v5292
      %v5365 = vunpack.c.l.b16 %v5293
      %v5366 = vunpack.c.l.b16 %v5294
      %v5367 = vunpack.c.l.b16 %v5295
      %v5368 = vunpack.c.l.b16 %v5296
      %v5369 = vunpack.c.l.b16 %v5297
      %v5370 = vunpack.c.l.b16 %v5298
      %v5371 = vunpack.c.l.b16 %v5299
      %v5372 = vunpack.c.l.b16 %v5300
      %v5373 = vunpack.c.l.b16 %v5301
      %v5374 = vunpack.c.l.b16 %v5302
      %v5375 = vunpack.c.l.b16 %v5303
      %v5376 = vunpack.c.l.b16 %v5304
      %v5377 = vunpack.c.l.b16 %v5305
      %v5378 = vunpack.c.l.b16 %v5306
      %v5379 = vpack.c.b16 %v5344, %v5343
      %v5380 = vpack.c.b16 %v5346, %v5345
      %v5381 = vpack.c.b16 %v5348, %v5347
      %v5382 = vpack.c.b16 %v5350, %v5349
      %v5383 = vpack.c.b16 %v5352, %v5351
      %v5384 = vpack.c.b16 %v5354, %v5353
      %v5385 = vpack.c.b16 %v5356, %v5355
      %v5386 = vpack.c.b16 %v5358, %v5357
      %v5387 = vpack.c.b16 %v5360, %v5359
      %v5388 = vpack.c.b16 %v5362, %v5361
      %v5389 = vpack.c.b16 %v5364, %v5363
      %v5390 = vpack.c.b16 %v5366, %v5365
      %v5391 = vpack.c.b16 %v5368, %v5367
      %v5392 = vpack.c.b16 %v5370, %v5369
      %v5393 = vpack.c.b16 %v5372, %v5371
      %v5394 = vpack.c.b16 %v5374, %v5373
      %v5395 = vpack.c.b16 %v5376, %v5375
      %v5396 = vpack.c.b16 %v5378, %v5377
      %v5416 = vsel %vm1989, %v5225, 0
      %v5419 = vsel %vm1989, %v5228, 0
      %v5422 = vsel %vm1989, %v5231, 0
      %v5425 = vsel %vm1989, %v5234, 0
      %v5428 = vsel %vm1989, %v5237, 0
      %v5431 = vsel %vm1989, %v5240, 0
      %v5434 = vsel %vm1989, %v5243, 0
      %v5437 = vsel %vm1989, %v5246, 0
      %v5440 = vsel %vm1989, %v5249, 0
      %v5443 = vsel %vm1989, %v5252, 0
      %v5446 = vsel %vm1989, %v5255, 0
      %v5449 = vsel %vm1989, %v5258, 0
      %v5452 = vsel %vm1989, %v5261, 0
      %v5455 = vsel %vm1989, %v5264, 0
      %v5458 = vsel %vm1989, %v5267, 0
      %v5461 = vsel %vm1989, %v5270, 0
      %5463 = vmatprep.subr.bf16.mxu0 0
      %5464 = vmatpush1.bf16.msra.mxu0 %v5379
      %5465 = vmatprep.subr.bf16.mxu0 0
      %5466 = vmatpush1.bf16.msra.mxu0 %v5380
      %5467 = vmatprep.subr.bf16.mxu0 0
      %5468 = vmatpush1.bf16.msra.mxu0 %v5381
      %5469 = vmatprep.subr.bf16.mxu0 0
      %5470 = vmatpush1.bf16.msra.mxu0 %v5382
      %5471 = vmatprep.subr.bf16.mxu0 0
      %5472 = vmatpush1.bf16.msra.mxu0 %v5383
      %5473 = vmatprep.subr.bf16.mxu0 0
      %5474 = vmatpush1.bf16.msra.mxu0 %v5384
      %5475 = vmatprep.subr.bf16.mxu0 0
      %5476 = vmatpush1.bf16.msra.mxu0 %v5385
      %5477 = vmatprep.subr.bf16.mxu0 0
      %5478 = vmatpush1.bf16.msra.mxu0 %v5386
      %5479 = vmatprep.subr.bf16.mxu0 0
      %5480 = vmatpush1.bf16.msra.mxu0 %v5387
      %5481 = vmatprep.subr.bf16.mxu0 0
      %5482 = vmatpush1.bf16.msra.mxu0 %v5388
      %5483 = vmatprep.subr.bf16.mxu0 0
      %5484 = vmatpush1.bf16.msra.mxu0 %v5389
      %5485 = vmatprep.subr.bf16.mxu0 0
      %5486 = vmatpush1.bf16.msra.mxu0 %v5390
      %5487 = vmatprep.subr.bf16.mxu0 0
      %5488 = vmatpush1.bf16.msra.mxu0 %v5391
      %5489 = vmatprep.subr.bf16.mxu0 0
      %5490 = vmatpush1.bf16.msra.mxu0 %v5392
      %5491 = vmatprep.subr.bf16.mxu0 0
      %5492 = vmatpush1.bf16.msra.mxu0 %v5393
      %5493 = vmatprep.subr.bf16.mxu0 0
      %5494 = vmatpush1.bf16.msra.mxu0 %v5394
      %5495 = vmatprep.mubr.bf16.mxu0 %v5224
      %5496 = vmatmul.mubr.bf16.gmra.mrb[0].mxu0 %v5223
      %v5497 = vpop.f32.mrb[0].mxu0
      %v5498 = vadd.f32 0.0, %v5497
      %v5499 = vpop.f32.mrb[0].mxu0
      %v5500 = vpop.f32.mrb[0].mxu0
      %v5501 = vadd.f32 0.0, %v5500
      %v5502 = vpop.f32.mrb[0].mxu0
      %5503 = vmatprep.mubr.bf16.mxu0 %v5227
      %5504 = vmatmul.mubr.bf16.gmra.mrb[0].mxu0 %v5226
      %v5505 = vpop.f32.mrb[0].mxu0
      %v5506 = vadd.f32 0.0, %v5505
      %v5507 = vpop.f32.mrb[0].mxu0
      %v5508 = vpop.f32.mrb[0].mxu0
      %v5509 = vadd.f32 0.0, %v5508
      %v5510 = vpop.f32.mrb[0].mxu0
      %5511 = vmatprep.mubr.bf16.mxu0 %v5230
      %5512 = vmatmul.mubr.bf16.gmra.mrb[0].mxu0 %v5229
      %v5513 = vpop.f32.mrb[0].mxu0
      %v5514 = vadd.f32 0.0, %v5513
      %v5515 = vpop.f32.mrb[0].mxu0
      %v5516 = vpop.f32.mrb[0].mxu0
      %v5517 = vadd.f32 0.0, %v5516
      %v5518 = vpop.f32.mrb[0].mxu0
      %5519 = vmatprep.mubr.bf16.mxu0 %v5233
      %5520 = vmatmul.mubr.bf16.gmra.mrb[0].mxu0 %v5232
      %v5521 = vpop.f32.mrb[0].mxu0
      %v5522 = vadd.f32 0.0, %v5521
      %v5523 = vpop.f32.mrb[0].mxu0
      %v5524 = vpop.f32.mrb[0].mxu0
      %v5525 = vadd.f32 0.0, %v5524
      %v5526 = vpop.f32.mrb[0].mxu0
      %5527 = vmatprep.mubr.bf16.mxu0 %v5236
      %5528 = vmatmul.mubr.bf16.gmra.mrb[0].mxu0 %v5235
      %v5529 = vpop.f32.mrb[0].mxu0
      %v5530 = vadd.f32 0.0, %v5529
      %v5531 = vpop.f32.mrb[0].mxu0
      %v5532 = vpop.f32.mrb[0].mxu0
      %v5533 = vadd.f32 0.0, %v5532
      %v5534 = vpop.f32.mrb[0].mxu0
      %5535 = vmatprep.mubr.bf16.mxu0 %v5239
      %5536 = vmatmul.mubr.bf16.gmra.mrb[0].mxu0 %v5238
      %v5537 = vpop.f32.mrb[0].mxu0
      %v5538 = vadd.f32 0.0, %v5537
      %v5539 = vpop.f32.mrb[0].mxu0
      %v5540 = vpop.f32.mrb[0].mxu0
      %v5541 = vadd.f32 0.0, %v5540
      %v5542 = vpop.f32.mrb[0].mxu0
      %5543 = vmatprep.mubr.bf16.mxu0 %v5242
      %5544 = vmatmul.mubr.bf16.gmra.mrb[0].mxu0 %v5241
      %v5545 = vpop.f32.mrb[0].mxu0
      %v5546 = vadd.f32 0.0, %v5545
      %v5547 = vpop.f32.mrb[0].mxu0
      %v5548 = vpop.f32.mrb[0].mxu0
      %v5549 = vadd.f32 0.0, %v5548
      %v5550 = vpop.f32.mrb[0].mxu0
      %5551 = vmatprep.mubr.bf16.mxu0 %v5245
      %5552 = vmatmul.mubr.bf16.gmra.mrb[0].mxu0 %v5244
      %v5553 = vpop.f32.mrb[0].mxu0
      %v5554 = vadd.f32 0.0, %v5553
      %v5555 = vpop.f32.mrb[0].mxu0
      %v5556 = vpop.f32.mrb[0].mxu0
      %v5557 = vadd.f32 0.0, %v5556
      %v5558 = vpop.f32.mrb[0].mxu0
      %5559 = vmatprep.mubr.bf16.mxu0 %v5248
      %5560 = vmatmul.mubr.bf16.gmra.mrb[0].mxu0 %v5247
      %v5561 = vpop.f32.mrb[0].mxu0
      %v5562 = vadd.f32 0.0, %v5561
      %v5563 = vpop.f32.mrb[0].mxu0
      %v5564 = vpop.f32.mrb[0].mxu0
      %v5565 = vadd.f32 0.0, %v5564
      %v5566 = vpop.f32.mrb[0].mxu0
      %5567 = vmatprep.mubr.bf16.mxu0 %v5251
      %5568 = vmatmul.mubr.bf16.gmra.mrb[0].mxu0 %v5250
      %v5569 = vpop.f32.mrb[0].mxu0
      %v5570 = vadd.f32 0.0, %v5569
      %v5571 = vpop.f32.mrb[0].mxu0
      %v5572 = vpop.f32.mrb[0].mxu0
      %v5573 = vadd.f32 0.0, %v5572
      %v5574 = vpop.f32.mrb[0].mxu0
      %5575 = vmatprep.mubr.bf16.mxu0 %v5254
      %5576 = vmatmul.mubr.bf16.gmra.mrb[0].mxu0 %v5253
      %v5577 = vpop.f32.mrb[0].mxu0
      %v5578 = vadd.f32 0.0, %v5577
      %v5579 = vpop.f32.mrb[0].mxu0
      %v5580 = vpop.f32.mrb[0].mxu0
      %v5581 = vadd.f32 0.0, %v5580
      %v5582 = vpop.f32.mrb[0].mxu0
      %5583 = vmatprep.mubr.bf16.mxu0 %v5257
      %5584 = vmatmul.mubr.bf16.gmra.mrb[0].mxu0 %v5256
      %v5585 = vpop.f32.mrb[0].mxu0
      %v5586 = vadd.f32 0.0, %v5585
      %v5587 = vpop.f32.mrb[0].mxu0
      %v5588 = vpop.f32.mrb[0].mxu0
      %v5589 = vadd.f32 0.0, %v5588
      %v5590 = vpop.f32.mrb[0].mxu0
      %5591 = vmatprep.mubr.bf16.mxu0 %v5260
      %5592 = vmatmul.mubr.bf16.gmra.mrb[0].mxu0 %v5259
      %v5593 = vpop.f32.mrb[0].mxu0
      %v5594 = vadd.f32 0.0, %v5593
      %v5595 = vpop.f32.mrb[0].mxu0
      %v5596 = vpop.f32.mrb[0].mxu0
      %v5597 = vadd.f32 0.0, %v5596
      %v5598 = vpop.f32.mrb[0].mxu0
      %5599 = vmatprep.mubr.bf16.mxu0 %v5263
      %5600 = vmatmul.mubr.bf16.gmra.mrb[0].mxu0 %v5262
      %v5601 = vpop.f32.mrb[0].mxu0
      %v5602 = vadd.f32 0.0, %v5601
      %v5603 = vpop.f32.mrb[0].mxu0
      %v5604 = vpop.f32.mrb[0].mxu0
      %v5605 = vadd.f32 0.0, %v5604
      %v5606 = vpop.f32.mrb[0].mxu0
      %5607 = vmatprep.mubr.bf16.mxu0 %v5266
      %5608 = vmatmul.mubr.bf16.gmra.mrb[0].mxu0 %v5265
      %v5609 = vpop.f32.mrb[0].mxu0
      %v5610 = vadd.f32 0.0, %v5609
      %v5611 = vpop.f32.mrb[0].mxu0
      %v5612 = vpop.f32.mrb[0].mxu0
      %v5613 = vadd.f32 0.0, %v5612
      %v5614 = vpop.f32.mrb[0].mxu0
      %5615 = vmatprep.mubr.bf16.mxu0 %v5269
      %5616 = vmatmul.mubr.bf16.gmra.mrb[0].mxu0 %v5268
      %v5617 = vpop.f32.mrb[0].mxu0
      %v5618 = vadd.f32 0.0, %v5617
      %v5619 = vpop.f32.mrb[0].mxu0
      %v5620 = vpop.f32.mrb[0].mxu0
      %v5621 = vadd.f32 0.0, %v5620
      %v5622 = vpop.f32.mrb[0].mxu0
      %5623 = vdwg.mxu0
      %5624 = vmatprep.subr.bf16.mxu0 0
      %5625 = vmatpush1.bf16.msra.mxu0 %v5395
      %5626 = vmatprep.subr.bf16.mxu0 0
      %5627 = vmatpush1.bf16.msra.mxu0 %v5396
      %5628 = vmatprep.subr.bf16.mxu0 0
      %5629 = vmatpush1.bf16.msra.mxu0 0
      %5630 = vmatprep.subr.bf16.mxu0 0
      %5631 = vmatpush1.bf16.msra.mxu0 0
      %5632 = vmatprep.subr.bf16.mxu0 0
      %5633 = vmatpush1.bf16.msra.mxu0 0
      %5634 = vmatprep.subr.bf16.mxu0 0
      %5635 = vmatpush1.bf16.msra.mxu0 0
      %5636 = vmatprep.subr.bf16.mxu0 0
      %5637 = vmatpush1.bf16.msra.mxu0 0
      %5638 = vmatprep.subr.bf16.mxu0 0
      %5639 = vmatpush1.bf16.msra.mxu0 0
      %5640 = vmatprep.subr.bf16.mxu0 0
      %5641 = vmatpush1.bf16.msra.mxu0 0
      %5642 = vmatprep.subr.bf16.mxu0 0
      %5643 = vmatpush1.bf16.msra.mxu0 0
      %5644 = vmatprep.subr.bf16.mxu0 0
      %5645 = vmatpush1.bf16.msra.mxu0 0
      %5646 = vmatprep.subr.bf16.mxu0 0
      %5647 = vmatpush1.bf16.msra.mxu0 0
      %5648 = vmatprep.subr.bf16.mxu0 0
      %5649 = vmatpush1.bf16.msra.mxu0 0
      %5650 = vmatprep.subr.bf16.mxu0 0
      %5651 = vmatpush1.bf16.msra.mxu0 0
      %5652 = vmatprep.subr.bf16.mxu0 0
      %5653 = vmatpush1.bf16.msra.mxu0 0
      %5654 = vmatprep.subr.bf16.mxu0 0
      %5655 = vmatpush1.bf16.msra.mxu0 0
      %5656 = vmatprep.mubr.bf16.mxu0 0
      %5657 = vmatmul.mubr.bf16.gmra.mrb[0].mxu0 %v5416
      %v5658 = vpop.f32.mrb[0].mxu0
      %v5659 = vadd.f32 %v5498, %v5658
      %v5660 = vpop.f32.mrb[0].mxu0
      %v5661 = vpop.f32.mrb[0].mxu0
      %v5662 = vadd.f32 %v5501, %v5661
      %v5663 = vpop.f32.mrb[0].mxu0
      %5664 = vmatprep.mubr.bf16.mxu0 0
      %5665 = vmatmul.mubr.bf16.gmra.mrb[0].mxu0 %v5419
      %v5666 = vpop.f32.mrb[0].mxu0
      %v5667 = vadd.f32 %v5506, %v5666
      %v5668 = vpop.f32.mrb[0].mxu0
      %v5669 = vpop.f32.mrb[0].mxu0
      %v5670 = vadd.f32 %v5509, %v5669
      %v5671 = vpop.f32.mrb[0].mxu0
      %5672 = vmatprep.mubr.bf16.mxu0 0
      %5673 = vmatmul.mubr.bf16.gmra.mrb[0].mxu0 %v5422
      %v5674 = vpop.f32.mrb[0].mxu0
      %v5675 = vadd.f32 %v5514, %v5674
      %v5676 = vpop.f32.mrb[0].mxu0
      %v5677 = vpop.f32.mrb[0].mxu0
      %v5678 = vadd.f32 %v5517, %v5677
      %v5679 = vpop.f32.mrb[0].mxu0
      %5680 = vmatprep.mubr.bf16.mxu0 0
      %5681 = vmatmul.mubr.bf16.gmra.mrb[0].mxu0 %v5425
      %v5682 = vpop.f32.mrb[0].mxu0
      %v5683 = vadd.f32 %v5522, %v5682
      %v5684 = vpop.f32.mrb[0].mxu0
      %v5685 = vpop.f32.mrb[0].mxu0
      %v5686 = vadd.f32 %v5525, %v5685
      %v5687 = vpop.f32.mrb[0].mxu0
      %5688 = vmatprep.mubr.bf16.mxu0 0
      %5689 = vmatmul.mubr.bf16.gmra.mrb[0].mxu0 %v5428
      %v5690 = vpop.f32.mrb[0].mxu0
      %v5691 = vadd.f32 %v5530, %v5690
      %v5692 = vpop.f32.mrb[0].mxu0
      %v5693 = vpop.f32.mrb[0].mxu0
      %v5694 = vadd.f32 %v5533, %v5693
      %v5695 = vpop.f32.mrb[0].mxu0
      %5696 = vmatprep.mubr.bf16.mxu0 0
      %5697 = vmatmul.mubr.bf16.gmra.mrb[0].mxu0 %v5431
      %v5698 = vpop.f32.mrb[0].mxu0
      %v5699 = vadd.f32 %v5538, %v5698
      %v5700 = vpop.f32.mrb[0].mxu0
      %v5701 = vpop.f32.mrb[0].mxu0
      %v5702 = vadd.f32 %v5541, %v5701
      %v5703 = vpop.f32.mrb[0].mxu0
      %5704 = vmatprep.mubr.bf16.mxu0 0
      %5705 = vmatmul.mubr.bf16.gmra.mrb[0].mxu0 %v5434
      %v5706 = vpop.f32.mrb[0].mxu0
      %v5707 = vadd.f32 %v5546, %v5706
      %v5708 = vpop.f32.mrb[0].mxu0
      %v5709 = vpop.f32.mrb[0].mxu0
      %v5710 = vadd.f32 %v5549, %v5709
      %v5711 = vpop.f32.mrb[0].mxu0
      %5712 = vmatprep.mubr.bf16.mxu0 0
      %5713 = vmatmul.mubr.bf16.gmra.mrb[0].mxu0 %v5437
      %v5714 = vpop.f32.mrb[0].mxu0
      %v5715 = vadd.f32 %v5554, %v5714
      %v5716 = vpop.f32.mrb[0].mxu0
      %v5717 = vpop.f32.mrb[0].mxu0
      %v5718 = vadd.f32 %v5557, %v5717
      %v5719 = vpop.f32.mrb[0].mxu0
      %5720 = vmatprep.mubr.bf16.mxu0 0
      %5721 = vmatmul.mubr.bf16.gmra.mrb[0].mxu0 %v5440
      %v5722 = vpop.f32.mrb[0].mxu0
      %v5723 = vadd.f32 %v5562, %v5722
      %v5724 = vpop.f32.mrb[0].mxu0
      %v5725 = vpop.f32.mrb[0].mxu0
      %v5726 = vadd.f32 %v5565, %v5725
      %v5727 = vpop.f32.mrb[0].mxu0
      %5728 = vmatprep.mubr.bf16.mxu0 0
      %5729 = vmatmul.mubr.bf16.gmra.mrb[0].mxu0 %v5443
      %v5730 = vpop.f32.mrb[0].mxu0
      %v5731 = vadd.f32 %v5570, %v5730
      %v5732 = vpop.f32.mrb[0].mxu0
      %v5733 = vpop.f32.mrb[0].mxu0
      %v5734 = vadd.f32 %v5573, %v5733
      %v5735 = vpop.f32.mrb[0].mxu0
      %5736 = vmatprep.mubr.bf16.mxu0 0
      %5737 = vmatmul.mubr.bf16.gmra.mrb[0].mxu0 %v5446
      %v5738 = vpop.f32.mrb[0].mxu0
      %v5739 = vadd.f32 %v5578, %v5738
      %v5740 = vpop.f32.mrb[0].mxu0
      %v5741 = vpop.f32.mrb[0].mxu0
      %v5742 = vadd.f32 %v5581, %v5741
      %v5743 = vpop.f32.mrb[0].mxu0
      %5744 = vmatprep.mubr.bf16.mxu0 0
      %5745 = vmatmul.mubr.bf16.gmra.mrb[0].mxu0 %v5449
      %v5746 = vpop.f32.mrb[0].mxu0
      %v5747 = vadd.f32 %v5586, %v5746
      %v5748 = vpop.f32.mrb[0].mxu0
      %v5749 = vpop.f32.mrb[0].mxu0
      %v5750 = vadd.f32 %v5589, %v5749
      %v5751 = vpop.f32.mrb[0].mxu0
      %5752 = vmatprep.mubr.bf16.mxu0 0
      %5753 = vmatmul.mubr.bf16.gmra.mrb[0].mxu0 %v5452
      %v5754 = vpop.f32.mrb[0].mxu0
      %v5755 = vadd.f32 %v5594, %v5754
      %v5756 = vpop.f32.mrb[0].mxu0
      %v5757 = vpop.f32.mrb[0].mxu0
      %v5758 = vadd.f32 %v5597, %v5757
      %v5759 = vpop.f32.mrb[0].mxu0
      %5760 = vmatprep.mubr.bf16.mxu0 0
      %5761 = vmatmul.mubr.bf16.gmra.mrb[0].mxu0 %v5455
      %v5762 = vpop.f32.mrb[0].mxu0
      %v5763 = vadd.f32 %v5602, %v5762
      %v5764 = vpop.f32.mrb[0].mxu0
      %v5765 = vpop.f32.mrb[0].mxu0
      %v5766 = vadd.f32 %v5605, %v5765
      %v5767 = vpop.f32.mrb[0].mxu0
      %5768 = vmatprep.mubr.bf16.mxu0 0
      %5769 = vmatmul.mubr.bf16.gmra.mrb[0].mxu0 %v5458
      %v5770 = vpop.f32.mrb[0].mxu0
      %v5771 = vadd.f32 %v5610, %v5770
      %v5772 = vpop.f32.mrb[0].mxu0
      %v5773 = vpop.f32.mrb[0].mxu0
      %v5774 = vadd.f32 %v5613, %v5773
      %v5775 = vpop.f32.mrb[0].mxu0
      %5776 = vmatprep.mubr.bf16.mxu0 0
      %5777 = vmatmul.mubr.bf16.gmra.mrb[0].mxu0 %v5461
      %v5778 = vpop.f32.mrb[0].mxu0
      %v5779 = vadd.f32 %v5618, %v5778
      %v5780 = vpop.f32.mrb[0].mxu0
      %v5781 = vpop.f32.mrb[0].mxu0
      %v5782 = vadd.f32 %v5621, %v5781
      %v5783 = vpop.f32.mrb[0].mxu0
      %5784 = vdwg.mxu0
      %v5785 = vadd.f32 %v3940, %v5659
      %v5786 = vadd.f32 %v3943, %v5662
      %v5787 = vadd.f32 %v3948, %v5667
      %v5788 = vadd.f32 %v3951, %v5670
      %v5789 = vadd.f32 %v3956, %v5675
      %v5790 = vadd.f32 %v3959, %v5678
      %v5791 = vadd.f32 %v3964, %v5683
      %v5792 = vadd.f32 %v3967, %v5686
      %v5793 = vadd.f32 %v3972, %v5691
      %v5794 = vadd.f32 %v3975, %v5694
      %v5795 = vadd.f32 %v3980, %v5699
      %v5796 = vadd.f32 %v3983, %v5702
      %v5797 = vadd.f32 %v3988, %v5707
      %v5798 = vadd.f32 %v3991, %v5710
      %v5799 = vadd.f32 %v3996, %v5715
      %v5800 = vadd.f32 %v3999, %v5718
      %v5801 = vadd.f32 %v4004, %v5723
      %v5802 = vadd.f32 %v4007, %v5726
      %v5803 = vadd.f32 %v4012, %v5731
      %v5804 = vadd.f32 %v4015, %v5734
      %v5805 = vadd.f32 %v4020, %v5739
      %v5806 = vadd.f32 %v4023, %v5742
      %v5807 = vadd.f32 %v4028, %v5747
      %v5808 = vadd.f32 %v4031, %v5750
      %v5809 = vadd.f32 %v4036, %v5755
      %v5810 = vadd.f32 %v4039, %v5758
      %v5811 = vadd.f32 %v4044, %v5763
      %v5812 = vadd.f32 %v4047, %v5766
      %v5813 = vadd.f32 %v4052, %v5771
      %v5814 = vadd.f32 %v4055, %v5774
      %v5815 = vadd.f32 %v4060, %v5779
      %v5816 = vadd.f32 %v4063, %v5782
      %v5817 = vld [vmem:[%s7] sm:$0xff]
      %v5818 = vld [vmem:[%s7 + $0x8] sm:$0xff]
      %v5819 = vld [vmem:[%s7 + $0x10] sm:$0xff]
      %v5820 = vld [vmem:[%s7 + $0x18] sm:$0xff]
      %v5821 = vld [vmem:[%s7 + $0x20] sm:$0xff]
      %v5822 = vld [vmem:[%s7 + $0x28] sm:$0xff]
      %v5823 = vld [vmem:[%s7 + $0x30] sm:$0xff]
      %v5824 = vld [vmem:[%s7 + $0x38] sm:$0xff]
      %v5826 = vsel %vm3760, %v5785, 0
      %v5829 = vsel %vm3760, %v5786, 0
      %v5832 = vsel %vm3760, %v5787, 0
      %v5835 = vsel %vm3760, %v5788, 0
      %v5838 = vsel %vm3760, %v5789, 0
      %v5841 = vsel %vm3760, %v5790, 0
      %v5844 = vsel %vm3760, %v5791, 0
      %v5847 = vsel %vm3760, %v5792, 0
      %v5850 = vsel %vm3760, %v5793, 0
      %v5853 = vsel %vm3760, %v5794, 0
      %v5856 = vsel %vm3760, %v5795, 0
      %v5859 = vsel %vm3760, %v5796, 0
      %v5862 = vsel %vm3760, %v5797, 0
      %v5865 = vsel %vm3760, %v5798, 0
      %v5868 = vsel %vm3760, %v5799, 0
      %v5871 = vsel %vm3760, %v5800, 0
      %v5874 = vsel %vm3760, %v5801, 0
      %v5877 = vsel %vm3760, %v5802, 0
      %v5880 = vsel %vm3760, %v5803, 0
      %v5883 = vsel %vm3760, %v5804, 0
      %v5886 = vsel %vm3760, %v5805, 0
      %v5889 = vsel %vm3760, %v5806, 0
      %v5892 = vsel %vm3760, %v5807, 0
      %v5895 = vsel %vm3760, %v5808, 0
      %v5898 = vsel %vm3760, %v5809, 0
      %v5901 = vsel %vm3760, %v5810, 0
      %v5904 = vsel %vm3760, %v5811, 0
      %v5907 = vsel %vm3760, %v5812, 0
      %v5910 = vsel %vm3760, %v5813, 0
      %v5913 = vsel %vm3760, %v5814, 0
      %v5916 = vsel %vm3760, %v5815, 0
      %v5919 = vsel %vm3760, %v5816, 0
      %5921 = vmatprep.subr.mxu0 0.0
      %5922 = vmatpush1.msra.mxu0 %v5817
      %5923 = vmatprep.subr.mxu0 0.0
      %5924 = vmatpush1.msra.mxu0 %v5818
      %5925 = vmatprep.subr.mxu0 0.0
      %5926 = vmatpush1.msra.mxu0 %v5819
      %5927 = vmatprep.subr.mxu0 0.0
      %5928 = vmatpush1.msra.mxu0 %v5820
      %5929 = vmatprep.subr.mxu0 0.0
      %5930 = vmatpush1.msra.mxu0 %v5821
      %5931 = vmatprep.subr.mxu0 0.0
      %5932 = vmatpush1.msra.mxu0 %v5822
      %5933 = vmatprep.subr.mxu0 0.0
      %5934 = vmatpush1.msra.mxu0 %v5823
      %5935 = vmatprep.subr.mxu0 0.0
      %5936 = vmatpush1.msra.mxu0 %v5824
      %5937 = vmatprep.subr.mxu0 0.0
      %5938 = vmatpush1.msra.mxu0 0.0
      %5939 = vmatprep.subr.mxu0 0.0
      %5940 = vmatpush1.msra.mxu0 0.0
      %5941 = vmatprep.subr.mxu0 0.0
      %5942 = vmatpush1.msra.mxu0 0.0
      %5943 = vmatprep.subr.mxu0 0.0
      %5944 = vmatpush1.msra.mxu0 0.0
      %5945 = vmatprep.subr.mxu0 0.0
      %5946 = vmatpush1.msra.mxu0 0.0
      %5947 = vmatprep.subr.mxu0 0.0
      %5948 = vmatpush1.msra.mxu0 0.0
      %5949 = vmatprep.subr.mxu0 0.0
      %5950 = vmatpush1.msra.mxu0 0.0
      %5951 = vmatprep.subr.mxu0 0.0
      %5952 = vmatpush1.msra.mxu0 0.0
      %5953 = vmatprep.subr.mxu0 0.0
      %5954 = vmatpush1.msra.mxu0 0.0
      %5955 = vmatprep.subr.mxu0 0.0
      %5956 = vmatpush1.msra.mxu0 0.0
      %5957 = vmatprep.subr.mxu0 0.0
      %5958 = vmatpush1.msra.mxu0 0.0
      %5959 = vmatprep.subr.mxu0 0.0
      %5960 = vmatpush1.msra.mxu0 0.0
      %5961 = vmatprep.subr.mxu0 0.0
      %5962 = vmatpush1.msra.mxu0 0.0
      %5963 = vmatprep.subr.mxu0 0.0
      %5964 = vmatpush1.msra.mxu0 0.0
      %5965 = vmatprep.subr.mxu0 0.0
      %5966 = vmatpush1.msra.mxu0 0.0
      %5967 = vmatprep.subr.mxu0 0.0
      %5968 = vmatpush1.msra.mxu0 0.0
      %5969 = vmatprep.subr.mxu0 0.0
      %5970 = vmatpush1.msra.mxu0 0.0
      %5971 = vmatprep.subr.mxu0 0.0
      %5972 = vmatpush1.msra.mxu0 0.0
      %5973 = vmatprep.subr.mxu0 0.0
      %5974 = vmatpush1.msra.mxu0 0.0
      %5975 = vmatprep.subr.mxu0 0.0
      %5976 = vmatpush1.msra.mxu0 0.0
      %5977 = vmatprep.subr.mxu0 0.0
      %5978 = vmatpush1.msra.mxu0 0.0
      %5979 = vmatprep.subr.mxu0 0.0
      %5980 = vmatpush1.msra.mxu0 0.0
      %5981 = vmatprep.subr.mxu0 0.0
      %5982 = vmatpush1.msra.mxu0 0.0
      %5983 = vmatprep.subr.mxu0 0.0
      %5984 = vmatpush1.msra.mxu0 0.0
      %5985 = vmatprep.mubr.f32.mxu0 0.0
      %5986 = vmatmul.mubr.f32.gmra.mrb[0].mxu0 %v5826
      %v5987 = vpop.f32.mrb[0].mxu0
      %v5988 = vadd.f32 0.0, %v5987
      %v5989 = vpop.f32.mrb[0].mxu0
      %5990 = vmatprep.mubr.f32.mxu0 0.0
      %5991 = vmatmul.mubr.f32.gmra.mrb[0].mxu0 %v5829
      %v5992 = vpop.f32.mrb[0].mxu0
      %v5993 = vadd.f32 0.0, %v5992
      %v5994 = vpop.f32.mrb[0].mxu0
      %5995 = vmatprep.mubr.f32.mxu0 0.0
      %5996 = vmatmul.mubr.f32.gmra.mrb[0].mxu0 %v5832
      %v5997 = vpop.f32.mrb[0].mxu0
      %v5998 = vadd.f32 0.0, %v5997
      %v5999 = vpop.f32.mrb[0].mxu0
      %6000 = vmatprep.mubr.f32.mxu0 0.0
      %6001 = vmatmul.mubr.f32.gmra.mrb[0].mxu0 %v5835
      %v6002 = vpop.f32.mrb[0].mxu0
      %v6003 = vadd.f32 0.0, %v6002
      %v6004 = vpop.f32.mrb[0].mxu0
      %6005 = vmatprep.mubr.f32.mxu0 0.0
      %6006 = vmatmul.mubr.f32.gmra.mrb[0].mxu0 %v5838
      %v6007 = vpop.f32.mrb[0].mxu0
      %v6008 = vadd.f32 0.0, %v6007
      %v6009 = vpop.f32.mrb[0].mxu0
      %6010 = vmatprep.mubr.f32.mxu0 0.0
      %6011 = vmatmul.mubr.f32.gmra.mrb[0].mxu0 %v5841
      %v6012 = vpop.f32.mrb[0].mxu0
      %v6013 = vadd.f32 0.0, %v6012
      %v6014 = vpop.f32.mrb[0].mxu0
      %6015 = vmatprep.mubr.f32.mxu0 0.0
      %6016 = vmatmul.mubr.f32.gmra.mrb[0].mxu0 %v5844
      %v6017 = vpop.f32.mrb[0].mxu0
      %v6018 = vadd.f32 0.0, %v6017
      %v6019 = vpop.f32.mrb[0].mxu0
      %6020 = vmatprep.mubr.f32.mxu0 0.0
      %6021 = vmatmul.mubr.f32.gmra.mrb[0].mxu0 %v5847
      %v6022 = vpop.f32.mrb[0].mxu0
      %v6023 = vadd.f32 0.0, %v6022
      %v6024 = vpop.f32.mrb[0].mxu0
      %6025 = vmatprep.mubr.f32.mxu0 0.0
      %6026 = vmatmul.mubr.f32.gmra.mrb[0].mxu0 %v5850
      %v6027 = vpop.f32.mrb[0].mxu0
      %v6028 = vadd.f32 0.0, %v6027
      %v6029 = vpop.f32.mrb[0].mxu0
      %6030 = vmatprep.mubr.f32.mxu0 0.0
      %6031 = vmatmul.mubr.f32.gmra.mrb[0].mxu0 %v5853
      %v6032 = vpop.f32.mrb[0].mxu0
      %v6033 = vadd.f32 0.0, %v6032
      %v6034 = vpop.f32.mrb[0].mxu0
      %6035 = vmatprep.mubr.f32.mxu0 0.0
      %6036 = vmatmul.mubr.f32.gmra.mrb[0].mxu0 %v5856
      %v6037 = vpop.f32.mrb[0].mxu0
      %v6038 = vadd.f32 0.0, %v6037
      %v6039 = vpop.f32.mrb[0].mxu0
      %6040 = vmatprep.mubr.f32.mxu0 0.0
      %6041 = vmatmul.mubr.f32.gmra.mrb[0].mxu0 %v5859
      %v6042 = vpop.f32.mrb[0].mxu0
      %v6043 = vadd.f32 0.0, %v6042
      %v6044 = vpop.f32.mrb[0].mxu0
      %6045 = vmatprep.mubr.f32.mxu0 0.0
      %6046 = vmatmul.mubr.f32.gmra.mrb[0].mxu0 %v5862
      %v6047 = vpop.f32.mrb[0].mxu0
      %v6048 = vadd.f32 0.0, %v6047
      %v6049 = vpop.f32.mrb[0].mxu0
      %6050 = vmatprep.mubr.f32.mxu0 0.0
      %6051 = vmatmul.mubr.f32.gmra.mrb[0].mxu0 %v5865
      %v6052 = vpop.f32.mrb[0].mxu0
      %v6053 = vadd.f32 0.0, %v6052
      %v6054 = vpop.f32.mrb[0].mxu0
      %6055 = vmatprep.mubr.f32.mxu0 0.0
      %6056 = vmatmul.mubr.f32.gmra.mrb[0].mxu0 %v5868
      %v6057 = vpop.f32.mrb[0].mxu0
      %v6058 = vadd.f32 0.0, %v6057
      %v6059 = vpop.f32.mrb[0].mxu0
      %6060 = vmatprep.mubr.f32.mxu0 0.0
      %6061 = vmatmul.mubr.f32.gmra.mrb[0].mxu0 %v5871
      %v6062 = vpop.f32.mrb[0].mxu0
      %v6063 = vadd.f32 0.0, %v6062
      %v6064 = vpop.f32.mrb[0].mxu0
      %6065 = vmatprep.mubr.f32.mxu0 0.0
      %6066 = vmatmul.mubr.f32.gmra.mrb[0].mxu0 %v5874
      %v6067 = vpop.f32.mrb[0].mxu0
      %v6068 = vadd.f32 0.0, %v6067
      %v6069 = vpop.f32.mrb[0].mxu0
      %6070 = vmatprep.mubr.f32.mxu0 0.0
      %6071 = vmatmul.mubr.f32.gmra.mrb[0].mxu0 %v5877
      %v6072 = vpop.f32.mrb[0].mxu0
      %v6073 = vadd.f32 0.0, %v6072
      %v6074 = vpop.f32.mrb[0].mxu0
      %6075 = vmatprep.mubr.f32.mxu0 0.0
      %6076 = vmatmul.mubr.f32.gmra.mrb[0].mxu0 %v5880
      %v6077 = vpop.f32.mrb[0].mxu0
      %v6078 = vadd.f32 0.0, %v6077
      %v6079 = vpop.f32.mrb[0].mxu0
      %6080 = vmatprep.mubr.f32.mxu0 0.0
      %6081 = vmatmul.mubr.f32.gmra.mrb[0].mxu0 %v5883
      %v6082 = vpop.f32.mrb[0].mxu0
      %v6083 = vadd.f32 0.0, %v6082
      %v6084 = vpop.f32.mrb[0].mxu0
      %6085 = vmatprep.mubr.f32.mxu0 0.0
      %6086 = vmatmul.mubr.f32.gmra.mrb[0].mxu0 %v5886
      %v6087 = vpop.f32.mrb[0].mxu0
      %v6088 = vadd.f32 0.0, %v6087
      %v6089 = vpop.f32.mrb[0].mxu0
      %6090 = vmatprep.mubr.f32.mxu0 0.0
      %6091 = vmatmul.mubr.f32.gmra.mrb[0].mxu0 %v5889
      %v6092 = vpop.f32.mrb[0].mxu0
      %v6093 = vadd.f32 0.0, %v6092
      %v6094 = vpop.f32.mrb[0].mxu0
      %6095 = vmatprep.mubr.f32.mxu0 0.0
      %6096 = vmatmul.mubr.f32.gmra.mrb[0].mxu0 %v5892
      %v6097 = vpop.f32.mrb[0].mxu0
      %v6098 = vadd.f32 0.0, %v6097
      %v6099 = vpop.f32.mrb[0].mxu0
      %6100 = vmatprep.mubr.f32.mxu0 0.0
      %6101 = vmatmul.mubr.f32.gmra.mrb[0].mxu0 %v5895
      %v6102 = vpop.f32.mrb[0].mxu0
      %v6103 = vadd.f32 0.0, %v6102
      %v6104 = vpop.f32.mrb[0].mxu0
      %6105 = vmatprep.mubr.f32.mxu0 0.0
      %6106 = vmatmul.mubr.f32.gmra.mrb[0].mxu0 %v5898
      %v6107 = vpop.f32.mrb[0].mxu0
      %v6108 = vadd.f32 0.0, %v6107
      %v6109 = vpop.f32.mrb[0].mxu0
      %6110 = vmatprep.mubr.f32.mxu0 0.0
      %6111 = vmatmul.mubr.f32.gmra.mrb[0].mxu0 %v5901
      %v6112 = vpop.f32.mrb[0].mxu0
      %v6113 = vadd.f32 0.0, %v6112
      %v6114 = vpop.f32.mrb[0].mxu0
      %6115 = vmatprep.mubr.f32.mxu0 0.0
      %6116 = vmatmul.mubr.f32.gmra.mrb[0].mxu0 %v5904
      %v6117 = vpop.f32.mrb[0].mxu0
      %v6118 = vadd.f32 0.0, %v6117
      %v6119 = vpop.f32.mrb[0].mxu0
      %6120 = vmatprep.mubr.f32.mxu0 0.0
      %6121 = vmatmul.mubr.f32.gmra.mrb[0].mxu0 %v5907
      %v6122 = vpop.f32.mrb[0].mxu0
      %v6123 = vadd.f32 0.0, %v6122
      %v6124 = vpop.f32.mrb[0].mxu0
      %6125 = vmatprep.mubr.f32.mxu0 0.0
      %6126 = vmatmul.mubr.f32.gmra.mrb[0].mxu0 %v5910
      %v6127 = vpop.f32.mrb[0].mxu0
      %v6128 = vadd.f32 0.0, %v6127
      %v6129 = vpop.f32.mrb[0].mxu0
      %6130 = vmatprep.mubr.f32.mxu0 0.0
      %6131 = vmatmul.mubr.f32.gmra.mrb[0].mxu0 %v5913
      %v6132 = vpop.f32.mrb[0].mxu0
      %v6133 = vadd.f32 0.0, %v6132
      %v6134 = vpop.f32.mrb[0].mxu0
      %6135 = vmatprep.mubr.f32.mxu0 0.0
      %6136 = vmatmul.mubr.f32.gmra.mrb[0].mxu0 %v5916
      %v6137 = vpop.f32.mrb[0].mxu0
      %v6138 = vadd.f32 0.0, %v6137
      %v6139 = vpop.f32.mrb[0].mxu0
      %6140 = vmatprep.mubr.f32.mxu0 0.0
      %6141 = vmatmul.mubr.f32.gmra.mrb[0].mxu0 %v5919
      %v6142 = vpop.f32.mrb[0].mxu0
      %v6143 = vadd.f32 0.0, %v6142
      %v6144 = vpop.f32.mrb[0].mxu0
      %6145 = vdwg.mxu0
      %v6146 = vsel %vm3760, %v5988, 0.0
      %v6147 = vsel %vm3760, %v5993, 0.0
      %v6148 = vadd.f32 %v6146, %v6147
      %v6149 = vsel %vm3760, %v5998, 0.0
      %v6150 = vadd.f32 %v6148, %v6149
      %v6151 = vsel %vm3760, %v6003, 0.0
      %v6152 = vadd.f32 %v6150, %v6151
      %v6153 = vsel %vm3760, %v6008, 0.0
      %v6154 = vadd.f32 %v6152, %v6153
      %v6155 = vsel %vm3760, %v6013, 0.0
      %v6156 = vadd.f32 %v6154, %v6155
      %v6157 = vsel %vm3760, %v6018, 0.0
      %v6158 = vadd.f32 %v6156, %v6157
      %v6159 = vsel %vm3760, %v6023, 0.0
      %v6160 = vadd.f32 %v6158, %v6159
      %v6161 = vsel %vm3760, %v6028, 0.0
      %v6162 = vadd.f32 %v6160, %v6161
      %v6163 = vsel %vm3760, %v6033, 0.0
      %v6164 = vadd.f32 %v6162, %v6163
      %v6165 = vsel %vm3760, %v6038, 0.0
      %v6166 = vadd.f32 %v6164, %v6165
      %v6167 = vsel %vm3760, %v6043, 0.0
      %v6168 = vadd.f32 %v6166, %v6167
      %v6169 = vsel %vm3760, %v6048, 0.0
      %v6170 = vadd.f32 %v6168, %v6169
      %v6171 = vsel %vm3760, %v6053, 0.0
      %v6172 = vadd.f32 %v6170, %v6171
      %v6173 = vsel %vm3760, %v6058, 0.0
      %v6174 = vadd.f32 %v6172, %v6173
      %v6175 = vsel %vm3760, %v6063, 0.0
      %v6176 = vadd.f32 %v6174, %v6175
      %v6177 = vsel %vm3760, %v6068, 0.0
      %v6178 = vadd.f32 %v6176, %v6177
      %v6179 = vsel %vm3760, %v6073, 0.0
      %v6180 = vadd.f32 %v6178, %v6179
      %v6181 = vsel %vm3760, %v6078, 0.0
      %v6182 = vadd.f32 %v6180, %v6181
      %v6183 = vsel %vm3760, %v6083, 0.0
      %v6184 = vadd.f32 %v6182, %v6183
      %v6185 = vsel %vm3760, %v6088, 0.0
      %v6186 = vadd.f32 %v6184, %v6185
      %v6187 = vsel %vm3760, %v6093, 0.0
      %v6188 = vadd.f32 %v6186, %v6187
      %v6189 = vsel %vm3760, %v6098, 0.0
      %v6190 = vadd.f32 %v6188, %v6189
      %v6191 = vsel %vm3760, %v6103, 0.0
      %v6192 = vadd.f32 %v6190, %v6191
      %v6193 = vsel %vm3760, %v6108, 0.0
      %v6194 = vadd.f32 %v6192, %v6193
      %v6195 = vsel %vm3760, %v6113, 0.0
      %v6196 = vadd.f32 %v6194, %v6195
      %v6197 = vsel %vm3760, %v6118, 0.0
      %v6198 = vadd.f32 %v6196, %v6197
      %v6199 = vsel %vm3760, %v6123, 0.0
      %v6200 = vadd.f32 %v6198, %v6199
      %v6201 = vsel %vm3760, %v6128, 0.0
      %v6202 = vadd.f32 %v6200, %v6201
      %v6203 = vsel %vm3760, %v6133, 0.0
      %v6204 = vadd.f32 %v6202, %v6203
      %v6205 = vsel %vm3760, %v6138, 0.0
      %v6206 = vadd.f32 %v6204, %v6205
      %v6207 = vsel %vm3760, %v6143, 0.0
      %v6208 = vadd.f32 %v6206, %v6207
      %v6209 = vrot.slane %v6208, 4
      %v6210 = vadd.f32 %v6208, %v6209
      %v6211 = vrot.slane %v6210, 2
      %v6212 = vadd.f32 %v6210, %v6211
      %v6213 = vrot.slane %v6212, 1
      %v6214 = vadd.f32 %v6212, %v6213
      %v6215 = vsub.f32 %v5785, %v6214
      %v6216 = vsub.f32 %v5786, %v6214
      %v6217 = vsub.f32 %v5787, %v6214
      %v6218 = vsub.f32 %v5788, %v6214
      %v6219 = vsub.f32 %v5789, %v6214
      %v6220 = vsub.f32 %v5790, %v6214
      %v6221 = vsub.f32 %v5791, %v6214
      %v6222 = vsub.f32 %v5792, %v6214
      %v6223 = vsub.f32 %v5793, %v6214
      %v6224 = vsub.f32 %v5794, %v6214
      %v6225 = vsub.f32 %v5795, %v6214
      %v6226 = vsub.f32 %v5796, %v6214
      %v6227 = vsub.f32 %v5797, %v6214
      %v6228 = vsub.f32 %v5798, %v6214
      %v6229 = vsub.f32 %v5799, %v6214
      %v6230 = vsub.f32 %v5800, %v6214
      %v6231 = vsub.f32 %v5801, %v6214
      %v6232 = vsub.f32 %v5802, %v6214
      %v6233 = vsub.f32 %v5803, %v6214
      %v6234 = vsub.f32 %v5804, %v6214
      %v6235 = vsub.f32 %v5805, %v6214
      %v6236 = vsub.f32 %v5806, %v6214
      %v6237 = vsub.f32 %v5807, %v6214
      %v6238 = vsub.f32 %v5808, %v6214
      %v6239 = vsub.f32 %v5809, %v6214
      %v6240 = vsub.f32 %v5810, %v6214
      %v6241 = vsub.f32 %v5811, %v6214
      %v6242 = vsub.f32 %v5812, %v6214
      %v6243 = vsub.f32 %v5813, %v6214
      %v6244 = vsub.f32 %v5814, %v6214
      %v6245 = vsub.f32 %v5815, %v6214
      %v6246 = vsub.f32 %v5816, %v6214
      %v6247 = vmul.f32 %v6215, %v6215
      %v6248 = vmul.f32 %v6216, %v6216
      %v6249 = vmul.f32 %v6217, %v6217
      %v6250 = vmul.f32 %v6218, %v6218
      %v6251 = vmul.f32 %v6219, %v6219
      %v6252 = vmul.f32 %v6220, %v6220
      %v6253 = vmul.f32 %v6221, %v6221
      %v6254 = vmul.f32 %v6222, %v6222
      %v6255 = vmul.f32 %v6223, %v6223
      %v6256 = vmul.f32 %v6224, %v6224
      %v6257 = vmul.f32 %v6225, %v6225
      %v6258 = vmul.f32 %v6226, %v6226
      %v6259 = vmul.f32 %v6227, %v6227
      %v6260 = vmul.f32 %v6228, %v6228
      %v6261 = vmul.f32 %v6229, %v6229
      %v6262 = vmul.f32 %v6230, %v6230
      %v6263 = vmul.f32 %v6231, %v6231
      %v6264 = vmul.f32 %v6232, %v6232
      %v6265 = vmul.f32 %v6233, %v6233
      %v6266 = vmul.f32 %v6234, %v6234
      %v6267 = vmul.f32 %v6235, %v6235
      %v6268 = vmul.f32 %v6236, %v6236
      %v6269 = vmul.f32 %v6237, %v6237
      %v6270 = vmul.f32 %v6238, %v6238
      %v6271 = vmul.f32 %v6239, %v6239
      %v6272 = vmul.f32 %v6240, %v6240
      %v6273 = vmul.f32 %v6241, %v6241
      %v6274 = vmul.f32 %v6242, %v6242
      %v6275 = vmul.f32 %v6243, %v6243
      %v6276 = vmul.f32 %v6244, %v6244
      %v6277 = vmul.f32 %v6245, %v6245
      %v6278 = vmul.f32 %v6246, %v6246
      %v6280 = vsel %vm3760, %v6247, 0
      %v6283 = vsel %vm3760, %v6248, 0
      %v6286 = vsel %vm3760, %v6249, 0
      %v6289 = vsel %vm3760, %v6250, 0
      %v6292 = vsel %vm3760, %v6251, 0
      %v6295 = vsel %vm3760, %v6252, 0
      %v6298 = vsel %vm3760, %v6253, 0
      %v6301 = vsel %vm3760, %v6254, 0
      %v6304 = vsel %vm3760, %v6255, 0
      %v6307 = vsel %vm3760, %v6256, 0
      %v6310 = vsel %vm3760, %v6257, 0
      %v6313 = vsel %vm3760, %v6258, 0
      %v6316 = vsel %vm3760, %v6259, 0
      %v6319 = vsel %vm3760, %v6260, 0
      %v6322 = vsel %vm3760, %v6261, 0
      %v6325 = vsel %vm3760, %v6262, 0
      %v6328 = vsel %vm3760, %v6263, 0
      %v6331 = vsel %vm3760, %v6264, 0
      %v6334 = vsel %vm3760, %v6265, 0
      %v6337 = vsel %vm3760, %v6266, 0
      %v6340 = vsel %vm3760, %v6267, 0
      %v6343 = vsel %vm3760, %v6268, 0
      %v6346 = vsel %vm3760, %v6269, 0
      %v6349 = vsel %vm3760, %v6270, 0
      %v6352 = vsel %vm3760, %v6271, 0
      %v6355 = vsel %vm3760, %v6272, 0
      %v6358 = vsel %vm3760, %v6273, 0
      %v6361 = vsel %vm3760, %v6274, 0
      %v6364 = vsel %vm3760, %v6275, 0
      %v6367 = vsel %vm3760, %v6276, 0
      %v6370 = vsel %vm3760, %v6277, 0
      %v6373 = vsel %vm3760, %v6278, 0
      %6375 = vmatprep.subr.mxu0 0.0
      %6376 = vmatpush1.msra.mxu0 %v5817
      %6377 = vmatprep.subr.mxu0 0.0
      %6378 = vmatpush1.msra.mxu0 %v5818
      %6379 = vmatprep.subr.mxu0 0.0
      %6380 = vmatpush1.msra.mxu0 %v5819
      %6381 = vmatprep.subr.mxu0 0.0
      %6382 = vmatpush1.msra.mxu0 %v5820
      %6383 = vmatprep.subr.mxu0 0.0
      %6384 = vmatpush1.msra.mxu0 %v5821
      %6385 = vmatprep.subr.mxu0 0.0
      %6386 = vmatpush1.msra.mxu0 %v5822
      %6387 = vmatprep.subr.mxu0 0.0
      %6388 = vmatpush1.msra.mxu0 %v5823
      %6389 = vmatprep.subr.mxu0 0.0
      %6390 = vmatpush1.msra.mxu0 %v5824
      %6391 = vmatprep.subr.mxu0 0.0
      %6392 = vmatpush1.msra.mxu0 0.0
      %6393 = vmatprep.subr.mxu0 0.0
      %6394 = vmatpush1.msra.mxu0 0.0
      %6395 = vmatprep.subr.mxu0 0.0
      %6396 = vmatpush1.msra.mxu0 0.0
      %6397 = vmatprep.subr.mxu0 0.0
      %6398 = vmatpush1.msra.mxu0 0.0
      %6399 = vmatprep.subr.mxu0 0.0
      %6400 = vmatpush1.msra.mxu0 0.0
      %6401 = vmatprep.subr.mxu0 0.0
      %6402 = vmatpush1.msra.mxu0 0.0
      %6403 = vmatprep.subr.mxu0 0.0
      %6404 = vmatpush1.msra.mxu0 0.0
      %6405 = vmatprep.subr.mxu0 0.0
      %6406 = vmatpush1.msra.mxu0 0.0
      %6407 = vmatprep.subr.mxu0 0.0
      %6408 = vmatpush1.msra.mxu0 0.0
      %6409 = vmatprep.subr.mxu0 0.0
      %6410 = vmatpush1.msra.mxu0 0.0
      %6411 = vmatprep.subr.mxu0 0.0
      %6412 = vmatpush1.msra.mxu0 0.0
      %6413 = vmatprep.subr.mxu0 0.0
      %6414 = vmatpush1.msra.mxu0 0.0
      %6415 = vmatprep.subr.mxu0 0.0
      %6416 = vmatpush1.msra.mxu0 0.0
      %6417 = vmatprep.subr.mxu0 0.0
      %6418 = vmatpush1.msra.mxu0 0.0
      %6419 = vmatprep.subr.mxu0 0.0
      %6420 = vmatpush1.msra.mxu0 0.0
      %6421 = vmatprep.subr.mxu0 0.0
      %6422 = vmatpush1.msra.mxu0 0.0
      %6423 = vmatprep.subr.mxu0 0.0
      %6424 = vmatpush1.msra.mxu0 0.0
      %6425 = vmatprep.subr.mxu0 0.0
      %6426 = vmatpush1.msra.mxu0 0.0
      %6427 = vmatprep.subr.mxu0 0.0
      %6428 = vmatpush1.msra.mxu0 0.0
      %6429 = vmatprep.subr.mxu0 0.0
      %6430 = vmatpush1.msra.mxu0 0.0
      %6431 = vmatprep.subr.mxu0 0.0
      %6432 = vmatpush1.msra.mxu0 0.0
      %6433 = vmatprep.subr.mxu0 0.0
      %6434 = vmatpush1.msra.mxu0 0.0
      %6435 = vmatprep.subr.mxu0 0.0
      %6436 = vmatpush1.msra.mxu0 0.0
      %6437 = vmatprep.subr.mxu0 0.0
      %6438 = vmatpush1.msra.mxu0 0.0
      %6439 = vmatprep.mubr.f32.mxu0 0.0
      %6440 = vmatmul.mubr.f32.gmra.mrb[0].mxu0 %v6280
      %v6441 = vpop.f32.mrb[0].mxu0
      %v6442 = vadd.f32 0.0, %v6441
      %v6443 = vpop.f32.mrb[0].mxu0
      %6444 = vmatprep.mubr.f32.mxu0 0.0
      %6445 = vmatmul.mubr.f32.gmra.mrb[0].mxu0 %v6283
      %v6446 = vpop.f32.mrb[0].mxu0
      %v6447 = vadd.f32 0.0, %v6446
      %v6448 = vpop.f32.mrb[0].mxu0
      %6449 = vmatprep.mubr.f32.mxu0 0.0
      %6450 = vmatmul.mubr.f32.gmra.mrb[0].mxu0 %v6286
      %v6451 = vpop.f32.mrb[0].mxu0
      %v6452 = vadd.f32 0.0, %v6451
      %v6453 = vpop.f32.mrb[0].mxu0
      %6454 = vmatprep.mubr.f32.mxu0 0.0
      %6455 = vmatmul.mubr.f32.gmra.mrb[0].mxu0 %v6289
      %v6456 = vpop.f32.mrb[0].mxu0
      %v6457 = vadd.f32 0.0, %v6456
      %v6458 = vpop.f32.mrb[0].mxu0
      %6459 = vmatprep.mubr.f32.mxu0 0.0
      %6460 = vmatmul.mubr.f32.gmra.mrb[0].mxu0 %v6292
      %v6461 = vpop.f32.mrb[0].mxu0
      %v6462 = vadd.f32 0.0, %v6461
      %v6463 = vpop.f32.mrb[0].mxu0
      %6464 = vmatprep.mubr.f32.mxu0 0.0
      %6465 = vmatmul.mubr.f32.gmra.mrb[0].mxu0 %v6295
      %v6466 = vpop.f32.mrb[0].mxu0
      %v6467 = vadd.f32 0.0, %v6466
      %v6468 = vpop.f32.mrb[0].mxu0
      %6469 = vmatprep.mubr.f32.mxu0 0.0
      %6470 = vmatmul.mubr.f32.gmra.mrb[0].mxu0 %v6298
      %v6471 = vpop.f32.mrb[0].mxu0
      %v6472 = vadd.f32 0.0, %v6471
      %v6473 = vpop.f32.mrb[0].mxu0
      %6474 = vmatprep.mubr.f32.mxu0 0.0
      %6475 = vmatmul.mubr.f32.gmra.mrb[0].mxu0 %v6301
      %v6476 = vpop.f32.mrb[0].mxu0
      %v6477 = vadd.f32 0.0, %v6476
      %v6478 = vpop.f32.mrb[0].mxu0
      %6479 = vmatprep.mubr.f32.mxu0 0.0
      %6480 = vmatmul.mubr.f32.gmra.mrb[0].mxu0 %v6304
      %v6481 = vpop.f32.mrb[0].mxu0
      %v6482 = vadd.f32 0.0, %v6481
      %v6483 = vpop.f32.mrb[0].mxu0
      %6484 = vmatprep.mubr.f32.mxu0 0.0
      %6485 = vmatmul.mubr.f32.gmra.mrb[0].mxu0 %v6307
      %v6486 = vpop.f32.mrb[0].mxu0
      %v6487 = vadd.f32 0.0, %v6486
      %v6488 = vpop.f32.mrb[0].mxu0
      %6489 = vmatprep.mubr.f32.mxu0 0.0
      %6490 = vmatmul.mubr.f32.gmra.mrb[0].mxu0 %v6310
      %v6491 = vpop.f32.mrb[0].mxu0
      %v6492 = vadd.f32 0.0, %v6491
      %v6493 = vpop.f32.mrb[0].mxu0
      %6494 = vmatprep.mubr.f32.mxu0 0.0
      %6495 = vmatmul.mubr.f32.gmra.mrb[0].mxu0 %v6313
      %v6496 = vpop.f32.mrb[0].mxu0
      %v6497 = vadd.f32 0.0, %v6496
      %v6498 = vpop.f32.mrb[0].mxu0
      %6499 = vmatprep.mubr.f32.mxu0 0.0
      %6500 = vmatmul.mubr.f32.gmra.mrb[0].mxu0 %v6316
      %v6501 = vpop.f32.mrb[0].mxu0
      %v6502 = vadd.f32 0.0, %v6501
      %v6503 = vpop.f32.mrb[0].mxu0
      %6504 = vmatprep.mubr.f32.mxu0 0.0
      %6505 = vmatmul.mubr.f32.gmra.mrb[0].mxu0 %v6319
      %v6506 = vpop.f32.mrb[0].mxu0
      %v6507 = vadd.f32 0.0, %v6506
      %v6508 = vpop.f32.mrb[0].mxu0
      %6509 = vmatprep.mubr.f32.mxu0 0.0
      %6510 = vmatmul.mubr.f32.gmra.mrb[0].mxu0 %v6322
      %v6511 = vpop.f32.mrb[0].mxu0
      %v6512 = vadd.f32 0.0, %v6511
      %v6513 = vpop.f32.mrb[0].mxu0
      %6514 = vmatprep.mubr.f32.mxu0 0.0
      %6515 = vmatmul.mubr.f32.gmra.mrb[0].mxu0 %v6325
      %v6516 = vpop.f32.mrb[0].mxu0
      %v6517 = vadd.f32 0.0, %v6516
      %v6518 = vpop.f32.mrb[0].mxu0
      %6519 = vmatprep.mubr.f32.mxu0 0.0
      %6520 = vmatmul.mubr.f32.gmra.mrb[0].mxu0 %v6328
      %v6521 = vpop.f32.mrb[0].mxu0
      %v6522 = vadd.f32 0.0, %v6521
      %v6523 = vpop.f32.mrb[0].mxu0
      %6524 = vmatprep.mubr.f32.mxu0 0.0
      %6525 = vmatmul.mubr.f32.gmra.mrb[0].mxu0 %v6331
      %v6526 = vpop.f32.mrb[0].mxu0
      %v6527 = vadd.f32 0.0, %v6526
      %v6528 = vpop.f32.mrb[0].mxu0
      %6529 = vmatprep.mubr.f32.mxu0 0.0
      %6530 = vmatmul.mubr.f32.gmra.mrb[0].mxu0 %v6334
      %v6531 = vpop.f32.mrb[0].mxu0
      %v6532 = vadd.f32 0.0, %v6531
      %v6533 = vpop.f32.mrb[0].mxu0
      %6534 = vmatprep.mubr.f32.mxu0 0.0
      %6535 = vmatmul.mubr.f32.gmra.mrb[0].mxu0 %v6337
      %v6536 = vpop.f32.mrb[0].mxu0
      %v6537 = vadd.f32 0.0, %v6536
      %v6538 = vpop.f32.mrb[0].mxu0
      %6539 = vmatprep.mubr.f32.mxu0 0.0
      %6540 = vmatmul.mubr.f32.gmra.mrb[0].mxu0 %v6340
      %v6541 = vpop.f32.mrb[0].mxu0
      %v6542 = vadd.f32 0.0, %v6541
      %v6543 = vpop.f32.mrb[0].mxu0
      %6544 = vmatprep.mubr.f32.mxu0 0.0
      %6545 = vmatmul.mubr.f32.gmra.mrb[0].mxu0 %v6343
      %v6546 = vpop.f32.mrb[0].mxu0
      %v6547 = vadd.f32 0.0, %v6546
      %v6548 = vpop.f32.mrb[0].mxu0
      %6549 = vmatprep.mubr.f32.mxu0 0.0
      %6550 = vmatmul.mubr.f32.gmra.mrb[0].mxu0 %v6346
      %v6551 = vpop.f32.mrb[0].mxu0
      %v6552 = vadd.f32 0.0, %v6551
      %v6553 = vpop.f32.mrb[0].mxu0
      %6554 = vmatprep.mubr.f32.mxu0 0.0
      %6555 = vmatmul.mubr.f32.gmra.mrb[0].mxu0 %v6349
      %v6556 = vpop.f32.mrb[0].mxu0
      %v6557 = vadd.f32 0.0, %v6556
      %v6558 = vpop.f32.mrb[0].mxu0
      %6559 = vmatprep.mubr.f32.mxu0 0.0
      %6560 = vmatmul.mubr.f32.gmra.mrb[0].mxu0 %v6352
      %v6561 = vpop.f32.mrb[0].mxu0
      %v6562 = vadd.f32 0.0, %v6561
      %v6563 = vpop.f32.mrb[0].mxu0
      %6564 = vmatprep.mubr.f32.mxu0 0.0
      %6565 = vmatmul.mubr.f32.gmra.mrb[0].mxu0 %v6355
      %v6566 = vpop.f32.mrb[0].mxu0
      %v6567 = vadd.f32 0.0, %v6566
      %v6568 = vpop.f32.mrb[0].mxu0
      %6569 = vmatprep.mubr.f32.mxu0 0.0
      %6570 = vmatmul.mubr.f32.gmra.mrb[0].mxu0 %v6358
      %v6571 = vpop.f32.mrb[0].mxu0
      %v6572 = vadd.f32 0.0, %v6571
      %v6573 = vpop.f32.mrb[0].mxu0
      %6574 = vmatprep.mubr.f32.mxu0 0.0
      %6575 = vmatmul.mubr.f32.gmra.mrb[0].mxu0 %v6361
      %v6576 = vpop.f32.mrb[0].mxu0
      %v6577 = vadd.f32 0.0, %v6576
      %v6578 = vpop.f32.mrb[0].mxu0
      %6579 = vmatprep.mubr.f32.mxu0 0.0
      %6580 = vmatmul.mubr.f32.gmra.mrb[0].mxu0 %v6364
      %v6581 = vpop.f32.mrb[0].mxu0
      %v6582 = vadd.f32 0.0, %v6581
      %v6583 = vpop.f32.mrb[0].mxu0
      %6584 = vmatprep.mubr.f32.mxu0 0.0
      %6585 = vmatmul.mubr.f32.gmra.mrb[0].mxu0 %v6367
      %v6586 = vpop.f32.mrb[0].mxu0
      %v6587 = vadd.f32 0.0, %v6586
      %v6588 = vpop.f32.mrb[0].mxu0
      %6589 = vmatprep.mubr.f32.mxu0 0.0
      %6590 = vmatmul.mubr.f32.gmra.mrb[0].mxu0 %v6370
      %v6591 = vpop.f32.mrb[0].mxu0
      %v6592 = vadd.f32 0.0, %v6591
      %v6593 = vpop.f32.mrb[0].mxu0
      %6594 = vmatprep.mubr.f32.mxu0 0.0
      %6595 = vmatmul.mubr.f32.gmra.mrb[0].mxu0 %v6373
      %v6596 = vpop.f32.mrb[0].mxu0
      %v6597 = vadd.f32 0.0, %v6596
      %v6598 = vpop.f32.mrb[0].mxu0
      %6599 = vdwg.mxu0
      %v6600 = vsel %vm3760, %v6442, 0.0
      %v6601 = vsel %vm3760, %v6447, 0.0
      %v6602 = vadd.f32 %v6600, %v6601
      %v6603 = vsel %vm3760, %v6452, 0.0
      %v6604 = vadd.f32 %v6602, %v6603
      %v6605 = vsel %vm3760, %v6457, 0.0
      %v6606 = vadd.f32 %v6604, %v6605
      %v6607 = vsel %vm3760, %v6462, 0.0
      %v6608 = vadd.f32 %v6606, %v6607
      %v6609 = vsel %vm3760, %v6467, 0.0
      %v6610 = vadd.f32 %v6608, %v6609
      %v6611 = vsel %vm3760, %v6472, 0.0
      %v6612 = vadd.f32 %v6610, %v6611
      %v6613 = vsel %vm3760, %v6477, 0.0
      %v6614 = vadd.f32 %v6612, %v6613
      %v6615 = vsel %vm3760, %v6482, 0.0
      %v6616 = vadd.f32 %v6614, %v6615
      %v6617 = vsel %vm3760, %v6487, 0.0
      %v6618 = vadd.f32 %v6616, %v6617
      %v6619 = vsel %vm3760, %v6492, 0.0
      %v6620 = vadd.f32 %v6618, %v6619
      %v6621 = vsel %vm3760, %v6497, 0.0
      %v6622 = vadd.f32 %v6620, %v6621
      %v6623 = vsel %vm3760, %v6502, 0.0
      %v6624 = vadd.f32 %v6622, %v6623
      %v6625 = vsel %vm3760, %v6507, 0.0
      %v6626 = vadd.f32 %v6624, %v6625
      %v6627 = vsel %vm3760, %v6512, 0.0
      %v6628 = vadd.f32 %v6626, %v6627
      %v6629 = vsel %vm3760, %v6517, 0.0
      %v6630 = vadd.f32 %v6628, %v6629
      %v6631 = vsel %vm3760, %v6522, 0.0
      %v6632 = vadd.f32 %v6630, %v6631
      %v6633 = vsel %vm3760, %v6527, 0.0
      %v6634 = vadd.f32 %v6632, %v6633
      %v6635 = vsel %vm3760, %v6532, 0.0
      %v6636 = vadd.f32 %v6634, %v6635
      %v6637 = vsel %vm3760, %v6537, 0.0
      %v6638 = vadd.f32 %v6636, %v6637
      %v6639 = vsel %vm3760, %v6542, 0.0
      %v6640 = vadd.f32 %v6638, %v6639
      %v6641 = vsel %vm3760, %v6547, 0.0
      %v6642 = vadd.f32 %v6640, %v6641
      %v6643 = vsel %vm3760, %v6552, 0.0
      %v6644 = vadd.f32 %v6642, %v6643
      %v6645 = vsel %vm3760, %v6557, 0.0
      %v6646 = vadd.f32 %v6644, %v6645
      %v6647 = vsel %vm3760, %v6562, 0.0
      %v6648 = vadd.f32 %v6646, %v6647
      %v6649 = vsel %vm3760, %v6567, 0.0
      %v6650 = vadd.f32 %v6648, %v6649
      %v6651 = vsel %vm3760, %v6572, 0.0
      %v6652 = vadd.f32 %v6650, %v6651
      %v6653 = vsel %vm3760, %v6577, 0.0
      %v6654 = vadd.f32 %v6652, %v6653
      %v6655 = vsel %vm3760, %v6582, 0.0
      %v6656 = vadd.f32 %v6654, %v6655
      %v6657 = vsel %vm3760, %v6587, 0.0
      %v6658 = vadd.f32 %v6656, %v6657
      %v6659 = vsel %vm3760, %v6592, 0.0
      %v6660 = vadd.f32 %v6658, %v6659
      %v6661 = vsel %vm3760, %v6597, 0.0
      %v6662 = vadd.f32 %v6660, %v6661
      %v6663 = vrot.slane %v6662, 4
      %v6664 = vadd.f32 %v6662, %v6663
      %v6665 = vrot.slane %v6664, 2
      %v6666 = vadd.f32 %v6664, %v6665
      %v6667 = vrot.slane %v6666, 1
      %v6668 = vadd.f32 %v6666, %v6667
      %v6669 = vadd.f32 %v6668, 1e-05
      %v6670 = vrsqrt.pop %v6669
      %v6671 = vmul.f32 %v6215, %v6670
      %v6672 = vmul.f32 %v6216, %v6670
      %v6673 = vmul.f32 %v6217, %v6670
      %v6674 = vmul.f32 %v6218, %v6670
      %v6675 = vmul.f32 %v6219, %v6670
      %v6676 = vmul.f32 %v6220, %v6670
      %v6677 = vmul.f32 %v6221, %v6670
      %v6678 = vmul.f32 %v6222, %v6670
      %v6679 = vmul.f32 %v6223, %v6670
      %v6680 = vmul.f32 %v6224, %v6670
      %v6681 = vmul.f32 %v6225, %v6670
      %v6682 = vmul.f32 %v6226, %v6670
      %v6683 = vmul.f32 %v6227, %v6670
      %v6684 = vmul.f32 %v6228, %v6670
      %v6685 = vmul.f32 %v6229, %v6670
      %v6686 = vmul.f32 %v6230, %v6670
      %v6687 = vmul.f32 %v6231, %v6670
      %v6688 = vmul.f32 %v6232, %v6670
      %v6689 = vmul.f32 %v6233, %v6670
      %v6690 = vmul.f32 %v6234, %v6670
      %v6691 = vmul.f32 %v6235, %v6670
      %v6692 = vmul.f32 %v6236, %v6670
      %v6693 = vmul.f32 %v6237, %v6670
      %v6694 = vmul.f32 %v6238, %v6670
      %v6695 = vmul.f32 %v6239, %v6670
      %v6696 = vmul.f32 %v6240, %v6670
      %v6697 = vmul.f32 %v6241, %v6670
      %v6698 = vmul.f32 %v6242, %v6670
      %v6699 = vmul.f32 %v6243, %v6670
      %v6700 = vmul.f32 %v6244, %v6670
      %v6701 = vmul.f32 %v6245, %v6670
      %v6702 = vmul.f32 %v6246, %v6670
      %v6703 = vld [vmem:[%s9] sm:$0x1]
      %v6705 = vlaneseq
      %v6706 = vshrl.u32 %v6705, 7
      %v6707 = vsub.s32 0, %v6706
      %v6708 = vrot.slane %v6703, %v6707
      %v6710 = vmul.f32 %v6671, %v6708
      %v6711 = vmul.f32 %v6672, %v6708
      %v6712 = vmul.f32 %v6673, %v6708
      %v6713 = vmul.f32 %v6674, %v6708
      %v6714 = vmul.f32 %v6675, %v6708
      %v6715 = vmul.f32 %v6676, %v6708
      %v6716 = vmul.f32 %v6677, %v6708
      %v6717 = vmul.f32 %v6678, %v6708
      %v6718 = vmul.f32 %v6679, %v6708
      %v6719 = vmul.f32 %v6680, %v6708
      %v6720 = vmul.f32 %v6681, %v6708
      %v6721 = vmul.f32 %v6682, %v6708
      %v6722 = vmul.f32 %v6683, %v6708
      %v6723 = vmul.f32 %v6684, %v6708
      %v6724 = vmul.f32 %v6685, %v6708
      %v6725 = vmul.f32 %v6686, %v6708
      %v6726 = vmul.f32 %v6687, %v6708
      %v6727 = vmul.f32 %v6688, %v6708
      %v6728 = vmul.f32 %v6689, %v6708
      %v6729 = vmul.f32 %v6690, %v6708
      %v6730 = vmul.f32 %v6691, %v6708
      %v6731 = vmul.f32 %v6692, %v6708
      %v6732 = vmul.f32 %v6693, %v6708
      %v6733 = vmul.f32 %v6694, %v6708
      %v6734 = vmul.f32 %v6695, %v6708
      %v6735 = vmul.f32 %v6696, %v6708
      %v6736 = vmul.f32 %v6697, %v6708
      %v6737 = vmul.f32 %v6698, %v6708
      %v6738 = vmul.f32 %v6699, %v6708
      %v6739 = vmul.f32 %v6700, %v6708
      %v6740 = vmul.f32 %v6701, %v6708
      %v6741 = vmul.f32 %v6702, %v6708
      %v6742 = vld [vmem:[%s10] sm:$0x1]
      %v6744 = vlaneseq
      %v6745 = vshrl.u32 %v6744, 7
      %v6746 = vsub.s32 0, %v6745
      %v6747 = vrot.slane %v6742, %v6746
      %v6749 = vadd.f32 %v6710, %v6747
      %v6750 = vadd.f32 %v6711, %v6747
      %v6751 = vadd.f32 %v6712, %v6747
      %v6752 = vadd.f32 %v6713, %v6747
      %v6753 = vadd.f32 %v6714, %v6747
      %v6754 = vadd.f32 %v6715, %v6747
      %v6755 = vadd.f32 %v6716, %v6747
      %v6756 = vadd.f32 %v6717, %v6747
      %v6757 = vadd.f32 %v6718, %v6747
      %v6758 = vadd.f32 %v6719, %v6747
      %v6759 = vadd.f32 %v6720, %v6747
      %v6760 = vadd.f32 %v6721, %v6747
      %v6761 = vadd.f32 %v6722, %v6747
      %v6762 = vadd.f32 %v6723, %v6747
      %v6763 = vadd.f32 %v6724, %v6747
      %v6764 = vadd.f32 %v6725, %v6747
      %v6765 = vadd.f32 %v6726, %v6747
      %v6766 = vadd.f32 %v6727, %v6747
      %v6767 = vadd.f32 %v6728, %v6747
      %v6768 = vadd.f32 %v6729, %v6747
      %v6769 = vadd.f32 %v6730, %v6747
      %v6770 = vadd.f32 %v6731, %v6747
      %v6771 = vadd.f32 %v6732, %v6747
      %v6772 = vadd.f32 %v6733, %v6747
      %v6773 = vadd.f32 %v6734, %v6747
      %v6774 = vadd.f32 %v6735, %v6747
      %v6775 = vadd.f32 %v6736, %v6747
      %v6776 = vadd.f32 %v6737, %v6747
      %v6777 = vadd.f32 %v6738, %v6747
      %v6778 = vadd.f32 %v6739, %v6747
      %v6779 = vadd.f32 %v6740, %v6747
      %v6780 = vadd.f32 %v6741, %v6747
      %v6781 = vxor.u32 %v6749, 2147483648
      %v6782 = vxor.u32 %v6750, 2147483648
      %v6783 = vxor.u32 %v6751, 2147483648
      %v6784 = vxor.u32 %v6752, 2147483648
      %v6785 = vxor.u32 %v6753, 2147483648
      %v6786 = vxor.u32 %v6754, 2147483648
      %v6787 = vxor.u32 %v6755, 2147483648
      %v6788 = vxor.u32 %v6756, 2147483648
      %v6789 = vxor.u32 %v6757, 2147483648
      %v6790 = vxor.u32 %v6758, 2147483648
      %v6791 = vxor.u32 %v6759, 2147483648
      %v6792 = vxor.u32 %v6760, 2147483648
      %v6793 = vxor.u32 %v6761, 2147483648
      %v6794 = vxor.u32 %v6762, 2147483648
      %v6795 = vxor.u32 %v6763, 2147483648
      %v6796 = vxor.u32 %v6764, 2147483648
      %v6797 = vxor.u32 %v6765, 2147483648
      %v6798 = vxor.u32 %v6766, 2147483648
      %v6799 = vxor.u32 %v6767, 2147483648
      %v6800 = vxor.u32 %v6768, 2147483648
      %v6801 = vxor.u32 %v6769, 2147483648
      %v6802 = vxor.u32 %v6770, 2147483648
      %v6803 = vxor.u32 %v6771, 2147483648
      %v6804 = vxor.u32 %v6772, 2147483648
      %v6805 = vxor.u32 %v6773, 2147483648
      %v6806 = vxor.u32 %v6774, 2147483648
      %v6807 = vxor.u32 %v6775, 2147483648
      %v6808 = vxor.u32 %v6776, 2147483648
      %v6809 = vxor.u32 %v6777, 2147483648
      %v6810 = vxor.u32 %v6778, 2147483648
      %v6811 = vxor.u32 %v6779, 2147483648
      %v6812 = vxor.u32 %v6780, 2147483648
      %v6813 = vmul.f32 %v6781, 1.442695
      %v6814 = vpow.pop %v6813
      %v6815 = vmul.f32 %v6782, 1.442695
      %v6816 = vpow.pop %v6815
      %v6817 = vmul.f32 %v6783, 1.442695
      %v6818 = vpow.pop %v6817
      %v6819 = vmul.f32 %v6784, 1.442695
      %v6820 = vpow.pop %v6819
      %v6821 = vmul.f32 %v6785, 1.442695
      %v6822 = vpow.pop %v6821
      %v6823 = vmul.f32 %v6786, 1.442695
      %v6824 = vpow.pop %v6823
      %v6825 = vmul.f32 %v6787, 1.442695
      %v6826 = vpow.pop %v6825
      %v6827 = vmul.f32 %v6788, 1.442695
      %v6828 = vpow.pop %v6827
      %v6829 = vmul.f32 %v6789, 1.442695
      %v6830 = vpow.pop %v6829
      %v6831 = vmul.f32 %v6790, 1.442695
      %v6832 = vpow.pop %v6831
      %v6833 = vmul.f32 %v6791, 1.442695
      %v6834 = vpow.pop %v6833
      %v6835 = vmul.f32 %v6792, 1.442695
      %v6836 = vpow.pop %v6835
      %v6837 = vmul.f32 %v6793, 1.442695
      %v6838 = vpow.pop %v6837
      %v6839 = vmul.f32 %v6794, 1.442695
      %v6840 = vpow.pop %v6839
      %v6841 = vmul.f32 %v6795, 1.442695
      %v6842 = vpow.pop %v6841
      %v6843 = vmul.f32 %v6796, 1.442695
      %v6844 = vpow.pop %v6843
      %v6845 = vmul.f32 %v6797, 1.442695
      %v6846 = vpow.pop %v6845
      %v6847 = vmul.f32 %v6798, 1.442695
      %v6848 = vpow.pop %v6847
      %v6849 = vmul.f32 %v6799, 1.442695
      %v6850 = vpow.pop %v6849
      %v6851 = vmul.f32 %v6800, 1.442695
      %v6852 = vpow.pop %v6851
      %v6853 = vmul.f32 %v6801, 1.442695
      %v6854 = vpow.pop %v6853
      %v6855 = vmul.f32 %v6802, 1.442695
      %v6856 = vpow.pop %v6855
      %v6857 = vmul.f32 %v6803, 1.442695
      %v6858 = vpow.pop %v6857
      %v6859 = vmul.f32 %v6804, 1.442695
      %v6860 = vpow.pop %v6859
      %v6861 = vmul.f32 %v6805, 1.442695
      %v6862 = vpow.pop %v6861
      %v6863 = vmul.f32 %v6806, 1.442695
      %v6864 = vpow.pop %v6863
      %v6865 = vmul.f32 %v6807, 1.442695
      %v6866 = vpow.pop %v6865
      %v6867 = vmul.f32 %v6808, 1.442695
      %v6868 = vpow.pop %v6867
      %v6869 = vmul.f32 %v6809, 1.442695
      %v6870 = vpow.pop %v6869
      %v6871 = vmul.f32 %v6810, 1.442695
      %v6872 = vpow.pop %v6871
      %v6873 = vmul.f32 %v6811, 1.442695
      %v6874 = vpow.pop %v6873
      %v6875 = vmul.f32 %v6812, 1.442695
      %v6876 = vpow.pop %v6875
      %v6877 = vadd.f32 %v6814, 1.0
      %v6878 = vadd.f32 %v6816, 1.0
      %v6879 = vadd.f32 %v6818, 1.0
      %v6880 = vadd.f32 %v6820, 1.0
      %v6881 = vadd.f32 %v6822, 1.0
      %v6882 = vadd.f32 %v6824, 1.0
      %v6883 = vadd.f32 %v6826, 1.0
      %v6884 = vadd.f32 %v6828, 1.0
      %v6885 = vadd.f32 %v6830, 1.0
      %v6886 = vadd.f32 %v6832, 1.0
      %v6887 = vadd.f32 %v6834, 1.0
      %v6888 = vadd.f32 %v6836, 1.0
      %v6889 = vadd.f32 %v6838, 1.0
      %v6890 = vadd.f32 %v6840, 1.0
      %v6891 = vadd.f32 %v6842, 1.0
      %v6892 = vadd.f32 %v6844, 1.0
      %v6893 = vadd.f32 %v6846, 1.0
      %v6894 = vadd.f32 %v6848, 1.0
      %v6895 = vadd.f32 %v6850, 1.0
      %v6896 = vadd.f32 %v6852, 1.0
      %v6897 = vadd.f32 %v6854, 1.0
      %v6898 = vadd.f32 %v6856, 1.0
      %v6899 = vadd.f32 %v6858, 1.0
      %v6900 = vadd.f32 %v6860, 1.0
      %v6901 = vadd.f32 %v6862, 1.0
      %v6902 = vadd.f32 %v6864, 1.0
      %v6903 = vadd.f32 %v6866, 1.0
      %v6904 = vadd.f32 %v6868, 1.0
      %v6905 = vadd.f32 %v6870, 1.0
      %v6906 = vadd.f32 %v6872, 1.0
      %v6907 = vadd.f32 %v6874, 1.0
      %v6908 = vadd.f32 %v6876, 1.0
      %v6909 = vrcp.pop %v6877
      %v6910 = vmul.f32 1.0, %v6909
      %v6911 = vrcp.pop %v6878
      %v6912 = vmul.f32 1.0, %v6911
      %v6913 = vrcp.pop %v6879
      %v6914 = vmul.f32 1.0, %v6913
      %v6915 = vrcp.pop %v6880
      %v6916 = vmul.f32 1.0, %v6915
      %v6917 = vrcp.pop %v6881
      %v6918 = vmul.f32 1.0, %v6917
      %v6919 = vrcp.pop %v6882
      %v6920 = vmul.f32 1.0, %v6919
      %v6921 = vrcp.pop %v6883
      %v6922 = vmul.f32 1.0, %v6921
      %v6923 = vrcp.pop %v6884
      %v6924 = vmul.f32 1.0, %v6923
      %v6925 = vrcp.pop %v6885
      %v6926 = vmul.f32 1.0, %v6925
      %v6927 = vrcp.pop %v6886
      %v6928 = vmul.f32 1.0, %v6927
      %v6929 = vrcp.pop %v6887
      %v6930 = vmul.f32 1.0, %v6929
      %v6931 = vrcp.pop %v6888
      %v6932 = vmul.f32 1.0, %v6931
      %v6933 = vrcp.pop %v6889
      %v6934 = vmul.f32 1.0, %v6933
      %v6935 = vrcp.pop %v6890
      %v6936 = vmul.f32 1.0, %v6935
      %v6937 = vrcp.pop %v6891
      %v6938 = vmul.f32 1.0, %v6937
      %v6939 = vrcp.pop %v6892
      %v6940 = vmul.f32 1.0, %v6939
      %v6941 = vrcp.pop %v6893
      %v6942 = vmul.f32 1.0, %v6941
      %v6943 = vrcp.pop %v6894
      %v6944 = vmul.f32 1.0, %v6943
      %v6945 = vrcp.pop %v6895
      %v6946 = vmul.f32 1.0, %v6945
      %v6947 = vrcp.pop %v6896
      %v6948 = vmul.f32 1.0, %v6947
      %v6949 = vrcp.pop %v6897
      %v6950 = vmul.f32 1.0, %v6949
      %v6951 = vrcp.pop %v6898
      %v6952 = vmul.f32 1.0, %v6951
      %v6953 = vrcp.pop %v6899
      %v6954 = vmul.f32 1.0, %v6953
      %v6955 = vrcp.pop %v6900
      %v6956 = vmul.f32 1.0, %v6955
      %v6957 = vrcp.pop %v6901
      %v6958 = vmul.f32 1.0, %v6957
      %v6959 = vrcp.pop %v6902
      %v6960 = vmul.f32 1.0, %v6959
      %v6961 = vrcp.pop %v6903
      %v6962 = vmul.f32 1.0, %v6961
      %v6963 = vrcp.pop %v6904
      %v6964 = vmul.f32 1.0, %v6963
      %v6965 = vrcp.pop %v6905
      %v6966 = vmul.f32 1.0, %v6965
      %v6967 = vrcp.pop %v6906
      %v6968 = vmul.f32 1.0, %v6967
      %v6969 = vrcp.pop %v6907
      %v6970 = vmul.f32 1.0, %v6969
      %v6971 = vrcp.pop %v6908
      %v6972 = vmul.f32 1.0, %v6971
      %6973 = vrot.lane.b32.xlu0 %v4131, 32
      %v6974 = vpop.permute.xlu0 %6973
      %6975 = vrot.lane.b32.xlu0 %v4132, 32
      %v6976 = vpop.permute.xlu0 %6975
      %v6979 = vmul.f32 %v6910, %v4459
      %v6980 = vmul.f32 %v6912, %v4461
      %v6981 = vmul.f32 %v6914, %v4463
      %v6982 = vmul.f32 %v6916, %v4465
      %v6983 = vmul.f32 %v6918, %v4467
      %v6984 = vmul.f32 %v6920, %v4469
      %v6985 = vmul.f32 %v6922, %v4471
      %v6986 = vmul.f32 %v6924, %v4473
      %v6987 = vmul.f32 %v6926, %v4475
      %v6988 = vmul.f32 %v6928, %v4477
      %v6989 = vmul.f32 %v6930, %v4479
      %v6990 = vmul.f32 %v6932, %v4481
      %v6991 = vmul.f32 %v6934, %v4483
      %v6992 = vmul.f32 %v6936, %v4485
      %v6993 = vmul.f32 %v6938, %v4487
      %v6994 = vmul.f32 %v6940, %v4489
      %v6995 = vmul.f32 %v6942, %v4491
      %v6996 = vmul.f32 %v6944, %v4493
      %v6997 = vmul.f32 %v6946, %v4495
      %v6998 = vmul.f32 %v6948, %v4497
      %v6999 = vmul.f32 %v6950, %v4499
      %v7000 = vmul.f32 %v6952, %v4501
      %v7001 = vmul.f32 %v6954, %v4503
      %v7002 = vmul.f32 %v6956, %v4505
      %v7003 = vmul.f32 %v6958, %v4507
      %v7004 = vmul.f32 %v6960, %v4509
      %v7005 = vmul.f32 %v6962, %v4511
      %v7006 = vmul.f32 %v6964, %v4513
      %v7007 = vmul.f32 %v6966, %v4515
      %v7008 = vmul.f32 %v6968, %v4517
      %v7009 = vmul.f32 %v6970, %v6974
      %v7010 = vmul.f32 %v6972, %v6976
      %7043 = vrot.lane.b32.xlu0 %v6979, 96
      %v7044 = vpop.permute.xlu0 %7043
      %7045 = vrot.lane.b32.xlu0 %v6980, 96
      %v7046 = vpop.permute.xlu0 %7045
      %7047 = vrot.lane.b32.xlu0 %v6981, 96
      %v7048 = vpop.permute.xlu0 %7047
      %7049 = vrot.lane.b32.xlu0 %v6982, 96
      %v7050 = vpop.permute.xlu0 %7049
      %7051 = vrot.lane.b32.xlu0 %v6983, 96
      %v7052 = vpop.permute.xlu0 %7051
      %7053 = vrot.lane.b32.xlu0 %v6984, 96
      %v7054 = vpop.permute.xlu0 %7053
      %7055 = vrot.lane.b32.xlu0 %v6985, 96
      %v7056 = vpop.permute.xlu0 %7055
      %7057 = vrot.lane.b32.xlu0 %v6986, 96
      %v7058 = vpop.permute.xlu0 %7057
      %7059 = vrot.lane.b32.xlu0 %v6987, 96
      %v7060 = vpop.permute.xlu0 %7059
      %7061 = vrot.lane.b32.xlu0 %v6988, 96
      %v7062 = vpop.permute.xlu0 %7061
      %7063 = vrot.lane.b32.xlu0 %v6989, 96
      %v7064 = vpop.permute.xlu0 %7063
      %7065 = vrot.lane.b32.xlu0 %v6990, 96
      %v7066 = vpop.permute.xlu0 %7065
      %7067 = vrot.lane.b32.xlu0 %v6991, 96
      %v7068 = vpop.permute.xlu0 %7067
      %7069 = vrot.lane.b32.xlu0 %v6992, 96
      %v7070 = vpop.permute.xlu0 %7069
      %7071 = vrot.lane.b32.xlu0 %v6993, 96
      %v7072 = vpop.permute.xlu0 %7071
      %7073 = vrot.lane.b32.xlu0 %v6994, 96
      %v7074 = vpop.permute.xlu0 %7073
      %7075 = vrot.lane.b32.xlu0 %v6995, 96
      %v7076 = vpop.permute.xlu0 %7075
      %7077 = vrot.lane.b32.xlu0 %v6996, 96
      %v7078 = vpop.permute.xlu0 %7077
      %7079 = vrot.lane.b32.xlu0 %v6997, 96
      %v7080 = vpop.permute.xlu0 %7079
      %7081 = vrot.lane.b32.xlu0 %v6998, 96
      %v7082 = vpop.permute.xlu0 %7081
      %7083 = vrot.lane.b32.xlu0 %v6999, 96
      %v7084 = vpop.permute.xlu0 %7083
      %7085 = vrot.lane.b32.xlu0 %v7000, 96
      %v7086 = vpop.permute.xlu0 %7085
      %7087 = vrot.lane.b32.xlu0 %v7001, 96
      %v7088 = vpop.permute.xlu0 %7087
      %7089 = vrot.lane.b32.xlu0 %v7002, 96
      %v7090 = vpop.permute.xlu0 %7089
      %7091 = vrot.lane.b32.xlu0 %v7003, 96
      %v7092 = vpop.permute.xlu0 %7091
      %7093 = vrot.lane.b32.xlu0 %v7004, 96
      %v7094 = vpop.permute.xlu0 %7093
      %7095 = vrot.lane.b32.xlu0 %v7005, 96
      %v7096 = vpop.permute.xlu0 %7095
      %7097 = vrot.lane.b32.xlu0 %v7006, 96
      %v7098 = vpop.permute.xlu0 %7097
      %7099 = vrot.lane.b32.xlu0 %v7007, 96
      %v7100 = vpop.permute.xlu0 %7099
      %7101 = vrot.lane.b32.xlu0 %v7008, 96
      %v7102 = vpop.permute.xlu0 %7101
      %7103 = vrot.lane.b32.xlu0 %v7009, 96
      %v7104 = vpop.permute.xlu0 %7103
      %7105 = vrot.lane.b32.xlu0 %v7010, 96
      %v7106 = vpop.permute.xlu0 %7105
      %s7139 = scalar_lea.vmem [#allocation4], 32
      %7140 = vst.msk [vmem:[%s7139 + $0x8] sm:$0xff] %vm1989, %v7044
      %7141 = vst.msk [vmem:[%s7139 + $0x10] sm:$0xff] %vm1989, %v7046
      %7142 = vst.msk [vmem:[%s7139 + $0x28] sm:$0xff] %vm1989, %v7048
      %7143 = vst.msk [vmem:[%s7139 + $0x30] sm:$0xff] %vm1989, %v7050
      %7144 = vst.msk [vmem:[%s7139 + $0x48] sm:$0xff] %vm1989, %v7052
      %7145 = vst.msk [vmem:[%s7139 + $0x50] sm:$0xff] %vm1989, %v7054
      %7146 = vst.msk [vmem:[%s7139 + $0x68] sm:$0xff] %vm1989, %v7056
      %7147 = vst.msk [vmem:[%s7139 + $0x70] sm:$0xff] %vm1989, %v7058
      %7148 = vst.msk [vmem:[%s7139 + $0x88] sm:$0xff] %vm1989, %v7060
      %7149 = vst.msk [vmem:[%s7139 + $0x90] sm:$0xff] %vm1989, %v7062
      %7150 = vst.msk [vmem:[%s7139 + $0xa8] sm:$0xff] %vm1989, %v7064
      %7151 = vst.msk [vmem:[%s7139 + $0xb0] sm:$0xff] %vm1989, %v7066
      %7152 = vst.msk [vmem:[%s7139 + $0xc8] sm:$0xff] %vm1989, %v7068
      %7153 = vst.msk [vmem:[%s7139 + $0xd0] sm:$0xff] %vm1989, %v7070
      %7154 = vst.msk [vmem:[%s7139 + $0xe8] sm:$0xff] %vm1989, %v7072
      %7155 = vst.msk [vmem:[%s7139 + $0xf0] sm:$0xff] %vm1989, %v7074
      %7156 = vst.msk [vmem:[%s7139 + $0x108] sm:$0xff] %vm1989, %v7076
      %7157 = vst.msk [vmem:[%s7139 + $0x110] sm:$0xff] %vm1989, %v7078
      %7158 = vst.msk [vmem:[%s7139 + $0x128] sm:$0xff] %vm1989, %v7080
      %7159 = vst.msk [vmem:[%s7139 + $0x130] sm:$0xff] %vm1989, %v7082
      %7160 = vst.msk [vmem:[%s7139 + $0x148] sm:$0xff] %vm1989, %v7084
      %7161 = vst.msk [vmem:[%s7139 + $0x150] sm:$0xff] %vm1989, %v7086
      %7162 = vst.msk [vmem:[%s7139 + $0x168] sm:$0xff] %vm1989, %v7088
      %7163 = vst.msk [vmem:[%s7139 + $0x170] sm:$0xff] %vm1989, %v7090
      %7164 = vst.msk [vmem:[%s7139 + $0x188] sm:$0xff] %vm1989, %v7092
      %7165 = vst.msk [vmem:[%s7139 + $0x190] sm:$0xff] %vm1989, %v7094
      %7166 = vst.msk [vmem:[%s7139 + $0x1a8] sm:$0xff] %vm1989, %v7096
      %7167 = vst.msk [vmem:[%s7139 + $0x1b0] sm:$0xff] %vm1989, %v7098
      %7168 = vst.msk [vmem:[%s7139 + $0x1c8] sm:$0xff] %vm1989, %v7100
      %7169 = vst.msk [vmem:[%s7139 + $0x1d0] sm:$0xff] %vm1989, %v7102
      %7170 = vst.msk [vmem:[%s7139 + $0x1e8] sm:$0xff] %vm1989, %v7104
      %7171 = vst.msk [vmem:[%s7139 + $0x1f0] sm:$0xff] %vm1989, %v7106
      %v7172 = vld [vmem:[#allocation4] sm:$0xff]
      %v7173 = vld [vmem:[#allocation4 + $0x8] sm:$0xff]
      %v7174 = vld [vmem:[#allocation4 + $0x10] sm:$0xff]
      %v7175 = vld [vmem:[#allocation4 + $0x18] sm:$0xff]
      %v7176 = vld [vmem:[#allocation4 + $0x20] sm:$0xff]
      %v7177 = vld [vmem:[#allocation4 + $0x28] sm:$0xff]
      %v7178 = vld [vmem:[#allocation4 + $0x30] sm:$0xff]
      %v7179 = vld [vmem:[#allocation4 + $0x38] sm:$0xff]
      %v7180 = vld [vmem:[#allocation4 + $0x40] sm:$0xff]
      %v7181 = vld [vmem:[#allocation4 + $0x48] sm:$0xff]
      %v7182 = vld [vmem:[#allocation4 + $0x50] sm:$0xff]
      %v7183 = vld [vmem:[#allocation4 + $0x58] sm:$0xff]
      %v7184 = vld [vmem:[#allocation4 + $0x60] sm:$0xff]
      %v7185 = vld [vmem:[#allocation4 + $0x68] sm:$0xff]
      %v7186 = vld [vmem:[#allocation4 + $0x70] sm:$0xff]
      %v7187 = vld [vmem:[#allocation4 + $0x78] sm:$0xff]
      %v7188 = vld [vmem:[#allocation4 + $0x80] sm:$0xff]
      %v7189 = vld [vmem:[#allocation4 + $0x88] sm:$0xff]
      %v7190 = vld [vmem:[#allocation4 + $0x90] sm:$0xff]
      %v7191 = vld [vmem:[#allocation4 + $0x98] sm:$0xff]
      %v7192 = vld [vmem:[#allocation4 + $0xa0] sm:$0xff]
      %v7193 = vld [vmem:[#allocation4 + $0xa8] sm:$0xff]
      %v7194 = vld [vmem:[#allocation4 + $0xb0] sm:$0xff]
      %v7195 = vld [vmem:[#allocation4 + $0xb8] sm:$0xff]
      %v7196 = vld [vmem:[#allocation4 + $0xc0] sm:$0xff]
      %v7197 = vld [vmem:[#allocation4 + $0xc8] sm:$0xff]
      %v7198 = vld [vmem:[#allocation4 + $0xd0] sm:$0xff]
      %v7199 = vld [vmem:[#allocation4 + $0xd8] sm:$0xff]
      %v7200 = vld [vmem:[#allocation4 + $0xe0] sm:$0xff]
      %v7201 = vld [vmem:[#allocation4 + $0xe8] sm:$0xff]
      %v7202 = vld [vmem:[#allocation4 + $0xf0] sm:$0xff]
      %v7203 = vld [vmem:[#allocation4 + $0xf8] sm:$0xff]
      %v7204 = vld [vmem:[#allocation4 + $0x100] sm:$0xff]
      %v7205 = vld [vmem:[#allocation4 + $0x108] sm:$0xff]
      %v7206 = vld [vmem:[#allocation4 + $0x110] sm:$0xff]
      %v7207 = vld [vmem:[#allocation4 + $0x118] sm:$0xff]
      %v7208 = vld [vmem:[#allocation4 + $0x120] sm:$0xff]
      %v7209 = vld [vmem:[#allocation4 + $0x128] sm:$0xff]
      %v7210 = vld [vmem:[#allocation4 + $0x130] sm:$0xff]
      %v7211 = vld [vmem:[#allocation4 + $0x138] sm:$0xff]
      %v7212 = vld [vmem:[#allocation4 + $0x140] sm:$0xff]
      %v7213 = vld [vmem:[#allocation4 + $0x148] sm:$0xff]
      %v7214 = vld [vmem:[#allocation4 + $0x150] sm:$0xff]
      %v7215 = vld [vmem:[#allocation4 + $0x158] sm:$0xff]
      %v7216 = vld [vmem:[#allocation4 + $0x160] sm:$0xff]
      %v7217 = vld [vmem:[#allocation4 + $0x168] sm:$0xff]
      %v7218 = vld [vmem:[#allocation4 + $0x170] sm:$0xff]
      %v7219 = vld [vmem:[#allocation4 + $0x178] sm:$0xff]
      %v7220 = vld [vmem:[#allocation4 + $0x180] sm:$0xff]
      %v7221 = vld [vmem:[#allocation4 + $0x188] sm:$0xff]
      %v7222 = vld [vmem:[#allocation4 + $0x190] sm:$0xff]
      %v7223 = vld [vmem:[#allocation4 + $0x198] sm:$0xff]
      %v7224 = vld [vmem:[#allocation4 + $0x1a0] sm:$0xff]
      %v7225 = vld [vmem:[#allocation4 + $0x1a8] sm:$0xff]
      %v7226 = vld [vmem:[#allocation4 + $0x1b0] sm:$0xff]
      %v7227 = vld [vmem:[#allocation4 + $0x1b8] sm:$0xff]
      %v7228 = vld [vmem:[#allocation4 + $0x1c0] sm:$0xff]
      %v7229 = vld [vmem:[#allocation4 + $0x1c8] sm:$0xff]
      %v7230 = vld [vmem:[#allocation4 + $0x1d0] sm:$0xff]
      %v7231 = vld [vmem:[#allocation4 + $0x1d8] sm:$0xff]
      %v7232 = vld [vmem:[#allocation4 + $0x1e0] sm:$0xff]
      %v7233 = vld [vmem:[#allocation4 + $0x1e8] sm:$0xff]
      %v7234 = vld [vmem:[#allocation4 + $0x1f0] sm:$0xff]
      %v7235 = vld [vmem:[#allocation4 + $0x1f8] sm:$0xff]
      %v7236 = vld [vmem:[#allocation4 + $0x200] sm:$0xff]
      %v7237 = vld [vmem:[#allocation4 + $0x208] sm:$0xff]
      %v7238 = vld [vmem:[#allocation4 + $0x210] sm:$0xff]
      %v7239 = vld [vmem:[#allocation4 + $0x218] sm:$0xff]
      %v7240 = vld [vmem:[#allocation4 + $0x220] sm:$0xff]
      %v7241 = vld [vmem:[#allocation4 + $0x228] sm:$0xff]
      %v7242 = vld [vmem:[#allocation4 + $0x230] sm:$0xff]
      %v7243 = vld [vmem:[#allocation4 + $0x238] sm:$0xff]
      %v7292 = vrot.slane %v7172, 7
      %v7293 = vrot.slane %v7173, 7
      %v7294 = vsel %vm2528, %v7292, %v7293
      %v7295 = vrot.slane %v7174, 7
      %v7296 = vsel %vm2528, %v7293, %v7295
      %v7297 = vrot.slane %v7176, 7
      %v7298 = vrot.slane %v7177, 7
      %v7299 = vsel %vm2528, %v7297, %v7298
      %v7300 = vrot.slane %v7178, 7
      %v7301 = vsel %vm2528, %v7298, %v7300
      %v7302 = vrot.slane %v7180, 7
      %v7303 = vrot.slane %v7181, 7
      %v7304 = vsel %vm2528, %v7302, %v7303
      %v7305 = vrot.slane %v7182, 7
      %v7306 = vsel %vm2528, %v7303, %v7305
      %v7307 = vrot.slane %v7184, 7
      %v7308 = vrot.slane %v7185, 7
      %v7309 = vsel %vm2528, %v7307, %v7308
      %v7310 = vrot.slane %v7186, 7
      %v7311 = vsel %vm2528, %v7308, %v7310
      %v7312 = vrot.slane %v7188, 7
      %v7313 = vrot.slane %v7189, 7
      %v7314 = vsel %vm2528, %v7312, %v7313
      %v7315 = vrot.slane %v7190, 7
      %v7316 = vsel %vm2528, %v7313, %v7315
      %v7317 = vrot.slane %v7192, 7
      %v7318 = vrot.slane %v7193, 7
      %v7319 = vsel %vm2528, %v7317, %v7318
      %v7320 = vrot.slane %v7194, 7
      %v7321 = vsel %vm2528, %v7318, %v7320
      %v7322 = vrot.slane %v7196, 7
      %v7323 = vrot.slane %v7197, 7
      %v7324 = vsel %vm2528, %v7322, %v7323
      %v7325 = vrot.slane %v7198, 7
      %v7326 = vsel %vm2528, %v7323, %v7325
      %v7327 = vrot.slane %v7200, 7
      %v7328 = vrot.slane %v7201, 7
      %v7329 = vsel %vm2528, %v7327, %v7328
      %v7330 = vrot.slane %v7202, 7
      %v7331 = vsel %vm2528, %v7328, %v7330
      %v7332 = vrot.slane %v7204, 7
      %v7333 = vrot.slane %v7205, 7
      %v7334 = vsel %vm2528, %v7332, %v7333
      %v7335 = vrot.slane %v7206, 7
      %v7336 = vsel %vm2528, %v7333, %v7335
      %v7337 = vrot.slane %v7208, 7
      %v7338 = vrot.slane %v7209, 7
      %v7339 = vsel %vm2528, %v7337, %v7338
      %v7340 = vrot.slane %v7210, 7
      %v7341 = vsel %vm2528, %v7338, %v7340
      %v7342 = vrot.slane %v7212, 7
      %v7343 = vrot.slane %v7213, 7
      %v7344 = vsel %vm2528, %v7342, %v7343
      %v7345 = vrot.slane %v7214, 7
      %v7346 = vsel %vm2528, %v7343, %v7345
      %v7347 = vrot.slane %v7216, 7
      %v7348 = vrot.slane %v7217, 7
      %v7349 = vsel %vm2528, %v7347, %v7348
      %v7350 = vrot.slane %v7218, 7
      %v7351 = vsel %vm2528, %v7348, %v7350
      %v7352 = vrot.slane %v7220, 7
      %v7353 = vrot.slane %v7221, 7
      %v7354 = vsel %vm2528, %v7352, %v7353
      %v7355 = vrot.slane %v7222, 7
      %v7356 = vsel %vm2528, %v7353, %v7355
      %v7357 = vrot.slane %v7224, 7
      %v7358 = vrot.slane %v7225, 7
      %v7359 = vsel %vm2528, %v7357, %v7358
      %v7360 = vrot.slane %v7226, 7
      %v7361 = vsel %vm2528, %v7358, %v7360
      %v7362 = vrot.slane %v7228, 7
      %v7363 = vrot.slane %v7229, 7
      %v7364 = vsel %vm2528, %v7362, %v7363
      %v7365 = vrot.slane %v7230, 7
      %v7366 = vsel %vm2528, %v7363, %v7365
      %v7367 = vrot.slane %v7232, 7
      %v7368 = vrot.slane %v7233, 7
      %v7369 = vsel %vm2528, %v7367, %v7368
      %v7370 = vrot.slane %v7234, 7
      %v7371 = vsel %vm2528, %v7368, %v7370
      %v7420 = vrot.slane %v7173, 1
      %v7421 = vrot.slane %v7174, 1
      %v7422 = vsel %vm802, %v7420, %v7421
      %v7423 = vrot.slane %v7175, 1
      %v7424 = vsel %vm802, %v7421, %v7423
      %v7425 = vrot.slane %v7177, 1
      %v7426 = vrot.slane %v7178, 1
      %v7427 = vsel %vm802, %v7425, %v7426
      %v7428 = vrot.slane %v7179, 1
      %v7429 = vsel %vm802, %v7426, %v7428
      %v7430 = vrot.slane %v7181, 1
      %v7431 = vrot.slane %v7182, 1
      %v7432 = vsel %vm802, %v7430, %v7431
      %v7433 = vrot.slane %v7183, 1
      %v7434 = vsel %vm802, %v7431, %v7433
      %v7435 = vrot.slane %v7185, 1
      %v7436 = vrot.slane %v7186, 1
      %v7437 = vsel %vm802, %v7435, %v7436
      %v7438 = vrot.slane %v7187, 1
      %v7439 = vsel %vm802, %v7436, %v7438
      %v7440 = vrot.slane %v7189, 1
      %v7441 = vrot.slane %v7190, 1
      %v7442 = vsel %vm802, %v7440, %v7441
      %v7443 = vrot.slane %v7191, 1
      %v7444 = vsel %vm802, %v7441, %v7443
      %v7445 = vrot.slane %v7193, 1
      %v7446 = vrot.slane %v7194, 1
      %v7447 = vsel %vm802, %v7445, %v7446
      %v7448 = vrot.slane %v7195, 1
      %v7449 = vsel %vm802, %v7446, %v7448
      %v7450 = vrot.slane %v7197, 1
      %v7451 = vrot.slane %v7198, 1
      %v7452 = vsel %vm802, %v7450, %v7451
      %v7453 = vrot.slane %v7199, 1
      %v7454 = vsel %vm802, %v7451, %v7453
      %v7455 = vrot.slane %v7201, 1
      %v7456 = vrot.slane %v7202, 1
      %v7457 = vsel %vm802, %v7455, %v7456
      %v7458 = vrot.slane %v7203, 1
      %v7459 = vsel %vm802, %v7456, %v7458
      %v7460 = vrot.slane %v7205, 1
      %v7461 = vrot.slane %v7206, 1
      %v7462 = vsel %vm802, %v7460, %v7461
      %v7463 = vrot.slane %v7207, 1
      %v7464 = vsel %vm802, %v7461, %v7463
      %v7465 = vrot.slane %v7209, 1
      %v7466 = vrot.slane %v7210, 1
      %v7467 = vsel %vm802, %v7465, %v7466
      %v7468 = vrot.slane %v7211, 1
      %v7469 = vsel %vm802, %v7466, %v7468
      %v7470 = vrot.slane %v7213, 1
      %v7471 = vrot.slane %v7214, 1
      %v7472 = vsel %vm802, %v7470, %v7471
      %v7473 = vrot.slane %v7215, 1
      %v7474 = vsel %vm802, %v7471, %v7473
      %v7475 = vrot.slane %v7217, 1
      %v7476 = vrot.slane %v7218, 1
      %v7477 = vsel %vm802, %v7475, %v7476
      %v7478 = vrot.slane %v7219, 1
      %v7479 = vsel %vm802, %v7476, %v7478
      %v7480 = vrot.slane %v7221, 1
      %v7481 = vrot.slane %v7222, 1
      %v7482 = vsel %vm802, %v7480, %v7481
      %v7483 = vrot.slane %v7223, 1
      %v7484 = vsel %vm802, %v7481, %v7483
      %v7485 = vrot.slane %v7225, 1
      %v7486 = vrot.slane %v7226, 1
      %v7487 = vsel %vm802, %v7485, %v7486
      %v7488 = vrot.slane %v7227, 1
      %v7489 = vsel %vm802, %v7486, %v7488
      %v7490 = vrot.slane %v7229, 1
      %v7491 = vrot.slane %v7230, 1
      %v7492 = vsel %vm802, %v7490, %v7491
      %v7493 = vrot.slane %v7231, 1
      %v7494 = vsel %vm802, %v7491, %v7493
      %v7495 = vrot.slane %v7233, 1
      %v7496 = vrot.slane %v7234, 1
      %v7497 = vsel %vm802, %v7495, %v7496
      %v7498 = vrot.slane %v7235, 1
      %v7499 = vsel %vm802, %v7496, %v7498
      %v7503 = vrot.slane %v7236, 7
      %v7504 = vrot.slane %v7237, 7
      %v7505 = vsel %vm2528, %v7503, %v7504
      %v7506 = vrot.slane %v7238, 7
      %v7507 = vsel %vm2528, %v7504, %v7506
      %v7509 = vrot.slane %v7237, 1
      %v7510 = vrot.slane %v7238, 1
      %v7511 = vsel %vm802, %v7509, %v7510
      %v7512 = vrot.slane %v7239, 1
      %v7513 = vsel %vm802, %v7510, %v7512
      %v7517 = vrot.slane %v7240, 7
      %v7518 = vrot.slane %v7241, 7
      %v7519 = vsel %vm2528, %v7517, %v7518
      %v7520 = vrot.slane %v7242, 7
      %v7521 = vsel %vm2528, %v7518, %v7520
      %v7523 = vrot.slane %v7241, 1
      %v7524 = vrot.slane %v7242, 1
      %v7525 = vsel %vm802, %v7523, %v7524
      %v7526 = vrot.slane %v7243, 1
      %v7527 = vsel %vm802, %v7524, %v7526
      %7560 = vrot.lane.b32.xlu0 %v7173, 32
      %v7561 = vpop.permute.xlu0 %7560
      %7562 = vrot.lane.b32.xlu0 %v7174, 32
      %v7563 = vpop.permute.xlu0 %7562
      %7564 = vrot.lane.b32.xlu0 %v7177, 32
      %v7565 = vpop.permute.xlu0 %7564
      %7566 = vrot.lane.b32.xlu0 %v7178, 32
      %v7567 = vpop.permute.xlu0 %7566
      %7568 = vrot.lane.b32.xlu0 %v7181, 32
      %v7569 = vpop.permute.xlu0 %7568
      %7570 = vrot.lane.b32.xlu0 %v7182, 32
      %v7571 = vpop.permute.xlu0 %7570
      %7572 = vrot.lane.b32.xlu0 %v7185, 32
      %v7573 = vpop.permute.xlu0 %7572
      %7574 = vrot.lane.b32.xlu0 %v7186, 32
      %v7575 = vpop.permute.xlu0 %7574
      %7576 = vrot.lane.b32.xlu0 %v7189, 32
      %v7577 = vpop.permute.xlu0 %7576
      %7578 = vrot.lane.b32.xlu0 %v7190, 32
      %v7579 = vpop.permute.xlu0 %7578
      %7580 = vrot.lane.b32.xlu0 %v7193, 32
      %v7581 = vpop.permute.xlu0 %7580
      %7582 = vrot.lane.b32.xlu0 %v7194, 32
      %v7583 = vpop.permute.xlu0 %7582
      %7584 = vrot.lane.b32.xlu0 %v7197, 32
      %v7585 = vpop.permute.xlu0 %7584
      %7586 = vrot.lane.b32.xlu0 %v7198, 32
      %v7587 = vpop.permute.xlu0 %7586
      %7588 = vrot.lane.b32.xlu0 %v7201, 32
      %v7589 = vpop.permute.xlu0 %7588
      %7590 = vrot.lane.b32.xlu0 %v7202, 32
      %v7591 = vpop.permute.xlu0 %7590
      %7592 = vrot.lane.b32.xlu0 %v7205, 32
      %v7593 = vpop.permute.xlu0 %7592
      %7594 = vrot.lane.b32.xlu0 %v7206, 32
      %v7595 = vpop.permute.xlu0 %7594
      %7596 = vrot.lane.b32.xlu0 %v7209, 32
      %v7597 = vpop.permute.xlu0 %7596
      %7598 = vrot.lane.b32.xlu0 %v7210, 32
      %v7599 = vpop.permute.xlu0 %7598
      %7600 = vrot.lane.b32.xlu0 %v7213, 32
      %v7601 = vpop.permute.xlu0 %7600
      %7602 = vrot.lane.b32.xlu0 %v7214, 32
      %v7603 = vpop.permute.xlu0 %7602
      %7604 = vrot.lane.b32.xlu0 %v7217, 32
      %v7605 = vpop.permute.xlu0 %7604
      %7606 = vrot.lane.b32.xlu0 %v7218, 32
      %v7607 = vpop.permute.xlu0 %7606
      %7608 = vrot.lane.b32.xlu0 %v7221, 32
      %v7609 = vpop.permute.xlu0 %7608
      %7610 = vrot.lane.b32.xlu0 %v7222, 32
      %v7611 = vpop.permute.xlu0 %7610
      %7612 = vrot.lane.b32.xlu0 %v7225, 32
      %v7613 = vpop.permute.xlu0 %7612
      %7614 = vrot.lane.b32.xlu0 %v7226, 32
      %v7615 = vpop.permute.xlu0 %7614
      %7616 = vrot.lane.b32.xlu0 %v7229, 32
      %v7617 = vpop.permute.xlu0 %7616
      %7618 = vrot.lane.b32.xlu0 %v7230, 32
      %v7619 = vpop.permute.xlu0 %7618
      %7620 = vrot.lane.b32.xlu0 %v7233, 32
      %v7621 = vpop.permute.xlu0 %7620
      %7622 = vrot.lane.b32.xlu0 %v7234, 32
      %v7623 = vpop.permute.xlu0 %7622
      %7656 = vrot.lane.b32.xlu0 %v7422, 64
      %v7657 = vpop.permute.xlu0 %7656
      %7658 = vrot.lane.b32.xlu0 %v7424, 64
      %v7659 = vpop.permute.xlu0 %7658
      %7660 = vrot.lane.b32.xlu0 %v7427, 64
      %v7661 = vpop.permute.xlu0 %7660
      %7662 = vrot.lane.b32.xlu0 %v7429, 64
      %v7663 = vpop.permute.xlu0 %7662
      %7664 = vrot.lane.b32.xlu0 %v7432, 64
      %v7665 = vpop.permute.xlu0 %7664
      %7666 = vrot.lane.b32.xlu0 %v7434, 64
      %v7667 = vpop.permute.xlu0 %7666
      %7668 = vrot.lane.b32.xlu0 %v7437, 64
      %v7669 = vpop.permute.xlu0 %7668
      %7670 = vrot.lane.b32.xlu0 %v7439, 64
      %v7671 = vpop.permute.xlu0 %7670
      %7672 = vrot.lane.b32.xlu0 %v7442, 64
      %v7673 = vpop.permute.xlu0 %7672
      %7674 = vrot.lane.b32.xlu0 %v7444, 64
      %v7675 = vpop.permute.xlu0 %7674
      %7676 = vrot.lane.b32.xlu0 %v7447, 64
      %v7677 = vpop.permute.xlu0 %7676
      %7678 = vrot.lane.b32.xlu0 %v7449, 64
      %v7679 = vpop.permute.xlu0 %7678
      %7680 = vrot.lane.b32.xlu0 %v7452, 64
      %v7681 = vpop.permute.xlu0 %7680
      %7682 = vrot.lane.b32.xlu0 %v7454, 64
      %v7683 = vpop.permute.xlu0 %7682
      %7684 = vrot.lane.b32.xlu0 %v7457, 64
      %v7685 = vpop.permute.xlu0 %7684
      %7686 = vrot.lane.b32.xlu0 %v7459, 64
      %v7687 = vpop.permute.xlu0 %7686
      %7688 = vrot.lane.b32.xlu0 %v7462, 64
      %v7689 = vpop.permute.xlu0 %7688
      %7690 = vrot.lane.b32.xlu0 %v7464, 64
      %v7691 = vpop.permute.xlu0 %7690
      %7692 = vrot.lane.b32.xlu0 %v7467, 64
      %v7693 = vpop.permute.xlu0 %7692
      %7694 = vrot.lane.b32.xlu0 %v7469, 64
      %v7695 = vpop.permute.xlu0 %7694
      %7696 = vrot.lane.b32.xlu0 %v7472, 64
      %v7697 = vpop.permute.xlu0 %7696
      %7698 = vrot.lane.b32.xlu0 %v7474, 64
      %v7699 = vpop.permute.xlu0 %7698
      %7700 = vrot.lane.b32.xlu0 %v7477, 64
      %v7701 = vpop.permute.xlu0 %7700
      %7702 = vrot.lane.b32.xlu0 %v7479, 64
      %v7703 = vpop.permute.xlu0 %7702
      %7704 = vrot.lane.b32.xlu0 %v7482, 64
      %v7705 = vpop.permute.xlu0 %7704
      %7706 = vrot.lane.b32.xlu0 %v7484, 64
      %v7707 = vpop.permute.xlu0 %7706
      %7708 = vrot.lane.b32.xlu0 %v7487, 64
      %v7709 = vpop.permute.xlu0 %7708
      %7710 = vrot.lane.b32.xlu0 %v7489, 64
      %v7711 = vpop.permute.xlu0 %7710
      %7712 = vrot.lane.b32.xlu0 %v7492, 64
      %v7713 = vpop.permute.xlu0 %7712
      %7714 = vrot.lane.b32.xlu0 %v7494, 64
      %v7715 = vpop.permute.xlu0 %7714
      %7716 = vrot.lane.b32.xlu0 %v7497, 64
      %v7717 = vpop.permute.xlu0 %7716
      %7718 = vrot.lane.b32.xlu0 %v7499, 64
      %v7719 = vpop.permute.xlu0 %7718
      %7752 = vrot.lane.b32.xlu0 %v7299, 96
      %v7753 = vpop.permute.xlu0 %7752
      %7754 = vrot.lane.b32.xlu0 %v7301, 96
      %v7755 = vpop.permute.xlu0 %7754
      %7756 = vrot.lane.b32.xlu0 %v7304, 96
      %v7757 = vpop.permute.xlu0 %7756
      %7758 = vrot.lane.b32.xlu0 %v7306, 96
      %v7759 = vpop.permute.xlu0 %7758
      %7760 = vrot.lane.b32.xlu0 %v7309, 96
      %v7761 = vpop.permute.xlu0 %7760
      %7762 = vrot.lane.b32.xlu0 %v7311, 96
      %v7763 = vpop.permute.xlu0 %7762
      %7764 = vrot.lane.b32.xlu0 %v7314, 96
      %v7765 = vpop.permute.xlu0 %7764
      %7766 = vrot.lane.b32.xlu0 %v7316, 96
      %v7767 = vpop.permute.xlu0 %7766
      %7768 = vrot.lane.b32.xlu0 %v7319, 96
      %v7769 = vpop.permute.xlu0 %7768
      %7770 = vrot.lane.b32.xlu0 %v7321, 96
      %v7771 = vpop.permute.xlu0 %7770
      %7772 = vrot.lane.b32.xlu0 %v7324, 96
      %v7773 = vpop.permute.xlu0 %7772
      %7774 = vrot.lane.b32.xlu0 %v7326, 96
      %v7775 = vpop.permute.xlu0 %7774
      %7776 = vrot.lane.b32.xlu0 %v7329, 96
      %v7777 = vpop.permute.xlu0 %7776
      %7778 = vrot.lane.b32.xlu0 %v7331, 96
      %v7779 = vpop.permute.xlu0 %7778
      %7780 = vrot.lane.b32.xlu0 %v7334, 96
      %v7781 = vpop.permute.xlu0 %7780
      %7782 = vrot.lane.b32.xlu0 %v7336, 96
      %v7783 = vpop.permute.xlu0 %7782
      %7784 = vrot.lane.b32.xlu0 %v7339, 96
      %v7785 = vpop.permute.xlu0 %7784
      %7786 = vrot.lane.b32.xlu0 %v7341, 96
      %v7787 = vpop.permute.xlu0 %7786
      %7788 = vrot.lane.b32.xlu0 %v7344, 96
      %v7789 = vpop.permute.xlu0 %7788
      %7790 = vrot.lane.b32.xlu0 %v7346, 96
      %v7791 = vpop.permute.xlu0 %7790
      %7792 = vrot.lane.b32.xlu0 %v7349, 96
      %v7793 = vpop.permute.xlu0 %7792
      %7794 = vrot.lane.b32.xlu0 %v7351, 96
      %v7795 = vpop.permute.xlu0 %7794
      %7796 = vrot.lane.b32.xlu0 %v7354, 96
      %v7797 = vpop.permute.xlu0 %7796
      %7798 = vrot.lane.b32.xlu0 %v7356, 96
      %v7799 = vpop.permute.xlu0 %7798
      %7800 = vrot.lane.b32.xlu0 %v7359, 96
      %v7801 = vpop.permute.xlu0 %7800
      %7802 = vrot.lane.b32.xlu0 %v7361, 96
      %v7803 = vpop.permute.xlu0 %7802
      %7804 = vrot.lane.b32.xlu0 %v7364, 96
      %v7805 = vpop.permute.xlu0 %7804
      %7806 = vrot.lane.b32.xlu0 %v7366, 96
      %v7807 = vpop.permute.xlu0 %7806
      %7808 = vrot.lane.b32.xlu0 %v7369, 96
      %v7809 = vpop.permute.xlu0 %7808
      %7810 = vrot.lane.b32.xlu0 %v7371, 96
      %v7811 = vpop.permute.xlu0 %7810
      %7812 = vrot.lane.b32.xlu0 %v7505, 96
      %v7813 = vpop.permute.xlu0 %7812
      %7814 = vrot.lane.b32.xlu0 %v7507, 96
      %v7815 = vpop.permute.xlu0 %7814
      %7848 = vrot.lane.b32.xlu0 %v7427, 32
      %v7849 = vpop.permute.xlu0 %7848
      %7850 = vrot.lane.b32.xlu0 %v7429, 32
      %v7851 = vpop.permute.xlu0 %7850
      %7852 = vrot.lane.b32.xlu0 %v7432, 32
      %v7853 = vpop.permute.xlu0 %7852
      %7854 = vrot.lane.b32.xlu0 %v7434, 32
      %v7855 = vpop.permute.xlu0 %7854
      %7856 = vrot.lane.b32.xlu0 %v7437, 32
      %v7857 = vpop.permute.xlu0 %7856
      %7858 = vrot.lane.b32.xlu0 %v7439, 32
      %v7859 = vpop.permute.xlu0 %7858
      %7860 = vrot.lane.b32.xlu0 %v7442, 32
      %v7861 = vpop.permute.xlu0 %7860
      %7862 = vrot.lane.b32.xlu0 %v7444, 32
      %v7863 = vpop.permute.xlu0 %7862
      %7864 = vrot.lane.b32.xlu0 %v7447, 32
      %v7865 = vpop.permute.xlu0 %7864
      %7866 = vrot.lane.b32.xlu0 %v7449, 32
      %v7867 = vpop.permute.xlu0 %7866
      %7868 = vrot.lane.b32.xlu0 %v7452, 32
      %v7869 = vpop.permute.xlu0 %7868
      %7870 = vrot.lane.b32.xlu0 %v7454, 32
      %v7871 = vpop.permute.xlu0 %7870
      %7872 = vrot.lane.b32.xlu0 %v7457, 32
      %v7873 = vpop.permute.xlu0 %7872
      %7874 = vrot.lane.b32.xlu0 %v7459, 32
      %v7875 = vpop.permute.xlu0 %7874
      %7876 = vrot.lane.b32.xlu0 %v7462, 32
      %v7877 = vpop.permute.xlu0 %7876
      %7878 = vrot.lane.b32.xlu0 %v7464, 32
      %v7879 = vpop.permute.xlu0 %7878
      %7880 = vrot.lane.b32.xlu0 %v7467, 32
      %v7881 = vpop.permute.xlu0 %7880
      %7882 = vrot.lane.b32.xlu0 %v7469, 32
      %v7883 = vpop.permute.xlu0 %7882
      %7884 = vrot.lane.b32.xlu0 %v7472, 32
      %v7885 = vpop.permute.xlu0 %7884
      %7886 = vrot.lane.b32.xlu0 %v7474, 32
      %v7887 = vpop.permute.xlu0 %7886
      %7888 = vrot.lane.b32.xlu0 %v7477, 32
      %v7889 = vpop.permute.xlu0 %7888
      %7890 = vrot.lane.b32.xlu0 %v7479, 32
      %v7891 = vpop.permute.xlu0 %7890
      %7892 = vrot.lane.b32.xlu0 %v7482, 32
      %v7893 = vpop.permute.xlu0 %7892
      %7894 = vrot.lane.b32.xlu0 %v7484, 32
      %v7895 = vpop.permute.xlu0 %7894
      %7896 = vrot.lane.b32.xlu0 %v7487, 32
      %v7897 = vpop.permute.xlu0 %7896
      %7898 = vrot.lane.b32.xlu0 %v7489, 32
      %v7899 = vpop.permute.xlu0 %7898
      %7900 = vrot.lane.b32.xlu0 %v7492, 32
      %v7901 = vpop.permute.xlu0 %7900
      %7902 = vrot.lane.b32.xlu0 %v7494, 32
      %v7903 = vpop.permute.xlu0 %7902
      %7904 = vrot.lane.b32.xlu0 %v7497, 32
      %v7905 = vpop.permute.xlu0 %7904
      %7906 = vrot.lane.b32.xlu0 %v7499, 32
      %v7907 = vpop.permute.xlu0 %7906
      %7908 = vrot.lane.b32.xlu0 %v7511, 32
      %v7909 = vpop.permute.xlu0 %7908
      %7910 = vrot.lane.b32.xlu0 %v7513, 32
      %v7911 = vpop.permute.xlu0 %7910
      %7944 = vrot.lane.b32.xlu0 %v7304, 64
      %v7945 = vpop.permute.xlu0 %7944
      %7946 = vrot.lane.b32.xlu0 %v7306, 64
      %v7947 = vpop.permute.xlu0 %7946
      %7948 = vrot.lane.b32.xlu0 %v7309, 64
      %v7949 = vpop.permute.xlu0 %7948
      %7950 = vrot.lane.b32.xlu0 %v7311, 64
      %v7951 = vpop.permute.xlu0 %7950
      %7952 = vrot.lane.b32.xlu0 %v7314, 64
      %v7953 = vpop.permute.xlu0 %7952
      %7954 = vrot.lane.b32.xlu0 %v7316, 64
      %v7955 = vpop.permute.xlu0 %7954
      %7956 = vrot.lane.b32.xlu0 %v7319, 64
      %v7957 = vpop.permute.xlu0 %7956
      %7958 = vrot.lane.b32.xlu0 %v7321, 64
      %v7959 = vpop.permute.xlu0 %7958
      %7960 = vrot.lane.b32.xlu0 %v7324, 64
      %v7961 = vpop.permute.xlu0 %7960
      %7962 = vrot.lane.b32.xlu0 %v7326, 64
      %v7963 = vpop.permute.xlu0 %7962
      %7964 = vrot.lane.b32.xlu0 %v7329, 64
      %v7965 = vpop.permute.xlu0 %7964
      %7966 = vrot.lane.b32.xlu0 %v7331, 64
      %v7967 = vpop.permute.xlu0 %7966
      %7968 = vrot.lane.b32.xlu0 %v7334, 64
      %v7969 = vpop.permute.xlu0 %7968
      %7970 = vrot.lane.b32.xlu0 %v7336, 64
      %v7971 = vpop.permute.xlu0 %7970
      %7972 = vrot.lane.b32.xlu0 %v7339, 64
      %v7973 = vpop.permute.xlu0 %7972
      %7974 = vrot.lane.b32.xlu0 %v7341, 64
      %v7975 = vpop.permute.xlu0 %7974
      %7976 = vrot.lane.b32.xlu0 %v7344, 64
      %v7977 = vpop.permute.xlu0 %7976
      %7978 = vrot.lane.b32.xlu0 %v7346, 64
      %v7979 = vpop.permute.xlu0 %7978
      %7980 = vrot.lane.b32.xlu0 %v7349, 64
      %v7981 = vpop.permute.xlu0 %7980
      %7982 = vrot.lane.b32.xlu0 %v7351, 64
      %v7983 = vpop.permute.xlu0 %7982
      %7984 = vrot.lane.b32.xlu0 %v7354, 64
      %v7985 = vpop.permute.xlu0 %7984
      %7986 = vrot.lane.b32.xlu0 %v7356, 64
      %v7987 = vpop.permute.xlu0 %7986
      %7988 = vrot.lane.b32.xlu0 %v7359, 64
      %v7989 = vpop.permute.xlu0 %7988
      %7990 = vrot.lane.b32.xlu0 %v7361, 64
      %v7991 = vpop.permute.xlu0 %7990
      %7992 = vrot.lane.b32.xlu0 %v7364, 64
      %v7993 = vpop.permute.xlu0 %7992
      %7994 = vrot.lane.b32.xlu0 %v7366, 64
      %v7995 = vpop.permute.xlu0 %7994
      %7996 = vrot.lane.b32.xlu0 %v7369, 64
      %v7997 = vpop.permute.xlu0 %7996
      %7998 = vrot.lane.b32.xlu0 %v7371, 64
      %v7999 = vpop.permute.xlu0 %7998
      %8000 = vrot.lane.b32.xlu0 %v7505, 64
      %v8001 = vpop.permute.xlu0 %8000
      %8002 = vrot.lane.b32.xlu0 %v7507, 64
      %v8003 = vpop.permute.xlu0 %8002
      %8004 = vrot.lane.b32.xlu0 %v7519, 64
      %v8005 = vpop.permute.xlu0 %8004
      %8006 = vrot.lane.b32.xlu0 %v7521, 64
      %v8007 = vpop.permute.xlu0 %8006
      %8040 = vrot.lane.b32.xlu0 %v7181, 96
      %v8041 = vpop.permute.xlu0 %8040
      %8042 = vrot.lane.b32.xlu0 %v7182, 96
      %v8043 = vpop.permute.xlu0 %8042
      %8044 = vrot.lane.b32.xlu0 %v7185, 96
      %v8045 = vpop.permute.xlu0 %8044
      %8046 = vrot.lane.b32.xlu0 %v7186, 96
      %v8047 = vpop.permute.xlu0 %8046
      %8048 = vrot.lane.b32.xlu0 %v7189, 96
      %v8049 = vpop.permute.xlu0 %8048
      %8050 = vrot.lane.b32.xlu0 %v7190, 96
      %v8051 = vpop.permute.xlu0 %8050
      %8052 = vrot.lane.b32.xlu0 %v7193, 96
      %v8053 = vpop.permute.xlu0 %8052
      %8054 = vrot.lane.b32.xlu0 %v7194, 96
      %v8055 = vpop.permute.xlu0 %8054
      %8056 = vrot.lane.b32.xlu0 %v7197, 96
      %v8057 = vpop.permute.xlu0 %8056
      %8058 = vrot.lane.b32.xlu0 %v7198, 96
      %v8059 = vpop.permute.xlu0 %8058
      %8060 = vrot.lane.b32.xlu0 %v7201, 96
      %v8061 = vpop.permute.xlu0 %8060
      %8062 = vrot.lane.b32.xlu0 %v7202, 96
      %v8063 = vpop.permute.xlu0 %8062
      %8064 = vrot.lane.b32.xlu0 %v7205, 96
      %v8065 = vpop.permute.xlu0 %8064
      %8066 = vrot.lane.b32.xlu0 %v7206, 96
      %v8067 = vpop.permute.xlu0 %8066
      %8068 = vrot.lane.b32.xlu0 %v7209, 96
      %v8069 = vpop.permute.xlu0 %8068
      %8070 = vrot.lane.b32.xlu0 %v7210, 96
      %v8071 = vpop.permute.xlu0 %8070
      %8072 = vrot.lane.b32.xlu0 %v7213, 96
      %v8073 = vpop.permute.xlu0 %8072
      %8074 = vrot.lane.b32.xlu0 %v7214, 96
      %v8075 = vpop.permute.xlu0 %8074
      %8076 = vrot.lane.b32.xlu0 %v7217, 96
      %v8077 = vpop.permute.xlu0 %8076
      %8078 = vrot.lane.b32.xlu0 %v7218, 96
      %v8079 = vpop.permute.xlu0 %8078
      %8080 = vrot.lane.b32.xlu0 %v7221, 96
      %v8081 = vpop.permute.xlu0 %8080
      %8082 = vrot.lane.b32.xlu0 %v7222, 96
      %v8083 = vpop.permute.xlu0 %8082
      %8084 = vrot.lane.b32.xlu0 %v7225, 96
      %v8085 = vpop.permute.xlu0 %8084
      %8086 = vrot.lane.b32.xlu0 %v7226, 96
      %v8087 = vpop.permute.xlu0 %8086
      %8088 = vrot.lane.b32.xlu0 %v7229, 96
      %v8089 = vpop.permute.xlu0 %8088
      %8090 = vrot.lane.b32.xlu0 %v7230, 96
      %v8091 = vpop.permute.xlu0 %8090
      %8092 = vrot.lane.b32.xlu0 %v7233, 96
      %v8093 = vpop.permute.xlu0 %8092
      %8094 = vrot.lane.b32.xlu0 %v7234, 96
      %v8095 = vpop.permute.xlu0 %8094
      %8096 = vrot.lane.b32.xlu0 %v7237, 96
      %v8097 = vpop.permute.xlu0 %8096
      %8098 = vrot.lane.b32.xlu0 %v7238, 96
      %v8099 = vpop.permute.xlu0 %8098
      %8100 = vrot.lane.b32.xlu0 %v7241, 96
      %v8101 = vpop.permute.xlu0 %8100
      %8102 = vrot.lane.b32.xlu0 %v7242, 96
      %v8103 = vpop.permute.xlu0 %8102
      %v8136 = vsel %vm1989, %v7294, %v7561
      %v8137 = vsel %vm1989, %v7296, %v7563
      %v8138 = vsel %vm1989, %v7299, %v7565
      %v8139 = vsel %vm1989, %v7301, %v7567
      %v8140 = vsel %vm1989, %v7304, %v7569
      %v8141 = vsel %vm1989, %v7306, %v7571
      %v8142 = vsel %vm1989, %v7309, %v7573
      %v8143 = vsel %vm1989, %v7311, %v7575
      %v8144 = vsel %vm1989, %v7314, %v7577
      %v8145 = vsel %vm1989, %v7316, %v7579
      %v8146 = vsel %vm1989, %v7319, %v7581
      %v8147 = vsel %vm1989, %v7321, %v7583
      %v8148 = vsel %vm1989, %v7324, %v7585
      %v8149 = vsel %vm1989, %v7326, %v7587
      %v8150 = vsel %vm1989, %v7329, %v7589
      %v8151 = vsel %vm1989, %v7331, %v7591
      %v8152 = vsel %vm1989, %v7334, %v7593
      %v8153 = vsel %vm1989, %v7336, %v7595
      %v8154 = vsel %vm1989, %v7339, %v7597
      %v8155 = vsel %vm1989, %v7341, %v7599
      %v8156 = vsel %vm1989, %v7344, %v7601
      %v8157 = vsel %vm1989, %v7346, %v7603
      %v8158 = vsel %vm1989, %v7349, %v7605
      %v8159 = vsel %vm1989, %v7351, %v7607
      %v8160 = vsel %vm1989, %v7354, %v7609
      %v8161 = vsel %vm1989, %v7356, %v7611
      %v8162 = vsel %vm1989, %v7359, %v7613
      %v8163 = vsel %vm1989, %v7361, %v7615
      %v8164 = vsel %vm1989, %v7364, %v7617
      %v8165 = vsel %vm1989, %v7366, %v7619
      %v8166 = vsel %vm1989, %v7369, %v7621
      %v8167 = vsel %vm1989, %v7371, %v7623
      %v8168 = vsel %vm3760, %v8136, %v7657
      %v8169 = vsel %vm3760, %v8137, %v7659
      %v8170 = vsel %vm3760, %v8138, %v7661
      %v8171 = vsel %vm3760, %v8139, %v7663
      %v8172 = vsel %vm3760, %v8140, %v7665
      %v8173 = vsel %vm3760, %v8141, %v7667
      %v8174 = vsel %vm3760, %v8142, %v7669
      %v8175 = vsel %vm3760, %v8143, %v7671
      %v8176 = vsel %vm3760, %v8144, %v7673
      %v8177 = vsel %vm3760, %v8145, %v7675
      %v8178 = vsel %vm3760, %v8146, %v7677
      %v8179 = vsel %vm3760, %v8147, %v7679
      %v8180 = vsel %vm3760, %v8148, %v7681
      %v8181 = vsel %vm3760, %v8149, %v7683
      %v8182 = vsel %vm3760, %v8150, %v7685
      %v8183 = vsel %vm3760, %v8151, %v7687
      %v8184 = vsel %vm3760, %v8152, %v7689
      %v8185 = vsel %vm3760, %v8153, %v7691
      %v8186 = vsel %vm3760, %v8154, %v7693
      %v8187 = vsel %vm3760, %v8155, %v7695
      %v8188 = vsel %vm3760, %v8156, %v7697
      %v8189 = vsel %vm3760, %v8157, %v7699
      %v8190 = vsel %vm3760, %v8158, %v7701
      %v8191 = vsel %vm3760, %v8159, %v7703
      %v8192 = vsel %vm3760, %v8160, %v7705
      %v8193 = vsel %vm3760, %v8161, %v7707
      %v8194 = vsel %vm3760, %v8162, %v7709
      %v8195 = vsel %vm3760, %v8163, %v7711
      %v8196 = vsel %vm3760, %v8164, %v7713
      %v8197 = vsel %vm3760, %v8165, %v7715
      %v8198 = vsel %vm3760, %v8166, %v7717
      %v8199 = vsel %vm3760, %v8167, %v7719
      %v8200 = vsel %vm5094, %v8168, %v7753
      %v8201 = vsel %vm5094, %v8169, %v7755
      %v8202 = vsel %vm5094, %v8170, %v7757
      %v8203 = vsel %vm5094, %v8171, %v7759
      %v8204 = vsel %vm5094, %v8172, %v7761
      %v8205 = vsel %vm5094, %v8173, %v7763
      %v8206 = vsel %vm5094, %v8174, %v7765
      %v8207 = vsel %vm5094, %v8175, %v7767
      %v8208 = vsel %vm5094, %v8176, %v7769
      %v8209 = vsel %vm5094, %v8177, %v7771
      %v8210 = vsel %vm5094, %v8178, %v7773
      %v8211 = vsel %vm5094, %v8179, %v7775
      %v8212 = vsel %vm5094, %v8180, %v7777
      %v8213 = vsel %vm5094, %v8181, %v7779
      %v8214 = vsel %vm5094, %v8182, %v7781
      %v8215 = vsel %vm5094, %v8183, %v7783
      %v8216 = vsel %vm5094, %v8184, %v7785
      %v8217 = vsel %vm5094, %v8185, %v7787
      %v8218 = vsel %vm5094, %v8186, %v7789
      %v8219 = vsel %vm5094, %v8187, %v7791
      %v8220 = vsel %vm5094, %v8188, %v7793
      %v8221 = vsel %vm5094, %v8189, %v7795
      %v8222 = vsel %vm5094, %v8190, %v7797
      %v8223 = vsel %vm5094, %v8191, %v7799
      %v8224 = vsel %vm5094, %v8192, %v7801
      %v8225 = vsel %vm5094, %v8193, %v7803
      %v8226 = vsel %vm5094, %v8194, %v7805
      %v8227 = vsel %vm5094, %v8195, %v7807
      %v8228 = vsel %vm5094, %v8196, %v7809
      %v8229 = vsel %vm5094, %v8197, %v7811
      %v8230 = vsel %vm5094, %v8198, %v7813
      %v8231 = vsel %vm5094, %v8199, %v7815
      %v8232 = vsel %vm1989, %v7177, %v7849
      %v8233 = vsel %vm1989, %v7178, %v7851
      %v8234 = vsel %vm1989, %v7181, %v7853
      %v8235 = vsel %vm1989, %v7182, %v7855
      %v8236 = vsel %vm1989, %v7185, %v7857
      %v8237 = vsel %vm1989, %v7186, %v7859
      %v8238 = vsel %vm1989, %v7189, %v7861
      %v8239 = vsel %vm1989, %v7190, %v7863
      %v8240 = vsel %vm1989, %v7193, %v7865
      %v8241 = vsel %vm1989, %v7194, %v7867
      %v8242 = vsel %vm1989, %v7197, %v7869
      %v8243 = vsel %vm1989, %v7198, %v7871
      %v8244 = vsel %vm1989, %v7201, %v7873
      %v8245 = vsel %vm1989, %v7202, %v7875
      %v8246 = vsel %vm1989, %v7205, %v7877
      %v8247 = vsel %vm1989, %v7206, %v7879
      %v8248 = vsel %vm1989, %v7209, %v7881
      %v8249 = vsel %vm1989, %v7210, %v7883
      %v8250 = vsel %vm1989, %v7213, %v7885
      %v8251 = vsel %vm1989, %v7214, %v7887
      %v8252 = vsel %vm1989, %v7217, %v7889
      %v8253 = vsel %vm1989, %v7218, %v7891
      %v8254 = vsel %vm1989, %v7221, %v7893
      %v8255 = vsel %vm1989, %v7222, %v7895
      %v8256 = vsel %vm1989, %v7225, %v7897
      %v8257 = vsel %vm1989, %v7226, %v7899
      %v8258 = vsel %vm1989, %v7229, %v7901
      %v8259 = vsel %vm1989, %v7230, %v7903
      %v8260 = vsel %vm1989, %v7233, %v7905
      %v8261 = vsel %vm1989, %v7234, %v7907
      %v8262 = vsel %vm1989, %v7237, %v7909
      %v8263 = vsel %vm1989, %v7238, %v7911
      %v8264 = vsel %vm3760, %v8232, %v7945
      %v8265 = vsel %vm3760, %v8233, %v7947
      %v8266 = vsel %vm3760, %v8234, %v7949
      %v8267 = vsel %vm3760, %v8235, %v7951
      %v8268 = vsel %vm3760, %v8236, %v7953
      %v8269 = vsel %vm3760, %v8237, %v7955
      %v8270 = vsel %vm3760, %v8238, %v7957
      %v8271 = vsel %vm3760, %v8239, %v7959
      %v8272 = vsel %vm3760, %v8240, %v7961
      %v8273 = vsel %vm3760, %v8241, %v7963
      %v8274 = vsel %vm3760, %v8242, %v7965
      %v8275 = vsel %vm3760, %v8243, %v7967
      %v8276 = vsel %vm3760, %v8244, %v7969
      %v8277 = vsel %vm3760, %v8245, %v7971
      %v8278 = vsel %vm3760, %v8246, %v7973
      %v8279 = vsel %vm3760, %v8247, %v7975
      %v8280 = vsel %vm3760, %v8248, %v7977
      %v8281 = vsel %vm3760, %v8249, %v7979
      %v8282 = vsel %vm3760, %v8250, %v7981
      %v8283 = vsel %vm3760, %v8251, %v7983
      %v8284 = vsel %vm3760, %v8252, %v7985
      %v8285 = vsel %vm3760, %v8253, %v7987
      %v8286 = vsel %vm3760, %v8254, %v7989
      %v8287 = vsel %vm3760, %v8255, %v7991
      %v8288 = vsel %vm3760, %v8256, %v7993
      %v8289 = vsel %vm3760, %v8257, %v7995
      %v8290 = vsel %vm3760, %v8258, %v7997
      %v8291 = vsel %vm3760, %v8259, %v7999
      %v8292 = vsel %vm3760, %v8260, %v8001
      %v8293 = vsel %vm3760, %v8261, %v8003
      %v8294 = vsel %vm3760, %v8262, %v8005
      %v8295 = vsel %vm3760, %v8263, %v8007
      %v8296 = vsel %vm5094, %v8264, %v8041
      %v8297 = vsel %vm5094, %v8265, %v8043
      %v8298 = vsel %vm5094, %v8266, %v8045
      %v8299 = vsel %vm5094, %v8267, %v8047
      %v8300 = vsel %vm5094, %v8268, %v8049
      %v8301 = vsel %vm5094, %v8269, %v8051
      %v8302 = vsel %vm5094, %v8270, %v8053
      %v8303 = vsel %vm5094, %v8271, %v8055
      %v8304 = vsel %vm5094, %v8272, %v8057
      %v8305 = vsel %vm5094, %v8273, %v8059
      %v8306 = vsel %vm5094, %v8274, %v8061
      %v8307 = vsel %vm5094, %v8275, %v8063
      %v8308 = vsel %vm5094, %v8276, %v8065
      %v8309 = vsel %vm5094, %v8277, %v8067
      %v8310 = vsel %vm5094, %v8278, %v8069
      %v8311 = vsel %vm5094, %v8279, %v8071
      %v8312 = vsel %vm5094, %v8280, %v8073
      %v8313 = vsel %vm5094, %v8281, %v8075
      %v8314 = vsel %vm5094, %v8282, %v8077
      %v8315 = vsel %vm5094, %v8283, %v8079
      %v8316 = vsel %vm5094, %v8284, %v8081
      %v8317 = vsel %vm5094, %v8285, %v8083
      %v8318 = vsel %vm5094, %v8286, %v8085
      %v8319 = vsel %vm5094, %v8287, %v8087
      %v8320 = vsel %vm5094, %v8288, %v8089
      %v8321 = vsel %vm5094, %v8289, %v8091
      %v8322 = vsel %vm5094, %v8290, %v8093
      %v8323 = vsel %vm5094, %v8291, %v8095
      %v8324 = vsel %vm5094, %v8292, %v8097
      %v8325 = vsel %vm5094, %v8293, %v8099
      %v8326 = vsel %vm5094, %v8294, %v8101
      %v8327 = vsel %vm5094, %v8295, %v8103
      %v8328 = vpack.c.bf16 %v8201, %v8200
      %v8329 = vpack.c.bf16 %v8297, %v8296
      %v8330 = vpack.c.bf16 %v7434, %v7432
      %v8331 = vpack.c.bf16 %v8203, %v8202
      %v8332 = vpack.c.bf16 %v8299, %v8298
      %v8333 = vpack.c.bf16 %v7439, %v7437
      %v8334 = vpack.c.bf16 %v8205, %v8204
      %v8335 = vpack.c.bf16 %v8301, %v8300
      %v8336 = vpack.c.bf16 %v7444, %v7442
      %v8337 = vpack.c.bf16 %v8207, %v8206
      %v8338 = vpack.c.bf16 %v8303, %v8302
      %v8339 = vpack.c.bf16 %v7449, %v7447
      %v8340 = vpack.c.bf16 %v8209, %v8208
      %v8341 = vpack.c.bf16 %v8305, %v8304
      %v8342 = vpack.c.bf16 %v7454, %v7452
      %v8343 = vpack.c.bf16 %v8211, %v8210
      %v8344 = vpack.c.bf16 %v8307, %v8306
      %v8345 = vpack.c.bf16 %v7459, %v7457
      %v8346 = vpack.c.bf16 %v8213, %v8212
      %v8347 = vpack.c.bf16 %v8309, %v8308
      %v8348 = vpack.c.bf16 %v7464, %v7462
      %v8349 = vpack.c.bf16 %v8215, %v8214
      %v8350 = vpack.c.bf16 %v8311, %v8310
      %v8351 = vpack.c.bf16 %v7469, %v7467
      %v8352 = vpack.c.bf16 %v8217, %v8216
      %v8353 = vpack.c.bf16 %v8313, %v8312
      %v8354 = vpack.c.bf16 %v7474, %v7472
      %v8355 = vpack.c.bf16 %v8219, %v8218
      %v8356 = vpack.c.bf16 %v8315, %v8314
      %v8357 = vpack.c.bf16 %v7479, %v7477
      %v8358 = vpack.c.bf16 %v8221, %v8220
      %v8359 = vpack.c.bf16 %v8317, %v8316
      %v8360 = vpack.c.bf16 %v7484, %v7482
      %v8361 = vpack.c.bf16 %v8223, %v8222
      %v8362 = vpack.c.bf16 %v8319, %v8318
      %v8363 = vpack.c.bf16 %v7489, %v7487
      %v8364 = vpack.c.bf16 %v8225, %v8224
      %v8365 = vpack.c.bf16 %v8321, %v8320
      %v8366 = vpack.c.bf16 %v7494, %v7492
      %v8367 = vpack.c.bf16 %v8227, %v8226
      %v8368 = vpack.c.bf16 %v8323, %v8322
      %v8369 = vpack.c.bf16 %v7499, %v7497
      %v8370 = vpack.c.bf16 %v8229, %v8228
      %v8371 = vpack.c.bf16 %v8325, %v8324
      %v8372 = vpack.c.bf16 %v7513, %v7511
      %v8373 = vpack.c.bf16 %v8231, %v8230
      %v8374 = vpack.c.bf16 %v8327, %v8326
      %v8375 = vpack.c.bf16 %v7527, %v7525
      %v8376 = vld [vmem:[%s6] sm:$0xf]
      %v8377 = vld [vmem:[%s6 + $0x4] sm:$0xf]
      %v8378 = vld [vmem:[%s6 + $0x8] sm:$0xf]
      %v8379 = vld [vmem:[%s6 + $0xc] sm:$0xf]
      %v8380 = vld [vmem:[%s6 + $0x10] sm:$0xf]
      %v8381 = vld [vmem:[%s6 + $0x14] sm:$0xf]
      %v8382 = vld [vmem:[%s6 + $0x18] sm:$0xf]
      %v8383 = vld [vmem:[%s6 + $0x1c] sm:$0xf]
      %v8384 = vld [vmem:[%s6 + $0x20] sm:$0xf]
      %v8385 = vld [vmem:[%s6 + $0x24] sm:$0xf]
      %v8386 = vld [vmem:[%s6 + $0x28] sm:$0xf]
      %v8387 = vld [vmem:[%s6 + $0x2c] sm:$0xf]
      %v8388 = vld [vmem:[%s6 + $0x30] sm:$0xf]
      %v8389 = vld [vmem:[%s6 + $0x34] sm:$0xf]
      %v8390 = vld [vmem:[%s6 + $0x38] sm:$0xf]
      %v8391 = vld [vmem:[%s6 + $0x3c] sm:$0xf]
      %v8392 = vld [vmem:[%s6 + $0x40] sm:$0xf]
      %v8393 = vld [vmem:[%s6 + $0x44] sm:$0xf]
      %v8394 = vld [vmem:[%s6 + $0x48] sm:$0xf]
      %v8395 = vld [vmem:[%s6 + $0x4c] sm:$0xf]
      %v8396 = vld [vmem:[%s6 + $0x50] sm:$0xf]
      %v8397 = vld [vmem:[%s6 + $0x54] sm:$0xf]
      %v8398 = vld [vmem:[%s6 + $0x58] sm:$0xf]
      %v8399 = vld [vmem:[%s6 + $0x5c] sm:$0xf]
      %v8400 = vld [vmem:[%s6 + $0x60] sm:$0xf]
      %v8401 = vld [vmem:[%s6 + $0x64] sm:$0xf]
      %v8402 = vld [vmem:[%s6 + $0x68] sm:$0xf]
      %v8403 = vld [vmem:[%s6 + $0x6c] sm:$0xf]
      %v8404 = vld [vmem:[%s6 + $0x70] sm:$0xf]
      %v8405 = vld [vmem:[%s6 + $0x74] sm:$0xf]
      %v8406 = vld [vmem:[%s6 + $0x78] sm:$0xf]
      %v8407 = vld [vmem:[%s6 + $0x7c] sm:$0xf]
      %v8408 = vld [vmem:[%s6 + $0x80] sm:$0xf]
      %v8409 = vld [vmem:[%s6 + $0x84] sm:$0xf]
      %v8410 = vld [vmem:[%s6 + $0x88] sm:$0xf]
      %v8411 = vld [vmem:[%s6 + $0x8c] sm:$0xf]
      %v8448 = vunpack.c.l.b16 %v8376
      %v8449 = vunpack.c.l.b16 %v8377
      %v8450 = vunpack.c.l.b16 %v8378
      %v8451 = vunpack.c.l.b16 %v8379
      %v8452 = vunpack.c.l.b16 %v8380
      %v8453 = vunpack.c.l.b16 %v8381
      %v8454 = vunpack.c.l.b16 %v8382
      %v8455 = vunpack.c.l.b16 %v8383
      %v8456 = vunpack.c.l.b16 %v8384
      %v8457 = vunpack.c.l.b16 %v8385
      %v8458 = vunpack.c.l.b16 %v8386
      %v8459 = vunpack.c.l.b16 %v8387
      %v8460 = vunpack.c.l.b16 %v8388
      %v8461 = vunpack.c.l.b16 %v8389
      %v8462 = vunpack.c.l.b16 %v8390
      %v8463 = vunpack.c.l.b16 %v8391
      %v8464 = vunpack.c.l.b16 %v8392
      %v8465 = vunpack.c.l.b16 %v8393
      %v8466 = vunpack.c.l.b16 %v8394
      %v8467 = vunpack.c.l.b16 %v8395
      %v8468 = vunpack.c.l.b16 %v8396
      %v8469 = vunpack.c.l.b16 %v8397
      %v8470 = vunpack.c.l.b16 %v8398
      %v8471 = vunpack.c.l.b16 %v8399
      %v8472 = vunpack.c.l.b16 %v8400
      %v8473 = vunpack.c.l.b16 %v8401
      %v8474 = vunpack.c.l.b16 %v8402
      %v8475 = vunpack.c.l.b16 %v8403
      %v8476 = vunpack.c.l.b16 %v8404
      %v8477 = vunpack.c.l.b16 %v8405
      %v8478 = vunpack.c.l.b16 %v8406
      %v8479 = vunpack.c.l.b16 %v8407
      %v8480 = vunpack.c.l.b16 %v8408
      %v8481 = vunpack.c.l.b16 %v8409
      %v8482 = vunpack.c.l.b16 %v8410
      %v8483 = vunpack.c.l.b16 %v8411
      %v8484 = vpack.c.b16 %v8449, %v8448
      %v8485 = vpack.c.b16 %v8451, %v8450
      %v8486 = vpack.c.b16 %v8453, %v8452
      %v8487 = vpack.c.b16 %v8455, %v8454
      %v8488 = vpack.c.b16 %v8457, %v8456
      %v8489 = vpack.c.b16 %v8459, %v8458
      %v8490 = vpack.c.b16 %v8461, %v8460
      %v8491 = vpack.c.b16 %v8463, %v8462
      %v8492 = vpack.c.b16 %v8465, %v8464
      %v8493 = vpack.c.b16 %v8467, %v8466
      %v8494 = vpack.c.b16 %v8469, %v8468
      %v8495 = vpack.c.b16 %v8471, %v8470
      %v8496 = vpack.c.b16 %v8473, %v8472
      %v8497 = vpack.c.b16 %v8475, %v8474
      %v8498 = vpack.c.b16 %v8477, %v8476
      %v8499 = vpack.c.b16 %v8479, %v8478
      %v8500 = vpack.c.b16 %v8481, %v8480
      %v8501 = vpack.c.b16 %v8483, %v8482
      %v8521 = vsel %vm1989, %v8330, 0
      %v8524 = vsel %vm1989, %v8333, 0
      %v8527 = vsel %vm1989, %v8336, 0
      %v8530 = vsel %vm1989, %v8339, 0
      %v8533 = vsel %vm1989, %v8342, 0
      %v8536 = vsel %vm1989, %v8345, 0
      %v8539 = vsel %vm1989, %v8348, 0
      %v8542 = vsel %vm1989, %v8351, 0
      %v8545 = vsel %vm1989, %v8354, 0
      %v8548 = vsel %vm1989, %v8357, 0
      %v8551 = vsel %vm1989, %v8360, 0
      %v8554 = vsel %vm1989, %v8363, 0
      %v8557 = vsel %vm1989, %v8366, 0
      %v8560 = vsel %vm1989, %v8369, 0
      %v8563 = vsel %vm1989, %v8372, 0
      %v8566 = vsel %vm1989, %v8375, 0
      %8568 = vmatprep.subr.bf16.mxu0 0
      %8569 = vmatpush1.bf16.msra.mxu0 %v8484
      %8570 = vmatprep.subr.bf16.mxu0 0
      %8571 = vmatpush1.bf16.msra.mxu0 %v8485
      %8572 = vmatprep.subr.bf16.mxu0 0
      %8573 = vmatpush1.bf16.msra.mxu0 %v8486
      %8574 = vmatprep.subr.bf16.mxu0 0
      %8575 = vmatpush1.bf16.msra.mxu0 %v8487
      %8576 = vmatprep.subr.bf16.mxu0 0
      %8577 = vmatpush1.bf16.msra.mxu0 %v8488
      %8578 = vmatprep.subr.bf16.mxu0 0
      %8579 = vmatpush1.bf16.msra.mxu0 %v8489
      %8580 = vmatprep.subr.bf16.mxu0 0
      %8581 = vmatpush1.bf16.msra.mxu0 %v8490
      %8582 = vmatprep.subr.bf16.mxu0 0
      %8583 = vmatpush1.bf16.msra.mxu0 %v8491
      %8584 = vmatprep.subr.bf16.mxu0 0
      %8585 = vmatpush1.bf16.msra.mxu0 %v8492
      %8586 = vmatprep.subr.bf16.mxu0 0
      %8587 = vmatpush1.bf16.msra.mxu0 %v8493
      %8588 = vmatprep.subr.bf16.mxu0 0
      %8589 = vmatpush1.bf16.msra.mxu0 %v8494
      %8590 = vmatprep.subr.bf16.mxu0 0
      %8591 = vmatpush1.bf16.msra.mxu0 %v8495
      %8592 = vmatprep.subr.bf16.mxu0 0
      %8593 = vmatpush1.bf16.msra.mxu0 %v8496
      %8594 = vmatprep.subr.bf16.mxu0 0
      %8595 = vmatpush1.bf16.msra.mxu0 %v8497
      %8596 = vmatprep.subr.bf16.mxu0 0
      %8597 = vmatpush1.bf16.msra.mxu0 %v8498
      %8598 = vmatprep.subr.bf16.mxu0 0
      %8599 = vmatpush1.bf16.msra.mxu0 %v8499
      %8600 = vmatprep.mubr.bf16.mxu0 %v8329
      %8601 = vmatmul.mubr.bf16.gmra.mrb[0].mxu0 %v8328
      %v8602 = vpop.f32.mrb[0].mxu0
      %v8603 = vadd.f32 0.0, %v8602
      %v8604 = vpop.f32.mrb[0].mxu0
      %v8605 = vpop.f32.mrb[0].mxu0
      %v8606 = vadd.f32 0.0, %v8605
      %v8607 = vpop.f32.mrb[0].mxu0
      %8608 = vmatprep.mubr.bf16.mxu0 %v8332
      %8609 = vmatmul.mubr.bf16.gmra.mrb[0].mxu0 %v8331
      %v8610 = vpop.f32.mrb[0].mxu0
      %v8611 = vadd.f32 0.0, %v8610
      %v8612 = vpop.f32.mrb[0].mxu0
      %v8613 = vpop.f32.mrb[0].mxu0
      %v8614 = vadd.f32 0.0, %v8613
      %v8615 = vpop.f32.mrb[0].mxu0
      %8616 = vmatprep.mubr.bf16.mxu0 %v8335
      %8617 = vmatmul.mubr.bf16.gmra.mrb[0].mxu0 %v8334
      %v8618 = vpop.f32.mrb[0].mxu0
      %v8619 = vadd.f32 0.0, %v8618
      %v8620 = vpop.f32.mrb[0].mxu0
      %v8621 = vpop.f32.mrb[0].mxu0
      %v8622 = vadd.f32 0.0, %v8621
      %v8623 = vpop.f32.mrb[0].mxu0
      %8624 = vmatprep.mubr.bf16.mxu0 %v8338
      %8625 = vmatmul.mubr.bf16.gmra.mrb[0].mxu0 %v8337
      %v8626 = vpop.f32.mrb[0].mxu0
      %v8627 = vadd.f32 0.0, %v8626
      %v8628 = vpop.f32.mrb[0].mxu0
      %v8629 = vpop.f32.mrb[0].mxu0
      %v8630 = vadd.f32 0.0, %v8629
      %v8631 = vpop.f32.mrb[0].mxu0
      %8632 = vmatprep.mubr.bf16.mxu0 %v8341
      %8633 = vmatmul.mubr.bf16.gmra.mrb[0].mxu0 %v8340
      %v8634 = vpop.f32.mrb[0].mxu0
      %v8635 = vadd.f32 0.0, %v8634
      %v8636 = vpop.f32.mrb[0].mxu0
      %v8637 = vpop.f32.mrb[0].mxu0
      %v8638 = vadd.f32 0.0, %v8637
      %v8639 = vpop.f32.mrb[0].mxu0
      %8640 = vmatprep.mubr.bf16.mxu0 %v8344
      %8641 = vmatmul.mubr.bf16.gmra.mrb[0].mxu0 %v8343
      %v8642 = vpop.f32.mrb[0].mxu0
      %v8643 = vadd.f32 0.0, %v8642
      %v8644 = vpop.f32.mrb[0].mxu0
      %v8645 = vpop.f32.mrb[0].mxu0
      %v8646 = vadd.f32 0.0, %v8645
      %v8647 = vpop.f32.mrb[0].mxu0
      %8648 = vmatprep.mubr.bf16.mxu0 %v8347
      %8649 = vmatmul.mubr.bf16.gmra.mrb[0].mxu0 %v8346
      %v8650 = vpop.f32.mrb[0].mxu0
      %v8651 = vadd.f32 0.0, %v8650
      %v8652 = vpop.f32.mrb[0].mxu0
      %v8653 = vpop.f32.mrb[0].mxu0
      %v8654 = vadd.f32 0.0, %v8653
      %v8655 = vpop.f32.mrb[0].mxu0
      %8656 = vmatprep.mubr.bf16.mxu0 %v8350
      %8657 = vmatmul.mubr.bf16.gmra.mrb[0].mxu0 %v8349
      %v8658 = vpop.f32.mrb[0].mxu0
      %v8659 = vadd.f32 0.0, %v8658
      %v8660 = vpop.f32.mrb[0].mxu0
      %v8661 = vpop.f32.mrb[0].mxu0
      %v8662 = vadd.f32 0.0, %v8661
      %v8663 = vpop.f32.mrb[0].mxu0
      %8664 = vmatprep.mubr.bf16.mxu0 %v8353
      %8665 = vmatmul.mubr.bf16.gmra.mrb[0].mxu0 %v8352
      %v8666 = vpop.f32.mrb[0].mxu0
      %v8667 = vadd.f32 0.0, %v8666
      %v8668 = vpop.f32.mrb[0].mxu0
      %v8669 = vpop.f32.mrb[0].mxu0
      %v8670 = vadd.f32 0.0, %v8669
      %v8671 = vpop.f32.mrb[0].mxu0
      %8672 = vmatprep.mubr.bf16.mxu0 %v8356
      %8673 = vmatmul.mubr.bf16.gmra.mrb[0].mxu0 %v8355
      %v8674 = vpop.f32.mrb[0].mxu0
      %v8675 = vadd.f32 0.0, %v8674
      %v8676 = vpop.f32.mrb[0].mxu0
      %v8677 = vpop.f32.mrb[0].mxu0
      %v8678 = vadd.f32 0.0, %v8677
      %v8679 = vpop.f32.mrb[0].mxu0
      %8680 = vmatprep.mubr.bf16.mxu0 %v8359
      %8681 = vmatmul.mubr.bf16.gmra.mrb[0].mxu0 %v8358
      %v8682 = vpop.f32.mrb[0].mxu0
      %v8683 = vadd.f32 0.0, %v8682
      %v8684 = vpop.f32.mrb[0].mxu0
      %v8685 = vpop.f32.mrb[0].mxu0
      %v8686 = vadd.f32 0.0, %v8685
      %v8687 = vpop.f32.mrb[0].mxu0
      %8688 = vmatprep.mubr.bf16.mxu0 %v8362
      %8689 = vmatmul.mubr.bf16.gmra.mrb[0].mxu0 %v8361
      %v8690 = vpop.f32.mrb[0].mxu0
      %v8691 = vadd.f32 0.0, %v8690
      %v8692 = vpop.f32.mrb[0].mxu0
      %v8693 = vpop.f32.mrb[0].mxu0
      %v8694 = vadd.f32 0.0, %v8693
      %v8695 = vpop.f32.mrb[0].mxu0
      %8696 = vmatprep.mubr.bf16.mxu0 %v8365
      %8697 = vmatmul.mubr.bf16.gmra.mrb[0].mxu0 %v8364
      %v8698 = vpop.f32.mrb[0].mxu0
      %v8699 = vadd.f32 0.0, %v8698
      %v8700 = vpop.f32.mrb[0].mxu0
      %v8701 = vpop.f32.mrb[0].mxu0
      %v8702 = vadd.f32 0.0, %v8701
      %v8703 = vpop.f32.mrb[0].mxu0
      %8704 = vmatprep.mubr.bf16.mxu0 %v8368
      %8705 = vmatmul.mubr.bf16.gmra.mrb[0].mxu0 %v8367
      %v8706 = vpop.f32.mrb[0].mxu0
      %v8707 = vadd.f32 0.0, %v8706
      %v8708 = vpop.f32.mrb[0].mxu0
      %v8709 = vpop.f32.mrb[0].mxu0
      %v8710 = vadd.f32 0.0, %v8709
      %v8711 = vpop.f32.mrb[0].mxu0
      %8712 = vmatprep.mubr.bf16.mxu0 %v8371
      %8713 = vmatmul.mubr.bf16.gmra.mrb[0].mxu0 %v8370
      %v8714 = vpop.f32.mrb[0].mxu0
      %v8715 = vadd.f32 0.0, %v8714
      %v8716 = vpop.f32.mrb[0].mxu0
      %v8717 = vpop.f32.mrb[0].mxu0
      %v8718 = vadd.f32 0.0, %v8717
      %v8719 = vpop.f32.mrb[0].mxu0
      %8720 = vmatprep.mubr.bf16.mxu0 %v8374
      %8721 = vmatmul.mubr.bf16.gmra.mrb[0].mxu0 %v8373
      %v8722 = vpop.f32.mrb[0].mxu0
      %v8723 = vadd.f32 0.0, %v8722
      %v8724 = vpop.f32.mrb[0].mxu0
      %v8725 = vpop.f32.mrb[0].mxu0
      %v8726 = vadd.f32 0.0, %v8725
      %v8727 = vpop.f32.mrb[0].mxu0
      %8728 = vdwg.mxu0
      %8729 = vmatprep.subr.bf16.mxu0 0
      %8730 = vmatpush1.bf16.msra.mxu0 %v8500
      %8731 = vmatprep.subr.bf16.mxu0 0
      %8732 = vmatpush1.bf16.msra.mxu0 %v8501
      %8733 = vmatprep.subr.bf16.mxu0 0
      %8734 = vmatpush1.bf16.msra.mxu0 0
      %8735 = vmatprep.subr.bf16.mxu0 0
      %8736 = vmatpush1.bf16.msra.mxu0 0
      %8737 = vmatprep.subr.bf16.mxu0 0
      %8738 = vmatpush1.bf16.msra.mxu0 0
      %8739 = vmatprep.subr.bf16.mxu0 0
      %8740 = vmatpush1.bf16.msra.mxu0 0
      %8741 = vmatprep.subr.bf16.mxu0 0
      %8742 = vmatpush1.bf16.msra.mxu0 0
      %8743 = vmatprep.subr.bf16.mxu0 0
      %8744 = vmatpush1.bf16.msra.mxu0 0
      %8745 = vmatprep.subr.bf16.mxu0 0
      %8746 = vmatpush1.bf16.msra.mxu0 0
      %8747 = vmatprep.subr.bf16.mxu0 0
      %8748 = vmatpush1.bf16.msra.mxu0 0
      %8749 = vmatprep.subr.bf16.mxu0 0
      %8750 = vmatpush1.bf16.msra.mxu0 0
      %8751 = vmatprep.subr.bf16.mxu0 0
      %8752 = vmatpush1.bf16.msra.mxu0 0
      %8753 = vmatprep.subr.bf16.mxu0 0
      %8754 = vmatpush1.bf16.msra.mxu0 0
      %8755 = vmatprep.subr.bf16.mxu0 0
      %8756 = vmatpush1.bf16.msra.mxu0 0
      %8757 = vmatprep.subr.bf16.mxu0 0
      %8758 = vmatpush1.bf16.msra.mxu0 0
      %8759 = vmatprep.subr.bf16.mxu0 0
      %8760 = vmatpush1.bf16.msra.mxu0 0
      %8761 = vmatprep.mubr.bf16.mxu0 0
      %8762 = vmatmul.mubr.bf16.gmra.mrb[0].mxu0 %v8521
      %v8763 = vpop.f32.mrb[0].mxu0
      %v8764 = vadd.f32 %v8603, %v8763
      %v8765 = vpop.f32.mrb[0].mxu0
      %v8766 = vpop.f32.mrb[0].mxu0
      %v8767 = vadd.f32 %v8606, %v8766
      %v8768 = vpop.f32.mrb[0].mxu0
      %8769 = vmatprep.mubr.bf16.mxu0 0
      %8770 = vmatmul.mubr.bf16.gmra.mrb[0].mxu0 %v8524
      %v8771 = vpop.f32.mrb[0].mxu0
      %v8772 = vadd.f32 %v8611, %v8771
      %v8773 = vpop.f32.mrb[0].mxu0
      %v8774 = vpop.f32.mrb[0].mxu0
      %v8775 = vadd.f32 %v8614, %v8774
      %v8776 = vpop.f32.mrb[0].mxu0
      %8777 = vmatprep.mubr.bf16.mxu0 0
      %8778 = vmatmul.mubr.bf16.gmra.mrb[0].mxu0 %v8527
      %v8779 = vpop.f32.mrb[0].mxu0
      %v8780 = vadd.f32 %v8619, %v8779
      %v8781 = vpop.f32.mrb[0].mxu0
      %v8782 = vpop.f32.mrb[0].mxu0
      %v8783 = vadd.f32 %v8622, %v8782
      %v8784 = vpop.f32.mrb[0].mxu0
      %8785 = vmatprep.mubr.bf16.mxu0 0
      %8786 = vmatmul.mubr.bf16.gmra.mrb[0].mxu0 %v8530
      %v8787 = vpop.f32.mrb[0].mxu0
      %v8788 = vadd.f32 %v8627, %v8787
      %v8789 = vpop.f32.mrb[0].mxu0
      %v8790 = vpop.f32.mrb[0].mxu0
      %v8791 = vadd.f32 %v8630, %v8790
      %v8792 = vpop.f32.mrb[0].mxu0
      %8793 = vmatprep.mubr.bf16.mxu0 0
      %8794 = vmatmul.mubr.bf16.gmra.mrb[0].mxu0 %v8533
      %v8795 = vpop.f32.mrb[0].mxu0
      %v8796 = vadd.f32 %v8635, %v8795
      %v8797 = vpop.f32.mrb[0].mxu0
      %v8798 = vpop.f32.mrb[0].mxu0
      %v8799 = vadd.f32 %v8638, %v8798
      %v8800 = vpop.f32.mrb[0].mxu0
      %8801 = vmatprep.mubr.bf16.mxu0 0
      %8802 = vmatmul.mubr.bf16.gmra.mrb[0].mxu0 %v8536
      %v8803 = vpop.f32.mrb[0].mxu0
      %v8804 = vadd.f32 %v8643, %v8803
      %v8805 = vpop.f32.mrb[0].mxu0
      %v8806 = vpop.f32.mrb[0].mxu0
      %v8807 = vadd.f32 %v8646, %v8806
      %v8808 = vpop.f32.mrb[0].mxu0
      %8809 = vmatprep.mubr.bf16.mxu0 0
      %8810 = vmatmul.mubr.bf16.gmra.mrb[0].mxu0 %v8539
      %v8811 = vpop.f32.mrb[0].mxu0
      %v8812 = vadd.f32 %v8651, %v8811
      %v8813 = vpop.f32.mrb[0].mxu0
      %v8814 = vpop.f32.mrb[0].mxu0
      %v8815 = vadd.f32 %v8654, %v8814
      %v8816 = vpop.f32.mrb[0].mxu0
      %8817 = vmatprep.mubr.bf16.mxu0 0
      %8818 = vmatmul.mubr.bf16.gmra.mrb[0].mxu0 %v8542
      %v8819 = vpop.f32.mrb[0].mxu0
      %v8820 = vadd.f32 %v8659, %v8819
      %v8821 = vpop.f32.mrb[0].mxu0
      %v8822 = vpop.f32.mrb[0].mxu0
      %v8823 = vadd.f32 %v8662, %v8822
      %v8824 = vpop.f32.mrb[0].mxu0
      %8825 = vmatprep.mubr.bf16.mxu0 0
      %8826 = vmatmul.mubr.bf16.gmra.mrb[0].mxu0 %v8545
      %v8827 = vpop.f32.mrb[0].mxu0
      %v8828 = vadd.f32 %v8667, %v8827
      %v8829 = vpop.f32.mrb[0].mxu0
      %v8830 = vpop.f32.mrb[0].mxu0
      %v8831 = vadd.f32 %v8670, %v8830
      %v8832 = vpop.f32.mrb[0].mxu0
      %8833 = vmatprep.mubr.bf16.mxu0 0
      %8834 = vmatmul.mubr.bf16.gmra.mrb[0].mxu0 %v8548
      %v8835 = vpop.f32.mrb[0].mxu0
      %v8836 = vadd.f32 %v8675, %v8835
      %v8837 = vpop.f32.mrb[0].mxu0
      %v8838 = vpop.f32.mrb[0].mxu0
      %v8839 = vadd.f32 %v8678, %v8838
      %v8840 = vpop.f32.mrb[0].mxu0
      %8841 = vmatprep.mubr.bf16.mxu0 0
      %8842 = vmatmul.mubr.bf16.gmra.mrb[0].mxu0 %v8551
      %v8843 = vpop.f32.mrb[0].mxu0
      %v8844 = vadd.f32 %v8683, %v8843
      %v8845 = vpop.f32.mrb[0].mxu0
      %v8846 = vpop.f32.mrb[0].mxu0
      %v8847 = vadd.f32 %v8686, %v8846
      %v8848 = vpop.f32.mrb[0].mxu0
      %8849 = vmatprep.mubr.bf16.mxu0 0
      %8850 = vmatmul.mubr.bf16.gmra.mrb[0].mxu0 %v8554
      %v8851 = vpop.f32.mrb[0].mxu0
      %v8852 = vadd.f32 %v8691, %v8851
      %v8853 = vpop.f32.mrb[0].mxu0
      %v8854 = vpop.f32.mrb[0].mxu0
      %v8855 = vadd.f32 %v8694, %v8854
      %v8856 = vpop.f32.mrb[0].mxu0
      %8857 = vmatprep.mubr.bf16.mxu0 0
      %8858 = vmatmul.mubr.bf16.gmra.mrb[0].mxu0 %v8557
      %v8859 = vpop.f32.mrb[0].mxu0
      %v8860 = vadd.f32 %v8699, %v8859
      %v8861 = vpop.f32.mrb[0].mxu0
      %v8862 = vpop.f32.mrb[0].mxu0
      %v8863 = vadd.f32 %v8702, %v8862
      %v8864 = vpop.f32.mrb[0].mxu0
      %8865 = vmatprep.mubr.bf16.mxu0 0
      %8866 = vmatmul.mubr.bf16.gmra.mrb[0].mxu0 %v8560
      %v8867 = vpop.f32.mrb[0].mxu0
      %v8868 = vadd.f32 %v8707, %v8867
      %v8869 = vpop.f32.mrb[0].mxu0
      %v8870 = vpop.f32.mrb[0].mxu0
      %v8871 = vadd.f32 %v8710, %v8870
      %v8872 = vpop.f32.mrb[0].mxu0
      %8873 = vmatprep.mubr.bf16.mxu0 0
      %8874 = vmatmul.mubr.bf16.gmra.mrb[0].mxu0 %v8563
      %v8875 = vpop.f32.mrb[0].mxu0
      %v8876 = vadd.f32 %v8715, %v8875
      %v8877 = vpop.f32.mrb[0].mxu0
      %v8878 = vpop.f32.mrb[0].mxu0
      %v8879 = vadd.f32 %v8718, %v8878
      %v8880 = vpop.f32.mrb[0].mxu0
      %8881 = vmatprep.mubr.bf16.mxu0 0
      %8882 = vmatmul.mubr.bf16.gmra.mrb[0].mxu0 %v8566
      %v8883 = vpop.f32.mrb[0].mxu0
      %v8884 = vadd.f32 %v8723, %v8883
      %v8885 = vpop.f32.mrb[0].mxu0
      %v8886 = vpop.f32.mrb[0].mxu0
      %v8887 = vadd.f32 %v8726, %v8886
      %v8888 = vpop.f32.mrb[0].mxu0
      %8889 = vdwg.mxu0
      %8922 = vrot.lane.b32.xlu0 %v8764, 64
      %v8923 = vpop.permute.xlu0 %8922
      %8924 = vrot.lane.b32.xlu0 %v8767, 64
      %v8925 = vpop.permute.xlu0 %8924
      %8926 = vrot.lane.b32.xlu0 %v8772, 64
      %v8927 = vpop.permute.xlu0 %8926
      %8928 = vrot.lane.b32.xlu0 %v8775, 64
      %v8929 = vpop.permute.xlu0 %8928
      %8930 = vrot.lane.b32.xlu0 %v8780, 64
      %v8931 = vpop.permute.xlu0 %8930
      %8932 = vrot.lane.b32.xlu0 %v8783, 64
      %v8933 = vpop.permute.xlu0 %8932
      %8934 = vrot.lane.b32.xlu0 %v8788, 64
      %v8935 = vpop.permute.xlu0 %8934
      %8936 = vrot.lane.b32.xlu0 %v8791, 64
      %v8937 = vpop.permute.xlu0 %8936
      %8938 = vrot.lane.b32.xlu0 %v8796, 64
      %v8939 = vpop.permute.xlu0 %8938
      %8940 = vrot.lane.b32.xlu0 %v8799, 64
      %v8941 = vpop.permute.xlu0 %8940
      %8942 = vrot.lane.b32.xlu0 %v8804, 64
      %v8943 = vpop.permute.xlu0 %8942
      %8944 = vrot.lane.b32.xlu0 %v8807, 64
      %v8945 = vpop.permute.xlu0 %8944
      %8946 = vrot.lane.b32.xlu0 %v8812, 64
      %v8947 = vpop.permute.xlu0 %8946
      %8948 = vrot.lane.b32.xlu0 %v8815, 64
      %v8949 = vpop.permute.xlu0 %8948
      %8950 = vrot.lane.b32.xlu0 %v8820, 64
      %v8951 = vpop.permute.xlu0 %8950
      %8952 = vrot.lane.b32.xlu0 %v8823, 64
      %v8953 = vpop.permute.xlu0 %8952
      %8954 = vrot.lane.b32.xlu0 %v8828, 64
      %v8955 = vpop.permute.xlu0 %8954
      %8956 = vrot.lane.b32.xlu0 %v8831, 64
      %v8957 = vpop.permute.xlu0 %8956
      %8958 = vrot.lane.b32.xlu0 %v8836, 64
      %v8959 = vpop.permute.xlu0 %8958
      %8960 = vrot.lane.b32.xlu0 %v8839, 64
      %v8961 = vpop.permute.xlu0 %8960
      %8962 = vrot.lane.b32.xlu0 %v8844, 64
      %v8963 = vpop.permute.xlu0 %8962
      %8964 = vrot.lane.b32.xlu0 %v8847, 64
      %v8965 = vpop.permute.xlu0 %8964
      %8966 = vrot.lane.b32.xlu0 %v8852, 64
      %v8967 = vpop.permute.xlu0 %8966
      %8968 = vrot.lane.b32.xlu0 %v8855, 64
      %v8969 = vpop.permute.xlu0 %8968
      %8970 = vrot.lane.b32.xlu0 %v8860, 64
      %v8971 = vpop.permute.xlu0 %8970
      %8972 = vrot.lane.b32.xlu0 %v8863, 64
      %v8973 = vpop.permute.xlu0 %8972
      %8974 = vrot.lane.b32.xlu0 %v8868, 64
      %v8975 = vpop.permute.xlu0 %8974
      %8976 = vrot.lane.b32.xlu0 %v8871, 64
      %v8977 = vpop.permute.xlu0 %8976
      %8978 = vrot.lane.b32.xlu0 %v8876, 64
      %v8979 = vpop.permute.xlu0 %8978
      %8980 = vrot.lane.b32.xlu0 %v8879, 64
      %v8981 = vpop.permute.xlu0 %8980
      %8982 = vrot.lane.b32.xlu0 %v8884, 64
      %v8983 = vpop.permute.xlu0 %8982
      %8984 = vrot.lane.b32.xlu0 %v8887, 64
      %v8985 = vpop.permute.xlu0 %8984
      %v9018 = vadd.f32 %v3940, %v8923
      %v9019 = vadd.f32 %v3943, %v8925
      %v9020 = vadd.f32 %v3948, %v8927
      %v9021 = vadd.f32 %v3951, %v8929
      %v9022 = vadd.f32 %v3956, %v8931
      %v9023 = vadd.f32 %v3959, %v8933
      %v9024 = vadd.f32 %v3964, %v8935
      %v9025 = vadd.f32 %v3967, %v8937
      %v9026 = vadd.f32 %v3972, %v8939
      %v9027 = vadd.f32 %v3975, %v8941
      %v9028 = vadd.f32 %v3980, %v8943
      %v9029 = vadd.f32 %v3983, %v8945
      %v9030 = vadd.f32 %v3988, %v8947
      %v9031 = vadd.f32 %v3991, %v8949
      %v9032 = vadd.f32 %v3996, %v8951
      %v9033 = vadd.f32 %v3999, %v8953
      %v9034 = vadd.f32 %v4004, %v8955
      %v9035 = vadd.f32 %v4007, %v8957
      %v9036 = vadd.f32 %v4012, %v8959
      %v9037 = vadd.f32 %v4015, %v8961
      %v9038 = vadd.f32 %v4020, %v8963
      %v9039 = vadd.f32 %v4023, %v8965
      %v9040 = vadd.f32 %v4028, %v8967
      %v9041 = vadd.f32 %v4031, %v8969
      %v9042 = vadd.f32 %v4036, %v8971
      %v9043 = vadd.f32 %v4039, %v8973
      %v9044 = vadd.f32 %v4044, %v8975
      %v9045 = vadd.f32 %v4047, %v8977
      %v9046 = vadd.f32 %v4052, %v8979
      %v9047 = vadd.f32 %v4055, %v8981
      %v9048 = vadd.f32 %v4060, %v8983
      %v9049 = vadd.f32 %v4063, %v8985
      %v9050 = vld [vmem:[%s8] sm:$0xff]
      %v9051 = vld [vmem:[%s8 + $0x8] sm:$0xff]
      %v9052 = vld [vmem:[%s8 + $0x10] sm:$0xff]
      %v9053 = vld [vmem:[%s8 + $0x18] sm:$0xff]
      %9086 = vrot.lane.b32.xlu0 %v9018, 64
      %v9087 = vpop.permute.xlu0 %9086
      %9088 = vrot.lane.b32.xlu0 %v9019, 64
      %v9089 = vpop.permute.xlu0 %9088
      %9090 = vrot.lane.b32.xlu0 %v9020, 64
      %v9091 = vpop.permute.xlu0 %9090
      %9092 = vrot.lane.b32.xlu0 %v9021, 64
      %v9093 = vpop.permute.xlu0 %9092
      %9094 = vrot.lane.b32.xlu0 %v9022, 64
      %v9095 = vpop.permute.xlu0 %9094
      %9096 = vrot.lane.b32.xlu0 %v9023, 64
      %v9097 = vpop.permute.xlu0 %9096
      %9098 = vrot.lane.b32.xlu0 %v9024, 64
      %v9099 = vpop.permute.xlu0 %9098
      %9100 = vrot.lane.b32.xlu0 %v9025, 64
      %v9101 = vpop.permute.xlu0 %9100
      %9102 = vrot.lane.b32.xlu0 %v9026, 64
      %v9103 = vpop.permute.xlu0 %9102
      %9104 = vrot.lane.b32.xlu0 %v9027, 64
      %v9105 = vpop.permute.xlu0 %9104
      %9106 = vrot.lane.b32.xlu0 %v9028, 64
      %v9107 = vpop.permute.xlu0 %9106
      %9108 = vrot.lane.b32.xlu0 %v9029, 64
      %v9109 = vpop.permute.xlu0 %9108
      %9110 = vrot.lane.b32.xlu0 %v9030, 64
      %v9111 = vpop.permute.xlu0 %9110
      %9112 = vrot.lane.b32.xlu0 %v9031, 64
      %v9113 = vpop.permute.xlu0 %9112
      %9114 = vrot.lane.b32.xlu0 %v9032, 64
      %v9115 = vpop.permute.xlu0 %9114
      %9116 = vrot.lane.b32.xlu0 %v9033, 64
      %v9117 = vpop.permute.xlu0 %9116
      %9118 = vrot.lane.b32.xlu0 %v9034, 64
      %v9119 = vpop.permute.xlu0 %9118
      %9120 = vrot.lane.b32.xlu0 %v9035, 64
      %v9121 = vpop.permute.xlu0 %9120
      %9122 = vrot.lane.b32.xlu0 %v9036, 64
      %v9123 = vpop.permute.xlu0 %9122
      %9124 = vrot.lane.b32.xlu0 %v9037, 64
      %v9125 = vpop.permute.xlu0 %9124
      %9126 = vrot.lane.b32.xlu0 %v9038, 64
      %v9127 = vpop.permute.xlu0 %9126
      %9128 = vrot.lane.b32.xlu0 %v9039, 64
      %v9129 = vpop.permute.xlu0 %9128
      %9130 = vrot.lane.b32.xlu0 %v9040, 64
      %v9131 = vpop.permute.xlu0 %9130
      %9132 = vrot.lane.b32.xlu0 %v9041, 64
      %v9133 = vpop.permute.xlu0 %9132
      %9134 = vrot.lane.b32.xlu0 %v9042, 64
      %v9135 = vpop.permute.xlu0 %9134
      %9136 = vrot.lane.b32.xlu0 %v9043, 64
      %v9137 = vpop.permute.xlu0 %9136
      %9138 = vrot.lane.b32.xlu0 %v9044, 64
      %v9139 = vpop.permute.xlu0 %9138
      %9140 = vrot.lane.b32.xlu0 %v9045, 64
      %v9141 = vpop.permute.xlu0 %9140
      %9142 = vrot.lane.b32.xlu0 %v9046, 64
      %v9143 = vpop.permute.xlu0 %9142
      %9144 = vrot.lane.b32.xlu0 %v9047, 64
      %v9145 = vpop.permute.xlu0 %9144
      %9146 = vrot.lane.b32.xlu0 %v9048, 64
      %v9147 = vpop.permute.xlu0 %9146
      %9148 = vrot.lane.b32.xlu0 %v9049, 64
      %v9149 = vpop.permute.xlu0 %9148
      %v9150 = vsel %vm1989, %v9087, 0
      %v9152 = vsel %vm1989, %v9089, 0
      %v9154 = vsel %vm1989, %v9091, 0
      %v9156 = vsel %vm1989, %v9093, 0
      %v9158 = vsel %vm1989, %v9095, 0
      %v9160 = vsel %vm1989, %v9097, 0
      %v9162 = vsel %vm1989, %v9099, 0
      %v9164 = vsel %vm1989, %v9101, 0
      %v9166 = vsel %vm1989, %v9103, 0
      %v9168 = vsel %vm1989, %v9105, 0
      %v9170 = vsel %vm1989, %v9107, 0
      %v9172 = vsel %vm1989, %v9109, 0
      %v9174 = vsel %vm1989, %v9111, 0
      %v9176 = vsel %vm1989, %v9113, 0
      %v9178 = vsel %vm1989, %v9115, 0
      %v9180 = vsel %vm1989, %v9117, 0
      %v9182 = vsel %vm1989, %v9119, 0
      %v9184 = vsel %vm1989, %v9121, 0
      %v9186 = vsel %vm1989, %v9123, 0
      %v9188 = vsel %vm1989, %v9125, 0
      %v9190 = vsel %vm1989, %v9127, 0
      %v9192 = vsel %vm1989, %v9129, 0
      %v9194 = vsel %vm1989, %v9131, 0
      %v9196 = vsel %vm1989, %v9133, 0
      %v9198 = vsel %vm1989, %v9135, 0
      %v9200 = vsel %vm1989, %v9137, 0
      %v9202 = vsel %vm1989, %v9139, 0
      %v9204 = vsel %vm1989, %v9141, 0
      %v9206 = vsel %vm1989, %v9143, 0
      %v9208 = vsel %vm1989, %v9145, 0
      %v9210 = vsel %vm1989, %v9147, 0
      %v9212 = vsel %vm1989, %v9149, 0
      %9214 = vmatprep.subr.mxu0 0.0
      %9215 = vmatpush1.msra.mxu0 %v9050
      %9216 = vmatprep.subr.mxu0 0.0
      %9217 = vmatpush1.msra.mxu0 %v9051
      %9218 = vmatprep.subr.mxu0 0.0
      %9219 = vmatpush1.msra.mxu0 %v9052
      %9220 = vmatprep.subr.mxu0 0.0
      %9221 = vmatpush1.msra.mxu0 %v9053
      %9222 = vmatprep.subr.mxu0 0.0
      %9223 = vmatpush1.msra.mxu0 0.0
      %9224 = vmatprep.subr.mxu0 0.0
      %9225 = vmatpush1.msra.mxu0 0.0
      %9226 = vmatprep.subr.mxu0 0.0
      %9227 = vmatpush1.msra.mxu0 0.0
      %9228 = vmatprep.subr.mxu0 0.0
      %9229 = vmatpush1.msra.mxu0 0.0
      %9230 = vmatprep.subr.mxu0 0.0
      %9231 = vmatpush1.msra.mxu0 0.0
      %9232 = vmatprep.subr.mxu0 0.0
      %9233 = vmatpush1.msra.mxu0 0.0
      %9234 = vmatprep.subr.mxu0 0.0
      %9235 = vmatpush1.msra.mxu0 0.0
      %9236 = vmatprep.subr.mxu0 0.0
      %9237 = vmatpush1.msra.mxu0 0.0
      %9238 = vmatprep.subr.mxu0 0.0
      %9239 = vmatpush1.msra.mxu0 0.0
      %9240 = vmatprep.subr.mxu0 0.0
      %9241 = vmatpush1.msra.mxu0 0.0
      %9242 = vmatprep.subr.mxu0 0.0
      %9243 = vmatpush1.msra.mxu0 0.0
      %9244 = vmatprep.subr.mxu0 0.0
      %9245 = vmatpush1.msra.mxu0 0.0
      %9246 = vmatprep.subr.mxu0 0.0
      %9247 = vmatpush1.msra.mxu0 0.0
      %9248 = vmatprep.subr.mxu0 0.0
      %9249 = vmatpush1.msra.mxu0 0.0
      %9250 = vmatprep.subr.mxu0 0.0
      %9251 = vmatpush1.msra.mxu0 0.0
      %9252 = vmatprep.subr.mxu0 0.0
      %9253 = vmatpush1.msra.mxu0 0.0
      %9254 = vmatprep.subr.mxu0 0.0
      %9255 = vmatpush1.msra.mxu0 0.0
      %9256 = vmatprep.subr.mxu0 0.0
      %9257 = vmatpush1.msra.mxu0 0.0
      %9258 = vmatprep.subr.mxu0 0.0
      %9259 = vmatpush1.msra.mxu0 0.0
      %9260 = vmatprep.subr.mxu0 0.0
      %9261 = vmatpush1.msra.mxu0 0.0
      %9262 = vmatprep.subr.mxu0 0.0
      %9263 = vmatpush1.msra.mxu0 0.0
      %9264 = vmatprep.subr.mxu0 0.0
      %9265 = vmatpush1.msra.mxu0 0.0
      %9266 = vmatprep.subr.mxu0 0.0
      %9267 = vmatpush1.msra.mxu0 0.0
      %9268 = vmatprep.subr.mxu0 0.0
      %9269 = vmatpush1.msra.mxu0 0.0
      %9270 = vmatprep.subr.mxu0 0.0
      %9271 = vmatpush1.msra.mxu0 0.0
      %9272 = vmatprep.subr.mxu0 0.0
      %9273 = vmatpush1.msra.mxu0 0.0
      %9274 = vmatprep.subr.mxu0 0.0
      %9275 = vmatpush1.msra.mxu0 0.0
      %9276 = vmatprep.subr.mxu0 0.0
      %9277 = vmatpush1.msra.mxu0 0.0
      %9278 = vmatprep.mubr.f32.mxu0 0.0
      %9279 = vmatmul.mubr.f32.gmra.mrb[0].mxu0 %v9150
      %v9280 = vpop.f32.mrb[0].mxu0
      %v9281 = vadd.f32 0.0, %v9280
      %v9282 = vpop.f32.mrb[0].mxu0
      %9283 = vmatprep.mubr.f32.mxu0 0.0
      %9284 = vmatmul.mubr.f32.gmra.mrb[0].mxu0 %v9152
      %v9285 = vpop.f32.mrb[0].mxu0
      %v9286 = vadd.f32 0.0, %v9285
      %v9287 = vpop.f32.mrb[0].mxu0
      %9288 = vmatprep.mubr.f32.mxu0 0.0
      %9289 = vmatmul.mubr.f32.gmra.mrb[0].mxu0 %v9154
      %v9290 = vpop.f32.mrb[0].mxu0
      %v9291 = vadd.f32 0.0, %v9290
      %v9292 = vpop.f32.mrb[0].mxu0
      %9293 = vmatprep.mubr.f32.mxu0 0.0
      %9294 = vmatmul.mubr.f32.gmra.mrb[0].mxu0 %v9156
      %v9295 = vpop.f32.mrb[0].mxu0
      %v9296 = vadd.f32 0.0, %v9295
      %v9297 = vpop.f32.mrb[0].mxu0
      %9298 = vmatprep.mubr.f32.mxu0 0.0
      %9299 = vmatmul.mubr.f32.gmra.mrb[0].mxu0 %v9158
      %v9300 = vpop.f32.mrb[0].mxu0
      %v9301 = vadd.f32 0.0, %v9300
      %v9302 = vpop.f32.mrb[0].mxu0
      %9303 = vmatprep.mubr.f32.mxu0 0.0
      %9304 = vmatmul.mubr.f32.gmra.mrb[0].mxu0 %v9160
      %v9305 = vpop.f32.mrb[0].mxu0
      %v9306 = vadd.f32 0.0, %v9305
      %v9307 = vpop.f32.mrb[0].mxu0
      %9308 = vmatprep.mubr.f32.mxu0 0.0
      %9309 = vmatmul.mubr.f32.gmra.mrb[0].mxu0 %v9162
      %v9310 = vpop.f32.mrb[0].mxu0
      %v9311 = vadd.f32 0.0, %v9310
      %v9312 = vpop.f32.mrb[0].mxu0
      %9313 = vmatprep.mubr.f32.mxu0 0.0
      %9314 = vmatmul.mubr.f32.gmra.mrb[0].mxu0 %v9164
      %v9315 = vpop.f32.mrb[0].mxu0
      %v9316 = vadd.f32 0.0, %v9315
      %v9317 = vpop.f32.mrb[0].mxu0
      %9318 = vmatprep.mubr.f32.mxu0 0.0
      %9319 = vmatmul.mubr.f32.gmra.mrb[0].mxu0 %v9166
      %v9320 = vpop.f32.mrb[0].mxu0
      %v9321 = vadd.f32 0.0, %v9320
      %v9322 = vpop.f32.mrb[0].mxu0
      %9323 = vmatprep.mubr.f32.mxu0 0.0
      %9324 = vmatmul.mubr.f32.gmra.mrb[0].mxu0 %v9168
      %v9325 = vpop.f32.mrb[0].mxu0
      %v9326 = vadd.f32 0.0, %v9325
      %v9327 = vpop.f32.mrb[0].mxu0
      %9328 = vmatprep.mubr.f32.mxu0 0.0
      %9329 = vmatmul.mubr.f32.gmra.mrb[0].mxu0 %v9170
      %v9330 = vpop.f32.mrb[0].mxu0
      %v9331 = vadd.f32 0.0, %v9330
      %v9332 = vpop.f32.mrb[0].mxu0
      %9333 = vmatprep.mubr.f32.mxu0 0.0
      %9334 = vmatmul.mubr.f32.gmra.mrb[0].mxu0 %v9172
      %v9335 = vpop.f32.mrb[0].mxu0
      %v9336 = vadd.f32 0.0, %v9335
      %v9337 = vpop.f32.mrb[0].mxu0
      %9338 = vmatprep.mubr.f32.mxu0 0.0
      %9339 = vmatmul.mubr.f32.gmra.mrb[0].mxu0 %v9174
      %v9340 = vpop.f32.mrb[0].mxu0
      %v9341 = vadd.f32 0.0, %v9340
      %v9342 = vpop.f32.mrb[0].mxu0
      %9343 = vmatprep.mubr.f32.mxu0 0.0
      %9344 = vmatmul.mubr.f32.gmra.mrb[0].mxu0 %v9176
      %v9345 = vpop.f32.mrb[0].mxu0
      %v9346 = vadd.f32 0.0, %v9345
      %v9347 = vpop.f32.mrb[0].mxu0
      %9348 = vmatprep.mubr.f32.mxu0 0.0
      %9349 = vmatmul.mubr.f32.gmra.mrb[0].mxu0 %v9178
      %v9350 = vpop.f32.mrb[0].mxu0
      %v9351 = vadd.f32 0.0, %v9350
      %v9352 = vpop.f32.mrb[0].mxu0
      %9353 = vmatprep.mubr.f32.mxu0 0.0
      %9354 = vmatmul.mubr.f32.gmra.mrb[0].mxu0 %v9180
      %v9355 = vpop.f32.mrb[0].mxu0
      %v9356 = vadd.f32 0.0, %v9355
      %v9357 = vpop.f32.mrb[0].mxu0
      %9358 = vmatprep.mubr.f32.mxu0 0.0
      %9359 = vmatmul.mubr.f32.gmra.mrb[0].mxu0 %v9182
      %v9360 = vpop.f32.mrb[0].mxu0
      %v9361 = vadd.f32 0.0, %v9360
      %v9362 = vpop.f32.mrb[0].mxu0
      %9363 = vmatprep.mubr.f32.mxu0 0.0
      %9364 = vmatmul.mubr.f32.gmra.mrb[0].mxu0 %v9184
      %v9365 = vpop.f32.mrb[0].mxu0
      %v9366 = vadd.f32 0.0, %v9365
      %v9367 = vpop.f32.mrb[0].mxu0
      %9368 = vmatprep.mubr.f32.mxu0 0.0
      %9369 = vmatmul.mubr.f32.gmra.mrb[0].mxu0 %v9186
      %v9370 = vpop.f32.mrb[0].mxu0
      %v9371 = vadd.f32 0.0, %v9370
      %v9372 = vpop.f32.mrb[0].mxu0
      %9373 = vmatprep.mubr.f32.mxu0 0.0
      %9374 = vmatmul.mubr.f32.gmra.mrb[0].mxu0 %v9188
      %v9375 = vpop.f32.mrb[0].mxu0
      %v9376 = vadd.f32 0.0, %v9375
      %v9377 = vpop.f32.mrb[0].mxu0
      %9378 = vmatprep.mubr.f32.mxu0 0.0
      %9379 = vmatmul.mubr.f32.gmra.mrb[0].mxu0 %v9190
      %v9380 = vpop.f32.mrb[0].mxu0
      %v9381 = vadd.f32 0.0, %v9380
      %v9382 = vpop.f32.mrb[0].mxu0
      %9383 = vmatprep.mubr.f32.mxu0 0.0
      %9384 = vmatmul.mubr.f32.gmra.mrb[0].mxu0 %v9192
      %v9385 = vpop.f32.mrb[0].mxu0
      %v9386 = vadd.f32 0.0, %v9385
      %v9387 = vpop.f32.mrb[0].mxu0
      %9388 = vmatprep.mubr.f32.mxu0 0.0
      %9389 = vmatmul.mubr.f32.gmra.mrb[0].mxu0 %v9194
      %v9390 = vpop.f32.mrb[0].mxu0
      %v9391 = vadd.f32 0.0, %v9390
      %v9392 = vpop.f32.mrb[0].mxu0
      %9393 = vmatprep.mubr.f32.mxu0 0.0
      %9394 = vmatmul.mubr.f32.gmra.mrb[0].mxu0 %v9196
      %v9395 = vpop.f32.mrb[0].mxu0
      %v9396 = vadd.f32 0.0, %v9395
      %v9397 = vpop.f32.mrb[0].mxu0
      %9398 = vmatprep.mubr.f32.mxu0 0.0
      %9399 = vmatmul.mubr.f32.gmra.mrb[0].mxu0 %v9198
      %v9400 = vpop.f32.mrb[0].mxu0
      %v9401 = vadd.f32 0.0, %v9400
      %v9402 = vpop.f32.mrb[0].mxu0
      %9403 = vmatprep.mubr.f32.mxu0 0.0
      %9404 = vmatmul.mubr.f32.gmra.mrb[0].mxu0 %v9200
      %v9405 = vpop.f32.mrb[0].mxu0
      %v9406 = vadd.f32 0.0, %v9405
      %v9407 = vpop.f32.mrb[0].mxu0
      %9408 = vmatprep.mubr.f32.mxu0 0.0
      %9409 = vmatmul.mubr.f32.gmra.mrb[0].mxu0 %v9202
      %v9410 = vpop.f32.mrb[0].mxu0
      %v9411 = vadd.f32 0.0, %v9410
      %v9412 = vpop.f32.mrb[0].mxu0
      %9413 = vmatprep.mubr.f32.mxu0 0.0
      %9414 = vmatmul.mubr.f32.gmra.mrb[0].mxu0 %v9204
      %v9415 = vpop.f32.mrb[0].mxu0
      %v9416 = vadd.f32 0.0, %v9415
      %v9417 = vpop.f32.mrb[0].mxu0
      %9418 = vmatprep.mubr.f32.mxu0 0.0
      %9419 = vmatmul.mubr.f32.gmra.mrb[0].mxu0 %v9206
      %v9420 = vpop.f32.mrb[0].mxu0
      %v9421 = vadd.f32 0.0, %v9420
      %v9422 = vpop.f32.mrb[0].mxu0
      %9423 = vmatprep.mubr.f32.mxu0 0.0
      %9424 = vmatmul.mubr.f32.gmra.mrb[0].mxu0 %v9208
      %v9425 = vpop.f32.mrb[0].mxu0
      %v9426 = vadd.f32 0.0, %v9425
      %v9427 = vpop.f32.mrb[0].mxu0
      %9428 = vmatprep.mubr.f32.mxu0 0.0
      %9429 = vmatmul.mubr.f32.gmra.mrb[0].mxu0 %v9210
      %v9430 = vpop.f32.mrb[0].mxu0
      %v9431 = vadd.f32 0.0, %v9430
      %v9432 = vpop.f32.mrb[0].mxu0
      %9433 = vmatprep.mubr.f32.mxu0 0.0
      %9434 = vmatmul.mubr.f32.gmra.mrb[0].mxu0 %v9212
      %v9435 = vpop.f32.mrb[0].mxu0
      %v9436 = vadd.f32 0.0, %v9435
      %v9437 = vpop.f32.mrb[0].mxu0
      %9438 = vdwg.mxu0
      %v9439 = vsel %vm1989, %v9281, 0.0
      %v9440 = vsel %vm1989, %v9286, 0.0
      %v9441 = vadd.f32 %v9439, %v9440
      %v9442 = vsel %vm1989, %v9291, 0.0
      %v9443 = vadd.f32 %v9441, %v9442
      %v9444 = vsel %vm1989, %v9296, 0.0
      %v9445 = vadd.f32 %v9443, %v9444
      %v9446 = vsel %vm1989, %v9301, 0.0
      %v9447 = vadd.f32 %v9445, %v9446
      %v9448 = vsel %vm1989, %v9306, 0.0
      %v9449 = vadd.f32 %v9447, %v9448
      %v9450 = vsel %vm1989, %v9311, 0.0
      %v9451 = vadd.f32 %v9449, %v9450
      %v9452 = vsel %vm1989, %v9316, 0.0
      %v9453 = vadd.f32 %v9451, %v9452
      %v9454 = vsel %vm1989, %v9321, 0.0
      %v9455 = vadd.f32 %v9453, %v9454
      %v9456 = vsel %vm1989, %v9326, 0.0
      %v9457 = vadd.f32 %v9455, %v9456
      %v9458 = vsel %vm1989, %v9331, 0.0
      %v9459 = vadd.f32 %v9457, %v9458
      %v9460 = vsel %vm1989, %v9336, 0.0
      %v9461 = vadd.f32 %v9459, %v9460
      %v9462 = vsel %vm1989, %v9341, 0.0
      %v9463 = vadd.f32 %v9461, %v9462
      %v9464 = vsel %vm1989, %v9346, 0.0
      %v9465 = vadd.f32 %v9463, %v9464
      %v9466 = vsel %vm1989, %v9351, 0.0
      %v9467 = vadd.f32 %v9465, %v9466
      %v9468 = vsel %vm1989, %v9356, 0.0
      %v9469 = vadd.f32 %v9467, %v9468
      %v9470 = vsel %vm1989, %v9361, 0.0
      %v9471 = vadd.f32 %v9469, %v9470
      %v9472 = vsel %vm1989, %v9366, 0.0
      %v9473 = vadd.f32 %v9471, %v9472
      %v9474 = vsel %vm1989, %v9371, 0.0
      %v9475 = vadd.f32 %v9473, %v9474
      %v9476 = vsel %vm1989, %v9376, 0.0
      %v9477 = vadd.f32 %v9475, %v9476
      %v9478 = vsel %vm1989, %v9381, 0.0
      %v9479 = vadd.f32 %v9477, %v9478
      %v9480 = vsel %vm1989, %v9386, 0.0
      %v9481 = vadd.f32 %v9479, %v9480
      %v9482 = vsel %vm1989, %v9391, 0.0
      %v9483 = vadd.f32 %v9481, %v9482
      %v9484 = vsel %vm1989, %v9396, 0.0
      %v9485 = vadd.f32 %v9483, %v9484
      %v9486 = vsel %vm1989, %v9401, 0.0
      %v9487 = vadd.f32 %v9485, %v9486
      %v9488 = vsel %vm1989, %v9406, 0.0
      %v9489 = vadd.f32 %v9487, %v9488
      %v9490 = vsel %vm1989, %v9411, 0.0
      %v9491 = vadd.f32 %v9489, %v9490
      %v9492 = vsel %vm1989, %v9416, 0.0
      %v9493 = vadd.f32 %v9491, %v9492
      %v9494 = vsel %vm1989, %v9421, 0.0
      %v9495 = vadd.f32 %v9493, %v9494
      %v9496 = vsel %vm1989, %v9426, 0.0
      %v9497 = vadd.f32 %v9495, %v9496
      %v9498 = vsel %vm1989, %v9431, 0.0
      %v9499 = vadd.f32 %v9497, %v9498
      %v9500 = vsel %vm1989, %v9436, 0.0
      %v9501 = vadd.f32 %v9499, %v9500
      %v9502 = vrot.slane %v9501, 4
      %v9503 = vadd.f32 %v9501, %v9502
      %v9504 = vrot.slane %v9503, 2
      %v9505 = vadd.f32 %v9503, %v9504
      %v9506 = vrot.slane %v9505, 1
      %v9507 = vadd.f32 %v9505, %v9506
      %9509 = vrot.lane.b32.xlu0 %v9507, 64
      %v9510 = vpop.permute.xlu0 %9509
      %v9512 = vsub.f32 %v9018, %v9510
      %v9513 = vsub.f32 %v9019, %v9510
      %v9514 = vsub.f32 %v9020, %v9510
      %v9515 = vsub.f32 %v9021, %v9510
      %v9516 = vsub.f32 %v9022, %v9510
      %v9517 = vsub.f32 %v9023, %v9510
      %v9518 = vsub.f32 %v9024, %v9510
      %v9519 = vsub.f32 %v9025, %v9510
      %v9520 = vsub.f32 %v9026, %v9510
      %v9521 = vsub.f32 %v9027, %v9510
      %v9522 = vsub.f32 %v9028, %v9510
      %v9523 = vsub.f32 %v9029, %v9510
      %v9524 = vsub.f32 %v9030, %v9510
      %v9525 = vsub.f32 %v9031, %v9510
      %v9526 = vsub.f32 %v9032, %v9510
      %v9527 = vsub.f32 %v9033, %v9510
      %v9528 = vsub.f32 %v9034, %v9510
      %v9529 = vsub.f32 %v9035, %v9510
      %v9530 = vsub.f32 %v9036, %v9510
      %v9531 = vsub.f32 %v9037, %v9510
      %v9532 = vsub.f32 %v9038, %v9510
      %v9533 = vsub.f32 %v9039, %v9510
      %v9534 = vsub.f32 %v9040, %v9510
      %v9535 = vsub.f32 %v9041, %v9510
      %v9536 = vsub.f32 %v9042, %v9510
      %v9537 = vsub.f32 %v9043, %v9510
      %v9538 = vsub.f32 %v9044, %v9510
      %v9539 = vsub.f32 %v9045, %v9510
      %v9540 = vsub.f32 %v9046, %v9510
      %v9541 = vsub.f32 %v9047, %v9510
      %v9542 = vsub.f32 %v9048, %v9510
      %v9543 = vsub.f32 %v9049, %v9510
      %v9544 = vmul.f32 %v9512, %v9512
      %v9545 = vmul.f32 %v9513, %v9513
      %v9546 = vmul.f32 %v9514, %v9514
      %v9547 = vmul.f32 %v9515, %v9515
      %v9548 = vmul.f32 %v9516, %v9516
      %v9549 = vmul.f32 %v9517, %v9517
      %v9550 = vmul.f32 %v9518, %v9518
      %v9551 = vmul.f32 %v9519, %v9519
      %v9552 = vmul.f32 %v9520, %v9520
      %v9553 = vmul.f32 %v9521, %v9521
      %v9554 = vmul.f32 %v9522, %v9522
      %v9555 = vmul.f32 %v9523, %v9523
      %v9556 = vmul.f32 %v9524, %v9524
      %v9557 = vmul.f32 %v9525, %v9525
      %v9558 = vmul.f32 %v9526, %v9526
      %v9559 = vmul.f32 %v9527, %v9527
      %v9560 = vmul.f32 %v9528, %v9528
      %v9561 = vmul.f32 %v9529, %v9529
      %v9562 = vmul.f32 %v9530, %v9530
      %v9563 = vmul.f32 %v9531, %v9531
      %v9564 = vmul.f32 %v9532, %v9532
      %v9565 = vmul.f32 %v9533, %v9533
      %v9566 = vmul.f32 %v9534, %v9534
      %v9567 = vmul.f32 %v9535, %v9535
      %v9568 = vmul.f32 %v9536, %v9536
      %v9569 = vmul.f32 %v9537, %v9537
      %v9570 = vmul.f32 %v9538, %v9538
      %v9571 = vmul.f32 %v9539, %v9539
      %v9572 = vmul.f32 %v9540, %v9540
      %v9573 = vmul.f32 %v9541, %v9541
      %v9574 = vmul.f32 %v9542, %v9542
      %v9575 = vmul.f32 %v9543, %v9543
      %9608 = vrot.lane.b32.xlu0 %v9544, 64
      %v9609 = vpop.permute.xlu0 %9608
      %9610 = vrot.lane.b32.xlu0 %v9545, 64
      %v9611 = vpop.permute.xlu0 %9610
      %9612 = vrot.lane.b32.xlu0 %v9546, 64
      %v9613 = vpop.permute.xlu0 %9612
      %9614 = vrot.lane.b32.xlu0 %v9547, 64
      %v9615 = vpop.permute.xlu0 %9614
      %9616 = vrot.lane.b32.xlu0 %v9548, 64
      %v9617 = vpop.permute.xlu0 %9616
      %9618 = vrot.lane.b32.xlu0 %v9549, 64
      %v9619 = vpop.permute.xlu0 %9618
      %9620 = vrot.lane.b32.xlu0 %v9550, 64
      %v9621 = vpop.permute.xlu0 %9620
      %9622 = vrot.lane.b32.xlu0 %v9551, 64
      %v9623 = vpop.permute.xlu0 %9622
      %9624 = vrot.lane.b32.xlu0 %v9552, 64
      %v9625 = vpop.permute.xlu0 %9624
      %9626 = vrot.lane.b32.xlu0 %v9553, 64
      %v9627 = vpop.permute.xlu0 %9626
      %9628 = vrot.lane.b32.xlu0 %v9554, 64
      %v9629 = vpop.permute.xlu0 %9628
      %9630 = vrot.lane.b32.xlu0 %v9555, 64
      %v9631 = vpop.permute.xlu0 %9630
      %9632 = vrot.lane.b32.xlu0 %v9556, 64
      %v9633 = vpop.permute.xlu0 %9632
      %9634 = vrot.lane.b32.xlu0 %v9557, 64
      %v9635 = vpop.permute.xlu0 %9634
      %9636 = vrot.lane.b32.xlu0 %v9558, 64
      %v9637 = vpop.permute.xlu0 %9636
      %9638 = vrot.lane.b32.xlu0 %v9559, 64
      %v9639 = vpop.permute.xlu0 %9638
      %9640 = vrot.lane.b32.xlu0 %v9560, 64
      %v9641 = vpop.permute.xlu0 %9640
      %9642 = vrot.lane.b32.xlu0 %v9561, 64
      %v9643 = vpop.permute.xlu0 %9642
      %9644 = vrot.lane.b32.xlu0 %v9562, 64
      %v9645 = vpop.permute.xlu0 %9644
      %9646 = vrot.lane.b32.xlu0 %v9563, 64
      %v9647 = vpop.permute.xlu0 %9646
      %9648 = vrot.lane.b32.xlu0 %v9564, 64
      %v9649 = vpop.permute.xlu0 %9648
      %9650 = vrot.lane.b32.xlu0 %v9565, 64
      %v9651 = vpop.permute.xlu0 %9650
      %9652 = vrot.lane.b32.xlu0 %v9566, 64
      %v9653 = vpop.permute.xlu0 %9652
      %9654 = vrot.lane.b32.xlu0 %v9567, 64
      %v9655 = vpop.permute.xlu0 %9654
      %9656 = vrot.lane.b32.xlu0 %v9568, 64
      %v9657 = vpop.permute.xlu0 %9656
      %9658 = vrot.lane.b32.xlu0 %v9569, 64
      %v9659 = vpop.permute.xlu0 %9658
      %9660 = vrot.lane.b32.xlu0 %v9570, 64
      %v9661 = vpop.permute.xlu0 %9660
      %9662 = vrot.lane.b32.xlu0 %v9571, 64
      %v9663 = vpop.permute.xlu0 %9662
      %9664 = vrot.lane.b32.xlu0 %v9572, 64
      %v9665 = vpop.permute.xlu0 %9664
      %9666 = vrot.lane.b32.xlu0 %v9573, 64
      %v9667 = vpop.permute.xlu0 %9666
      %9668 = vrot.lane.b32.xlu0 %v9574, 64
      %v9669 = vpop.permute.xlu0 %9668
      %9670 = vrot.lane.b32.xlu0 %v9575, 64
      %v9671 = vpop.permute.xlu0 %9670
      %v9672 = vsel %vm1989, %v9609, 0
      %v9674 = vsel %vm1989, %v9611, 0
      %v9676 = vsel %vm1989, %v9613, 0
      %v9678 = vsel %vm1989, %v9615, 0
      %v9680 = vsel %vm1989, %v9617, 0
      %v9682 = vsel %vm1989, %v9619, 0
      %v9684 = vsel %vm1989, %v9621, 0
      %v9686 = vsel %vm1989, %v9623, 0
      %v9688 = vsel %vm1989, %v9625, 0
      %v9690 = vsel %vm1989, %v9627, 0
      %v9692 = vsel %vm1989, %v9629, 0
      %v9694 = vsel %vm1989, %v9631, 0
      %v9696 = vsel %vm1989, %v9633, 0
      %v9698 = vsel %vm1989, %v9635, 0
      %v9700 = vsel %vm1989, %v9637, 0
      %v9702 = vsel %vm1989, %v9639, 0
      %v9704 = vsel %vm1989, %v9641, 0
      %v9706 = vsel %vm1989, %v9643, 0
      %v9708 = vsel %vm1989, %v9645, 0
      %v9710 = vsel %vm1989, %v9647, 0
      %v9712 = vsel %vm1989, %v9649, 0
      %v9714 = vsel %vm1989, %v9651, 0
      %v9716 = vsel %vm1989, %v9653, 0
      %v9718 = vsel %vm1989, %v9655, 0
      %v9720 = vsel %vm1989, %v9657, 0
      %v9722 = vsel %vm1989, %v9659, 0
      %v9724 = vsel %vm1989, %v9661, 0
      %v9726 = vsel %vm1989, %v9663, 0
      %v9728 = vsel %vm1989, %v9665, 0
      %v9730 = vsel %vm1989, %v9667, 0
      %v9732 = vsel %vm1989, %v9669, 0
      %v9734 = vsel %vm1989, %v9671, 0
      %9736 = vmatprep.subr.mxu0 0.0
      %9737 = vmatpush1.msra.mxu0 %v9050
      %9738 = vmatprep.subr.mxu0 0.0
      %9739 = vmatpush1.msra.mxu0 %v9051
      %9740 = vmatprep.subr.mxu0 0.0
      %9741 = vmatpush1.msra.mxu0 %v9052
      %9742 = vmatprep.subr.mxu0 0.0
      %9743 = vmatpush1.msra.mxu0 %v9053
      %9744 = vmatprep.subr.mxu0 0.0
      %9745 = vmatpush1.msra.mxu0 0.0
      %9746 = vmatprep.subr.mxu0 0.0
      %9747 = vmatpush1.msra.mxu0 0.0
      %9748 = vmatprep.subr.mxu0 0.0
      %9749 = vmatpush1.msra.mxu0 0.0
      %9750 = vmatprep.subr.mxu0 0.0
      %9751 = vmatpush1.msra.mxu0 0.0
      %9752 = vmatprep.subr.mxu0 0.0
      %9753 = vmatpush1.msra.mxu0 0.0
      %9754 = vmatprep.subr.mxu0 0.0
      %9755 = vmatpush1.msra.mxu0 0.0
      %9756 = vmatprep.subr.mxu0 0.0
      %9757 = vmatpush1.msra.mxu0 0.0
      %9758 = vmatprep.subr.mxu0 0.0
      %9759 = vmatpush1.msra.mxu0 0.0
      %9760 = vmatprep.subr.mxu0 0.0
      %9761 = vmatpush1.msra.mxu0 0.0
      %9762 = vmatprep.subr.mxu0 0.0
      %9763 = vmatpush1.msra.mxu0 0.0
      %9764 = vmatprep.subr.mxu0 0.0
      %9765 = vmatpush1.msra.mxu0 0.0
      %9766 = vmatprep.subr.mxu0 0.0
      %9767 = vmatpush1.msra.mxu0 0.0
      %9768 = vmatprep.subr.mxu0 0.0
      %9769 = vmatpush1.msra.mxu0 0.0
      %9770 = vmatprep.subr.mxu0 0.0
      %9771 = vmatpush1.msra.mxu0 0.0
      %9772 = vmatprep.subr.mxu0 0.0
      %9773 = vmatpush1.msra.mxu0 0.0
      %9774 = vmatprep.subr.mxu0 0.0
      %9775 = vmatpush1.msra.mxu0 0.0
      %9776 = vmatprep.subr.mxu0 0.0
      %9777 = vmatpush1.msra.mxu0 0.0
      %9778 = vmatprep.subr.mxu0 0.0
      %9779 = vmatpush1.msra.mxu0 0.0
      %9780 = vmatprep.subr.mxu0 0.0
      %9781 = vmatpush1.msra.mxu0 0.0
      %9782 = vmatprep.subr.mxu0 0.0
      %9783 = vmatpush1.msra.mxu0 0.0
      %9784 = vmatprep.subr.mxu0 0.0
      %9785 = vmatpush1.msra.mxu0 0.0
      %9786 = vmatprep.subr.mxu0 0.0
      %9787 = vmatpush1.msra.mxu0 0.0
      %9788 = vmatprep.subr.mxu0 0.0
      %9789 = vmatpush1.msra.mxu0 0.0
      %9790 = vmatprep.subr.mxu0 0.0
      %9791 = vmatpush1.msra.mxu0 0.0
      %9792 = vmatprep.subr.mxu0 0.0
      %9793 = vmatpush1.msra.mxu0 0.0
      %9794 = vmatprep.subr.mxu0 0.0
      %9795 = vmatpush1.msra.mxu0 0.0
      %9796 = vmatprep.subr.mxu0 0.0
      %9797 = vmatpush1.msra.mxu0 0.0
      %9798 = vmatprep.subr.mxu0 0.0
      %9799 = vmatpush1.msra.mxu0 0.0
      %9800 = vmatprep.mubr.f32.mxu0 0.0
      %9801 = vmatmul.mubr.f32.gmra.mrb[0].mxu0 %v9672
      %v9802 = vpop.f32.mrb[0].mxu0
      %v9803 = vadd.f32 0.0, %v9802
      %v9804 = vpop.f32.mrb[0].mxu0
      %9805 = vmatprep.mubr.f32.mxu0 0.0
      %9806 = vmatmul.mubr.f32.gmra.mrb[0].mxu0 %v9674
      %v9807 = vpop.f32.mrb[0].mxu0
      %v9808 = vadd.f32 0.0, %v9807
      %v9809 = vpop.f32.mrb[0].mxu0
      %9810 = vmatprep.mubr.f32.mxu0 0.0
      %9811 = vmatmul.mubr.f32.gmra.mrb[0].mxu0 %v9676
      %v9812 = vpop.f32.mrb[0].mxu0
      %v9813 = vadd.f32 0.0, %v9812
      %v9814 = vpop.f32.mrb[0].mxu0
      %9815 = vmatprep.mubr.f32.mxu0 0.0
      %9816 = vmatmul.mubr.f32.gmra.mrb[0].mxu0 %v9678
      %v9817 = vpop.f32.mrb[0].mxu0
      %v9818 = vadd.f32 0.0, %v9817
      %v9819 = vpop.f32.mrb[0].mxu0
      %9820 = vmatprep.mubr.f32.mxu0 0.0
      %9821 = vmatmul.mubr.f32.gmra.mrb[0].mxu0 %v9680
      %v9822 = vpop.f32.mrb[0].mxu0
      %v9823 = vadd.f32 0.0, %v9822
      %v9824 = vpop.f32.mrb[0].mxu0
      %9825 = vmatprep.mubr.f32.mxu0 0.0
      %9826 = vmatmul.mubr.f32.gmra.mrb[0].mxu0 %v9682
      %v9827 = vpop.f32.mrb[0].mxu0
      %v9828 = vadd.f32 0.0, %v9827
      %v9829 = vpop.f32.mrb[0].mxu0
      %9830 = vmatprep.mubr.f32.mxu0 0.0
      %9831 = vmatmul.mubr.f32.gmra.mrb[0].mxu0 %v9684
      %v9832 = vpop.f32.mrb[0].mxu0
      %v9833 = vadd.f32 0.0, %v9832
      %v9834 = vpop.f32.mrb[0].mxu0
      %9835 = vmatprep.mubr.f32.mxu0 0.0
      %9836 = vmatmul.mubr.f32.gmra.mrb[0].mxu0 %v9686
      %v9837 = vpop.f32.mrb[0].mxu0
      %v9838 = vadd.f32 0.0, %v9837
      %v9839 = vpop.f32.mrb[0].mxu0
      %9840 = vmatprep.mubr.f32.mxu0 0.0
      %9841 = vmatmul.mubr.f32.gmra.mrb[0].mxu0 %v9688
      %v9842 = vpop.f32.mrb[0].mxu0
      %v9843 = vadd.f32 0.0, %v9842
      %v9844 = vpop.f32.mrb[0].mxu0
      %9845 = vmatprep.mubr.f32.mxu0 0.0
      %9846 = vmatmul.mubr.f32.gmra.mrb[0].mxu0 %v9690
      %v9847 = vpop.f32.mrb[0].mxu0
      %v9848 = vadd.f32 0.0, %v9847
      %v9849 = vpop.f32.mrb[0].mxu0
      %9850 = vmatprep.mubr.f32.mxu0 0.0
      %9851 = vmatmul.mubr.f32.gmra.mrb[0].mxu0 %v9692
      %v9852 = vpop.f32.mrb[0].mxu0
      %v9853 = vadd.f32 0.0, %v9852
      %v9854 = vpop.f32.mrb[0].mxu0
      %9855 = vmatprep.mubr.f32.mxu0 0.0
      %9856 = vmatmul.mubr.f32.gmra.mrb[0].mxu0 %v9694
      %v9857 = vpop.f32.mrb[0].mxu0
      %v9858 = vadd.f32 0.0, %v9857
      %v9859 = vpop.f32.mrb[0].mxu0
      %9860 = vmatprep.mubr.f32.mxu0 0.0
      %9861 = vmatmul.mubr.f32.gmra.mrb[0].mxu0 %v9696
      %v9862 = vpop.f32.mrb[0].mxu0
      %v9863 = vadd.f32 0.0, %v9862
      %v9864 = vpop.f32.mrb[0].mxu0
      %9865 = vmatprep.mubr.f32.mxu0 0.0
      %9866 = vmatmul.mubr.f32.gmra.mrb[0].mxu0 %v9698
      %v9867 = vpop.f32.mrb[0].mxu0
      %v9868 = vadd.f32 0.0, %v9867
      %v9869 = vpop.f32.mrb[0].mxu0
      %9870 = vmatprep.mubr.f32.mxu0 0.0
      %9871 = vmatmul.mubr.f32.gmra.mrb[0].mxu0 %v9700
      %v9872 = vpop.f32.mrb[0].mxu0
      %v9873 = vadd.f32 0.0, %v9872
      %v9874 = vpop.f32.mrb[0].mxu0
      %9875 = vmatprep.mubr.f32.mxu0 0.0
      %9876 = vmatmul.mubr.f32.gmra.mrb[0].mxu0 %v9702
      %v9877 = vpop.f32.mrb[0].mxu0
      %v9878 = vadd.f32 0.0, %v9877
      %v9879 = vpop.f32.mrb[0].mxu0
      %9880 = vmatprep.mubr.f32.mxu0 0.0
      %9881 = vmatmul.mubr.f32.gmra.mrb[0].mxu0 %v9704
      %v9882 = vpop.f32.mrb[0].mxu0
      %v9883 = vadd.f32 0.0, %v9882
      %v9884 = vpop.f32.mrb[0].mxu0
      %9885 = vmatprep.mubr.f32.mxu0 0.0
      %9886 = vmatmul.mubr.f32.gmra.mrb[0].mxu0 %v9706
      %v9887 = vpop.f32.mrb[0].mxu0
      %v9888 = vadd.f32 0.0, %v9887
      %v9889 = vpop.f32.mrb[0].mxu0
      %9890 = vmatprep.mubr.f32.mxu0 0.0
      %9891 = vmatmul.mubr.f32.gmra.mrb[0].mxu0 %v9708
      %v9892 = vpop.f32.mrb[0].mxu0
      %v9893 = vadd.f32 0.0, %v9892
      %v9894 = vpop.f32.mrb[0].mxu0
      %9895 = vmatprep.mubr.f32.mxu0 0.0
      %9896 = vmatmul.mubr.f32.gmra.mrb[0].mxu0 %v9710
      %v9897 = vpop.f32.mrb[0].mxu0
      %v9898 = vadd.f32 0.0, %v9897
      %v9899 = vpop.f32.mrb[0].mxu0
      %9900 = vmatprep.mubr.f32.mxu0 0.0
      %9901 = vmatmul.mubr.f32.gmra.mrb[0].mxu0 %v9712
      %v9902 = vpop.f32.mrb[0].mxu0
      %v9903 = vadd.f32 0.0, %v9902
      %v9904 = vpop.f32.mrb[0].mxu0
      %9905 = vmatprep.mubr.f32.mxu0 0.0
      %9906 = vmatmul.mubr.f32.gmra.mrb[0].mxu0 %v9714
      %v9907 = vpop.f32.mrb[0].mxu0
      %v9908 = vadd.f32 0.0, %v9907
      %v9909 = vpop.f32.mrb[0].mxu0
      %9910 = vmatprep.mubr.f32.mxu0 0.0
      %9911 = vmatmul.mubr.f32.gmra.mrb[0].mxu0 %v9716
      %v9912 = vpop.f32.mrb[0].mxu0
      %v9913 = vadd.f32 0.0, %v9912
      %v9914 = vpop.f32.mrb[0].mxu0
      %9915 = vmatprep.mubr.f32.mxu0 0.0
      %9916 = vmatmul.mubr.f32.gmra.mrb[0].mxu0 %v9718
      %v9917 = vpop.f32.mrb[0].mxu0
      %v9918 = vadd.f32 0.0, %v9917
      %v9919 = vpop.f32.mrb[0].mxu0
      %9920 = vmatprep.mubr.f32.mxu0 0.0
      %9921 = vmatmul.mubr.f32.gmra.mrb[0].mxu0 %v9720
      %v9922 = vpop.f32.mrb[0].mxu0
      %v9923 = vadd.f32 0.0, %v9922
      %v9924 = vpop.f32.mrb[0].mxu0
      %9925 = vmatprep.mubr.f32.mxu0 0.0
      %9926 = vmatmul.mubr.f32.gmra.mrb[0].mxu0 %v9722
      %v9927 = vpop.f32.mrb[0].mxu0
      %v9928 = vadd.f32 0.0, %v9927
      %v9929 = vpop.f32.mrb[0].mxu0
      %9930 = vmatprep.mubr.f32.mxu0 0.0
      %9931 = vmatmul.mubr.f32.gmra.mrb[0].mxu0 %v9724
      %v9932 = vpop.f32.mrb[0].mxu0
      %v9933 = vadd.f32 0.0, %v9932
      %v9934 = vpop.f32.mrb[0].mxu0
      %9935 = vmatprep.mubr.f32.mxu0 0.0
      %9936 = vmatmul.mubr.f32.gmra.mrb[0].mxu0 %v9726
      %v9937 = vpop.f32.mrb[0].mxu0
      %v9938 = vadd.f32 0.0, %v9937
      %v9939 = vpop.f32.mrb[0].mxu0
      %9940 = vmatprep.mubr.f32.mxu0 0.0
      %9941 = vmatmul.mubr.f32.gmra.mrb[0].mxu0 %v9728
      %v9942 = vpop.f32.mrb[0].mxu0
      %v9943 = vadd.f32 0.0, %v9942
      %v9944 = vpop.f32.mrb[0].mxu0
      %9945 = vmatprep.mubr.f32.mxu0 0.0
      %9946 = vmatmul.mubr.f32.gmra.mrb[0].mxu0 %v9730
      %v9947 = vpop.f32.mrb[0].mxu0
      %v9948 = vadd.f32 0.0, %v9947
      %v9949 = vpop.f32.mrb[0].mxu0
      %9950 = vmatprep.mubr.f32.mxu0 0.0
      %9951 = vmatmul.mubr.f32.gmra.mrb[0].mxu0 %v9732
      %v9952 = vpop.f32.mrb[0].mxu0
      %v9953 = vadd.f32 0.0, %v9952
      %v9954 = vpop.f32.mrb[0].mxu0
      %9955 = vmatprep.mubr.f32.mxu0 0.0
      %9956 = vmatmul.mubr.f32.gmra.mrb[0].mxu0 %v9734
      %v9957 = vpop.f32.mrb[0].mxu0
      %v9958 = vadd.f32 0.0, %v9957
      %v9959 = vpop.f32.mrb[0].mxu0
      %9960 = vdwg.mxu0
      %v9961 = vsel %vm1989, %v9803, 0.0
      %v9962 = vsel %vm1989, %v9808, 0.0
      %v9963 = vadd.f32 %v9961, %v9962
      %v9964 = vsel %vm1989, %v9813, 0.0
      %v9965 = vadd.f32 %v9963, %v9964
      %v9966 = vsel %vm1989, %v9818, 0.0
      %v9967 = vadd.f32 %v9965, %v9966
      %v9968 = vsel %vm1989, %v9823, 0.0
      %v9969 = vadd.f32 %v9967, %v9968
      %v9970 = vsel %vm1989, %v9828, 0.0
      %v9971 = vadd.f32 %v9969, %v9970
      %v9972 = vsel %vm1989, %v9833, 0.0
      %v9973 = vadd.f32 %v9971, %v9972
      %v9974 = vsel %vm1989, %v9838, 0.0
      %v9975 = vadd.f32 %v9973, %v9974
      %v9976 = vsel %vm1989, %v9843, 0.0
      %v9977 = vadd.f32 %v9975, %v9976
      %v9978 = vsel %vm1989, %v9848, 0.0
      %v9979 = vadd.f32 %v9977, %v9978
      %v9980 = vsel %vm1989, %v9853, 0.0
      %v9981 = vadd.f32 %v9979, %v9980
      %v9982 = vsel %vm1989, %v9858, 0.0
      %v9983 = vadd.f32 %v9981, %v9982
      %v9984 = vsel %vm1989, %v9863, 0.0
      %v9985 = vadd.f32 %v9983, %v9984
      %v9986 = vsel %vm1989, %v9868, 0.0
      %v9987 = vadd.f32 %v9985, %v9986
      %v9988 = vsel %vm1989, %v9873, 0.0
      %v9989 = vadd.f32 %v9987, %v9988
      %v9990 = vsel %vm1989, %v9878, 0.0
      %v9991 = vadd.f32 %v9989, %v9990
      %v9992 = vsel %vm1989, %v9883, 0.0
      %v9993 = vadd.f32 %v9991, %v9992
      %v9994 = vsel %vm1989, %v9888, 0.0
      %v9995 = vadd.f32 %v9993, %v9994
      %v9996 = vsel %vm1989, %v9893, 0.0
      %v9997 = vadd.f32 %v9995, %v9996
      %v9998 = vsel %vm1989, %v9898, 0.0
      %v9999 = vadd.f32 %v9997, %v9998
      %v10000 = vsel %vm1989, %v9903, 0.0
      %v10001 = vadd.f32 %v9999, %v10000
      %v10002 = vsel %vm1989, %v9908, 0.0
      %v10003 = vadd.f32 %v10001, %v10002
      %v10004 = vsel %vm1989, %v9913, 0.0
      %v10005 = vadd.f32 %v10003, %v10004
      %v10006 = vsel %vm1989, %v9918, 0.0
      %v10007 = vadd.f32 %v10005, %v10006
      %v10008 = vsel %vm1989, %v9923, 0.0
      %v10009 = vadd.f32 %v10007, %v10008
      %v10010 = vsel %vm1989, %v9928, 0.0
      %v10011 = vadd.f32 %v10009, %v10010
      %v10012 = vsel %vm1989, %v9933, 0.0
      %v10013 = vadd.f32 %v10011, %v10012
      %v10014 = vsel %vm1989, %v9938, 0.0
      %v10015 = vadd.f32 %v10013, %v10014
      %v10016 = vsel %vm1989, %v9943, 0.0
      %v10017 = vadd.f32 %v10015, %v10016
      %v10018 = vsel %vm1989, %v9948, 0.0
      %v10019 = vadd.f32 %v10017, %v10018
      %v10020 = vsel %vm1989, %v9953, 0.0
      %v10021 = vadd.f32 %v10019, %v10020
      %v10022 = vsel %vm1989, %v9958, 0.0
      %v10023 = vadd.f32 %v10021, %v10022
      %v10024 = vrot.slane %v10023, 4
      %v10025 = vadd.f32 %v10023, %v10024
      %v10026 = vrot.slane %v10025, 2
      %v10027 = vadd.f32 %v10025, %v10026
      %v10028 = vrot.slane %v10027, 1
      %v10029 = vadd.f32 %v10027, %v10028
      %v10030 = vadd.f32 %v10029, 1e-05
      %v10031 = vrsqrt.pop %v10030
      %10033 = vrot.lane.b32.xlu0 %v10031, 64
      %v10034 = vpop.permute.xlu0 %10033
      %v10036 = vmul.f32 %v9512, %v10034
      %v10037 = vmul.f32 %v9513, %v10034
      %v10038 = vmul.f32 %v9514, %v10034
      %v10039 = vmul.f32 %v9515, %v10034
      %v10040 = vmul.f32 %v9516, %v10034
      %v10041 = vmul.f32 %v9517, %v10034
      %v10042 = vmul.f32 %v9518, %v10034
      %v10043 = vmul.f32 %v9519, %v10034
      %v10044 = vmul.f32 %v9520, %v10034
      %v10045 = vmul.f32 %v9521, %v10034
      %v10046 = vmul.f32 %v9522, %v10034
      %v10047 = vmul.f32 %v9523, %v10034
      %v10048 = vmul.f32 %v9524, %v10034
      %v10049 = vmul.f32 %v9525, %v10034
      %v10050 = vmul.f32 %v9526, %v10034
      %v10051 = vmul.f32 %v9527, %v10034
      %v10052 = vmul.f32 %v9528, %v10034
      %v10053 = vmul.f32 %v9529, %v10034
      %v10054 = vmul.f32 %v9530, %v10034
      %v10055 = vmul.f32 %v9531, %v10034
      %v10056 = vmul.f32 %v9532, %v10034
      %v10057 = vmul.f32 %v9533, %v10034
      %v10058 = vmul.f32 %v9534, %v10034
      %v10059 = vmul.f32 %v9535, %v10034
      %v10060 = vmul.f32 %v9536, %v10034
      %v10061 = vmul.f32 %v9537, %v10034
      %v10062 = vmul.f32 %v9538, %v10034
      %v10063 = vmul.f32 %v9539, %v10034
      %v10064 = vmul.f32 %v9540, %v10034
      %v10065 = vmul.f32 %v9541, %v10034
      %v10066 = vmul.f32 %v9542, %v10034
      %v10067 = vmul.f32 %v9543, %v10034
      %v10068 = vld [vmem:[%s11] sm:$0x1]
      %v10070 = vlaneseq
      %v10071 = vshrl.u32 %v10070, 7
      %v10072 = vsub.s32 0, %v10071
      %v10073 = vrot.slane %v10068, %v10072
      %10074 = vrot.lane.b32.xlu0 %v10073, 64
      %v10075 = vpop.permute.xlu0 %10074
      %v10077 = vmul.f32 %v10036, %v10075
      %v10078 = vmul.f32 %v10037, %v10075
      %v10079 = vmul.f32 %v10038, %v10075
      %v10080 = vmul.f32 %v10039, %v10075
      %v10081 = vmul.f32 %v10040, %v10075
      %v10082 = vmul.f32 %v10041, %v10075
      %v10083 = vmul.f32 %v10042, %v10075
      %v10084 = vmul.f32 %v10043, %v10075
      %v10085 = vmul.f32 %v10044, %v10075
      %v10086 = vmul.f32 %v10045, %v10075
      %v10087 = vmul.f32 %v10046, %v10075
      %v10088 = vmul.f32 %v10047, %v10075
      %v10089 = vmul.f32 %v10048, %v10075
      %v10090 = vmul.f32 %v10049, %v10075
      %v10091 = vmul.f32 %v10050, %v10075
      %v10092 = vmul.f32 %v10051, %v10075
      %v10093 = vmul.f32 %v10052, %v10075
      %v10094 = vmul.f32 %v10053, %v10075
      %v10095 = vmul.f32 %v10054, %v10075
      %v10096 = vmul.f32 %v10055, %v10075
      %v10097 = vmul.f32 %v10056, %v10075
      %v10098 = vmul.f32 %v10057, %v10075
      %v10099 = vmul.f32 %v10058, %v10075
      %v10100 = vmul.f32 %v10059, %v10075
      %v10101 = vmul.f32 %v10060, %v10075
      %v10102 = vmul.f32 %v10061, %v10075
      %v10103 = vmul.f32 %v10062, %v10075
      %v10104 = vmul.f32 %v10063, %v10075
      %v10105 = vmul.f32 %v10064, %v10075
      %v10106 = vmul.f32 %v10065, %v10075
      %v10107 = vmul.f32 %v10066, %v10075
      %v10108 = vmul.f32 %v10067, %v10075
      %v10109 = vld [vmem:[%s12] sm:$0x1]
      %v10111 = vlaneseq
      %v10112 = vshrl.u32 %v10111, 7
      %v10113 = vsub.s32 0, %v10112
      %v10114 = vrot.slane %v10109, %v10113
      %10115 = vrot.lane.b32.xlu0 %v10114, 64
      %v10116 = vpop.permute.xlu0 %10115
      %v10118 = vadd.f32 %v10077, %v10116
      %v10119 = vadd.f32 %v10078, %v10116
      %v10120 = vadd.f32 %v10079, %v10116
      %v10121 = vadd.f32 %v10080, %v10116
      %v10122 = vadd.f32 %v10081, %v10116
      %v10123 = vadd.f32 %v10082, %v10116
      %v10124 = vadd.f32 %v10083, %v10116
      %v10125 = vadd.f32 %v10084, %v10116
      %v10126 = vadd.f32 %v10085, %v10116
      %v10127 = vadd.f32 %v10086, %v10116
      %v10128 = vadd.f32 %v10087, %v10116
      %v10129 = vadd.f32 %v10088, %v10116
      %v10130 = vadd.f32 %v10089, %v10116
      %v10131 = vadd.f32 %v10090, %v10116
      %v10132 = vadd.f32 %v10091, %v10116
      %v10133 = vadd.f32 %v10092, %v10116
      %v10134 = vadd.f32 %v10093, %v10116
      %v10135 = vadd.f32 %v10094, %v10116
      %v10136 = vadd.f32 %v10095, %v10116
      %v10137 = vadd.f32 %v10096, %v10116
      %v10138 = vadd.f32 %v10097, %v10116
      %v10139 = vadd.f32 %v10098, %v10116
      %v10140 = vadd.f32 %v10099, %v10116
      %v10141 = vadd.f32 %v10100, %v10116
      %v10142 = vadd.f32 %v10101, %v10116
      %v10143 = vadd.f32 %v10102, %v10116
      %v10144 = vadd.f32 %v10103, %v10116
      %v10145 = vadd.f32 %v10104, %v10116
      %v10146 = vadd.f32 %v10105, %v10116
      %v10147 = vadd.f32 %v10106, %v10116
      %v10148 = vadd.f32 %v10107, %v10116
      %v10149 = vadd.f32 %v10108, %v10116
      %v10150 = vtanh.pop %v10118
      %v10151 = vtanh.pop %v10119
      %v10152 = vtanh.pop %v10120
      %v10153 = vtanh.pop %v10121
      %v10154 = vtanh.pop %v10122
      %v10155 = vtanh.pop %v10123
      %v10156 = vtanh.pop %v10124
      %v10157 = vtanh.pop %v10125
      %v10158 = vtanh.pop %v10126
      %v10159 = vtanh.pop %v10127
      %v10160 = vtanh.pop %v10128
      %v10161 = vtanh.pop %v10129
      %v10162 = vtanh.pop %v10130
      %v10163 = vtanh.pop %v10131
      %v10164 = vtanh.pop %v10132
      %v10165 = vtanh.pop %v10133
      %v10166 = vtanh.pop %v10134
      %v10167 = vtanh.pop %v10135
      %v10168 = vtanh.pop %v10136
      %v10169 = vtanh.pop %v10137
      %v10170 = vtanh.pop %v10138
      %v10171 = vtanh.pop %v10139
      %v10172 = vtanh.pop %v10140
      %v10173 = vtanh.pop %v10141
      %v10174 = vtanh.pop %v10142
      %v10175 = vtanh.pop %v10143
      %v10176 = vtanh.pop %v10144
      %v10177 = vtanh.pop %v10145
      %v10178 = vtanh.pop %v10146
      %v10179 = vtanh.pop %v10147
      %v10180 = vtanh.pop %v10148
      %v10181 = vtanh.pop %v10149
      %v10182 = vsub.f32 1.0, %v6910
      %v10183 = vsub.f32 1.0, %v6912
      %v10184 = vsub.f32 1.0, %v6914
      %v10185 = vsub.f32 1.0, %v6916
      %v10186 = vsub.f32 1.0, %v6918
      %v10187 = vsub.f32 1.0, %v6920
      %v10188 = vsub.f32 1.0, %v6922
      %v10189 = vsub.f32 1.0, %v6924
      %v10190 = vsub.f32 1.0, %v6926
      %v10191 = vsub.f32 1.0, %v6928
      %v10192 = vsub.f32 1.0, %v6930
      %v10193 = vsub.f32 1.0, %v6932
      %v10194 = vsub.f32 1.0, %v6934
      %v10195 = vsub.f32 1.0, %v6936
      %v10196 = vsub.f32 1.0, %v6938
      %v10197 = vsub.f32 1.0, %v6940
      %v10198 = vsub.f32 1.0, %v6942
      %v10199 = vsub.f32 1.0, %v6944
      %v10200 = vsub.f32 1.0, %v6946
      %v10201 = vsub.f32 1.0, %v6948
      %v10202 = vsub.f32 1.0, %v6950
      %v10203 = vsub.f32 1.0, %v6952
      %v10204 = vsub.f32 1.0, %v6954
      %v10205 = vsub.f32 1.0, %v6956
      %v10206 = vsub.f32 1.0, %v6958
      %v10207 = vsub.f32 1.0, %v6960
      %v10208 = vsub.f32 1.0, %v6962
      %v10209 = vsub.f32 1.0, %v6964
      %v10210 = vsub.f32 1.0, %v6966
      %v10211 = vsub.f32 1.0, %v6968
      %v10212 = vsub.f32 1.0, %v6970
      %v10213 = vsub.f32 1.0, %v6972
      %v10214 = vmul.f32 %v10182, %v4071
      %v10215 = vmul.f32 %v10183, %v4072
      %v10216 = vmul.f32 %v10184, %v4075
      %v10217 = vmul.f32 %v10185, %v4076
      %v10218 = vmul.f32 %v10186, %v4079
      %v10219 = vmul.f32 %v10187, %v4080
      %v10220 = vmul.f32 %v10188, %v4083
      %v10221 = vmul.f32 %v10189, %v4084
      %v10222 = vmul.f32 %v10190, %v4087
      %v10223 = vmul.f32 %v10191, %v4088
      %v10224 = vmul.f32 %v10192, %v4091
      %v10225 = vmul.f32 %v10193, %v4092
      %v10226 = vmul.f32 %v10194, %v4095
      %v10227 = vmul.f32 %v10195, %v4096
      %v10228 = vmul.f32 %v10196, %v4099
      %v10229 = vmul.f32 %v10197, %v4100
      %v10230 = vmul.f32 %v10198, %v4103
      %v10231 = vmul.f32 %v10199, %v4104
      %v10232 = vmul.f32 %v10200, %v4107
      %v10233 = vmul.f32 %v10201, %v4108
      %v10234 = vmul.f32 %v10202, %v4111
      %v10235 = vmul.f32 %v10203, %v4112
      %v10236 = vmul.f32 %v10204, %v4115
      %v10237 = vmul.f32 %v10205, %v4116
      %v10238 = vmul.f32 %v10206, %v4119
      %v10239 = vmul.f32 %v10207, %v4120
      %v10240 = vmul.f32 %v10208, %v4123
      %v10241 = vmul.f32 %v10209, %v4124
      %v10242 = vmul.f32 %v10210, %v4127
      %v10243 = vmul.f32 %v10211, %v4128
      %v10244 = vmul.f32 %v10212, %v4131
      %v10245 = vmul.f32 %v10213, %v4132
      %10278 = vrot.lane.b32.xlu0 %v10150, 64
      %v10279 = vpop.permute.xlu0 %10278
      %10280 = vrot.lane.b32.xlu0 %v10151, 64
      %v10281 = vpop.permute.xlu0 %10280
      %10282 = vrot.lane.b32.xlu0 %v10152, 64
      %v10283 = vpop.permute.xlu0 %10282
      %10284 = vrot.lane.b32.xlu0 %v10153, 64
      %v10285 = vpop.permute.xlu0 %10284
      %10286 = vrot.lane.b32.xlu0 %v10154, 64
      %v10287 = vpop.permute.xlu0 %10286
      %10288 = vrot.lane.b32.xlu0 %v10155, 64
      %v10289 = vpop.permute.xlu0 %10288
      %10290 = vrot.lane.b32.xlu0 %v10156, 64
      %v10291 = vpop.permute.xlu0 %10290
      %10292 = vrot.lane.b32.xlu0 %v10157, 64
      %v10293 = vpop.permute.xlu0 %10292
      %10294 = vrot.lane.b32.xlu0 %v10158, 64
      %v10295 = vpop.permute.xlu0 %10294
      %10296 = vrot.lane.b32.xlu0 %v10159, 64
      %v10297 = vpop.permute.xlu0 %10296
      %10298 = vrot.lane.b32.xlu0 %v10160, 64
      %v10299 = vpop.permute.xlu0 %10298
      %10300 = vrot.lane.b32.xlu0 %v10161, 64
      %v10301 = vpop.permute.xlu0 %10300
      %10302 = vrot.lane.b32.xlu0 %v10162, 64
      %v10303 = vpop.permute.xlu0 %10302
      %10304 = vrot.lane.b32.xlu0 %v10163, 64
      %v10305 = vpop.permute.xlu0 %10304
      %10306 = vrot.lane.b32.xlu0 %v10164, 64
      %v10307 = vpop.permute.xlu0 %10306
      %10308 = vrot.lane.b32.xlu0 %v10165, 64
      %v10309 = vpop.permute.xlu0 %10308
      %10310 = vrot.lane.b32.xlu0 %v10166, 64
      %v10311 = vpop.permute.xlu0 %10310
      %10312 = vrot.lane.b32.xlu0 %v10167, 64
      %v10313 = vpop.permute.xlu0 %10312
      %10314 = vrot.lane.b32.xlu0 %v10168, 64
      %v10315 = vpop.permute.xlu0 %10314
      %10316 = vrot.lane.b32.xlu0 %v10169, 64
      %v10317 = vpop.permute.xlu0 %10316
      %10318 = vrot.lane.b32.xlu0 %v10170, 64
      %v10319 = vpop.permute.xlu0 %10318
      %10320 = vrot.lane.b32.xlu0 %v10171, 64
      %v10321 = vpop.permute.xlu0 %10320
      %10322 = vrot.lane.b32.xlu0 %v10172, 64
      %v10323 = vpop.permute.xlu0 %10322
      %10324 = vrot.lane.b32.xlu0 %v10173, 64
      %v10325 = vpop.permute.xlu0 %10324
      %10326 = vrot.lane.b32.xlu0 %v10174, 64
      %v10327 = vpop.permute.xlu0 %10326
      %10328 = vrot.lane.b32.xlu0 %v10175, 64
      %v10329 = vpop.permute.xlu0 %10328
      %10330 = vrot.lane.b32.xlu0 %v10176, 64
      %v10331 = vpop.permute.xlu0 %10330
      %10332 = vrot.lane.b32.xlu0 %v10177, 64
      %v10333 = vpop.permute.xlu0 %10332
      %10334 = vrot.lane.b32.xlu0 %v10178, 64
      %v10335 = vpop.permute.xlu0 %10334
      %10336 = vrot.lane.b32.xlu0 %v10179, 64
      %v10337 = vpop.permute.xlu0 %10336
      %10338 = vrot.lane.b32.xlu0 %v10180, 64
      %v10339 = vpop.permute.xlu0 %10338
      %10340 = vrot.lane.b32.xlu0 %v10181, 64
      %v10341 = vpop.permute.xlu0 %10340
      %v10374 = vmul.f32 %v6910, %v10279
      %v10375 = vmul.f32 %v6912, %v10281
      %v10376 = vmul.f32 %v6914, %v10283
      %v10377 = vmul.f32 %v6916, %v10285
      %v10378 = vmul.f32 %v6918, %v10287
      %v10379 = vmul.f32 %v6920, %v10289
      %v10380 = vmul.f32 %v6922, %v10291
      %v10381 = vmul.f32 %v6924, %v10293
      %v10382 = vmul.f32 %v6926, %v10295
      %v10383 = vmul.f32 %v6928, %v10297
      %v10384 = vmul.f32 %v6930, %v10299
      %v10385 = vmul.f32 %v6932, %v10301
      %v10386 = vmul.f32 %v6934, %v10303
      %v10387 = vmul.f32 %v6936, %v10305
      %v10388 = vmul.f32 %v6938, %v10307
      %v10389 = vmul.f32 %v6940, %v10309
      %v10390 = vmul.f32 %v6942, %v10311
      %v10391 = vmul.f32 %v6944, %v10313
      %v10392 = vmul.f32 %v6946, %v10315
      %v10393 = vmul.f32 %v6948, %v10317
      %v10394 = vmul.f32 %v6950, %v10319
      %v10395 = vmul.f32 %v6952, %v10321
      %v10396 = vmul.f32 %v6954, %v10323
      %v10397 = vmul.f32 %v6956, %v10325
      %v10398 = vmul.f32 %v6958, %v10327
      %v10399 = vmul.f32 %v6960, %v10329
      %v10400 = vmul.f32 %v6962, %v10331
      %v10401 = vmul.f32 %v6964, %v10333
      %v10402 = vmul.f32 %v6966, %v10335
      %v10403 = vmul.f32 %v6968, %v10337
      %v10404 = vmul.f32 %v6970, %v10339
      %v10405 = vmul.f32 %v6972, %v10341
      %v10406 = vadd.f32 %v10214, %v10374
      %v10407 = vadd.f32 %v10215, %v10375
      %v10408 = vadd.f32 %v10216, %v10376
      %v10409 = vadd.f32 %v10217, %v10377
      %v10410 = vadd.f32 %v10218, %v10378
      %v10411 = vadd.f32 %v10219, %v10379
      %v10412 = vadd.f32 %v10220, %v10380
      %v10413 = vadd.f32 %v10221, %v10381
      %v10414 = vadd.f32 %v10222, %v10382
      %v10415 = vadd.f32 %v10223, %v10383
      %v10416 = vadd.f32 %v10224, %v10384
      %v10417 = vadd.f32 %v10225, %v10385
      %v10418 = vadd.f32 %v10226, %v10386
      %v10419 = vadd.f32 %v10227, %v10387
      %v10420 = vadd.f32 %v10228, %v10388
      %v10421 = vadd.f32 %v10229, %v10389
      %v10422 = vadd.f32 %v10230, %v10390
      %v10423 = vadd.f32 %v10231, %v10391
      %v10424 = vadd.f32 %v10232, %v10392
      %v10425 = vadd.f32 %v10233, %v10393
      %v10426 = vadd.f32 %v10234, %v10394
      %v10427 = vadd.f32 %v10235, %v10395
      %v10428 = vadd.f32 %v10236, %v10396
      %v10429 = vadd.f32 %v10237, %v10397
      %v10430 = vadd.f32 %v10238, %v10398
      %v10431 = vadd.f32 %v10239, %v10399
      %v10432 = vadd.f32 %v10240, %v10400
      %v10433 = vadd.f32 %v10241, %v10401
      %v10434 = vadd.f32 %v10242, %v10402
      %v10435 = vadd.f32 %v10243, %v10403
      %v10436 = vadd.f32 %v10244, %v10404
      %v10437 = vadd.f32 %v10245, %v10405
      %s10438 = scalar_lea.vmem [#allocation3], 32
      %10439 = vst.msk [vmem:[%s10438 + $0x8] sm:$0xff] %vm1989, %v10406
      %10440 = vst.msk [vmem:[%s10438 + $0x10] sm:$0xff] %vm1989, %v10407
      %10441 = vst.msk [vmem:[%s10438 + $0x28] sm:$0xff] %vm1989, %v10408
      %10442 = vst.msk [vmem:[%s10438 + $0x30] sm:$0xff] %vm1989, %v10409
      %10443 = vst.msk [vmem:[%s10438 + $0x48] sm:$0xff] %vm1989, %v10410
      %10444 = vst.msk [vmem:[%s10438 + $0x50] sm:$0xff] %vm1989, %v10411
      %10445 = vst.msk [vmem:[%s10438 + $0x68] sm:$0xff] %vm1989, %v10412
      %10446 = vst.msk [vmem:[%s10438 + $0x70] sm:$0xff] %vm1989, %v10413
      %10447 = vst.msk [vmem:[%s10438 + $0x88] sm:$0xff] %vm1989, %v10414
      %10448 = vst.msk [vmem:[%s10438 + $0x90] sm:$0xff] %vm1989, %v10415
      %10449 = vst.msk [vmem:[%s10438 + $0xa8] sm:$0xff] %vm1989, %v10416
      %10450 = vst.msk [vmem:[%s10438 + $0xb0] sm:$0xff] %vm1989, %v10417
      %10451 = vst.msk [vmem:[%s10438 + $0xc8] sm:$0xff] %vm1989, %v10418
      %10452 = vst.msk [vmem:[%s10438 + $0xd0] sm:$0xff] %vm1989, %v10419
      %10453 = vst.msk [vmem:[%s10438 + $0xe8] sm:$0xff] %vm1989, %v10420
      %10454 = vst.msk [vmem:[%s10438 + $0xf0] sm:$0xff] %vm1989, %v10421
      %10455 = vst.msk [vmem:[%s10438 + $0x108] sm:$0xff] %vm1989, %v10422
      %10456 = vst.msk [vmem:[%s10438 + $0x110] sm:$0xff] %vm1989, %v10423
      %10457 = vst.msk [vmem:[%s10438 + $0x128] sm:$0xff] %vm1989, %v10424
      %10458 = vst.msk [vmem:[%s10438 + $0x130] sm:$0xff] %vm1989, %v10425
      %10459 = vst.msk [vmem:[%s10438 + $0x148] sm:$0xff] %vm1989, %v10426
      %10460 = vst.msk [vmem:[%s10438 + $0x150] sm:$0xff] %vm1989, %v10427
      %10461 = vst.msk [vmem:[%s10438 + $0x168] sm:$0xff] %vm1989, %v10428
      %10462 = vst.msk [vmem:[%s10438 + $0x170] sm:$0xff] %vm1989, %v10429
      %10463 = vst.msk [vmem:[%s10438 + $0x188] sm:$0xff] %vm1989, %v10430
      %10464 = vst.msk [vmem:[%s10438 + $0x190] sm:$0xff] %vm1989, %v10431
      %10465 = vst.msk [vmem:[%s10438 + $0x1a8] sm:$0xff] %vm1989, %v10432
      %10466 = vst.msk [vmem:[%s10438 + $0x1b0] sm:$0xff] %vm1989, %v10433
      %10467 = vst.msk [vmem:[%s10438 + $0x1c8] sm:$0xff] %vm1989, %v10434
      %10468 = vst.msk [vmem:[%s10438 + $0x1d0] sm:$0xff] %vm1989, %v10435
      %10469 = vst.msk [vmem:[%s10438 + $0x1e8] sm:$0xff] %vm1989, %v10436
      %10470 = vst.msk [vmem:[%s10438 + $0x1f0] sm:$0xff] %vm1989, %v10437
      %10471 = vst.msk [vmem:[%s476] sm:$0xff] %vm1989, %v10406
      %10472 = vst.msk [vmem:[%s476 + $0x8] sm:$0xff] %vm1989, %v10407
      %10473 = vst.msk [vmem:[%s476 + $0x10] sm:$0xff] %vm1989, %v10408
      %10474 = vst.msk [vmem:[%s476 + $0x18] sm:$0xff] %vm1989, %v10409
      %10475 = vst.msk [vmem:[%s476 + $0x20] sm:$0xff] %vm1989, %v10410
      %10476 = vst.msk [vmem:[%s476 + $0x28] sm:$0xff] %vm1989, %v10411
      %10477 = vst.msk [vmem:[%s476 + $0x30] sm:$0xff] %vm1989, %v10412
      %10478 = vst.msk [vmem:[%s476 + $0x38] sm:$0xff] %vm1989, %v10413
      %10479 = vst.msk [vmem:[%s476 + $0x40] sm:$0xff] %vm1989, %v10414
      %10480 = vst.msk [vmem:[%s476 + $0x48] sm:$0xff] %vm1989, %v10415
      %10481 = vst.msk [vmem:[%s476 + $0x50] sm:$0xff] %vm1989, %v10416
      %10482 = vst.msk [vmem:[%s476 + $0x58] sm:$0xff] %vm1989, %v10417
      %10483 = vst.msk [vmem:[%s476 + $0x60] sm:$0xff] %vm1989, %v10418
      %10484 = vst.msk [vmem:[%s476 + $0x68] sm:$0xff] %vm1989, %v10419
      %10485 = vst.msk [vmem:[%s476 + $0x70] sm:$0xff] %vm1989, %v10420
      %10486 = vst.msk [vmem:[%s476 + $0x78] sm:$0xff] %vm1989, %v10421
      %10487 = vst.msk [vmem:[%s476 + $0x80] sm:$0xff] %vm1989, %v10422
      %10488 = vst.msk [vmem:[%s476 + $0x88] sm:$0xff] %vm1989, %v10423
      %10489 = vst.msk [vmem:[%s476 + $0x90] sm:$0xff] %vm1989, %v10424
      %10490 = vst.msk [vmem:[%s476 + $0x98] sm:$0xff] %vm1989, %v10425
      %10491 = vst.msk [vmem:[%s476 + $0xa0] sm:$0xff] %vm1989, %v10426
      %10492 = vst.msk [vmem:[%s476 + $0xa8] sm:$0xff] %vm1989, %v10427
      %10493 = vst.msk [vmem:[%s476 + $0xb0] sm:$0xff] %vm1989, %v10428
      %10494 = vst.msk [vmem:[%s476 + $0xb8] sm:$0xff] %vm1989, %v10429
      %10495 = vst.msk [vmem:[%s476 + $0xc0] sm:$0xff] %vm1989, %v10430
      %10496 = vst.msk [vmem:[%s476 + $0xc8] sm:$0xff] %vm1989, %v10431
      %10497 = vst.msk [vmem:[%s476 + $0xd0] sm:$0xff] %vm1989, %v10432
      %10498 = vst.msk [vmem:[%s476 + $0xd8] sm:$0xff] %vm1989, %v10433
      %10499 = vst.msk [vmem:[%s476 + $0xe0] sm:$0xff] %vm1989, %v10434
      %10500 = vst.msk [vmem:[%s476 + $0xe8] sm:$0xff] %vm1989, %v10435
      %10501 = vst.msk [vmem:[%s476 + $0xf0] sm:$0xff] %vm1989, %v10436
      %10502 = vst.msk [vmem:[%s476 + $0xf8] sm:$0xff] %vm1989, %v10437
      %p10503 = scmp.lt.s32.totalorder %s28, 1
      %s10504 = scalar_select %p10503, %s28, 1
      %p10505 = scmp.lt.s32.totalorder %s29, 3
      %s10506 = scalar_select %p10505, %s29, 3
      %s10507 = smul.addr %s10506, 32
      %s10508 = smul.addr %s10504, 128
      %s10509 = sadd.s32 %s10507, %s10508
      %s10510 = smul.addr %s10509, 8
      %s10511 = scalar_lea.vmem %s13, %s10510
      // Predicated region
      $region77: #{convgru_encoder_block.1} parent=71 // pred_check
        %p10512 = pneg %p336
      $region78: #{convgru_encoder_block.1} parent=71 // pred_check_branch
        %10514 = sbr.rel (%p10512) target = $region80
      $region79: #{convgru_encoder_block.1} parent=71 // pred_region
        _
      $region80: #{convgru_encoder_block.1} parent=71 // pred_fallthru
        _
    $region72: #{convgru_encoder_block.1} parent=5 // pred_fallthru
      _
    %p10515 = scmp.le.s32.totalorder 2, %s19
    // Predicated region
    $region81: #{convgru_encoder_block.1} parent=5 // pred_check
      %p10516 = pneg %p10515
    $region82: #{convgru_encoder_block.1} parent=5 // pred_check_branch
      %10518 = sbr.rel (%p10516) target = $region84
    $region83: #{convgru_encoder_block.1} parent=5 // pred_region
      %s10519 = ssub.s32 %s19, 2
      // Predicated region
      $region85: #{convgru_encoder_block.1} parent=83 // pred_check
        %p10520 = pneg %p342
      $region86: #{convgru_encoder_block.1} parent=83 // pred_check_branch
        %10522 = sbr.rel (%p10520) target = $region88
      $region87: #{convgru_encoder_block.1} parent=83 // pred_region
        %p10523 = scmp.lt.s32.totalorder %s30, 1
        %s10524 = scalar_select %p10523, %s30, 1
        %p10525 = scmp.lt.s32.totalorder %s31, 3
        %s10526 = scalar_select %p10525, %s31, 3
        %s10527 = smul.addr %s10526, 32
        %s10528 = smul.addr %s10524, 128
        %s10529 = sadd.s32 %s10527, %s10528
        %s10530 = smul.addr %s10529, 8
        %s10531 = scalar_lea.vmem %s13, %s10530
      $region88: #{convgru_encoder_block.1} parent=83 // pred_fallthru
        _
    $region84: #{convgru_encoder_block.1} parent=5 // pred_fallthru
      _
  $region6: #{convgru_encoder_block.1} parent=0 // loop_footer
    %s23 = sadd.s32 1, %s19
  $region7: #{convgru_encoder_block.1} parent=0 // loop_footer_branch
    %18 = sbr.rel target = $region3
  $region8: #{convgru_encoder_block.1} parent=0 // loop_exit
    _

</llo_original>
